<compile_context>
chip_gen: v5e
topology: v5e:2x2
jax: 0.10.0
libtpu: 0.0.40
codegen_flags: <defaults>
</compile_context>

<pallas_src>
import functools

import jax
import jax.numpy as jnp
from jax.experimental import pallas as pl
from jax.experimental.pallas import tpu as pltpu

LANE = 128
CONV1_CIN_PAD = 32      # conv1 input channels padded 3 -> 32 (lane/K density)
LEFT_PAD = 8            # left spatial pad: keeps interior stores sublane-aligned


def _round_up(n: int, m: int = LANE) -> int:
    return ((n + m - 1) // m) * m


# ------------------------------ kernel helpers ------------------------------ #

def _conv_relu_hpool(in_ref, w_ref, b_ref, pool_ref, *, Bt, H, W, Cin, Cout):
    """3x3 'same' conv + bias + ReLU + 2x1 (H-direction) max-pool.

    in_ref : (Bt, H+2, >= W+16, Cin) zero-padded buffer, data at [1:H+1, 8:8+W]
    w_ref  : (9, Cin, Cout), k = kh*3 + kw
    b_ref  : (1, Cout)
    pool_ref[0:Bt*(H//2), 0:W, 0:Cout] <- H-pooled activations,
        row = b*(H//2) + i//2, col = j.  Returns number of rows written.
    """
    Ho = H // 2
    R = Bt * Ho

    # One width-shifted slab per kw (sublane offsets 7/8/9 -> only two are
    # unaligned).  kh offsets below are free major-dim slices of these values,
    # and every reshape feeding the MXU is layout-trivial (W % 8 == 0).
    taps = [in_ref[:, :, LEFT_PAD - 1 + kw:LEFT_PAD - 1 + kw + W, :]
            for kw in range(3)]                                   # (Bt,H+2,W,Cin)

    acc = None
    for kh in range(3):
        for kw in range(3):
            x = taps[kw][:, kh:kh + H, :, :].reshape(Bt * H * W, Cin)
            z = jnp.dot(x, w_ref[kh * 3 + kw],
                        preferred_element_type=jnp.float32)
            acc = z if acc is None else acc + z
    y = jnp.maximum(acc + b_ref[...], 0.0)                        # (Bt*H*W, Cout)

    # H-direction pool: rows 2i vs 2i+1 via an aligned reshape (2W % 8 == 0).
    y3 = y.reshape(R, 2 * W, Cout)
    yh = jnp.maximum(y3[:, :W, :], y3[:, W:, :])                  # (R, W, Cout)

    pool_ref[pl.ds(0, R), pl.ds(0, W), pl.ds(0, Cout)] = yh
    return R


def _wpool(pool_ref, *, R, W, Cout):
    """W-direction pool: strided-sublane reads (cols 2j vs 2j+1) + max."""
    Wo = W // 2
    ev = pool_ref[pl.ds(0, R), pl.ds(0, Wo, stride=2), pl.ds(0, Cout)]
    od = pool_ref[pl.ds(0, R), pl.ds(1, Wo, stride=2), pl.ds(0, Cout)]
    return jnp.maximum(ev, od)                                    # (R, Wo, Cout)


# --------------------------------- kernel ----------------------------------- #

def _cifar_fused_kernel(x_ref, c1w, c1b, c2w, c2b, c3w, c3b,
                        f1w, f1b, f2w, f2b, f3w, f3b,
                        o_ref, buf2, buf3, pool, *, Bt, H1, W1):
    H2, W2 = H1 // 2, W1 // 2
    H3, W3 = H2 // 2, W2 // 2
    Ho3, Wo3 = H3 // 2, W3 // 2

    c0p = x_ref.shape[-1]
    c1p = c1w.shape[-1]
    c2p = c2w.shape[-1]
    c3p = c3w.shape[-1]

    # Re-establish the zero halo of the next-stage buffers every step (scratch
    # is per-core / persistent; interiors are overwritten, borders must be 0).
    buf2[...] = jnp.zeros_like(buf2)
    buf3[...] = jnp.zeros_like(buf3)

    # ---- stage 1: conv1 + ReLU + 2x2 pool ----------------------------------
    R1 = _conv_relu_hpool(x_ref, c1w, c1b, pool,
                          Bt=Bt, H=H1, W=W1, Cin=c0p, Cout=c1p)
    p1 = _wpool(pool, R=R1, W=W1, Cout=c1p)                       # (Bt*H2,W2,c1p)
    buf2[:, 1:1 + H2, LEFT_PAD:LEFT_PAD + W2, :] = p1.reshape(Bt, H2, W2, c1p)

    # ---- stage 2: conv2 + ReLU + 2x2 pool -----------------------------------
    R2 = _conv_relu_hpool(buf2, c2w, c2b, pool,
                          Bt=Bt, H=H2, W=W2, Cin=c1p, Cout=c2p)
    p2 = _wpool(pool, R=R2, W=W2, Cout=c2p)                       # (Bt*H3,W3,c2p)
    buf3[:, 1:1 + H3, LEFT_PAD:LEFT_PAD + W3, :] = p2.reshape(Bt, H3, W3, c2p)

    # ---- stage 3: conv3 + ReLU + H-pool (W-pool fused into fc1 below) -------
    _conv_relu_hpool(buf3, c3w, c3b, pool,
                     Bt=Bt, H=H3, W=W3, Cin=c2p, Cout=c3p)

    # ---- fc1: contract over the 16 pooled spatial positions ----------------
    # pool rows for stage 3: r = b*Ho3 + io; cols 2*jo / 2*jo+1 are the
    # W-pool pair for output position (io, jo).
    acc1 = None
    for io in range(Ho3):
        for jo in range(Wo3):
            pair = pool[pl.ds(io, Bt, stride=Ho3),
                        pl.ds(2 * jo, 2),
                        pl.ds(0, c3p)]                            # (Bt, 2, c3p)
            v = jnp.maximum(pair[:, 0, :], pair[:, 1, :])         # (Bt, c3p)
            z = jnp.dot(v, f1w[io * Wo3 + jo],
                        preferred_element_type=jnp.float32)
            acc1 = z if acc1 is None else acc1 + z
    h = jnp.maximum(acc1 + f1b[...], 0.0)                         # (Bt, f1p)

    # ---- fc2 + ReLU, fc3 -----------------------------------------------------
    h = jnp.maximum(jnp.dot(h, f2w[...],
                            preferred_element_type=jnp.float32) + f2b[...], 0.0)
    out = jnp.dot(h, f3w[...], preferred_element_type=jnp.float32) + f3b[...]
    o_ref[0] = out.astype(o_ref.dtype)                            # (Bt, ncp)


# --------------------------------- wrapper ----------------------------------- #

def _pick_bt(B):
    """Largest batch tile <= 4 that divides B while keeping >= 2 grid steps."""
    for bt in (4, 2, 1):
        if B % bt == 0 and B // bt >= 2:
            return bt
    return 1


def cifar_cnn_forward(x_nchw, p, num_classes=10):
    """Matches CifarCNN.forward. x_nchw: (B, 3, 32, 32) float32."""
    B, cin, H1, W1 = x_nchw.shape
    c0p = p["conv1_w"].shape[1]
    c1p = p["conv1_w"].shape[2]
    c2p = p["conv2_w"].shape[2]
    c3p = p["conv3_w"].shape[2]
    ncp = p["fc3_w"].shape[1]
    H2, W2, H3, W3 = H1 // 2, W1 // 2, H1 // 4, W1 // 4
    cmax = max(c1p, c2p, c3p)

    # Only remaining XLA glue: NCHW->NHWC once and one pad of the tiny raw
    # input (spatial halo + channel pad 3->32 for lane/K density).
    x = jnp.transpose(x_nchw, (0, 2, 3, 1))
    xb = jnp.pad(x, ((0, 0), (1, 1), (LEFT_PAD, LEFT_PAD), (0, c0p - cin)))

    Bt = _pick_bt(B)
    nblk = B // Bt

    kernel = functools.partial(_cifar_fused_kernel, Bt=Bt, H1=H1, W1=W1)

    out = pl.pallas_call(
        kernel,
        out_shape=jax.ShapeDtypeStruct((nblk, Bt, ncp), jnp.float32),
        grid=(nblk,),
        in_specs=[
            pl.BlockSpec((Bt, H1 + 2, W1 + 2 * LEFT_PAD, c0p),
                         lambda i: (i, 0, 0, 0)),
            pl.BlockSpec(p["conv1_w"].shape, lambda i: (0, 0, 0)),
            pl.BlockSpec(p["conv1_b"].shape, lambda i: (0, 0)),
            pl.BlockSpec(p["conv2_w"].shape, lambda i: (0, 0, 0)),
            pl.BlockSpec(p["conv2_b"].shape, lambda i: (0, 0)),
            pl.BlockSpec(p["conv3_w"].shape, lambda i: (0, 0, 0)),
            pl.BlockSpec(p["conv3_b"].shape, lambda i: (0, 0)),
            pl.BlockSpec(p["fc1_w"].shape, lambda i: (0, 0, 0)),
            pl.BlockSpec(p["fc1_b"].shape, lambda i: (0, 0)),
            pl.BlockSpec(p["fc2_w"].shape, lambda i: (0, 0)),
            pl.BlockSpec(p["fc2_b"].shape, lambda i: (0, 0)),
            pl.BlockSpec(p["fc3_w"].shape, lambda i: (0, 0)),
            pl.BlockSpec(p["fc3_b"].shape, lambda i: (0, 0)),
        ],
        out_specs=pl.BlockSpec((1, Bt, ncp), lambda i: (i, 0, 0)),
        scratch_shapes=[
            pltpu.VMEM((Bt, H2 + 2, W2 + 2 * LEFT_PAD, c1p), jnp.float32),  # buf2
            pltpu.VMEM((Bt, H3 + 2, W3 + 2 * LEFT_PAD, c2p), jnp.float32),  # buf3
            pltpu.VMEM((Bt * H2, W1, cmax), jnp.float32),                   # pool
        ],
        compiler_params=pltpu.CompilerParams(
            dimension_semantics=("parallel",)),
    )(xb, p["conv1_w"], p["conv1_b"], p["conv2_w"], p["conv2_b"],
      p["conv3_w"], p["conv3_b"], p["fc1_w"], p["fc1_b"],
      p["fc2_w"], p["fc2_b"], p["fc3_w"], p["fc3_b"])

    return out.reshape(B, ncp)[:, :num_classes]


# --------------------------- parameter preparation -------------------------- #

def init_params(key, num_classes=10, width_factor=0.25):
    """Raw parameters in the PyTorch CifarCNN layout (OIHW convs, (out,in) fcs)."""
    c1 = int(64 * width_factor)
    c2 = int(128 * width_factor)
    c3 = int(128 * width_factor)
    f1 = int(512 * width_factor)
    f2 = int(256 * width_factor)
    ks = jax.random.split(key, 12)
    n = jax.random.normal
    return {
        "conv1_w": 0.05 * n(ks[0], (c1, 3, 3, 3), jnp.float32),
        "conv1_b": 0.05 * n(ks[1], (c1,), jnp.float32),
        "conv2_w": 0.05 * n(ks[2], (c2, c1, 3, 3), jnp.float32),
        "conv2_b": 0.05 * n(ks[3], (c2,), jnp.float32),
        "conv3_w": 0.05 * n(ks[4], (c3, c2, 3, 3), jnp.float32),
        "conv3_b": 0.05 * n(ks[5], (c3,), jnp.float32),
        "fc1_w": 0.05 * n(ks[6], (f1, c3 * 4 * 4), jnp.float32),
        "fc1_b": 0.05 * n(ks[7], (f1,), jnp.float32),
        "fc2_w": 0.05 * n(ks[8], (f2, f1), jnp.float32),
        "fc2_b": 0.05 * n(ks[9], (f2,), jnp.float32),
        "fc3_w": 0.05 * n(ks[10], (num_classes, f2), jnp.float32),
        "fc3_b": 0.05 * n(ks[11], (num_classes,), jnp.float32),
    }


def _prep_conv(w_oihw, b, cin_pad, cout_pad):
    """OIHW conv weight -> (9, cin_pad, cout_pad); bias -> (1, cout_pad)."""
    cout, cin, _, _ = w_oihw.shape
    w9 = jnp.transpose(w_oihw, (2, 3, 1, 0)).reshape(9, cin, cout)
    w9p = jnp.zeros((9, cin_pad, cout_pad), jnp.float32).at[:, :cin, :cout].set(w9)
    bp = jnp.zeros((1, cout_pad), jnp.float32).at[0, :cout].set(b)
    return w9p, bp


def _prep_fc(w_oi, b, in_pad, out_pad):
    """(out,in) fc weight -> (in_pad, out_pad); bias -> (1, out_pad)."""
    out_f, in_f = w_oi.shape
    wt = jnp.zeros((in_pad, out_pad), jnp.float32).at[:in_f, :out_f].set(w_oi.T)
    bp = jnp.zeros((1, out_pad), jnp.float32).at[0, :out_f].set(b)
    return wt, bp


def prepare_params(params, num_classes=10):
    """One-time re-layout / zero-padding of PyTorch-style params.

    Padded lanes stay exactly zero through the whole net (zero weights and
    biases, relu(0)=0, max-pool of zeros = 0), so numerics match the unpadded
    PyTorch model; the final logits are sliced back to num_classes.
    """
    c1 = params["conv1_w"].shape[0]
    c2 = params["conv2_w"].shape[0]
    c3 = params["conv3_w"].shape[0]
    f1 = params["fc1_w"].shape[0]
    f2 = params["fc2_w"].shape[0]
    c1p, c2p, c3p = _round_up(c1), _round_up(c2), _round_up(c3)
    f1p, f2p, ncp = _round_up(f1), _round_up(f2), _round_up(num_classes)

    p = {}
    p["conv1_w"], p["conv1_b"] = _prep_conv(params["conv1_w"], params["conv1_b"],
                                            CONV1_CIN_PAD, c1p)
    p["conv2_w"], p["conv2_b"] = _prep_conv(params["conv2_w"], params["conv2_b"],
                                            c1p, c2p)
    p["conv3_w"], p["conv3_b"] = _prep_conv(params["conv3_w"], params["conv3_b"],
                                            c2p, c3p)

    # fc1: PyTorch flattens NCHW (col = c*16 + io*4 + jo); the kernel consumes
    # it as 16 per-spatial-position (c3p, f1p) matrices indexed by q = io*4+jo,
    # so the permutation and channel padding are baked in here.
    w1 = params["fc1_w"]                         # (f1, c3*16)
    sp = w1.shape[1] // c3                       # 16 spatial positions
    w1 = w1.reshape(f1, c3, sp)                  # [n, c, q]
    w1 = jnp.transpose(w1, (2, 1, 0))            # [q, c, n]
    p["fc1_w"] = jnp.zeros((sp, c3p, f1p), jnp.float32).at[:, :c3, :f1].set(w1)
    p["fc1_b"] = jnp.zeros((1, f1p), jnp.float32).at[0, :f1].set(params["fc1_b"])

    p["fc2_w"], p["fc2_b"] = _prep_fc(params["fc2_w"], params["fc2_b"], f1p, f2p)
    p["fc3_w"], p["fc3_b"] = _prep_fc(params["fc3_w"], params["fc3_b"], f2p, ncp)
    return p


# ----------------------------------- main ------------------------------------ #

if __name__ == "__main__":
    key = jax.random.PRNGKey(0)
    k_params, k_x = jax.random.split(key)

    # CIFAR geometry (32x32 spatial) is required by fc1's in-features
    # (= int(128*wf) * 4 * 4).  batch=2, width_factor=0.25 keeps it small.
    num_classes = 10
    raw = init_params(k_params, num_classes=num_classes, width_factor=0.25)
    prepped = prepare_params(raw, num_classes=num_classes)

    x = jax.random.normal(k_x, (2, 3, 32, 32), jnp.float32)

    fwd = jax.jit(cifar_cnn_forward, static_argnames=("num_classes",))
    out = fwd(x, prepped, num_classes=num_classes)
    out = jax.block_until_ready(out)
    assert out.shape == (2, num_classes), out.shape
    print("KERNEL_OK")
</pallas_src>

<mosaic_0001>
module attributes {stable_mosaic.version = 11 : i64} {
  func.func @_cifar_fused_kernel(%arg0: i32, %arg1: memref<1x34x48x32xf32, #tpu.memory_space<vmem>>, %arg2: memref<9x32x128xf32, #tpu.memory_space<vmem>>, %arg3: memref<1x128xf32, #tpu.memory_space<vmem>>, %arg4: memref<9x128x128xf32, #tpu.memory_space<vmem>>, %arg5: memref<1x128xf32, #tpu.memory_space<vmem>>, %arg6: memref<9x128x128xf32, #tpu.memory_space<vmem>>, %arg7: memref<1x128xf32, #tpu.memory_space<vmem>>, %arg8: memref<16x128x128xf32, #tpu.memory_space<vmem>>, %arg9: memref<1x128xf32, #tpu.memory_space<vmem>>, %arg10: memref<128x128xf32, #tpu.memory_space<vmem>>, %arg11: memref<1x128xf32, #tpu.memory_space<vmem>>, %arg12: memref<128x128xf32, #tpu.memory_space<vmem>>, %arg13: memref<1x128xf32, #tpu.memory_space<vmem>>, %arg14: memref<1x1x128xf32, #tpu.memory_space<vmem>>, %arg15: memref<1x18x32x128xf32, #tpu.memory_space<vmem>>, %arg16: memref<1x10x24x128xf32, #tpu.memory_space<vmem>>, %arg17: memref<16x32x128xf32, #tpu.memory_space<vmem>>) attributes {dimension_semantics = [#tpu.dimension_semantics<parallel>], iteration_bounds = array<i64: 2>, scalar_prefetch = 0 : i64, scratch_operands = 3 : i64, tpu.core_type = #tpu.core_type<tc>, window_params = [{transform_indices = @transform_0, window_bounds = array<i64: 1, 34, 48, 32>}, {pipeline_mode = #tpu.pipeline_mode<synchronous>, transform_indices = @transform_1, window_bounds = array<i64: 9, 32, 128>}, {pipeline_mode = #tpu.pipeline_mode<synchronous>, transform_indices = @transform_2, window_bounds = array<i64: 1, 128>}, {pipeline_mode = #tpu.pipeline_mode<synchronous>, transform_indices = @transform_3, window_bounds = array<i64: 9, 128, 128>}, {pipeline_mode = #tpu.pipeline_mode<synchronous>, transform_indices = @transform_4, window_bounds = array<i64: 1, 128>}, {pipeline_mode = #tpu.pipeline_mode<synchronous>, transform_indices = @transform_5, window_bounds = array<i64: 9, 128, 128>}, {pipeline_mode = #tpu.pipeline_mode<synchronous>, transform_indices = @transform_6, window_bounds = array<i64: 1, 128>}, {pipeline_mode = #tpu.pipeline_mode<synchronous>, transform_indices = @transform_7, window_bounds = array<i64: 16, 128, 128>}, {pipeline_mode = #tpu.pipeline_mode<synchronous>, transform_indices = @transform_8, window_bounds = array<i64: 1, 128>}, {pipeline_mode = #tpu.pipeline_mode<synchronous>, transform_indices = @transform_9, window_bounds = array<i64: 128, 128>}, {pipeline_mode = #tpu.pipeline_mode<synchronous>, transform_indices = @transform_10, window_bounds = array<i64: 1, 128>}, {pipeline_mode = #tpu.pipeline_mode<synchronous>, transform_indices = @transform_11, window_bounds = array<i64: 128, 128>}, {pipeline_mode = #tpu.pipeline_mode<synchronous>, transform_indices = @transform_12, window_bounds = array<i64: 1, 128>}, {transform_indices = @transform_13, window_bounds = array<i64: 1, 1, 128>}]} {
    %cst = arith.constant 0.000000e+00 : f32
    %0 = vector.broadcast %cst : f32 to vector<1x18x32x128xf32>
    %c0 = arith.constant 0 : index
    %c0_0 = arith.constant 0 : index
    %c0_1 = arith.constant 0 : index
    %c0_2 = arith.constant 0 : index
    %1 = vector.load %arg15[%c0, %c0_0, %c0_1, %c0_2] : memref<1x18x32x128xf32, #tpu.memory_space<vmem>>, vector<1x18x32x128xf32>
    tpu.vector_store %arg15[%c0, %c0_0, %c0_1, %c0_2], %0 {strides = array<i32>} : memref<1x18x32x128xf32, #tpu.memory_space<vmem>>, vector<1x18x32x128xf32>,
    %cst_3 = arith.constant 0.000000e+00 : f32
    %2 = vector.broadcast %cst_3 : f32 to vector<1x10x24x128xf32>
    %c0_4 = arith.constant 0 : index
    %c0_5 = arith.constant 0 : index
    %c0_6 = arith.constant 0 : index
    %c0_7 = arith.constant 0 : index
    %3 = vector.load %arg16[%c0_4, %c0_5, %c0_6, %c0_7] : memref<1x10x24x128xf32, #tpu.memory_space<vmem>>, vector<1x10x24x128xf32>
    tpu.vector_store %arg16[%c0_4, %c0_5, %c0_6, %c0_7], %2 {strides = array<i32>} : memref<1x10x24x128xf32, #tpu.memory_space<vmem>>, vector<1x10x24x128xf32>,
    %c0_8 = arith.constant 0 : index
    %c0_9 = arith.constant 0 : index
    %c7 = arith.constant 7 : index
    %c0_10 = arith.constant 0 : index
    %4 = vector.load %arg1[%c0_8, %c0_9, %c7, %c0_10] : memref<1x34x48x32xf32, #tpu.memory_space<vmem>>, vector<1x34x32x32xf32>
    %c0_11 = arith.constant 0 : index
    %c0_12 = arith.constant 0 : index
    %c8 = arith.constant 8 : index
    %c0_13 = arith.constant 0 : index
    %5 = vector.load %arg1[%c0_11, %c0_12, %c8, %c0_13] : memref<1x34x48x32xf32, #tpu.memory_space<vmem>>, vector<1x34x32x32xf32>
    %c0_14 = arith.constant 0 : index
    %c0_15 = arith.constant 0 : index
    %c9 = arith.constant 9 : index
    %c0_16 = arith.constant 0 : index
    %6 = vector.load %arg1[%c0_14, %c0_15, %c9, %c0_16] : memref<1x34x48x32xf32, #tpu.memory_space<vmem>>, vector<1x34x32x32xf32>
    %7 = vector.extract_strided_slice %4 {offsets = [0, 0, 0, 0], sizes = [1, 32, 32, 32], strides = [1, 1, 1, 1]} : vector<1x34x32x32xf32> to vector<1x32x32x32xf32>
    %8 = vector.shape_cast %7 : vector<1x32x32x32xf32> to vector<1024x32xf32>
    %c0_17 = arith.constant 0 : index
    %c0_18 = arith.constant 0 : index
    %c0_19 = arith.constant 0 : index
    %9 = vector.load %arg2[%c0_17, %c0_18, %c0_19] : memref<9x32x128xf32, #tpu.memory_space<vmem>>, vector<1x32x128xf32>
    %10 = vector.shape_cast %9 : vector<1x32x128xf32> to vector<32x128xf32>
    %cst_20 = arith.constant dense<0.000000e+00> : vector<1024x128xf32>
    %11 = tpu.matmul %8, %10, %cst_20 {dimension_numbers = #tpu.dot_dimension_numbers<[1], [0], [0], [1], [0, 0, 1, 1], [], []>} : vector<1024x32xf32>, vector<32x128xf32>, vector<1024x128xf32> -> vector<1024x128xf32>
    %12 = vector.extract_strided_slice %5 {offsets = [0, 0, 0, 0], sizes = [1, 32, 32, 32], strides = [1, 1, 1, 1]} : vector<1x34x32x32xf32> to vector<1x32x32x32xf32>
    %13 = vector.shape_cast %12 : vector<1x32x32x32xf32> to vector<1024x32xf32>
    %c1 = arith.constant 1 : index
    %c0_21 = arith.constant 0 : index
    %c0_22 = arith.constant 0 : index
    %14 = vector.load %arg2[%c1, %c0_21, %c0_22] : memref<9x32x128xf32, #tpu.memory_space<vmem>>, vector<1x32x128xf32>
    %15 = vector.shape_cast %14 : vector<1x32x128xf32> to vector<32x128xf32>
    %cst_23 = arith.constant dense<0.000000e+00> : vector<1024x128xf32>
    %16 = tpu.matmul %13, %15, %cst_23 {dimension_numbers = #tpu.dot_dimension_numbers<[1], [0], [0], [1], [0, 0, 1, 1], [], []>} : vector<1024x32xf32>, vector<32x128xf32>, vector<1024x128xf32> -> vector<1024x128xf32>
    %17 = arith.addf %11, %16 : vector<1024x128xf32>
    %18 = vector.extract_strided_slice %6 {offsets = [0, 0, 0, 0], sizes = [1, 32, 32, 32], strides = [1, 1, 1, 1]} : vector<1x34x32x32xf32> to vector<1x32x32x32xf32>
    %19 = vector.shape_cast %18 : vector<1x32x32x32xf32> to vector<1024x32xf32>
    %c2 = arith.constant 2 : index
    %c0_24 = arith.constant 0 : index
    %c0_25 = arith.constant 0 : index
    %20 = vector.load %arg2[%c2, %c0_24, %c0_25] : memref<9x32x128xf32, #tpu.memory_space<vmem>>, vector<1x32x128xf32>
    %21 = vector.shape_cast %20 : vector<1x32x128xf32> to vector<32x128xf32>
    %cst_26 = arith.constant dense<0.000000e+00> : vector<1024x128xf32>
    %22 = tpu.matmul %19, %21, %cst_26 {dimension_numbers = #tpu.dot_dimension_numbers<[1], [0], [0], [1], [0, 0, 1, 1], [], []>} : vector<1024x32xf32>, vector<32x128xf32>, vector<1024x128xf32> -> vector<1024x128xf32>
    %23 = arith.addf %17, %22 : vector<1024x128xf32>
    %24 = vector.extract_strided_slice %4 {offsets = [0, 1, 0, 0], sizes = [1, 32, 32, 32], strides = [1, 1, 1, 1]} : vector<1x34x32x32xf32> to vector<1x32x32x32xf32>
    %25 = vector.shape_cast %24 : vector<1x32x32x32xf32> to vector<1024x32xf32>
    %c3 = arith.constant 3 : index
    %c0_27 = arith.constant 0 : index
    %c0_28 = arith.constant 0 : index
    %26 = vector.load %arg2[%c3, %c0_27, %c0_28] : memref<9x32x128xf32, #tpu.memory_space<vmem>>, vector<1x32x128xf32>
    %27 = vector.shape_cast %26 : vector<1x32x128xf32> to vector<32x128xf32>
    %cst_29 = arith.constant dense<0.000000e+00> : vector<1024x128xf32>
    %28 = tpu.matmul %25, %27, %cst_29 {dimension_numbers = #tpu.dot_dimension_numbers<[1], [0], [0], [1], [0, 0, 1, 1], [], []>} : vector<1024x32xf32>, vector<32x128xf32>, vector<1024x128xf32> -> vector<1024x128xf32>
    %29 = arith.addf %23, %28 : vector<1024x128xf32>
    %30 = vector.extract_strided_slice %5 {offsets = [0, 1, 0, 0], sizes = [1, 32, 32, 32], strides = [1, 1, 1, 1]} : vector<1x34x32x32xf32> to vector<1x32x32x32xf32>
    %31 = vector.shape_cast %30 : vector<1x32x32x32xf32> to vector<1024x32xf32>
    %c4 = arith.constant 4 : index
    %c0_30 = arith.constant 0 : index
    %c0_31 = arith.constant 0 : index
    %32 = vector.load %arg2[%c4, %c0_30, %c0_31] : memref<9x32x128xf32, #tpu.memory_space<vmem>>, vector<1x32x128xf32>
    %33 = vector.shape_cast %32 : vector<1x32x128xf32> to vector<32x128xf32>
    %cst_32 = arith.constant dense<0.000000e+00> : vector<1024x128xf32>
    %34 = tpu.matmul %31, %33, %cst_32 {dimension_numbers = #tpu.dot_dimension_numbers<[1], [0], [0], [1], [0, 0, 1, 1], [], []>} : vector<1024x32xf32>, vector<32x128xf32>, vector<1024x128xf32> -> vector<1024x128xf32>
    %35 = arith.addf %29, %34 : vector<1024x128xf32>
    %36 = vector.extract_strided_slice %6 {offsets = [0, 1, 0, 0], sizes = [1, 32, 32, 32], strides = [1, 1, 1, 1]} : vector<1x34x32x32xf32> to vector<1x32x32x32xf32>
    %37 = vector.shape_cast %36 : vector<1x32x32x32xf32> to vector<1024x32xf32>
    %c5 = arith.constant 5 : index
    %c0_33 = arith.constant 0 : index
    %c0_34 = arith.constant 0 : index
    %38 = vector.load %arg2[%c5, %c0_33, %c0_34] : memref<9x32x128xf32, #tpu.memory_space<vmem>>, vector<1x32x128xf32>
    %39 = vector.shape_cast %38 : vector<1x32x128xf32> to vector<32x128xf32>
    %cst_35 = arith.constant dense<0.000000e+00> : vector<1024x128xf32>
    %40 = tpu.matmul %37, %39, %cst_35 {dimension_numbers = #tpu.dot_dimension_numbers<[1], [0], [0], [1], [0, 0, 1, 1], [], []>} : vector<1024x32xf32>, vector<32x128xf32>, vector<1024x128xf32> -> vector<1024x128xf32>
    %41 = arith.addf %35, %40 : vector<1024x128xf32>
    %42 = vector.extract_strided_slice %4 {offsets = [0, 2, 0, 0], sizes = [1, 32, 32, 32], strides = [1, 1, 1, 1]} : vector<1x34x32x32xf32> to vector<1x32x32x32xf32>
    %43 = vector.shape_cast %42 : vector<1x32x32x32xf32> to vector<1024x32xf32>
    %c6 = arith.constant 6 : index
    %c0_36 = arith.constant 0 : index
    %c0_37 = arith.constant 0 : index
    %44 = vector.load %arg2[%c6, %c0_36, %c0_37] : memref<9x32x128xf32, #tpu.memory_space<vmem>>, vector<1x32x128xf32>
    %45 = vector.shape_cast %44 : vector<1x32x128xf32> to vector<32x128xf32>
    %cst_38 = arith.constant dense<0.000000e+00> : vector<1024x128xf32>
    %46 = tpu.matmul %43, %45, %cst_38 {dimension_numbers = #tpu.dot_dimension_numbers<[1], [0], [0], [1], [0, 0, 1, 1], [], []>} : vector<1024x32xf32>, vector<32x128xf32>, vector<1024x128xf32> -> vector<1024x128xf32>
    %47 = arith.addf %41, %46 : vector<1024x128xf32>
    %48 = vector.extract_strided_slice %5 {offsets = [0, 2, 0, 0], sizes = [1, 32, 32, 32], strides = [1, 1, 1, 1]} : vector<1x34x32x32xf32> to vector<1x32x32x32xf32>
    %49 = vector.shape_cast %48 : vector<1x32x32x32xf32> to vector<1024x32xf32>
    %c7_39 = arith.constant 7 : index
    %c0_40 = arith.constant 0 : index
    %c0_41 = arith.constant 0 : index
    %50 = vector.load %arg2[%c7_39, %c0_40, %c0_41] : memref<9x32x128xf32, #tpu.memory_space<vmem>>, vector<1x32x128xf32>
    %51 = vector.shape_cast %50 : vector<1x32x128xf32> to vector<32x128xf32>
    %cst_42 = arith.constant dense<0.000000e+00> : vector<1024x128xf32>
    %52 = tpu.matmul %49, %51, %cst_42 {dimension_numbers = #tpu.dot_dimension_numbers<[1], [0], [0], [1], [0, 0, 1, 1], [], []>} : vector<1024x32xf32>, vector<32x128xf32>, vector<1024x128xf32> -> vector<1024x128xf32>
    %53 = arith.addf %47, %52 : vector<1024x128xf32>
    %54 = vector.extract_strided_slice %6 {offsets = [0, 2, 0, 0], sizes = [1, 32, 32, 32], strides = [1, 1, 1, 1]} : vector<1x34x32x32xf32> to vector<1x32x32x32xf32>
    %55 = vector.shape_cast %54 : vector<1x32x32x32xf32> to vector<1024x32xf32>
    %c8_43 = arith.constant 8 : index
    %c0_44 = arith.constant 0 : index
    %c0_45 = arith.constant 0 : index
    %56 = vector.load %arg2[%c8_43, %c0_44, %c0_45] : memref<9x32x128xf32, #tpu.memory_space<vmem>>, vector<1x32x128xf32>
    %57 = vector.shape_cast %56 : vector<1x32x128xf32> to vector<32x128xf32>
    %cst_46 = arith.constant dense<0.000000e+00> : vector<1024x128xf32>
    %58 = tpu.matmul %55, %57, %cst_46 {dimension_numbers = #tpu.dot_dimension_numbers<[1], [0], [0], [1], [0, 0, 1, 1], [], []>} : vector<1024x32xf32>, vector<32x128xf32>, vector<1024x128xf32> -> vector<1024x128xf32>
    %59 = arith.addf %53, %58 : vector<1024x128xf32>
    %c0_47 = arith.constant 0 : index
    %c0_48 = arith.constant 0 : index
    %60 = vector.load %arg3[%c0_47, %c0_48] : memref<1x128xf32, #tpu.memory_space<vmem>>, vector<1x128xf32>
    %61 = vector.broadcast %60 : vector<1x128xf32> to vector<1024x128xf32>
    %62 = arith.addf %59, %61 : vector<1024x128xf32>
    %cst_49 = arith.constant 0.000000e+00 : f32
    %63 = vector.broadcast %cst_49 : f32 to vector<1024x128xf32>
    %64 = arith.maximumf %62, %63 : vector<1024x128xf32>
    %65 = vector.shape_cast %64 : vector<1024x128xf32> to vector<16x64x128xf32>
    %66 = vector.extract_strided_slice %65 {offsets = [0, 0, 0], sizes = [16, 32, 128], strides = [1, 1, 1]} : vector<16x64x128xf32> to vector<16x32x128xf32>
    %67 = vector.extract_strided_slice %65 {offsets = [0, 32, 0], sizes = [16, 32, 128], strides = [1, 1, 1]} : vector<16x64x128xf32> to vector<16x32x128xf32>
    %68 = arith.maximumf %66, %67 : vector<16x32x128xf32>
    %c0_50 = arith.constant 0 : index
    %c0_51 = arith.constant 0 : index
    %c0_52 = arith.constant 0 : index
    %69 = vector.load %arg17[%c0_50, %c0_51, %c0_52] : memref<16x32x128xf32, #tpu.memory_space<vmem>>, vector<16x32x128xf32>
    tpu.vector_store %arg17[%c0_50, %c0_51, %c0_52], %68 {strides = array<i32>} : memref<16x32x128xf32, #tpu.memory_space<vmem>>, vector<16x32x128xf32>,
    %c0_53 = arith.constant 0 : index
    %c0_54 = arith.constant 0 : index
    %c0_55 = arith.constant 0 : index
    %70 = tpu.strided_load %arg17[%c0_53, %c0_54, %c0_55] {strides = array<i32: 1, 2, 1>} : memref<16x32x128xf32, #tpu.memory_space<vmem>>, vector<16x16x128xf32>
    %c0_56 = arith.constant 0 : index
    %c1_57 = arith.constant 1 : index
    %c0_58 = arith.constant 0 : index
    %71 = tpu.strided_load %arg17[%c0_56, %c1_57, %c0_58] {strides = array<i32: 1, 2, 1>} : memref<16x32x128xf32, #tpu.memory_space<vmem>>, vector<16x16x128xf32>
    %72 = arith.maximumf %70, %71 : vector<16x16x128xf32>
    %73 = vector.shape_cast %72 : vector<16x16x128xf32> to vector<1x16x16x128xf32>
    %c0_59 = arith.constant 0 : index
    %c1_60 = arith.constant 1 : index
    %c8_61 = arith.constant 8 : index
    %c0_62 = arith.constant 0 : index
    %74 = vector.load %arg15[%c0_59, %c1_60, %c8_61, %c0_62] : memref<1x18x32x128xf32, #tpu.memory_space<vmem>>, vector<1x16x16x128xf32>
    tpu.vector_store %arg15[%c0_59, %c1_60, %c8_61, %c0_62], %73 {strides = array<i32>} : memref<1x18x32x128xf32, #tpu.memory_space<vmem>>, vector<1x16x16x128xf32>,
    %c0_63 = arith.constant 0 : index
    %c0_64 = arith.constant 0 : index
    %c7_65 = arith.constant 7 : index
    %c0_66 = arith.constant 0 : index
    %75 = vector.load %arg15[%c0_63, %c0_64, %c7_65, %c0_66] : memref<1x18x32x128xf32, #tpu.memory_space<vmem>>, vector<1x18x16x128xf32>
    %c0_67 = arith.constant 0 : index
    %c0_68 = arith.constant 0 : index
    %c8_69 = arith.constant 8 : index
    %c0_70 = arith.constant 0 : index
    %76 = vector.load %arg15[%c0_67, %c0_68, %c8_69, %c0_70] : memref<1x18x32x128xf32, #tpu.memory_space<vmem>>, vector<1x18x16x128xf32>
    %c0_71 = arith.constant 0 : index
    %c0_72 = arith.constant 0 : index
    %c9_73 = arith.constant 9 : index
    %c0_74 = arith.constant 0 : index
    %77 = vector.load %arg15[%c0_71, %c0_72, %c9_73, %c0_74] : memref<1x18x32x128xf32, #tpu.memory_space<vmem>>, vector<1x18x16x128xf32>
    %78 = vector.extract_strided_slice %75 {offsets = [0, 0, 0, 0], sizes = [1, 16, 16, 128], strides = [1, 1, 1, 1]} : vector<1x18x16x128xf32> to vector<1x16x16x128xf32>
    %79 = vector.shape_cast %78 : vector<1x16x16x128xf32> to vector<256x128xf32>
    %c0_75 = arith.constant 0 : index
    %c0_76 = arith.constant 0 : index
    %c0_77 = arith.constant 0 : index
    %80 = vector.load %arg4[%c0_75, %c0_76, %c0_77] : memref<9x128x128xf32, #tpu.memory_space<vmem>>, vector<1x128x128xf32>
    %81 = vector.shape_cast %80 : vector<1x128x128xf32> to vector<128x128xf32>
    %cst_78 = arith.constant dense<0.000000e+00> : vector<256x128xf32>
    %82 = tpu.matmul %79, %81, %cst_78 {dimension_numbers = #tpu.dot_dimension_numbers<[1], [0], [0], [1], [0, 0, 1, 1], [], []>} : vector<256x128xf32>, vector<128x128xf32>, vector<256x128xf32> -> vector<256x128xf32>
    %83 = vector.extract_strided_slice %76 {offsets = [0, 0, 0, 0], sizes = [1, 16, 16, 128], strides = [1, 1, 1, 1]} : vector<1x18x16x128xf32> to vector<1x16x16x128xf32>
    %84 = vector.shape_cast %83 : vector<1x16x16x128xf32> to vector<256x128xf32>
    %c1_79 = arith.constant 1 : index
    %c0_80 = arith.constant 0 : index
    %c0_81 = arith.constant 0 : index
    %85 = vector.load %arg4[%c1_79, %c0_80, %c0_81] : memref<9x128x128xf32, #tpu.memory_space<vmem>>, vector<1x128x128xf32>
    %86 = vector.shape_cast %85 : vector<1x128x128xf32> to vector<128x128xf32>
    %cst_82 = arith.constant dense<0.000000e+00> : vector<256x128xf32>
    %87 = tpu.matmul %84, %86, %cst_82 {dimension_numbers = #tpu.dot_dimension_numbers<[1], [0], [0], [1], [0, 0, 1, 1], [], []>} : vector<256x128xf32>, vector<128x128xf32>, vector<256x128xf32> -> vector<256x128xf32>
    %88 = arith.addf %82, %87 : vector<256x128xf32>
    %89 = vector.extract_strided_slice %77 {offsets = [0, 0, 0, 0], sizes = [1, 16, 16, 128], strides = [1, 1, 1, 1]} : vector<1x18x16x128xf32> to vector<1x16x16x128xf32>
    %90 = vector.shape_cast %89 : vector<1x16x16x128xf32> to vector<256x128xf32>
    %c2_83 = arith.constant 2 : index
    %c0_84 = arith.constant 0 : index
    %c0_85 = arith.constant 0 : index
    %91 = vector.load %arg4[%c2_83, %c0_84, %c0_85] : memref<9x128x128xf32, #tpu.memory_space<vmem>>, vector<1x128x128xf32>
    %92 = vector.shape_cast %91 : vector<1x128x128xf32> to vector<128x128xf32>
    %cst_86 = arith.constant dense<0.000000e+00> : vector<256x128xf32>
    %93 = tpu.matmul %90, %92, %cst_86 {dimension_numbers = #tpu.dot_dimension_numbers<[1], [0], [0], [1], [0, 0, 1, 1], [], []>} : vector<256x128xf32>, vector<128x128xf32>, vector<256x128xf32> -> vector<256x128xf32>
    %94 = arith.addf %88, %93 : vector<256x128xf32>
    %95 = vector.extract_strided_slice %75 {offsets = [0, 1, 0, 0], sizes = [1, 16, 16, 128], strides = [1, 1, 1, 1]} : vector<1x18x16x128xf32> to vector<1x16x16x128xf32>
    %96 = vector.shape_cast %95 : vector<1x16x16x128xf32> to vector<256x128xf32>
    %c3_87 = arith.constant 3 : index
    %c0_88 = arith.constant 0 : index
    %c0_89 = arith.constant 0 : index
    %97 = vector.load %arg4[%c3_87, %c0_88, %c0_89] : memref<9x128x128xf32, #tpu.memory_space<vmem>>, vector<1x128x128xf32>
    %98 = vector.shape_cast %97 : vector<1x128x128xf32> to vector<128x128xf32>
    %cst_90 = arith.constant dense<0.000000e+00> : vector<256x128xf32>
    %99 = tpu.matmul %96, %98, %cst_90 {dimension_numbers = #tpu.dot_dimension_numbers<[1], [0], [0], [1], [0, 0, 1, 1], [], []>} : vector<256x128xf32>, vector<128x128xf32>, vector<256x128xf32> -> vector<256x128xf32>
    %100 = arith.addf %94, %99 : vector<256x128xf32>
    %101 = vector.extract_strided_slice %76 {offsets = [0, 1, 0, 0], sizes = [1, 16, 16, 128], strides = [1, 1, 1, 1]} : vector<1x18x16x128xf32> to vector<1x16x16x128xf32>
    %102 = vector.shape_cast %101 : vector<1x16x16x128xf32> to vector<256x128xf32>
    %c4_91 = arith.constant 4 : index
    %c0_92 = arith.constant 0 : index
    %c0_93 = arith.constant 0 : index
    %103 = vector.load %arg4[%c4_91, %c0_92, %c0_93] : memref<9x128x128xf32, #tpu.memory_space<vmem>>, vector<1x128x128xf32>
    %104 = vector.shape_cast %103 : vector<1x128x128xf32> to vector<128x128xf32>
    %cst_94 = arith.constant dense<0.000000e+00> : vector<256x128xf32>
    %105 = tpu.matmul %102, %104, %cst_94 {dimension_numbers = #tpu.dot_dimension_numbers<[1], [0], [0], [1], [0, 0, 1, 1], [], []>} : vector<256x128xf32>, vector<128x128xf32>, vector<256x128xf32> -> vector<256x128xf32>
    %106 = arith.addf %100, %105 : vector<256x128xf32>
    %107 = vector.extract_strided_slice %77 {offsets = [0, 1, 0, 0], sizes = [1, 16, 16, 128], strides = [1, 1, 1, 1]} : vector<1x18x16x128xf32> to vector<1x16x16x128xf32>
    %108 = vector.shape_cast %107 : vector<1x16x16x128xf32> to vector<256x128xf32>
    %c5_95 = arith.constant 5 : index
    %c0_96 = arith.constant 0 : index
    %c0_97 = arith.constant 0 : index
    %109 = vector.load %arg4[%c5_95, %c0_96, %c0_97] : memref<9x128x128xf32, #tpu.memory_space<vmem>>, vector<1x128x128xf32>
    %110 = vector.shape_cast %109 : vector<1x128x128xf32> to vector<128x128xf32>
    %cst_98 = arith.constant dense<0.000000e+00> : vector<256x128xf32>
    %111 = tpu.matmul %108, %110, %cst_98 {dimension_numbers = #tpu.dot_dimension_numbers<[1], [0], [0], [1], [0, 0, 1, 1], [], []>} : vector<256x128xf32>, vector<128x128xf32>, vector<256x128xf32> -> vector<256x128xf32>
    %112 = arith.addf %106, %111 : vector<256x128xf32>
    %113 = vector.extract_strided_slice %75 {offsets = [0, 2, 0, 0], sizes = [1, 16, 16, 128], strides = [1, 1, 1, 1]} : vector<1x18x16x128xf32> to vector<1x16x16x128xf32>
    %114 = vector.shape_cast %113 : vector<1x16x16x128xf32> to vector<256x128xf32>
    %c6_99 = arith.constant 6 : index
    %c0_100 = arith.constant 0 : index
    %c0_101 = arith.constant 0 : index
    %115 = vector.load %arg4[%c6_99, %c0_100, %c0_101] : memref<9x128x128xf32, #tpu.memory_space<vmem>>, vector<1x128x128xf32>
    %116 = vector.shape_cast %115 : vector<1x128x128xf32> to vector<128x128xf32>
    %cst_102 = arith.constant dense<0.000000e+00> : vector<256x128xf32>
    %117 = tpu.matmul %114, %116, %cst_102 {dimension_numbers = #tpu.dot_dimension_numbers<[1], [0], [0], [1], [0, 0, 1, 1], [], []>} : vector<256x128xf32>, vector<128x128xf32>, vector<256x128xf32> -> vector<256x128xf32>
    %118 = arith.addf %112, %117 : vector<256x128xf32>
    %119 = vector.extract_strided_slice %76 {offsets = [0, 2, 0, 0], sizes = [1, 16, 16, 128], strides = [1, 1, 1, 1]} : vector<1x18x16x128xf32> to vector<1x16x16x128xf32>
    %120 = vector.shape_cast %119 : vector<1x16x16x128xf32> to vector<256x128xf32>
    %c7_103 = arith.constant 7 : index
    %c0_104 = arith.constant 0 : index
    %c0_105 = arith.constant 0 : index
    %121 = vector.load %arg4[%c7_103, %c0_104, %c0_105] : memref<9x128x128xf32, #tpu.memory_space<vmem>>, vector<1x128x128xf32>
    %122 = vector.shape_cast %121 : vector<1x128x128xf32> to vector<128x128xf32>
    %cst_106 = arith.constant dense<0.000000e+00> : vector<256x128xf32>
    %123 = tpu.matmul %120, %122, %cst_106 {dimension_numbers = #tpu.dot_dimension_numbers<[1], [0], [0], [1], [0, 0, 1, 1], [], []>} : vector<256x128xf32>, vector<128x128xf32>, vector<256x128xf32> -> vector<256x128xf32>
    %124 = arith.addf %118, %123 : vector<256x128xf32>
    %125 = vector.extract_strided_slice %77 {offsets = [0, 2, 0, 0], sizes = [1, 16, 16, 128], strides = [1, 1, 1, 1]} : vector<1x18x16x128xf32> to vector<1x16x16x128xf32>
    %126 = vector.shape_cast %125 : vector<1x16x16x128xf32> to vector<256x128xf32>
    %c8_107 = arith.constant 8 : index
    %c0_108 = arith.constant 0 : index
    %c0_109 = arith.constant 0 : index
    %127 = vector.load %arg4[%c8_107, %c0_108, %c0_109] : memref<9x128x128xf32, #tpu.memory_space<vmem>>, vector<1x128x128xf32>
    %128 = vector.shape_cast %127 : vector<1x128x128xf32> to vector<128x128xf32>
    %cst_110 = arith.constant dense<0.000000e+00> : vector<256x128xf32>
    %129 = tpu.matmul %126, %128, %cst_110 {dimension_numbers = #tpu.dot_dimension_numbers<[1], [0], [0], [1], [0, 0, 1, 1], [], []>} : vector<256x128xf32>, vector<128x128xf32>, vector<256x128xf32> -> vector<256x128xf32>
    %130 = arith.addf %124, %129 : vector<256x128xf32>
    %c0_111 = arith.constant 0 : index
    %c0_112 = arith.constant 0 : index
    %131 = vector.load %arg5[%c0_111, %c0_112] : memref<1x128xf32, #tpu.memory_space<vmem>>, vector<1x128xf32>
    %132 = vector.broadcast %131 : vector<1x128xf32> to vector<256x128xf32>
    %133 = arith.addf %130, %132 : vector<256x128xf32>
    %cst_113 = arith.constant 0.000000e+00 : f32
    %134 = vector.broadcast %cst_113 : f32 to vector<256x128xf32>
    %135 = arith.maximumf %133, %134 : vector<256x128xf32>
    %136 = vector.shape_cast %135 : vector<256x128xf32> to vector<8x32x128xf32>
    %137 = vector.extract_strided_slice %136 {offsets = [0, 0, 0], sizes = [8, 16, 128], strides = [1, 1, 1]} : vector<8x32x128xf32> to vector<8x16x128xf32>
    %138 = vector.extract_strided_slice %136 {offsets = [0, 16, 0], sizes = [8, 16, 128], strides = [1, 1, 1]} : vector<8x32x128xf32> to vector<8x16x128xf32>
    %139 = arith.maximumf %137, %138 : vector<8x16x128xf32>
    %c0_114 = arith.constant 0 : index
    %c0_115 = arith.constant 0 : index
    %c0_116 = arith.constant 0 : index
    %140 = vector.load %arg17[%c0_114, %c0_115, %c0_116] : memref<16x32x128xf32, #tpu.memory_space<vmem>>, vector<8x16x128xf32>
    tpu.vector_store %arg17[%c0_114, %c0_115, %c0_116], %139 {strides = array<i32>} : memref<16x32x128xf32, #tpu.memory_space<vmem>>, vector<8x16x128xf32>,
    %c0_117 = arith.constant 0 : index
    %c0_118 = arith.constant 0 : index
    %c0_119 = arith.constant 0 : index
    %141 = tpu.strided_load %arg17[%c0_117, %c0_118, %c0_119] {strides = array<i32: 1, 2, 1>} : memref<16x32x128xf32, #tpu.memory_space<vmem>>, vector<8x8x128xf32>
    %c0_120 = arith.constant 0 : index
    %c1_121 = arith.constant 1 : index
    %c0_122 = arith.constant 0 : index
    %142 = tpu.strided_load %arg17[%c0_120, %c1_121, %c0_122] {strides = array<i32: 1, 2, 1>} : memref<16x32x128xf32, #tpu.memory_space<vmem>>, vector<8x8x128xf32>
    %143 = arith.maximumf %141, %142 : vector<8x8x128xf32>
    %144 = vector.shape_cast %143 : vector<8x8x128xf32> to vector<1x8x8x128xf32>
    %c0_123 = arith.constant 0 : index
    %c1_124 = arith.constant 1 : index
    %c8_125 = arith.constant 8 : index
    %c0_126 = arith.constant 0 : index
    %145 = vector.load %arg16[%c0_123, %c1_124, %c8_125, %c0_126] : memref<1x10x24x128xf32, #tpu.memory_space<vmem>>, vector<1x8x8x128xf32>
    tpu.vector_store %arg16[%c0_123, %c1_124, %c8_125, %c0_126], %144 {strides = array<i32>} : memref<1x10x24x128xf32, #tpu.memory_space<vmem>>, vector<1x8x8x128xf32>,
    %c0_127 = arith.constant 0 : index
    %c0_128 = arith.constant 0 : index
    %c7_129 = arith.constant 7 : index
    %c0_130 = arith.constant 0 : index
    %146 = vector.load %arg16[%c0_127, %c0_128, %c7_129, %c0_130] : memref<1x10x24x128xf32, #tpu.memory_space<vmem>>, vector<1x10x8x128xf32>
    %c0_131 = arith.constant 0 : index
    %c0_132 = arith.constant 0 : index
    %c8_133 = arith.constant 8 : index
    %c0_134 = arith.constant 0 : index
    %147 = vector.load %arg16[%c0_131, %c0_132, %c8_133, %c0_134] : memref<1x10x24x128xf32, #tpu.memory_space<vmem>>, vector<1x10x8x128xf32>
    %c0_135 = arith.constant 0 : index
    %c0_136 = arith.constant 0 : index
    %c9_137 = arith.constant 9 : index
    %c0_138 = arith.constant 0 : index
    %148 = vector.load %arg16[%c0_135, %c0_136, %c9_137, %c0_138] : memref<1x10x24x128xf32, #tpu.memory_space<vmem>>, vector<1x10x8x128xf32>
    %149 = vector.extract_strided_slice %146 {offsets = [0, 0, 0, 0], sizes = [1, 8, 8, 128], strides = [1, 1, 1, 1]} : vector<1x10x8x128xf32> to vector<1x8x8x128xf32>
    %150 = vector.shape_cast %149 : vector<1x8x8x128xf32> to vector<64x128xf32>
    %c0_139 = arith.constant 0 : index
    %c0_140 = arith.constant 0 : index
    %c0_141 = arith.constant 0 : index
    %151 = vector.load %arg6[%c0_139, %c0_140, %c0_141] : memref<9x128x128xf32, #tpu.memory_space<vmem>>, vector<1x128x128xf32>
    %152 = vector.shape_cast %151 : vector<1x128x128xf32> to vector<128x128xf32>
    %cst_142 = arith.constant dense<0.000000e+00> : vector<64x128xf32>
    %153 = tpu.matmul %150, %152, %cst_142 {dimension_numbers = #tpu.dot_dimension_numbers<[1], [0], [0], [1], [0, 0, 1, 1], [], []>} : vector<64x128xf32>, vector<128x128xf32>, vector<64x128xf32> -> vector<64x128xf32>
    %154 = vector.extract_strided_slice %147 {offsets = [0, 0, 0, 0], sizes = [1, 8, 8, 128], strides = [1, 1, 1, 1]} : vector<1x10x8x128xf32> to vector<1x8x8x128xf32>
    %155 = vector.shape_cast %154 : vector<1x8x8x128xf32> to vector<64x128xf32>
    %c1_143 = arith.constant 1 : index
    %c0_144 = arith.constant 0 : index
    %c0_145 = arith.constant 0 : index
    %156 = vector.load %arg6[%c1_143, %c0_144, %c0_145] : memref<9x128x128xf32, #tpu.memory_space<vmem>>, vector<1x128x128xf32>
    %157 = vector.shape_cast %156 : vector<1x128x128xf32> to vector<128x128xf32>
    %cst_146 = arith.constant dense<0.000000e+00> : vector<64x128xf32>
    %158 = tpu.matmul %155, %157, %cst_146 {dimension_numbers = #tpu.dot_dimension_numbers<[1], [0], [0], [1], [0, 0, 1, 1], [], []>} : vector<64x128xf32>, vector<128x128xf32>, vector<64x128xf32> -> vector<64x128xf32>
    %159 = arith.addf %153, %158 : vector<64x128xf32>
    %160 = vector.extract_strided_slice %148 {offsets = [0, 0, 0, 0], sizes = [1, 8, 8, 128], strides = [1, 1, 1, 1]} : vector<1x10x8x128xf32> to vector<1x8x8x128xf32>
    %161 = vector.shape_cast %160 : vector<1x8x8x128xf32> to vector<64x128xf32>
    %c2_147 = arith.constant 2 : index
    %c0_148 = arith.constant 0 : index
    %c0_149 = arith.constant 0 : index
    %162 = vector.load %arg6[%c2_147, %c0_148, %c0_149] : memref<9x128x128xf32, #tpu.memory_space<vmem>>, vector<1x128x128xf32>
    %163 = vector.shape_cast %162 : vector<1x128x128xf32> to vector<128x128xf32>
    %cst_150 = arith.constant dense<0.000000e+00> : vector<64x128xf32>
    %164 = tpu.matmul %161, %163, %cst_150 {dimension_numbers = #tpu.dot_dimension_numbers<[1], [0], [0], [1], [0, 0, 1, 1], [], []>} : vector<64x128xf32>, vector<128x128xf32>, vector<64x128xf32> -> vector<64x128xf32>
    %165 = arith.addf %159, %164 : vector<64x128xf32>
    %166 = vector.extract_strided_slice %146 {offsets = [0, 1, 0, 0], sizes = [1, 8, 8, 128], strides = [1, 1, 1, 1]} : vector<1x10x8x128xf32> to vector<1x8x8x128xf32>
    %167 = vector.shape_cast %166 : vector<1x8x8x128xf32> to vector<64x128xf32>
    %c3_151 = arith.constant 3 : index
    %c0_152 = arith.constant 0 : index
    %c0_153 = arith.constant 0 : index
    %168 = vector.load %arg6[%c3_151, %c0_152, %c0_153] : memref<9x128x128xf32, #tpu.memory_space<vmem>>, vector<1x128x128xf32>
    %169 = vector.shape_cast %168 : vector<1x128x128xf32> to vector<128x128xf32>
    %cst_154 = arith.constant dense<0.000000e+00> : vector<64x128xf32>
    %170 = tpu.matmul %167, %169, %cst_154 {dimension_numbers = #tpu.dot_dimension_numbers<[1], [0], [0], [1], [0, 0, 1, 1], [], []>} : vector<64x128xf32>, vector<128x128xf32>, vector<64x128xf32> -> vector<64x128xf32>
    %171 = arith.addf %165, %170 : vector<64x128xf32>
    %172 = vector.extract_strided_slice %147 {offsets = [0, 1, 0, 0], sizes = [1, 8, 8, 128], strides = [1, 1, 1, 1]} : vector<1x10x8x128xf32> to vector<1x8x8x128xf32>
    %173 = vector.shape_cast %172 : vector<1x8x8x128xf32> to vector<64x128xf32>
    %c4_155 = arith.constant 4 : index
    %c0_156 = arith.constant 0 : index
    %c0_157 = arith.constant 0 : index
    %174 = vector.load %arg6[%c4_155, %c0_156, %c0_157] : memref<9x128x128xf32, #tpu.memory_space<vmem>>, vector<1x128x128xf32>
    %175 = vector.shape_cast %174 : vector<1x128x128xf32> to vector<128x128xf32>
    %cst_158 = arith.constant dense<0.000000e+00> : vector<64x128xf32>
    %176 = tpu.matmul %173, %175, %cst_158 {dimension_numbers = #tpu.dot_dimension_numbers<[1], [0], [0], [1], [0, 0, 1, 1], [], []>} : vector<64x128xf32>, vector<128x128xf32>, vector<64x128xf32> -> vector<64x128xf32>
    %177 = arith.addf %171, %176 : vector<64x128xf32>
    %178 = vector.extract_strided_slice %148 {offsets = [0, 1, 0, 0], sizes = [1, 8, 8, 128], strides = [1, 1, 1, 1]} : vector<1x10x8x128xf32> to vector<1x8x8x128xf32>
    %179 = vector.shape_cast %178 : vector<1x8x8x128xf32> to vector<64x128xf32>
    %c5_159 = arith.constant 5 : index
    %c0_160 = arith.constant 0 : index
    %c0_161 = arith.constant 0 : index
    %180 = vector.load %arg6[%c5_159, %c0_160, %c0_161] : memref<9x128x128xf32, #tpu.memory_space<vmem>>, vector<1x128x128xf32>
    %181 = vector.shape_cast %180 : vector<1x128x128xf32> to vector<128x128xf32>
    %cst_162 = arith.constant dense<0.000000e+00> : vector<64x128xf32>
    %182 = tpu.matmul %179, %181, %cst_162 {dimension_numbers = #tpu.dot_dimension_numbers<[1], [0], [0], [1], [0, 0, 1, 1], [], []>} : vector<64x128xf32>, vector<128x128xf32>, vector<64x128xf32> -> vector<64x128xf32>
    %183 = arith.addf %177, %182 : vector<64x128xf32>
    %184 = vector.extract_strided_slice %146 {offsets = [0, 2, 0, 0], sizes = [1, 8, 8, 128], strides = [1, 1, 1, 1]} : vector<1x10x8x128xf32> to vector<1x8x8x128xf32>
    %185 = vector.shape_cast %184 : vector<1x8x8x128xf32> to vector<64x128xf32>
    %c6_163 = arith.constant 6 : index
    %c0_164 = arith.constant 0 : index
    %c0_165 = arith.constant 0 : index
    %186 = vector.load %arg6[%c6_163, %c0_164, %c0_165] : memref<9x128x128xf32, #tpu.memory_space<vmem>>, vector<1x128x128xf32>
    %187 = vector.shape_cast %186 : vector<1x128x128xf32> to vector<128x128xf32>
    %cst_166 = arith.constant dense<0.000000e+00> : vector<64x128xf32>
    %188 = tpu.matmul %185, %187, %cst_166 {dimension_numbers = #tpu.dot_dimension_numbers<[1], [0], [0], [1], [0, 0, 1, 1], [], []>} : vector<64x128xf32>, vector<128x128xf32>, vector<64x128xf32> -> vector<64x128xf32>
    %189 = arith.addf %183, %188 : vector<64x128xf32>
    %190 = vector.extract_strided_slice %147 {offsets = [0, 2, 0, 0], sizes = [1, 8, 8, 128], strides = [1, 1, 1, 1]} : vector<1x10x8x128xf32> to vector<1x8x8x128xf32>
    %191 = vector.shape_cast %190 : vector<1x8x8x128xf32> to vector<64x128xf32>
    %c7_167 = arith.constant 7 : index
    %c0_168 = arith.constant 0 : index
    %c0_169 = arith.constant 0 : index
    %192 = vector.load %arg6[%c7_167, %c0_168, %c0_169] : memref<9x128x128xf32, #tpu.memory_space<vmem>>, vector<1x128x128xf32>
    %193 = vector.shape_cast %192 : vector<1x128x128xf32> to vector<128x128xf32>
    %cst_170 = arith.constant dense<0.000000e+00> : vector<64x128xf32>
    %194 = tpu.matmul %191, %193, %cst_170 {dimension_numbers = #tpu.dot_dimension_numbers<[1], [0], [0], [1], [0, 0, 1, 1], [], []>} : vector<64x128xf32>, vector<128x128xf32>, vector<64x128xf32> -> vector<64x128xf32>
    %195 = arith.addf %189, %194 : vector<64x128xf32>
    %196 = vector.extract_strided_slice %148 {offsets = [0, 2, 0, 0], sizes = [1, 8, 8, 128], strides = [1, 1, 1, 1]} : vector<1x10x8x128xf32> to vector<1x8x8x128xf32>
    %197 = vector.shape_cast %196 : vector<1x8x8x128xf32> to vector<64x128xf32>
    %c8_171 = arith.constant 8 : index
    %c0_172 = arith.constant 0 : index
    %c0_173 = arith.constant 0 : index
    %198 = vector.load %arg6[%c8_171, %c0_172, %c0_173] : memref<9x128x128xf32, #tpu.memory_space<vmem>>, vector<1x128x128xf32>
    %199 = vector.shape_cast %198 : vector<1x128x128xf32> to vector<128x128xf32>
    %cst_174 = arith.constant dense<0.000000e+00> : vector<64x128xf32>
    %200 = tpu.matmul %197, %199, %cst_174 {dimension_numbers = #tpu.dot_dimension_numbers<[1], [0], [0], [1], [0, 0, 1, 1], [], []>} : vector<64x128xf32>, vector<128x128xf32>, vector<64x128xf32> -> vector<64x128xf32>
    %201 = arith.addf %195, %200 : vector<64x128xf32>
    %c0_175 = arith.constant 0 : index
    %c0_176 = arith.constant 0 : index
    %202 = vector.load %arg7[%c0_175, %c0_176] : memref<1x128xf32, #tpu.memory_space<vmem>>, vector<1x128xf32>
    %203 = vector.broadcast %202 : vector<1x128xf32> to vector<64x128xf32>
    %204 = arith.addf %201, %203 : vector<64x128xf32>
    %cst_177 = arith.constant 0.000000e+00 : f32
    %205 = vector.broadcast %cst_177 : f32 to vector<64x128xf32>
    %206 = arith.maximumf %204, %205 : vector<64x128xf32>
    %207 = vector.shape_cast %206 : vector<64x128xf32> to vector<4x16x128xf32>
    %208 = vector.extract_strided_slice %207 {offsets = [0, 0, 0], sizes = [4, 8, 128], strides = [1, 1, 1]} : vector<4x16x128xf32> to vector<4x8x128xf32>
    %209 = vector.extract_strided_slice %207 {offsets = [0, 8, 0], sizes = [4, 8, 128], strides = [1, 1, 1]} : vector<4x16x128xf32> to vector<4x8x128xf32>
    %210 = arith.maximumf %208, %209 : vector<4x8x128xf32>
    %c0_178 = arith.constant 0 : index
    %c0_179 = arith.constant 0 : index
    %c0_180 = arith.constant 0 : index
    %211 = vector.load %arg17[%c0_178, %c0_179, %c0_180] : memref<16x32x128xf32, #tpu.memory_space<vmem>>, vector<4x8x128xf32>
    tpu.vector_store %arg17[%c0_178, %c0_179, %c0_180], %210 {strides = array<i32>} : memref<16x32x128xf32, #tpu.memory_space<vmem>>, vector<4x8x128xf32>,
    %c0_181 = arith.constant 0 : index
    %c0_182 = arith.constant 0 : index
    %c0_183 = arith.constant 0 : index
    %212 = tpu.strided_load %arg17[%c0_181, %c0_182, %c0_183] {strides = array<i32: 4, 1, 1>} : memref<16x32x128xf32, #tpu.memory_space<vmem>>, vector<1x2x128xf32>
    %213 = vector.extract_strided_slice %212 {offsets = [0, 0, 0], sizes = [1, 1, 128], strides = [1, 1, 1]} : vector<1x2x128xf32> to vector<1x1x128xf32>
    %214 = vector.shape_cast %213 : vector<1x1x128xf32> to vector<1x128xf32>
    %215 = vector.extract_strided_slice %212 {offsets = [0, 1, 0], sizes = [1, 1, 128], strides = [1, 1, 1]} : vector<1x2x128xf32> to vector<1x1x128xf32>
    %216 = vector.shape_cast %215 : vector<1x1x128xf32> to vector<1x128xf32>
    %217 = arith.maximumf %214, %216 : vector<1x128xf32>
    %c0_184 = arith.constant 0 : index
    %c0_185 = arith.constant 0 : index
    %c0_186 = arith.constant 0 : index
    %218 = vector.load %arg8[%c0_184, %c0_185, %c0_186] : memref<16x128x128xf32, #tpu.memory_space<vmem>>, vector<1x128x128xf32>
    %219 = vector.shape_cast %218 : vector<1x128x128xf32> to vector<128x128xf32>
    %cst_187 = arith.constant dense<0.000000e+00> : vector<1x128xf32>
    %220 = tpu.matmul %217, %219, %cst_187 {dimension_numbers = #tpu.dot_dimension_numbers<[1], [0], [0], [1], [0, 0, 1, 1], [], []>} : vector<1x128xf32>, vector<128x128xf32>, vector<1x128xf32> -> vector<1x128xf32>
    %c0_188 = arith.constant 0 : index
    %c2_189 = arith.constant 2 : index
    %c0_190 = arith.constant 0 : index
    %221 = tpu.strided_load %arg17[%c0_188, %c2_189, %c0_190] {strides = array<i32: 4, 1, 1>} : memref<16x32x128xf32, #tpu.memory_space<vmem>>, vector<1x2x128xf32>
    %222 = vector.extract_strided_slice %221 {offsets = [0, 0, 0], sizes = [1, 1, 128], strides = [1, 1, 1]} : vector<1x2x128xf32> to vector<1x1x128xf32>
    %223 = vector.shape_cast %222 : vector<1x1x128xf32> to vector<1x128xf32>
    %224 = vector.extract_strided_slice %221 {offsets = [0, 1, 0], sizes = [1, 1, 128], strides = [1, 1, 1]} : vector<1x2x128xf32> to vector<1x1x128xf32>
    %225 = vector.shape_cast %224 : vector<1x1x128xf32> to vector<1x128xf32>
    %226 = arith.maximumf %223, %225 : vector<1x128xf32>
    %c1_191 = arith.constant 1 : index
    %c0_192 = arith.constant 0 : index
    %c0_193 = arith.constant 0 : index
    %227 = vector.load %arg8[%c1_191, %c0_192, %c0_193] : memref<16x128x128xf32, #tpu.memory_space<vmem>>, vector<1x128x128xf32>
    %228 = vector.shape_cast %227 : vector<1x128x128xf32> to vector<128x128xf32>
    %cst_194 = arith.constant dense<0.000000e+00> : vector<1x128xf32>
    %229 = tpu.matmul %226, %228, %cst_194 {dimension_numbers = #tpu.dot_dimension_numbers<[1], [0], [0], [1], [0, 0, 1, 1], [], []>} : vector<1x128xf32>, vector<128x128xf32>, vector<1x128xf32> -> vector<1x128xf32>
    %230 = arith.addf %220, %229 : vector<1x128xf32>
    %c0_195 = arith.constant 0 : index
    %c4_196 = arith.constant 4 : index
    %c0_197 = arith.constant 0 : index
    %231 = tpu.strided_load %arg17[%c0_195, %c4_196, %c0_197] {strides = array<i32: 4, 1, 1>} : memref<16x32x128xf32, #tpu.memory_space<vmem>>, vector<1x2x128xf32>
    %232 = vector.extract_strided_slice %231 {offsets = [0, 0, 0], sizes = [1, 1, 128], strides = [1, 1, 1]} : vector<1x2x128xf32> to vector<1x1x128xf32>
    %233 = vector.shape_cast %232 : vector<1x1x128xf32> to vector<1x128xf32>
    %234 = vector.extract_strided_slice %231 {offsets = [0, 1, 0], sizes = [1, 1, 128], strides = [1, 1, 1]} : vector<1x2x128xf32> to vector<1x1x128xf32>
    %235 = vector.shape_cast %234 : vector<1x1x128xf32> to vector<1x128xf32>
    %236 = arith.maximumf %233, %235 : vector<1x128xf32>
    %c2_198 = arith.constant 2 : index
    %c0_199 = arith.constant 0 : index
    %c0_200 = arith.constant 0 : index
    %237 = vector.load %arg8[%c2_198, %c0_199, %c0_200] : memref<16x128x128xf32, #tpu.memory_space<vmem>>, vector<1x128x128xf32>
    %238 = vector.shape_cast %237 : vector<1x128x128xf32> to vector<128x128xf32>
    %cst_201 = arith.constant dense<0.000000e+00> : vector<1x128xf32>
    %239 = tpu.matmul %236, %238, %cst_201 {dimension_numbers = #tpu.dot_dimension_numbers<[1], [0], [0], [1], [0, 0, 1, 1], [], []>} : vector<1x128xf32>, vector<128x128xf32>, vector<1x128xf32> -> vector<1x128xf32>
    %240 = arith.addf %230, %239 : vector<1x128xf32>
    %c0_202 = arith.constant 0 : index
    %c6_203 = arith.constant 6 : index
    %c0_204 = arith.constant 0 : index
    %241 = tpu.strided_load %arg17[%c0_202, %c6_203, %c0_204] {strides = array<i32: 4, 1, 1>} : memref<16x32x128xf32, #tpu.memory_space<vmem>>, vector<1x2x128xf32>
    %242 = vector.extract_strided_slice %241 {offsets = [0, 0, 0], sizes = [1, 1, 128], strides = [1, 1, 1]} : vector<1x2x128xf32> to vector<1x1x128xf32>
    %243 = vector.shape_cast %242 : vector<1x1x128xf32> to vector<1x128xf32>
    %244 = vector.extract_strided_slice %241 {offsets = [0, 1, 0], sizes = [1, 1, 128], strides = [1, 1, 1]} : vector<1x2x128xf32> to vector<1x1x128xf32>
    %245 = vector.shape_cast %244 : vector<1x1x128xf32> to vector<1x128xf32>
    %246 = arith.maximumf %243, %245 : vector<1x128xf32>
    %c3_205 = arith.constant 3 : index
    %c0_206 = arith.constant 0 : index
    %c0_207 = arith.constant 0 : index
    %247 = vector.load %arg8[%c3_205, %c0_206, %c0_207] : memref<16x128x128xf32, #tpu.memory_space<vmem>>, vector<1x128x128xf32>
    %248 = vector.shape_cast %247 : vector<1x128x128xf32> to vector<128x128xf32>
    %cst_208 = arith.constant dense<0.000000e+00> : vector<1x128xf32>
    %249 = tpu.matmul %246, %248, %cst_208 {dimension_numbers = #tpu.dot_dimension_numbers<[1], [0], [0], [1], [0, 0, 1, 1], [], []>} : vector<1x128xf32>, vector<128x128xf32>, vector<1x128xf32> -> vector<1x128xf32>
    %250 = arith.addf %240, %249 : vector<1x128xf32>
    %c1_209 = arith.constant 1 : index
    %c0_210 = arith.constant 0 : index
    %c0_211 = arith.constant 0 : index
    %251 = tpu.strided_load %arg17[%c1_209, %c0_210, %c0_211] {strides = array<i32: 4, 1, 1>} : memref<16x32x128xf32, #tpu.memory_space<vmem>>, vector<1x2x128xf32>
    %252 = vector.extract_strided_slice %251 {offsets = [0, 0, 0], sizes = [1, 1, 128], strides = [1, 1, 1]} : vector<1x2x128xf32> to vector<1x1x128xf32>
    %253 = vector.shape_cast %252 : vector<1x1x128xf32> to vector<1x128xf32>
    %254 = vector.extract_strided_slice %251 {offsets = [0, 1, 0], sizes = [1, 1, 128], strides = [1, 1, 1]} : vector<1x2x128xf32> to vector<1x1x128xf32>
    %255 = vector.shape_cast %254 : vector<1x1x128xf32> to vector<1x128xf32>
    %256 = arith.maximumf %253, %255 : vector<1x128xf32>
    %c4_212 = arith.constant 4 : index
    %c0_213 = arith.constant 0 : index
    %c0_214 = arith.constant 0 : index
    %257 = vector.load %arg8[%c4_212, %c0_213, %c0_214] : memref<16x128x128xf32, #tpu.memory_space<vmem>>, vector<1x128x128xf32>
    %258 = vector.shape_cast %257 : vector<1x128x128xf32> to vector<128x128xf32>
    %cst_215 = arith.constant dense<0.000000e+00> : vector<1x128xf32>
    %259 = tpu.matmul %256, %258, %cst_215 {dimension_numbers = #tpu.dot_dimension_numbers<[1], [0], [0], [1], [0, 0, 1, 1], [], []>} : vector<1x128xf32>, vector<128x128xf32>, vector<1x128xf32> -> vector<1x128xf32>
    %260 = arith.addf %250, %259 : vector<1x128xf32>
    %c1_216 = arith.constant 1 : index
    %c2_217 = arith.constant 2 : index
    %c0_218 = arith.constant 0 : index
    %261 = tpu.strided_load %arg17[%c1_216, %c2_217, %c0_218] {strides = array<i32: 4, 1, 1>} : memref<16x32x128xf32, #tpu.memory_space<vmem>>, vector<1x2x128xf32>
    %262 = vector.extract_strided_slice %261 {offsets = [0, 0, 0], sizes = [1, 1, 128], strides = [1, 1, 1]} : vector<1x2x128xf32> to vector<1x1x128xf32>
    %263 = vector.shape_cast %262 : vector<1x1x128xf32> to vector<1x128xf32>
    %264 = vector.extract_strided_slice %261 {offsets = [0, 1, 0], sizes = [1, 1, 128], strides = [1, 1, 1]} : vector<1x2x128xf32> to vector<1x1x128xf32>
    %265 = vector.shape_cast %264 : vector<1x1x128xf32> to vector<1x128xf32>
    %266 = arith.maximumf %263, %265 : vector<1x128xf32>
    %c5_219 = arith.constant 5 : index
    %c0_220 = arith.constant 0 : index
    %c0_221 = arith.constant 0 : index
    %267 = vector.load %arg8[%c5_219, %c0_220, %c0_221] : memref<16x128x128xf32, #tpu.memory_space<vmem>>, vector<1x128x128xf32>
    %268 = vector.shape_cast %267 : vector<1x128x128xf32> to vector<128x128xf32>
    %cst_222 = arith.constant dense<0.000000e+00> : vector<1x128xf32>
    %269 = tpu.matmul %266, %268, %cst_222 {dimension_numbers = #tpu.dot_dimension_numbers<[1], [0], [0], [1], [0, 0, 1, 1], [], []>} : vector<1x128xf32>, vector<128x128xf32>, vector<1x128xf32> -> vector<1x128xf32>
    %270 = arith.addf %260, %269 : vector<1x128xf32>
    %c1_223 = arith.constant 1 : index
    %c4_224 = arith.constant 4 : index
    %c0_225 = arith.constant 0 : index
    %271 = tpu.strided_load %arg17[%c1_223, %c4_224, %c0_225] {strides = array<i32: 4, 1, 1>} : memref<16x32x128xf32, #tpu.memory_space<vmem>>, vector<1x2x128xf32>
    %272 = vector.extract_strided_slice %271 {offsets = [0, 0, 0], sizes = [1, 1, 128], strides = [1, 1, 1]} : vector<1x2x128xf32> to vector<1x1x128xf32>
    %273 = vector.shape_cast %272 : vector<1x1x128xf32> to vector<1x128xf32>
    %274 = vector.extract_strided_slice %271 {offsets = [0, 1, 0], sizes = [1, 1, 128], strides = [1, 1, 1]} : vector<1x2x128xf32> to vector<1x1x128xf32>
    %275 = vector.shape_cast %274 : vector<1x1x128xf32> to vector<1x128xf32>
    %276 = arith.maximumf %273, %275 : vector<1x128xf32>
    %c6_226 = arith.constant 6 : index
    %c0_227 = arith.constant 0 : index
    %c0_228 = arith.constant 0 : index
    %277 = vector.load %arg8[%c6_226, %c0_227, %c0_228] : memref<16x128x128xf32, #tpu.memory_space<vmem>>, vector<1x128x128xf32>
    %278 = vector.shape_cast %277 : vector<1x128x128xf32> to vector<128x128xf32>
    %cst_229 = arith.constant dense<0.000000e+00> : vector<1x128xf32>
    %279 = tpu.matmul %276, %278, %cst_229 {dimension_numbers = #tpu.dot_dimension_numbers<[1], [0], [0], [1], [0, 0, 1, 1], [], []>} : vector<1x128xf32>, vector<128x128xf32>, vector<1x128xf32> -> vector<1x128xf32>
    %280 = arith.addf %270, %279 : vector<1x128xf32>
    %c1_230 = arith.constant 1 : index
    %c6_231 = arith.constant 6 : index
    %c0_232 = arith.constant 0 : index
    %281 = tpu.strided_load %arg17[%c1_230, %c6_231, %c0_232] {strides = array<i32: 4, 1, 1>} : memref<16x32x128xf32, #tpu.memory_space<vmem>>, vector<1x2x128xf32>
    %282 = vector.extract_strided_slice %281 {offsets = [0, 0, 0], sizes = [1, 1, 128], strides = [1, 1, 1]} : vector<1x2x128xf32> to vector<1x1x128xf32>
    %283 = vector.shape_cast %282 : vector<1x1x128xf32> to vector<1x128xf32>
    %284 = vector.extract_strided_slice %281 {offsets = [0, 1, 0], sizes = [1, 1, 128], strides = [1, 1, 1]} : vector<1x2x128xf32> to vector<1x1x128xf32>
    %285 = vector.shape_cast %284 : vector<1x1x128xf32> to vector<1x128xf32>
    %286 = arith.maximumf %283, %285 : vector<1x128xf32>
    %c7_233 = arith.constant 7 : index
    %c0_234 = arith.constant 0 : index
    %c0_235 = arith.constant 0 : index
    %287 = vector.load %arg8[%c7_233, %c0_234, %c0_235] : memref<16x128x128xf32, #tpu.memory_space<vmem>>, vector<1x128x128xf32>
    %288 = vector.shape_cast %287 : vector<1x128x128xf32> to vector<128x128xf32>
    %cst_236 = arith.constant dense<0.000000e+00> : vector<1x128xf32>
    %289 = tpu.matmul %286, %288, %cst_236 {dimension_numbers = #tpu.dot_dimension_numbers<[1], [0], [0], [1], [0, 0, 1, 1], [], []>} : vector<1x128xf32>, vector<128x128xf32>, vector<1x128xf32> -> vector<1x128xf32>
    %290 = arith.addf %280, %289 : vector<1x128xf32>
    %c2_237 = arith.constant 2 : index
    %c0_238 = arith.constant 0 : index
    %c0_239 = arith.constant 0 : index
    %291 = tpu.strided_load %arg17[%c2_237, %c0_238, %c0_239] {strides = array<i32: 4, 1, 1>} : memref<16x32x128xf32, #tpu.memory_space<vmem>>, vector<1x2x128xf32>
    %292 = vector.extract_strided_slice %291 {offsets = [0, 0, 0], sizes = [1, 1, 128], strides = [1, 1, 1]} : vector<1x2x128xf32> to vector<1x1x128xf32>
    %293 = vector.shape_cast %292 : vector<1x1x128xf32> to vector<1x128xf32>
    %294 = vector.extract_strided_slice %291 {offsets = [0, 1, 0], sizes = [1, 1, 128], strides = [1, 1, 1]} : vector<1x2x128xf32> to vector<1x1x128xf32>
    %295 = vector.shape_cast %294 : vector<1x1x128xf32> to vector<1x128xf32>
    %296 = arith.maximumf %293, %295 : vector<1x128xf32>
    %c8_240 = arith.constant 8 : index
    %c0_241 = arith.constant 0 : index
    %c0_242 = arith.constant 0 : index
    %297 = vector.load %arg8[%c8_240, %c0_241, %c0_242] : memref<16x128x128xf32, #tpu.memory_space<vmem>>, vector<1x128x128xf32>
    %298 = vector.shape_cast %297 : vector<1x128x128xf32> to vector<128x128xf32>
    %cst_243 = arith.constant dense<0.000000e+00> : vector<1x128xf32>
    %299 = tpu.matmul %296, %298, %cst_243 {dimension_numbers = #tpu.dot_dimension_numbers<[1], [0], [0], [1], [0, 0, 1, 1], [], []>} : vector<1x128xf32>, vector<128x128xf32>, vector<1x128xf32> -> vector<1x128xf32>
    %300 = arith.addf %290, %299 : vector<1x128xf32>
    %c2_244 = arith.constant 2 : index
    %c2_245 = arith.constant 2 : index
    %c0_246 = arith.constant 0 : index
    %301 = tpu.strided_load %arg17[%c2_244, %c2_245, %c0_246] {strides = array<i32: 4, 1, 1>} : memref<16x32x128xf32, #tpu.memory_space<vmem>>, vector<1x2x128xf32>
    %302 = vector.extract_strided_slice %301 {offsets = [0, 0, 0], sizes = [1, 1, 128], strides = [1, 1, 1]} : vector<1x2x128xf32> to vector<1x1x128xf32>
    %303 = vector.shape_cast %302 : vector<1x1x128xf32> to vector<1x128xf32>
    %304 = vector.extract_strided_slice %301 {offsets = [0, 1, 0], sizes = [1, 1, 128], strides = [1, 1, 1]} : vector<1x2x128xf32> to vector<1x1x128xf32>
    %305 = vector.shape_cast %304 : vector<1x1x128xf32> to vector<1x128xf32>
    %306 = arith.maximumf %303, %305 : vector<1x128xf32>
    %c9_247 = arith.constant 9 : index
    %c0_248 = arith.constant 0 : index
    %c0_249 = arith.constant 0 : index
    %307 = vector.load %arg8[%c9_247, %c0_248, %c0_249] : memref<16x128x128xf32, #tpu.memory_space<vmem>>, vector<1x128x128xf32>
    %308 = vector.shape_cast %307 : vector<1x128x128xf32> to vector<128x128xf32>
    %cst_250 = arith.constant dense<0.000000e+00> : vector<1x128xf32>
    %309 = tpu.matmul %306, %308, %cst_250 {dimension_numbers = #tpu.dot_dimension_numbers<[1], [0], [0], [1], [0, 0, 1, 1], [], []>} : vector<1x128xf32>, vector<128x128xf32>, vector<1x128xf32> -> vector<1x128xf32>
    %310 = arith.addf %300, %309 : vector<1x128xf32>
    %c2_251 = arith.constant 2 : index
    %c4_252 = arith.constant 4 : index
    %c0_253 = arith.constant 0 : index
    %311 = tpu.strided_load %arg17[%c2_251, %c4_252, %c0_253] {strides = array<i32: 4, 1, 1>} : memref<16x32x128xf32, #tpu.memory_space<vmem>>, vector<1x2x128xf32>
    %312 = vector.extract_strided_slice %311 {offsets = [0, 0, 0], sizes = [1, 1, 128], strides = [1, 1, 1]} : vector<1x2x128xf32> to vector<1x1x128xf32>
    %313 = vector.shape_cast %312 : vector<1x1x128xf32> to vector<1x128xf32>
    %314 = vector.extract_strided_slice %311 {offsets = [0, 1, 0], sizes = [1, 1, 128], strides = [1, 1, 1]} : vector<1x2x128xf32> to vector<1x1x128xf32>
    %315 = vector.shape_cast %314 : vector<1x1x128xf32> to vector<1x128xf32>
    %316 = arith.maximumf %313, %315 : vector<1x128xf32>
    %c10 = arith.constant 10 : index
    %c0_254 = arith.constant 0 : index
    %c0_255 = arith.constant 0 : index
    %317 = vector.load %arg8[%c10, %c0_254, %c0_255] : memref<16x128x128xf32, #tpu.memory_space<vmem>>, vector<1x128x128xf32>
    %318 = vector.shape_cast %317 : vector<1x128x128xf32> to vector<128x128xf32>
    %cst_256 = arith.constant dense<0.000000e+00> : vector<1x128xf32>
    %319 = tpu.matmul %316, %318, %cst_256 {dimension_numbers = #tpu.dot_dimension_numbers<[1], [0], [0], [1], [0, 0, 1, 1], [], []>} : vector<1x128xf32>, vector<128x128xf32>, vector<1x128xf32> -> vector<1x128xf32>
    %320 = arith.addf %310, %319 : vector<1x128xf32>
    %c2_257 = arith.constant 2 : index
    %c6_258 = arith.constant 6 : index
    %c0_259 = arith.constant 0 : index
    %321 = tpu.strided_load %arg17[%c2_257, %c6_258, %c0_259] {strides = array<i32: 4, 1, 1>} : memref<16x32x128xf32, #tpu.memory_space<vmem>>, vector<1x2x128xf32>
    %322 = vector.extract_strided_slice %321 {offsets = [0, 0, 0], sizes = [1, 1, 128], strides = [1, 1, 1]} : vector<1x2x128xf32> to vector<1x1x128xf32>
    %323 = vector.shape_cast %322 : vector<1x1x128xf32> to vector<1x128xf32>
    %324 = vector.extract_strided_slice %321 {offsets = [0, 1, 0], sizes = [1, 1, 128], strides = [1, 1, 1]} : vector<1x2x128xf32> to vector<1x1x128xf32>
    %325 = vector.shape_cast %324 : vector<1x1x128xf32> to vector<1x128xf32>
    %326 = arith.maximumf %323, %325 : vector<1x128xf32>
    %c11 = arith.constant 11 : index
    %c0_260 = arith.constant 0 : index
    %c0_261 = arith.constant 0 : index
    %327 = vector.load %arg8[%c11, %c0_260, %c0_261] : memref<16x128x128xf32, #tpu.memory_space<vmem>>, vector<1x128x128xf32>
    %328 = vector.shape_cast %327 : vector<1x128x128xf32> to vector<128x128xf32>
    %cst_262 = arith.constant dense<0.000000e+00> : vector<1x128xf32>
    %329 = tpu.matmul %326, %328, %cst_262 {dimension_numbers = #tpu.dot_dimension_numbers<[1], [0], [0], [1], [0, 0, 1, 1], [], []>} : vector<1x128xf32>, vector<128x128xf32>, vector<1x128xf32> -> vector<1x128xf32>
    %330 = arith.addf %320, %329 : vector<1x128xf32>
    %c3_263 = arith.constant 3 : index
    %c0_264 = arith.constant 0 : index
    %c0_265 = arith.constant 0 : index
    %331 = tpu.strided_load %arg17[%c3_263, %c0_264, %c0_265] {strides = array<i32: 4, 1, 1>} : memref<16x32x128xf32, #tpu.memory_space<vmem>>, vector<1x2x128xf32>
    %332 = vector.extract_strided_slice %331 {offsets = [0, 0, 0], sizes = [1, 1, 128], strides = [1, 1, 1]} : vector<1x2x128xf32> to vector<1x1x128xf32>
    %333 = vector.shape_cast %332 : vector<1x1x128xf32> to vector<1x128xf32>
    %334 = vector.extract_strided_slice %331 {offsets = [0, 1, 0], sizes = [1, 1, 128], strides = [1, 1, 1]} : vector<1x2x128xf32> to vector<1x1x128xf32>
    %335 = vector.shape_cast %334 : vector<1x1x128xf32> to vector<1x128xf32>
    %336 = arith.maximumf %333, %335 : vector<1x128xf32>
    %c12 = arith.constant 12 : index
    %c0_266 = arith.constant 0 : index
    %c0_267 = arith.constant 0 : index
    %337 = vector.load %arg8[%c12, %c0_266, %c0_267] : memref<16x128x128xf32, #tpu.memory_space<vmem>>, vector<1x128x128xf32>
    %338 = vector.shape_cast %337 : vector<1x128x128xf32> to vector<128x128xf32>
    %cst_268 = arith.constant dense<0.000000e+00> : vector<1x128xf32>
    %339 = tpu.matmul %336, %338, %cst_268 {dimension_numbers = #tpu.dot_dimension_numbers<[1], [0], [0], [1], [0, 0, 1, 1], [], []>} : vector<1x128xf32>, vector<128x128xf32>, vector<1x128xf32> -> vector<1x128xf32>
    %340 = arith.addf %330, %339 : vector<1x128xf32>
    %c3_269 = arith.constant 3 : index
    %c2_270 = arith.constant 2 : index
    %c0_271 = arith.constant 0 : index
    %341 = tpu.strided_load %arg17[%c3_269, %c2_270, %c0_271] {strides = array<i32: 4, 1, 1>} : memref<16x32x128xf32, #tpu.memory_space<vmem>>, vector<1x2x128xf32>
    %342 = vector.extract_strided_slice %341 {offsets = [0, 0, 0], sizes = [1, 1, 128], strides = [1, 1, 1]} : vector<1x2x128xf32> to vector<1x1x128xf32>
    %343 = vector.shape_cast %342 : vector<1x1x128xf32> to vector<1x128xf32>
    %344 = vector.extract_strided_slice %341 {offsets = [0, 1, 0], sizes = [1, 1, 128], strides = [1, 1, 1]} : vector<1x2x128xf32> to vector<1x1x128xf32>
    %345 = vector.shape_cast %344 : vector<1x1x128xf32> to vector<1x128xf32>
    %346 = arith.maximumf %343, %345 : vector<1x128xf32>
    %c13 = arith.constant 13 : index
    %c0_272 = arith.constant 0 : index
    %c0_273 = arith.constant 0 : index
    %347 = vector.load %arg8[%c13, %c0_272, %c0_273] : memref<16x128x128xf32, #tpu.memory_space<vmem>>, vector<1x128x128xf32>
    %348 = vector.shape_cast %347 : vector<1x128x128xf32> to vector<128x128xf32>
    %cst_274 = arith.constant dense<0.000000e+00> : vector<1x128xf32>
    %349 = tpu.matmul %346, %348, %cst_274 {dimension_numbers = #tpu.dot_dimension_numbers<[1], [0], [0], [1], [0, 0, 1, 1], [], []>} : vector<1x128xf32>, vector<128x128xf32>, vector<1x128xf32> -> vector<1x128xf32>
    %350 = arith.addf %340, %349 : vector<1x128xf32>
    %c3_275 = arith.constant 3 : index
    %c4_276 = arith.constant 4 : index
    %c0_277 = arith.constant 0 : index
    %351 = tpu.strided_load %arg17[%c3_275, %c4_276, %c0_277] {strides = array<i32: 4, 1, 1>} : memref<16x32x128xf32, #tpu.memory_space<vmem>>, vector<1x2x128xf32>
    %352 = vector.extract_strided_slice %351 {offsets = [0, 0, 0], sizes = [1, 1, 128], strides = [1, 1, 1]} : vector<1x2x128xf32> to vector<1x1x128xf32>
    %353 = vector.shape_cast %352 : vector<1x1x128xf32> to vector<1x128xf32>
    %354 = vector.extract_strided_slice %351 {offsets = [0, 1, 0], sizes = [1, 1, 128], strides = [1, 1, 1]} : vector<1x2x128xf32> to vector<1x1x128xf32>
    %355 = vector.shape_cast %354 : vector<1x1x128xf32> to vector<1x128xf32>
    %356 = arith.maximumf %353, %355 : vector<1x128xf32>
    %c14 = arith.constant 14 : index
    %c0_278 = arith.constant 0 : index
    %c0_279 = arith.constant 0 : index
    %357 = vector.load %arg8[%c14, %c0_278, %c0_279] : memref<16x128x128xf32, #tpu.memory_space<vmem>>, vector<1x128x128xf32>
    %358 = vector.shape_cast %357 : vector<1x128x128xf32> to vector<128x128xf32>
    %cst_280 = arith.constant dense<0.000000e+00> : vector<1x128xf32>
    %359 = tpu.matmul %356, %358, %cst_280 {dimension_numbers = #tpu.dot_dimension_numbers<[1], [0], [0], [1], [0, 0, 1, 1], [], []>} : vector<1x128xf32>, vector<128x128xf32>, vector<1x128xf32> -> vector<1x128xf32>
    %360 = arith.addf %350, %359 : vector<1x128xf32>
    %c3_281 = arith.constant 3 : index
    %c6_282 = arith.constant 6 : index
    %c0_283 = arith.constant 0 : index
    %361 = tpu.strided_load %arg17[%c3_281, %c6_282, %c0_283] {strides = array<i32: 4, 1, 1>} : memref<16x32x128xf32, #tpu.memory_space<vmem>>, vector<1x2x128xf32>
    %362 = vector.extract_strided_slice %361 {offsets = [0, 0, 0], sizes = [1, 1, 128], strides = [1, 1, 1]} : vector<1x2x128xf32> to vector<1x1x128xf32>
    %363 = vector.shape_cast %362 : vector<1x1x128xf32> to vector<1x128xf32>
    %364 = vector.extract_strided_slice %361 {offsets = [0, 1, 0], sizes = [1, 1, 128], strides = [1, 1, 1]} : vector<1x2x128xf32> to vector<1x1x128xf32>
    %365 = vector.shape_cast %364 : vector<1x1x128xf32> to vector<1x128xf32>
    %366 = arith.maximumf %363, %365 : vector<1x128xf32>
    %c15 = arith.constant 15 : index
    %c0_284 = arith.constant 0 : index
    %c0_285 = arith.constant 0 : index
    %367 = vector.load %arg8[%c15, %c0_284, %c0_285] : memref<16x128x128xf32, #tpu.memory_space<vmem>>, vector<1x128x128xf32>
    %368 = vector.shape_cast %367 : vector<1x128x128xf32> to vector<128x128xf32>
    %cst_286 = arith.constant dense<0.000000e+00> : vector<1x128xf32>
    %369 = tpu.matmul %366, %368, %cst_286 {dimension_numbers = #tpu.dot_dimension_numbers<[1], [0], [0], [1], [0, 0, 1, 1], [], []>} : vector<1x128xf32>, vector<128x128xf32>, vector<1x128xf32> -> vector<1x128xf32>
    %370 = arith.addf %360, %369 : vector<1x128xf32>
    %c0_287 = arith.constant 0 : index
    %c0_288 = arith.constant 0 : index
    %371 = vector.load %arg9[%c0_287, %c0_288] : memref<1x128xf32, #tpu.memory_space<vmem>>, vector<1x128xf32>
    %372 = arith.addf %370, %371 : vector<1x128xf32>
    %cst_289 = arith.constant 0.000000e+00 : f32
    %373 = vector.broadcast %cst_289 : f32 to vector<1x128xf32>
    %374 = arith.maximumf %372, %373 : vector<1x128xf32>
    %c0_290 = arith.constant 0 : index
    %c0_291 = arith.constant 0 : index
    %375 = vector.load %arg10[%c0_290, %c0_291] : memref<128x128xf32, #tpu.memory_space<vmem>>, vector<128x128xf32>
    %cst_292 = arith.constant dense<0.000000e+00> : vector<1x128xf32>
    %376 = tpu.matmul %374, %375, %cst_292 {dimension_numbers = #tpu.dot_dimension_numbers<[1], [0], [0], [1], [0, 0, 1, 1], [], []>} : vector<1x128xf32>, vector<128x128xf32>, vector<1x128xf32> -> vector<1x128xf32>
    %c0_293 = arith.constant 0 : index
    %c0_294 = arith.constant 0 : index
    %377 = vector.load %arg11[%c0_293, %c0_294] : memref<1x128xf32, #tpu.memory_space<vmem>>, vector<1x128xf32>
    %378 = arith.addf %376, %377 : vector<1x128xf32>
    %cst_295 = arith.constant 0.000000e+00 : f32
    %379 = vector.broadcast %cst_295 : f32 to vector<1x128xf32>
    %380 = arith.maximumf %378, %379 : vector<1x128xf32>
    %c0_296 = arith.constant 0 : index
    %c0_297 = arith.constant 0 : index
    %381 = vector.load %arg12[%c0_296, %c0_297] : memref<128x128xf32, #tpu.memory_space<vmem>>, vector<128x128xf32>
    %cst_298 = arith.constant dense<0.000000e+00> : vector<1x128xf32>
    %382 = tpu.matmul %380, %381, %cst_298 {dimension_numbers = #tpu.dot_dimension_numbers<[1], [0], [0], [1], [0, 0, 1, 1], [], []>} : vector<1x128xf32>, vector<128x128xf32>, vector<1x128xf32> -> vector<1x128xf32>
    %c0_299 = arith.constant 0 : index
    %c0_300 = arith.constant 0 : index
    %383 = vector.load %arg13[%c0_299, %c0_300] : memref<1x128xf32, #tpu.memory_space<vmem>>, vector<1x128xf32>
    %384 = arith.addf %382, %383 : vector<1x128xf32>
    %c0_301 = arith.constant 0 : index
    %c0_302 = arith.constant 0 : index
    %c0_303 = arith.constant 0 : index
    %385 = vector.load %arg14[%c0_301, %c0_302, %c0_303] : memref<1x1x128xf32, #tpu.memory_space<vmem>>, vector<1x1x128xf32>
    %386 = vector.shape_cast %385 : vector<1x1x128xf32> to vector<1x128xf32>
    %387 = vector.shape_cast %384 : vector<1x128xf32> to vector<1x1x128xf32>
    tpu.vector_store %arg14[%c0_301, %c0_302, %c0_303], %387 {strides = array<i32>} : memref<1x1x128xf32, #tpu.memory_space<vmem>>, vector<1x1x128xf32>,
    return
  }
  func.func @transform_0(%arg0: i32) -> (i32, i32, i32, i32) {
    %c0_i32 = arith.constant 0 : i32
    %c0_i32_0 = arith.constant 0 : i32
    %c0_i32_1 = arith.constant 0 : i32
    %c0_i32_2 = arith.constant 0 : i32
    return %arg0, %c0_i32, %c0_i32_0, %c0_i32_1 : i32, i32, i32, i32
  }
  func.func @transform_1(%arg0: i32) -> (i32, i32, i32) {
    %c0_i32 = arith.constant 0 : i32
    %c0_i32_0 = arith.constant 0 : i32
    %c0_i32_1 = arith.constant 0 : i32
    %c0_i32_2 = arith.constant 0 : i32
    return %c0_i32, %c0_i32_0, %c0_i32_1 : i32, i32, i32
  }
  func.func @transform_2(%arg0: i32) -> (i32, i32) {
    %c0_i32 = arith.constant 0 : i32
    %c0_i32_0 = arith.constant 0 : i32
    %c0_i32_1 = arith.constant 0 : i32
    return %c0_i32, %c0_i32_0 : i32, i32
  }
  func.func @transform_3(%arg0: i32) -> (i32, i32, i32) {
    %c0_i32 = arith.constant 0 : i32
    %c0_i32_0 = arith.constant 0 : i32
    %c0_i32_1 = arith.constant 0 : i32
    %c0_i32_2 = arith.constant 0 : i32
    return %c0_i32, %c0_i32_0, %c0_i32_1 : i32, i32, i32
  }
  func.func @transform_4(%arg0: i32) -> (i32, i32) {
    %c0_i32 = arith.constant 0 : i32
    %c0_i32_0 = arith.constant 0 : i32
    %c0_i32_1 = arith.constant 0 : i32
    return %c0_i32, %c0_i32_0 : i32, i32
  }
  func.func @transform_5(%arg0: i32) -> (i32, i32, i32) {
    %c0_i32 = arith.constant 0 : i32
    %c0_i32_0 = arith.constant 0 : i32
    %c0_i32_1 = arith.constant 0 : i32
    %c0_i32_2 = arith.constant 0 : i32
    return %c0_i32, %c0_i32_0, %c0_i32_1 : i32, i32, i32
  }
  func.func @transform_6(%arg0: i32) -> (i32, i32) {
    %c0_i32 = arith.constant 0 : i32
    %c0_i32_0 = arith.constant 0 : i32
    %c0_i32_1 = arith.constant 0 : i32
    return %c0_i32, %c0_i32_0 : i32, i32
  }
  func.func @transform_7(%arg0: i32) -> (i32, i32, i32) {
    %c0_i32 = arith.constant 0 : i32
    %c0_i32_0 = arith.constant 0 : i32
    %c0_i32_1 = arith.constant 0 : i32
    %c0_i32_2 = arith.constant 0 : i32
    return %c0_i32, %c0_i32_0, %c0_i32_1 : i32, i32, i32
  }
  func.func @transform_8(%arg0: i32) -> (i32, i32) {
    %c0_i32 = arith.constant 0 : i32
    %c0_i32_0 = arith.constant 0 : i32
    %c0_i32_1 = arith.constant 0 : i32
    return %c0_i32, %c0_i32_0 : i32, i32
  }
  func.func @transform_9(%arg0: i32) -> (i32, i32) {
    %c0_i32 = arith.constant 0 : i32
    %c0_i32_0 = arith.constant 0 : i32
    %c0_i32_1 = arith.constant 0 : i32
    return %c0_i32, %c0_i32_0 : i32, i32
  }
  func.func @transform_10(%arg0: i32) -> (i32, i32) {
    %c0_i32 = arith.constant 0 : i32
    %c0_i32_0 = arith.constant 0 : i32
    %c0_i32_1 = arith.constant 0 : i32
    return %c0_i32, %c0_i32_0 : i32, i32
  }
  func.func @transform_11(%arg0: i32) -> (i32, i32) {
    %c0_i32 = arith.constant 0 : i32
    %c0_i32_0 = arith.constant 0 : i32
    %c0_i32_1 = arith.constant 0 : i32
    return %c0_i32, %c0_i32_0 : i32, i32
  }
  func.func @transform_12(%arg0: i32) -> (i32, i32) {
    %c0_i32 = arith.constant 0 : i32
    %c0_i32_0 = arith.constant 0 : i32
    %c0_i32_1 = arith.constant 0 : i32
    return %c0_i32, %c0_i32_0 : i32, i32
  }
  func.func @transform_13(%arg0: i32) -> (i32, i32, i32) {
    %c0_i32 = arith.constant 0 : i32
    %c0_i32_0 = arith.constant 0 : i32
    %c0_i32_1 = arith.constant 0 : i32
    return %arg0, %c0_i32, %c0_i32_0 : i32, i32, i32
  }
}

</mosaic_0001>

<llo_original>
// kernel: cifar_cnn_forward.1
$region0: #{cifar_cnn_forward.1}
  #allocation0 [shape = 'u32[]', space=smem, size = 0x4, offset = 0x4, fixed_abs, tag = 'smem constant byte address 0x4 - core index']
  #allocation1 [shape = 'u32[72,128]{1,0:T(1,128)}', space=vmem, size = 0x9000, scoped, tag = 'internal scratch']
  #allocation2 [shape = 'f32[1,18,32,128]{3,2,1,0:T(8,128)}', space=vmem, size = 0x48000, scoped, tag = 'scratch operand']
  #allocation3 [shape = 'f32[1,10,24,128]{3,2,1,0:T(8,128)}', space=vmem, size = 0x1e000, scoped, tag = 'scratch operand']
  #allocation4 [shape = 'f32[16,32,128]{2,1,0:T(8,128)}', space=vmem, size = 0x40000, scoped, tag = 'scratch operand']
  %s0 = inlined_call_operand.vmem [shape: f32[2,34,48,32], index: 0, kind: input, shape index: {}]
  %s1 = inlined_call_operand.vmem [shape: f32[9,32,128], index: 1, kind: input, shape index: {}]
  %s2 = inlined_call_operand.vmem [shape: f32[1,128], index: 2, kind: input, shape index: {}]
  %s3 = inlined_call_operand.vmem [shape: f32[9,128,128], index: 3, kind: input, shape index: {}]
  %s4 = inlined_call_operand.vmem [shape: f32[1,128], index: 4, kind: input, shape index: {}]
  %s5 = inlined_call_operand.vmem [shape: f32[9,128,128], index: 5, kind: input, shape index: {}]
  %s6 = inlined_call_operand.vmem [shape: f32[1,128], index: 6, kind: input, shape index: {}]
  %s7 = inlined_call_operand.vmem [shape: f32[16,128,128], index: 7, kind: input, shape index: {}]
  %s8 = inlined_call_operand.vmem [shape: f32[1,128], index: 8, kind: input, shape index: {}]
  %s9 = inlined_call_operand.vmem [shape: f32[128,128], index: 9, kind: input, shape index: {}]
  %s10 = inlined_call_operand.vmem [shape: f32[1,128], index: 10, kind: input, shape index: {}]
  %s11 = inlined_call_operand.vmem [shape: f32[128,128], index: 11, kind: input, shape index: {}]
  %s12 = inlined_call_operand.vmem [shape: f32[1,128], index: 12, kind: input, shape index: {}]
  %s13 = inlined_call_operand.hbm [shape: f32[2,1,128], index: 13, kind: output, shape index: {}]
  %s14 = sld [smem:[#allocation0]]
  $region85: #{cifar_cnn_forward.1} parent=0
    _
  %s16 = ssub.s32 1, %s14
  %s17 = scalar_select 0, %s16, %s14
  $region1: #{cifar_cnn_forward.1} parent=0
    #allocation5 [shape = 'u8[1024]{0}', space=vmem, size = 0x400, scoped, tag = 'output window, operand 0']
    #allocation6 [shape = 's32[2]{0}', space=sflag, size = 0x8, scoped, tag = 'scoped memory for cifar_cnn_forward.1']
    %18 = vsyncpa [#allocation6], 0
    %s19 = scalar_lea.sflag [#allocation6], 1
    %20 = vsyncpa %s19, 0
    loop: start=0, step=1, limit=4
    $region2: #{cifar_cnn_forward.1} parent=1 // loop_pre_header
      _
    $region3: #{cifar_cnn_forward.1} parent=1 // loop_header
      %s22 = sphi 0, %s26
      %p23 = scmp.ge.s32.totalorder %s22, 4
      %s32 = sphi 0, %s34
      %s35 = sphi 0, %s32
      %s36 = sphi 0, %s35
      %s52 = sphi 0, %s36
      %s56 = sphi 0, %s56
      %s58 = sphi 0, %s56
      %s59 = sphi 0, %s58
      %s73 = sphi 0, %s59
      %s77 = sphi 0, %s77
      %s79 = sphi 0, %s77
      %s80 = sphi 0, %s79
      %s94 = sphi 0, %s80
      %s98 = sphi 0, %s98
      %s100 = sphi 0, %s98
      %s101 = sphi 0, %s100
      %s115 = sphi 0, %s101
      %s119 = sphi 0, %s119
      %s121 = sphi 0, %s119
      %s122 = sphi 0, %s121
      %s136 = sphi 0, %s122
      %s140 = sphi 0, %s140
      %s142 = sphi 0, %s140
      %s143 = sphi 0, %s142
      %s157 = sphi 0, %s143
      %s161 = sphi 0, %s161
      %s163 = sphi 0, %s161
      %s164 = sphi 0, %s163
      %s178 = sphi 0, %s164
      %s182 = sphi 0, %s182
      %s184 = sphi 0, %s182
      %s185 = sphi 0, %s184
      %s199 = sphi 0, %s185
      %s203 = sphi 0, %s203
      %s205 = sphi 0, %s203
      %s206 = sphi 0, %s205
      %s220 = sphi 0, %s206
      %s224 = sphi 0, %s224
      %s226 = sphi 0, %s224
      %s227 = sphi 0, %s226
      %s241 = sphi 0, %s227
      %s245 = sphi 0, %s245
      %s247 = sphi 0, %s245
      %s248 = sphi 0, %s247
      %s262 = sphi 0, %s248
      %s266 = sphi 0, %s266
      %s268 = sphi 0, %s266
      %s269 = sphi 0, %s268
      %s283 = sphi 0, %s269
      %s287 = sphi 0, %s287
      %s289 = sphi 0, %s287
      %s290 = sphi 0, %s289
      %s304 = sphi 0, %s290
      %s310 = sphi 0, %s312
      %s313 = sphi 0, %s310
      %s314 = sphi 0, %s313
      %s330 = sphi 0, %s314
    $region4: #{cifar_cnn_forward.1} parent=1 // loop_header_branch
      %25 = sbr.rel (%p23) target = $region8
    $region5: #{cifar_cnn_forward.1} parent=1 // loop_body
      %s27 = ssub.s32 %s22, 1
      %s28 = ssub.s32 %s22, 2
      %s29 = sadd.s32 %s22, 1
      %s30 = ssub.s32 %s22, %s29
      %p31 = scmp.eq.s32.totalorder %s30, 0
      %s33 = sadd.s32 %s32, 1
      %s34 = scalar_select %p31, %s32, %s33
      %p37 = pneg %p31
      %p38 = scmp.eq.s32.totalorder %s22, 1
      %p39 = por %p37, %p38
      %p40 = scmp.ne.s32.totalorder %s32, %s35
      %p41 = scmp.eq.s32.totalorder %s22, 0
      %p42 = por %p40, %p41
      %p43 = scmp.ne.s32.totalorder %s32, %s35
      %p44 = scmp.eq.s32.totalorder %s27, 1
      %p45 = por %p43, %p44
      %p46 = scmp.ne.s32.totalorder %s35, %s36
      %p47 = scmp.eq.s32.totalorder %s27, 0
      %p48 = por %p46, %p47
      %p49 = scmp.ne.s32.totalorder %s35, %s36
      %p50 = scmp.eq.s32.totalorder %s28, 1
      %p51 = por %p49, %p50
      %p53 = scmp.ne.s32.totalorder %s36, %s52
      %p54 = scmp.eq.s32.totalorder %s28, 0
      %p55 = por %p53, %p54
      %s57 = sadd.s32 %s56, 1
      %p60 = scmp.eq.s32.totalorder %s22, 1
      %p61 = scmp.ne.s32.totalorder %s56, %s58
      %p62 = scmp.eq.s32.totalorder %s22, 0
      %p63 = por %p61, %p62
      %p64 = scmp.ne.s32.totalorder %s56, %s58
      %p65 = scmp.eq.s32.totalorder %s27, 1
      %p66 = por %p64, %p65
      %p67 = scmp.ne.s32.totalorder %s58, %s59
      %p68 = scmp.eq.s32.totalorder %s27, 0
      %p69 = por %p67, %p68
      %p70 = scmp.ne.s32.totalorder %s58, %s59
      %p71 = scmp.eq.s32.totalorder %s28, 1
      %p72 = por %p70, %p71
      %p74 = scmp.ne.s32.totalorder %s59, %s73
      %p75 = scmp.eq.s32.totalorder %s28, 0
      %p76 = por %p74, %p75
      %s78 = sadd.s32 %s77, 1
      %p81 = scmp.eq.s32.totalorder %s22, 1
      %p82 = scmp.ne.s32.totalorder %s77, %s79
      %p83 = scmp.eq.s32.totalorder %s22, 0
      %p84 = por %p82, %p83
      %p85 = scmp.ne.s32.totalorder %s77, %s79
      %p86 = scmp.eq.s32.totalorder %s27, 1
      %p87 = por %p85, %p86
      %p88 = scmp.ne.s32.totalorder %s79, %s80
      %p89 = scmp.eq.s32.totalorder %s27, 0
      %p90 = por %p88, %p89
      %p91 = scmp.ne.s32.totalorder %s79, %s80
      %p92 = scmp.eq.s32.totalorder %s28, 1
      %p93 = por %p91, %p92
      %p95 = scmp.ne.s32.totalorder %s80, %s94
      %p96 = scmp.eq.s32.totalorder %s28, 0
      %p97 = por %p95, %p96
      %s99 = sadd.s32 %s98, 1
      %p102 = scmp.eq.s32.totalorder %s22, 1
      %p103 = scmp.ne.s32.totalorder %s98, %s100
      %p104 = scmp.eq.s32.totalorder %s22, 0
      %p105 = por %p103, %p104
      %p106 = scmp.ne.s32.totalorder %s98, %s100
      %p107 = scmp.eq.s32.totalorder %s27, 1
      %p108 = por %p106, %p107
      %p109 = scmp.ne.s32.totalorder %s100, %s101
      %p110 = scmp.eq.s32.totalorder %s27, 0
      %p111 = por %p109, %p110
      %p112 = scmp.ne.s32.totalorder %s100, %s101
      %p113 = scmp.eq.s32.totalorder %s28, 1
      %p114 = por %p112, %p113
      %p116 = scmp.ne.s32.totalorder %s101, %s115
      %p117 = scmp.eq.s32.totalorder %s28, 0
      %p118 = por %p116, %p117
      %s120 = sadd.s32 %s119, 1
      %p123 = scmp.eq.s32.totalorder %s22, 1
      %p124 = scmp.ne.s32.totalorder %s119, %s121
      %p125 = scmp.eq.s32.totalorder %s22, 0
      %p126 = por %p124, %p125
      %p127 = scmp.ne.s32.totalorder %s119, %s121
      %p128 = scmp.eq.s32.totalorder %s27, 1
      %p129 = por %p127, %p128
      %p130 = scmp.ne.s32.totalorder %s121, %s122
      %p131 = scmp.eq.s32.totalorder %s27, 0
      %p132 = por %p130, %p131
      %p133 = scmp.ne.s32.totalorder %s121, %s122
      %p134 = scmp.eq.s32.totalorder %s28, 1
      %p135 = por %p133, %p134
      %p137 = scmp.ne.s32.totalorder %s122, %s136
      %p138 = scmp.eq.s32.totalorder %s28, 0
      %p139 = por %p137, %p138
      %s141 = sadd.s32 %s140, 1
      %p144 = scmp.eq.s32.totalorder %s22, 1
      %p145 = scmp.ne.s32.totalorder %s140, %s142
      %p146 = scmp.eq.s32.totalorder %s22, 0
      %p147 = por %p145, %p146
      %p148 = scmp.ne.s32.totalorder %s140, %s142
      %p149 = scmp.eq.s32.totalorder %s27, 1
      %p150 = por %p148, %p149
      %p151 = scmp.ne.s32.totalorder %s142, %s143
      %p152 = scmp.eq.s32.totalorder %s27, 0
      %p153 = por %p151, %p152
      %p154 = scmp.ne.s32.totalorder %s142, %s143
      %p155 = scmp.eq.s32.totalorder %s28, 1
      %p156 = por %p154, %p155
      %p158 = scmp.ne.s32.totalorder %s143, %s157
      %p159 = scmp.eq.s32.totalorder %s28, 0
      %p160 = por %p158, %p159
      %s162 = sadd.s32 %s161, 1
      %p165 = scmp.eq.s32.totalorder %s22, 1
      %p166 = scmp.ne.s32.totalorder %s161, %s163
      %p167 = scmp.eq.s32.totalorder %s22, 0
      %p168 = por %p166, %p167
      %p169 = scmp.ne.s32.totalorder %s161, %s163
      %p170 = scmp.eq.s32.totalorder %s27, 1
      %p171 = por %p169, %p170
      %p172 = scmp.ne.s32.totalorder %s163, %s164
      %p173 = scmp.eq.s32.totalorder %s27, 0
      %p174 = por %p172, %p173
      %p175 = scmp.ne.s32.totalorder %s163, %s164
      %p176 = scmp.eq.s32.totalorder %s28, 1
      %p177 = por %p175, %p176
      %p179 = scmp.ne.s32.totalorder %s164, %s178
      %p180 = scmp.eq.s32.totalorder %s28, 0
      %p181 = por %p179, %p180
      %s183 = sadd.s32 %s182, 1
      %p186 = scmp.eq.s32.totalorder %s22, 1
      %p187 = scmp.ne.s32.totalorder %s182, %s184
      %p188 = scmp.eq.s32.totalorder %s22, 0
      %p189 = por %p187, %p188
      %p190 = scmp.ne.s32.totalorder %s182, %s184
      %p191 = scmp.eq.s32.totalorder %s27, 1
      %p192 = por %p190, %p191
      %p193 = scmp.ne.s32.totalorder %s184, %s185
      %p194 = scmp.eq.s32.totalorder %s27, 0
      %p195 = por %p193, %p194
      %p196 = scmp.ne.s32.totalorder %s184, %s185
      %p197 = scmp.eq.s32.totalorder %s28, 1
      %p198 = por %p196, %p197
      %p200 = scmp.ne.s32.totalorder %s185, %s199
      %p201 = scmp.eq.s32.totalorder %s28, 0
      %p202 = por %p200, %p201
      %s204 = sadd.s32 %s203, 1
      %p207 = scmp.eq.s32.totalorder %s22, 1
      %p208 = scmp.ne.s32.totalorder %s203, %s205
      %p209 = scmp.eq.s32.totalorder %s22, 0
      %p210 = por %p208, %p209
      %p211 = scmp.ne.s32.totalorder %s203, %s205
      %p212 = scmp.eq.s32.totalorder %s27, 1
      %p213 = por %p211, %p212
      %p214 = scmp.ne.s32.totalorder %s205, %s206
      %p215 = scmp.eq.s32.totalorder %s27, 0
      %p216 = por %p214, %p215
      %p217 = scmp.ne.s32.totalorder %s205, %s206
      %p218 = scmp.eq.s32.totalorder %s28, 1
      %p219 = por %p217, %p218
      %p221 = scmp.ne.s32.totalorder %s206, %s220
      %p222 = scmp.eq.s32.totalorder %s28, 0
      %p223 = por %p221, %p222
      %s225 = sadd.s32 %s224, 1
      %p228 = scmp.eq.s32.totalorder %s22, 1
      %p229 = scmp.ne.s32.totalorder %s224, %s226
      %p230 = scmp.eq.s32.totalorder %s22, 0
      %p231 = por %p229, %p230
      %p232 = scmp.ne.s32.totalorder %s224, %s226
      %p233 = scmp.eq.s32.totalorder %s27, 1
      %p234 = por %p232, %p233
      %p235 = scmp.ne.s32.totalorder %s226, %s227
      %p236 = scmp.eq.s32.totalorder %s27, 0
      %p237 = por %p235, %p236
      %p238 = scmp.ne.s32.totalorder %s226, %s227
      %p239 = scmp.eq.s32.totalorder %s28, 1
      %p240 = por %p238, %p239
      %p242 = scmp.ne.s32.totalorder %s227, %s241
      %p243 = scmp.eq.s32.totalorder %s28, 0
      %p244 = por %p242, %p243
      %s246 = sadd.s32 %s245, 1
      %p249 = scmp.eq.s32.totalorder %s22, 1
      %p250 = scmp.ne.s32.totalorder %s245, %s247
      %p251 = scmp.eq.s32.totalorder %s22, 0
      %p252 = por %p250, %p251
      %p253 = scmp.ne.s32.totalorder %s245, %s247
      %p254 = scmp.eq.s32.totalorder %s27, 1
      %p255 = por %p253, %p254
      %p256 = scmp.ne.s32.totalorder %s247, %s248
      %p257 = scmp.eq.s32.totalorder %s27, 0
      %p258 = por %p256, %p257
      %p259 = scmp.ne.s32.totalorder %s247, %s248
      %p260 = scmp.eq.s32.totalorder %s28, 1
      %p261 = por %p259, %p260
      %p263 = scmp.ne.s32.totalorder %s248, %s262
      %p264 = scmp.eq.s32.totalorder %s28, 0
      %p265 = por %p263, %p264
      %s267 = sadd.s32 %s266, 1
      %p270 = scmp.eq.s32.totalorder %s22, 1
      %p271 = scmp.ne.s32.totalorder %s266, %s268
      %p272 = scmp.eq.s32.totalorder %s22, 0
      %p273 = por %p271, %p272
      %p274 = scmp.ne.s32.totalorder %s266, %s268
      %p275 = scmp.eq.s32.totalorder %s27, 1
      %p276 = por %p274, %p275
      %p277 = scmp.ne.s32.totalorder %s268, %s269
      %p278 = scmp.eq.s32.totalorder %s27, 0
      %p279 = por %p277, %p278
      %p280 = scmp.ne.s32.totalorder %s268, %s269
      %p281 = scmp.eq.s32.totalorder %s28, 1
      %p282 = por %p280, %p281
      %p284 = scmp.ne.s32.totalorder %s269, %s283
      %p285 = scmp.eq.s32.totalorder %s28, 0
      %p286 = por %p284, %p285
      %s288 = sadd.s32 %s287, 1
      %p291 = scmp.eq.s32.totalorder %s22, 1
      %p292 = scmp.ne.s32.totalorder %s287, %s289
      %p293 = scmp.eq.s32.totalorder %s22, 0
      %p294 = por %p292, %p293
      %p295 = scmp.ne.s32.totalorder %s287, %s289
      %p296 = scmp.eq.s32.totalorder %s27, 1
      %p297 = por %p295, %p296
      %p298 = scmp.ne.s32.totalorder %s289, %s290
      %p299 = scmp.eq.s32.totalorder %s27, 0
      %p300 = por %p298, %p299
      %p301 = scmp.ne.s32.totalorder %s289, %s290
      %p302 = scmp.eq.s32.totalorder %s28, 1
      %p303 = por %p301, %p302
      %p305 = scmp.ne.s32.totalorder %s290, %s304
      %p306 = scmp.eq.s32.totalorder %s28, 0
      %p307 = por %p305, %p306
      %s308 = ssub.s32 %s22, %s29
      %p309 = scmp.eq.s32.totalorder %s308, 0
      %s311 = sadd.s32 %s310, 1
      %s312 = scalar_select %p309, %s310, %s311
      %p315 = pneg %p309
      %p316 = scmp.eq.s32.totalorder %s22, 1
      %p317 = por %p315, %p316
      %p318 = scmp.ne.s32.totalorder %s310, %s313
      %p319 = scmp.eq.s32.totalorder %s22, 0
      %p320 = por %p318, %p319
      %p321 = scmp.ne.s32.totalorder %s310, %s313
      %p322 = scmp.eq.s32.totalorder %s27, 1
      %p323 = por %p321, %p322
      %p324 = scmp.ne.s32.totalorder %s313, %s314
      %p325 = scmp.eq.s32.totalorder %s27, 0
      %p326 = por %p324, %p325
      %p327 = scmp.ne.s32.totalorder %s313, %s314
      %p328 = scmp.eq.s32.totalorder %s28, 1
      %p329 = por %p327, %p328
      %p331 = scmp.ne.s32.totalorder %s314, %s330
      %p332 = scmp.eq.s32.totalorder %s28, 0
      %p333 = por %p331, %p332
      %p334 = scmp.le.s32.totalorder 1, %s22
      %p335 = scmp.lt.s32.totalorder %s22, 3
      %p336 = pnand %p334, %p335
      %p337 = pneg %p336
      // Predicated region
      $region9: #{cifar_cnn_forward.1} parent=5 // pred_check
        _
      $region10: #{cifar_cnn_forward.1} parent=5 // pred_check_branch
        %339 = sbr.rel (%p336) target = $region12
      $region11: #{cifar_cnn_forward.1} parent=5 // pred_region
        %s340 = ssub.s32 %s22, 1
        // Predicated region
        $region13: #{cifar_cnn_forward.1} parent=11 // pred_check
          %p341 = pneg %p69
        $region14: #{cifar_cnn_forward.1} parent=11 // pred_check_branch
          %343 = sbr.rel (%p341) target = $region16
        $region15: #{cifar_cnn_forward.1} parent=11 // pred_region
          _
        $region16: #{cifar_cnn_forward.1} parent=11 // pred_fallthru
          _
        // Predicated region
        $region17: #{cifar_cnn_forward.1} parent=11 // pred_check
          %p344 = pneg %p90
        $region18: #{cifar_cnn_forward.1} parent=11 // pred_check_branch
          %346 = sbr.rel (%p344) target = $region20
        $region19: #{cifar_cnn_forward.1} parent=11 // pred_region
          _
        $region20: #{cifar_cnn_forward.1} parent=11 // pred_fallthru
          _
        // Predicated region
        $region21: #{cifar_cnn_forward.1} parent=11 // pred_check
          %p347 = pneg %p111
        $region22: #{cifar_cnn_forward.1} parent=11 // pred_check_branch
          %349 = sbr.rel (%p347) target = $region24
        $region23: #{cifar_cnn_forward.1} parent=11 // pred_region
          _
        $region24: #{cifar_cnn_forward.1} parent=11 // pred_fallthru
          _
        // Predicated region
        $region25: #{cifar_cnn_forward.1} parent=11 // pred_check
          %p350 = pneg %p132
        $region26: #{cifar_cnn_forward.1} parent=11 // pred_check_branch
          %352 = sbr.rel (%p350) target = $region28
        $region27: #{cifar_cnn_forward.1} parent=11 // pred_region
          _
        $region28: #{cifar_cnn_forward.1} parent=11 // pred_fallthru
          _
        // Predicated region
        $region29: #{cifar_cnn_forward.1} parent=11 // pred_check
          %p353 = pneg %p153
        $region30: #{cifar_cnn_forward.1} parent=11 // pred_check_branch
          %355 = sbr.rel (%p353) target = $region32
        $region31: #{cifar_cnn_forward.1} parent=11 // pred_region
          _
        $region32: #{cifar_cnn_forward.1} parent=11 // pred_fallthru
          _
        // Predicated region
        $region33: #{cifar_cnn_forward.1} parent=11 // pred_check
          %p356 = pneg %p174
        $region34: #{cifar_cnn_forward.1} parent=11 // pred_check_branch
          %358 = sbr.rel (%p356) target = $region36
        $region35: #{cifar_cnn_forward.1} parent=11 // pred_region
          _
        $region36: #{cifar_cnn_forward.1} parent=11 // pred_fallthru
          _
        // Predicated region
        $region37: #{cifar_cnn_forward.1} parent=11 // pred_check
          %p359 = pneg %p195
        $region38: #{cifar_cnn_forward.1} parent=11 // pred_check_branch
          %361 = sbr.rel (%p359) target = $region40
        $region39: #{cifar_cnn_forward.1} parent=11 // pred_region
          _
        $region40: #{cifar_cnn_forward.1} parent=11 // pred_fallthru
          _
        // Predicated region
        $region41: #{cifar_cnn_forward.1} parent=11 // pred_check
          %p362 = pneg %p216
        $region42: #{cifar_cnn_forward.1} parent=11 // pred_check_branch
          %364 = sbr.rel (%p362) target = $region44
        $region43: #{cifar_cnn_forward.1} parent=11 // pred_region
          _
        $region44: #{cifar_cnn_forward.1} parent=11 // pred_fallthru
          _
        // Predicated region
        $region45: #{cifar_cnn_forward.1} parent=11 // pred_check
          %p365 = pneg %p237
        $region46: #{cifar_cnn_forward.1} parent=11 // pred_check_branch
          %367 = sbr.rel (%p365) target = $region48
        $region47: #{cifar_cnn_forward.1} parent=11 // pred_region
          _
        $region48: #{cifar_cnn_forward.1} parent=11 // pred_fallthru
          _
        // Predicated region
        $region49: #{cifar_cnn_forward.1} parent=11 // pred_check
          %p368 = pneg %p258
        $region50: #{cifar_cnn_forward.1} parent=11 // pred_check_branch
          %370 = sbr.rel (%p368) target = $region52
        $region51: #{cifar_cnn_forward.1} parent=11 // pred_region
          _
        $region52: #{cifar_cnn_forward.1} parent=11 // pred_fallthru
          _
        // Predicated region
        $region53: #{cifar_cnn_forward.1} parent=11 // pred_check
          %p371 = pneg %p279
        $region54: #{cifar_cnn_forward.1} parent=11 // pred_check_branch
          %373 = sbr.rel (%p371) target = $region56
        $region55: #{cifar_cnn_forward.1} parent=11 // pred_region
          _
        $region56: #{cifar_cnn_forward.1} parent=11 // pred_fallthru
          _
        // Predicated region
        $region57: #{cifar_cnn_forward.1} parent=11 // pred_check
          %p374 = pneg %p300
        $region58: #{cifar_cnn_forward.1} parent=11 // pred_check_branch
          %376 = sbr.rel (%p374) target = $region60
        $region59: #{cifar_cnn_forward.1} parent=11 // pred_region
          _
        $region60: #{cifar_cnn_forward.1} parent=11 // pred_fallthru
          _
      $region12: #{cifar_cnn_forward.1} parent=5 // pred_fallthru
        _
      %p377 = scmp.lt.s32.totalorder %s22, 2
      // Predicated region
      $region61: #{cifar_cnn_forward.1} parent=5 // pred_check
        %p378 = pneg %p377
      $region62: #{cifar_cnn_forward.1} parent=5 // pred_check_branch
        %380 = sbr.rel (%p378) target = $region64
      $region63: #{cifar_cnn_forward.1} parent=5 // pred_region
        // Predicated region
        $region65: #{cifar_cnn_forward.1} parent=63 // pred_check
          %p381 = pneg %p42
        $region66: #{cifar_cnn_forward.1} parent=63 // pred_check_branch
          %383 = sbr.rel (%p381) target = $region68
        $region67: #{cifar_cnn_forward.1} parent=63 // pred_region
          %p384 = scmp.lt.s32.totalorder %s22, 1
          %s385 = scalar_select %p384, %s22, 1
          %s386 = smul.addr %s385, 204
          %s387 = smul.addr %s386, 8
          %s388 = scalar_lea.vmem %s0, %s387
        $region68: #{cifar_cnn_forward.1} parent=63 // pred_fallthru
          _
      $region64: #{cifar_cnn_forward.1} parent=5 // pred_fallthru
        _
      %p389 = scmp.le.s32.totalorder 1, %s22
      %p390 = scmp.lt.s32.totalorder %s22, 3
      %p391 = pnand %p389, %p390
      %p392 = pneg %p391
      // Predicated region
      $region69: #{cifar_cnn_forward.1} parent=5 // pred_check
        _
      $region70: #{cifar_cnn_forward.1} parent=5 // pred_check_branch
        %394 = sbr.rel (%p391) target = $region72
      $region71: #{cifar_cnn_forward.1} parent=5 // pred_region
        %s395 = ssub.s32 %s22, 1
        %p396 = scmp.lt.s32.totalorder %s27, 1
        %s397 = scalar_select %p396, %s27, 1
        %s398 = smul.addr %s397, 204
        %s399 = smul.addr %s398, 8
        %s400 = scalar_lea.vmem %s0, %s399
        %p401 = pneg %p48
        %p402 = pneg %p45
        %p403 = pneg %p69
        %p404 = pneg %p66
        %p405 = pneg %p90
        %p406 = pneg %p87
        %p407 = pneg %p111
        %p408 = pneg %p108
        %p409 = pneg %p132
        %p410 = pneg %p129
        %p411 = pneg %p153
        %p412 = pneg %p150
        %p413 = pneg %p174
        %p414 = pneg %p171
        %p415 = pneg %p195
        %p416 = pneg %p192
        %p417 = pneg %p216
        %p418 = pneg %p213
        %p419 = pneg %p237
        %p420 = pneg %p234
        %p421 = pneg %p258
        %p422 = pneg %p255
        %p423 = pneg %p279
        %p424 = pneg %p276
        %p425 = pneg %p300
        %p426 = pneg %p297
        %p427 = pneg %p326
        %p428 = pneg %p323
        %s429 = sand.u32 %s313, 1
        %s430 = scalar_lea.sflag [#allocation6], %s429
        %s431 = sand.u32 %s313, 1
        %s432 = scalar_lea.vmem [#allocation5], %s431
        %p433 = scmp.lt.s32.totalorder %s27, 1
        %s434 = scalar_select %p433, %s27, 1
        %s435 = smul.addr %s434, 204
        %s436 = smul.addr %s435, 8
        %s437 = scalar_lea.vmem %s0, %s436
        %438 = vst [vmem:[#allocation2] sm:$0xff] 0.0
        %439 = vst [vmem:[#allocation2 + $0x8] sm:$0xff] 0.0
        %440 = vst [vmem:[#allocation2 + $0x10] sm:$0xff] 0.0
        %441 = vst [vmem:[#allocation2 + $0x18] sm:$0xff] 0.0
        %442 = vst [vmem:[#allocation2 + $0x20] sm:$0xff] 0.0
        %443 = vst [vmem:[#allocation2 + $0x28] sm:$0xff] 0.0
        %444 = vst [vmem:[#allocation2 + $0x30] sm:$0xff] 0.0
        %445 = vst [vmem:[#allocation2 + $0x38] sm:$0xff] 0.0
        %446 = vst [vmem:[#allocation2 + $0x40] sm:$0xff] 0.0
        %447 = vst [vmem:[#allocation2 + $0x48] sm:$0xff] 0.0
        %448 = vst [vmem:[#allocation2 + $0x50] sm:$0xff] 0.0
        %449 = vst [vmem:[#allocation2 + $0x58] sm:$0xff] 0.0
        %450 = vst [vmem:[#allocation2 + $0x60] sm:$0xff] 0.0
        %451 = vst [vmem:[#allocation2 + $0x68] sm:$0xff] 0.0
        %452 = vst [vmem:[#allocation2 + $0x70] sm:$0xff] 0.0
        %453 = vst [vmem:[#allocation2 + $0x78] sm:$0xff] 0.0
        %454 = vst [vmem:[#allocation2 + $0x80] sm:$0xff] 0.0
        %455 = vst [vmem:[#allocation2 + $0x88] sm:$0xff] 0.0
        %456 = vst [vmem:[#allocation2 + $0x90] sm:$0xff] 0.0
        %457 = vst [vmem:[#allocation2 + $0x98] sm:$0xff] 0.0
        %458 = vst [vmem:[#allocation2 + $0xa0] sm:$0xff] 0.0
        %459 = vst [vmem:[#allocation2 + $0xa8] sm:$0xff] 0.0
        %460 = vst [vmem:[#allocation2 + $0xb0] sm:$0xff] 0.0
        %461 = vst [vmem:[#allocation2 + $0xb8] sm:$0xff] 0.0
        %462 = vst [vmem:[#allocation2 + $0xc0] sm:$0xff] 0.0
        %463 = vst [vmem:[#allocation2 + $0xc8] sm:$0xff] 0.0
        %464 = vst [vmem:[#allocation2 + $0xd0] sm:$0xff] 0.0
        %465 = vst [vmem:[#allocation2 + $0xd8] sm:$0xff] 0.0
        %466 = vst [vmem:[#allocation2 + $0xe0] sm:$0xff] 0.0
        %467 = vst [vmem:[#allocation2 + $0xe8] sm:$0xff] 0.0
        %468 = vst [vmem:[#allocation2 + $0xf0] sm:$0xff] 0.0
        %469 = vst [vmem:[#allocation2 + $0xf8] sm:$0xff] 0.0
        %470 = vst [vmem:[#allocation2 + $0x100] sm:$0xff] 0.0
        %471 = vst [vmem:[#allocation2 + $0x108] sm:$0xff] 0.0
        %472 = vst [vmem:[#allocation2 + $0x110] sm:$0xff] 0.0
        %473 = vst [vmem:[#allocation2 + $0x118] sm:$0xff] 0.0
        %474 = vst [vmem:[#allocation2 + $0x120] sm:$0xff] 0.0
        %475 = vst [vmem:[#allocation2 + $0x128] sm:$0xff] 0.0
        %476 = vst [vmem:[#allocation2 + $0x130] sm:$0xff] 0.0
        %477 = vst [vmem:[#allocation2 + $0x138] sm:$0xff] 0.0
        %478 = vst [vmem:[#allocation2 + $0x140] sm:$0xff] 0.0
        %479 = vst [vmem:[#allocation2 + $0x148] sm:$0xff] 0.0
        %480 = vst [vmem:[#allocation2 + $0x150] sm:$0xff] 0.0
        %481 = vst [vmem:[#allocation2 + $0x158] sm:$0xff] 0.0
        %482 = vst [vmem:[#allocation2 + $0x160] sm:$0xff] 0.0
        %483 = vst [vmem:[#allocation2 + $0x168] sm:$0xff] 0.0
        %484 = vst [vmem:[#allocation2 + $0x170] sm:$0xff] 0.0
        %485 = vst [vmem:[#allocation2 + $0x178] sm:$0xff] 0.0
        %486 = vst [vmem:[#allocation2 + $0x180] sm:$0xff] 0.0
        %487 = vst [vmem:[#allocation2 + $0x188] sm:$0xff] 0.0
        %488 = vst [vmem:[#allocation2 + $0x190] sm:$0xff] 0.0
        %489 = vst [vmem:[#allocation2 + $0x198] sm:$0xff] 0.0
        %490 = vst [vmem:[#allocation2 + $0x1a0] sm:$0xff] 0.0
        %491 = vst [vmem:[#allocation2 + $0x1a8] sm:$0xff] 0.0
        %492 = vst [vmem:[#allocation2 + $0x1b0] sm:$0xff] 0.0
        %493 = vst [vmem:[#allocation2 + $0x1b8] sm:$0xff] 0.0
        %494 = vst [vmem:[#allocation2 + $0x1c0] sm:$0xff] 0.0
        %495 = vst [vmem:[#allocation2 + $0x1c8] sm:$0xff] 0.0
        %496 = vst [vmem:[#allocation2 + $0x1d0] sm:$0xff] 0.0
        %497 = vst [vmem:[#allocation2 + $0x1d8] sm:$0xff] 0.0
        %498 = vst [vmem:[#allocation2 + $0x1e0] sm:$0xff] 0.0
        %499 = vst [vmem:[#allocation2 + $0x1e8] sm:$0xff] 0.0
        %500 = vst [vmem:[#allocation2 + $0x1f0] sm:$0xff] 0.0
        %501 = vst [vmem:[#allocation2 + $0x1f8] sm:$0xff] 0.0
        %502 = vst [vmem:[#allocation2 + $0x200] sm:$0xff] 0.0
        %503 = vst [vmem:[#allocation2 + $0x208] sm:$0xff] 0.0
        %504 = vst [vmem:[#allocation2 + $0x210] sm:$0xff] 0.0
        %505 = vst [vmem:[#allocation2 + $0x218] sm:$0xff] 0.0
        %506 = vst [vmem:[#allocation2 + $0x220] sm:$0xff] 0.0
        %507 = vst [vmem:[#allocation2 + $0x228] sm:$0xff] 0.0
        %508 = vst [vmem:[#allocation2 + $0x230] sm:$0xff] 0.0
        %509 = vst [vmem:[#allocation2 + $0x238] sm:$0xff] 0.0
        %510 = vst [vmem:[#allocation3] sm:$0xff] 0.0
        %511 = vst [vmem:[#allocation3 + $0x8] sm:$0xff] 0.0
        %512 = vst [vmem:[#allocation3 + $0x10] sm:$0xff] 0.0
        %513 = vst [vmem:[#allocation3 + $0x18] sm:$0xff] 0.0
        %514 = vst [vmem:[#allocation3 + $0x20] sm:$0xff] 0.0
        %515 = vst [vmem:[#allocation3 + $0x28] sm:$0xff] 0.0
        %516 = vst [vmem:[#allocation3 + $0x30] sm:$0xff] 0.0
        %517 = vst [vmem:[#allocation3 + $0x38] sm:$0xff] 0.0
        %518 = vst [vmem:[#allocation3 + $0x40] sm:$0xff] 0.0
        %519 = vst [vmem:[#allocation3 + $0x48] sm:$0xff] 0.0
        %520 = vst [vmem:[#allocation3 + $0x50] sm:$0xff] 0.0
        %521 = vst [vmem:[#allocation3 + $0x58] sm:$0xff] 0.0
        %522 = vst [vmem:[#allocation3 + $0x60] sm:$0xff] 0.0
        %523 = vst [vmem:[#allocation3 + $0x68] sm:$0xff] 0.0
        %524 = vst [vmem:[#allocation3 + $0x70] sm:$0xff] 0.0
        %525 = vst [vmem:[#allocation3 + $0x78] sm:$0xff] 0.0
        %526 = vst [vmem:[#allocation3 + $0x80] sm:$0xff] 0.0
        %527 = vst [vmem:[#allocation3 + $0x88] sm:$0xff] 0.0
        %528 = vst [vmem:[#allocation3 + $0x90] sm:$0xff] 0.0
        %529 = vst [vmem:[#allocation3 + $0x98] sm:$0xff] 0.0
        %530 = vst [vmem:[#allocation3 + $0xa0] sm:$0xff] 0.0
        %531 = vst [vmem:[#allocation3 + $0xa8] sm:$0xff] 0.0
        %532 = vst [vmem:[#allocation3 + $0xb0] sm:$0xff] 0.0
        %533 = vst [vmem:[#allocation3 + $0xb8] sm:$0xff] 0.0
        %534 = vst [vmem:[#allocation3 + $0xc0] sm:$0xff] 0.0
        %535 = vst [vmem:[#allocation3 + $0xc8] sm:$0xff] 0.0
        %536 = vst [vmem:[#allocation3 + $0xd0] sm:$0xff] 0.0
        %537 = vst [vmem:[#allocation3 + $0xd8] sm:$0xff] 0.0
        %538 = vst [vmem:[#allocation3 + $0xe0] sm:$0xff] 0.0
        %539 = vst [vmem:[#allocation3 + $0xe8] sm:$0xff] 0.0
        %v540 = vld [vmem:[%s437 + $0x7] sm:$0xff]
        %v541 = vld [vmem:[%s437 + $0xf] sm:$0xff]
        %v542 = vld [vmem:[%s437 + $0x17] sm:$0xff]
        %v543 = vld [vmem:[%s437 + $0x1f] sm:$0xff]
        %v544 = vld [vmem:[%s437 + $0x37] sm:$0xff]
        %v545 = vld [vmem:[%s437 + $0x3f] sm:$0xff]
        %v546 = vld [vmem:[%s437 + $0x47] sm:$0xff]
        %v547 = vld [vmem:[%s437 + $0x4f] sm:$0xff]
        %v548 = vld [vmem:[%s437 + $0x67] sm:$0xff]
        %v549 = vld [vmem:[%s437 + $0x6f] sm:$0xff]
        %v550 = vld [vmem:[%s437 + $0x77] sm:$0xff]
        %v551 = vld [vmem:[%s437 + $0x7f] sm:$0xff]
        %v552 = vld [vmem:[%s437 + $0x97] sm:$0xff]
        %v553 = vld [vmem:[%s437 + $0x9f] sm:$0xff]
        %v554 = vld [vmem:[%s437 + $0xa7] sm:$0xff]
        %v555 = vld [vmem:[%s437 + $0xaf] sm:$0xff]
        %v556 = vld [vmem:[%s437 + $0xc7] sm:$0xff]
        %v557 = vld [vmem:[%s437 + $0xcf] sm:$0xff]
        %v558 = vld [vmem:[%s437 + $0xd7] sm:$0xff]
        %v559 = vld [vmem:[%s437 + $0xdf] sm:$0xff]
        %v560 = vld [vmem:[%s437 + $0xf7] sm:$0xff]
        %v561 = vld [vmem:[%s437 + $0xff] sm:$0xff]
        %v562 = vld [vmem:[%s437 + $0x107] sm:$0xff]
        %v563 = vld [vmem:[%s437 + $0x10f] sm:$0xff]
        %v564 = vld [vmem:[%s437 + $0x127] sm:$0xff]
        %v565 = vld [vmem:[%s437 + $0x12f] sm:$0xff]
        %v566 = vld [vmem:[%s437 + $0x137] sm:$0xff]
        %v567 = vld [vmem:[%s437 + $0x13f] sm:$0xff]
        %v568 = vld [vmem:[%s437 + $0x157] sm:$0xff]
        %v569 = vld [vmem:[%s437 + $0x15f] sm:$0xff]
        %v570 = vld [vmem:[%s437 + $0x167] sm:$0xff]
        %v571 = vld [vmem:[%s437 + $0x16f] sm:$0xff]
        %v572 = vld [vmem:[%s437 + $0x187] sm:$0xff]
        %v573 = vld [vmem:[%s437 + $0x18f] sm:$0xff]
        %v574 = vld [vmem:[%s437 + $0x197] sm:$0xff]
        %v575 = vld [vmem:[%s437 + $0x19f] sm:$0xff]
        %v576 = vld [vmem:[%s437 + $0x1b7] sm:$0xff]
        %v577 = vld [vmem:[%s437 + $0x1bf] sm:$0xff]
        %v578 = vld [vmem:[%s437 + $0x1c7] sm:$0xff]
        %v579 = vld [vmem:[%s437 + $0x1cf] sm:$0xff]
        %v580 = vld [vmem:[%s437 + $0x1e7] sm:$0xff]
        %v581 = vld [vmem:[%s437 + $0x1ef] sm:$0xff]
        %v582 = vld [vmem:[%s437 + $0x1f7] sm:$0xff]
        %v583 = vld [vmem:[%s437 + $0x1ff] sm:$0xff]
        %v584 = vld [vmem:[%s437 + $0x217] sm:$0xff]
        %v585 = vld [vmem:[%s437 + $0x21f] sm:$0xff]
        %v586 = vld [vmem:[%s437 + $0x227] sm:$0xff]
        %v587 = vld [vmem:[%s437 + $0x22f] sm:$0xff]
        %v588 = vld [vmem:[%s437 + $0x247] sm:$0xff]
        %v589 = vld [vmem:[%s437 + $0x24f] sm:$0xff]
        %v590 = vld [vmem:[%s437 + $0x257] sm:$0xff]
        %v591 = vld [vmem:[%s437 + $0x25f] sm:$0xff]
        %v592 = vld [vmem:[%s437 + $0x277] sm:$0xff]
        %v593 = vld [vmem:[%s437 + $0x27f] sm:$0xff]
        %v594 = vld [vmem:[%s437 + $0x287] sm:$0xff]
        %v595 = vld [vmem:[%s437 + $0x28f] sm:$0xff]
        %v596 = vld [vmem:[%s437 + $0x2a7] sm:$0xff]
        %v597 = vld [vmem:[%s437 + $0x2af] sm:$0xff]
        %v598 = vld [vmem:[%s437 + $0x2b7] sm:$0xff]
        %v599 = vld [vmem:[%s437 + $0x2bf] sm:$0xff]
        %v600 = vld [vmem:[%s437 + $0x2d7] sm:$0xff]
        %v601 = vld [vmem:[%s437 + $0x2df] sm:$0xff]
        %v602 = vld [vmem:[%s437 + $0x2e7] sm:$0xff]
        %v603 = vld [vmem:[%s437 + $0x2ef] sm:$0xff]
        %v604 = vld [vmem:[%s437 + $0x307] sm:$0xff]
        %v605 = vld [vmem:[%s437 + $0x30f] sm:$0xff]
        %v606 = vld [vmem:[%s437 + $0x317] sm:$0xff]
        %v607 = vld [vmem:[%s437 + $0x31f] sm:$0xff]
        %v608 = vld [vmem:[%s437 + $0x337] sm:$0xff]
        %v609 = vld [vmem:[%s437 + $0x33f] sm:$0xff]
        %v610 = vld [vmem:[%s437 + $0x347] sm:$0xff]
        %v611 = vld [vmem:[%s437 + $0x34f] sm:$0xff]
        %v612 = vld [vmem:[%s437 + $0x367] sm:$0xff]
        %v613 = vld [vmem:[%s437 + $0x36f] sm:$0xff]
        %v614 = vld [vmem:[%s437 + $0x377] sm:$0xff]
        %v615 = vld [vmem:[%s437 + $0x37f] sm:$0xff]
        %v616 = vld [vmem:[%s437 + $0x397] sm:$0xff]
        %v617 = vld [vmem:[%s437 + $0x39f] sm:$0xff]
        %v618 = vld [vmem:[%s437 + $0x3a7] sm:$0xff]
        %v619 = vld [vmem:[%s437 + $0x3af] sm:$0xff]
        %v620 = vld [vmem:[%s437 + $0x3c7] sm:$0xff]
        %v621 = vld [vmem:[%s437 + $0x3cf] sm:$0xff]
        %v622 = vld [vmem:[%s437 + $0x3d7] sm:$0xff]
        %v623 = vld [vmem:[%s437 + $0x3df] sm:$0xff]
        %v624 = vld [vmem:[%s437 + $0x3f7] sm:$0xff]
        %v625 = vld [vmem:[%s437 + $0x3ff] sm:$0xff]
        %v626 = vld [vmem:[%s437 + $0x407] sm:$0xff]
        %v627 = vld [vmem:[%s437 + $0x40f] sm:$0xff]
        %v628 = vld [vmem:[%s437 + $0x427] sm:$0xff]
        %v629 = vld [vmem:[%s437 + $0x42f] sm:$0xff]
        %v630 = vld [vmem:[%s437 + $0x437] sm:$0xff]
        %v631 = vld [vmem:[%s437 + $0x43f] sm:$0xff]
        %v632 = vld [vmem:[%s437 + $0x457] sm:$0xff]
        %v633 = vld [vmem:[%s437 + $0x45f] sm:$0xff]
        %v634 = vld [vmem:[%s437 + $0x467] sm:$0xff]
        %v635 = vld [vmem:[%s437 + $0x46f] sm:$0xff]
        %v636 = vld [vmem:[%s437 + $0x487] sm:$0xff]
        %v637 = vld [vmem:[%s437 + $0x48f] sm:$0xff]
        %v638 = vld [vmem:[%s437 + $0x497] sm:$0xff]
        %v639 = vld [vmem:[%s437 + $0x49f] sm:$0xff]
        %v640 = vld [vmem:[%s437 + $0x4b7] sm:$0xff]
        %v641 = vld [vmem:[%s437 + $0x4bf] sm:$0xff]
        %v642 = vld [vmem:[%s437 + $0x4c7] sm:$0xff]
        %v643 = vld [vmem:[%s437 + $0x4cf] sm:$0xff]
        %v644 = vld [vmem:[%s437 + $0x4e7] sm:$0xff]
        %v645 = vld [vmem:[%s437 + $0x4ef] sm:$0xff]
        %v646 = vld [vmem:[%s437 + $0x4f7] sm:$0xff]
        %v647 = vld [vmem:[%s437 + $0x4ff] sm:$0xff]
        %v648 = vld [vmem:[%s437 + $0x517] sm:$0xff]
        %v649 = vld [vmem:[%s437 + $0x51f] sm:$0xff]
        %v650 = vld [vmem:[%s437 + $0x527] sm:$0xff]
        %v651 = vld [vmem:[%s437 + $0x52f] sm:$0xff]
        %v652 = vld [vmem:[%s437 + $0x547] sm:$0xff]
        %v653 = vld [vmem:[%s437 + $0x54f] sm:$0xff]
        %v654 = vld [vmem:[%s437 + $0x557] sm:$0xff]
        %v655 = vld [vmem:[%s437 + $0x55f] sm:$0xff]
        %v656 = vld [vmem:[%s437 + $0x577] sm:$0xff]
        %v657 = vld [vmem:[%s437 + $0x57f] sm:$0xff]
        %v658 = vld [vmem:[%s437 + $0x587] sm:$0xff]
        %v659 = vld [vmem:[%s437 + $0x58f] sm:$0xff]
        %v660 = vld [vmem:[%s437 + $0x5a7] sm:$0xff]
        %v661 = vld [vmem:[%s437 + $0x5af] sm:$0xff]
        %v662 = vld [vmem:[%s437 + $0x5b7] sm:$0xff]
        %v663 = vld [vmem:[%s437 + $0x5bf] sm:$0xff]
        %v664 = vld [vmem:[%s437 + $0x5d7] sm:$0xff]
        %v665 = vld [vmem:[%s437 + $0x5df] sm:$0xff]
        %v666 = vld [vmem:[%s437 + $0x5e7] sm:$0xff]
        %v667 = vld [vmem:[%s437 + $0x5ef] sm:$0xff]
        %v668 = vld [vmem:[%s437 + $0x607] sm:$0xff]
        %v669 = vld [vmem:[%s437 + $0x60f] sm:$0xff]
        %v670 = vld [vmem:[%s437 + $0x617] sm:$0xff]
        %v671 = vld [vmem:[%s437 + $0x61f] sm:$0xff]
        %v672 = vld [vmem:[%s437 + $0x637] sm:$0xff]
        %v673 = vld [vmem:[%s437 + $0x63f] sm:$0xff]
        %v674 = vld [vmem:[%s437 + $0x647] sm:$0xff]
        %v675 = vld [vmem:[%s437 + $0x64f] sm:$0xff]
        %v676 = vld [vmem:[%s437 + $0x8] sm:$0xff]
        %v677 = vld [vmem:[%s437 + $0x10] sm:$0xff]
        %v678 = vld [vmem:[%s437 + $0x18] sm:$0xff]
        %v679 = vld [vmem:[%s437 + $0x20] sm:$0xff]
        %v680 = vld [vmem:[%s437 + $0x38] sm:$0xff]
        %v681 = vld [vmem:[%s437 + $0x40] sm:$0xff]
        %v682 = vld [vmem:[%s437 + $0x48] sm:$0xff]
        %v683 = vld [vmem:[%s437 + $0x50] sm:$0xff]
        %v684 = vld [vmem:[%s437 + $0x68] sm:$0xff]
        %v685 = vld [vmem:[%s437 + $0x70] sm:$0xff]
        %v686 = vld [vmem:[%s437 + $0x78] sm:$0xff]
        %v687 = vld [vmem:[%s437 + $0x80] sm:$0xff]
        %v688 = vld [vmem:[%s437 + $0x98] sm:$0xff]
        %v689 = vld [vmem:[%s437 + $0xa0] sm:$0xff]
        %v690 = vld [vmem:[%s437 + $0xa8] sm:$0xff]
        %v691 = vld [vmem:[%s437 + $0xb0] sm:$0xff]
        %v692 = vld [vmem:[%s437 + $0xc8] sm:$0xff]
        %v693 = vld [vmem:[%s437 + $0xd0] sm:$0xff]
        %v694 = vld [vmem:[%s437 + $0xd8] sm:$0xff]
        %v695 = vld [vmem:[%s437 + $0xe0] sm:$0xff]
        %v696 = vld [vmem:[%s437 + $0xf8] sm:$0xff]
        %v697 = vld [vmem:[%s437 + $0x100] sm:$0xff]
        %v698 = vld [vmem:[%s437 + $0x108] sm:$0xff]
        %v699 = vld [vmem:[%s437 + $0x110] sm:$0xff]
        %v700 = vld [vmem:[%s437 + $0x128] sm:$0xff]
        %v701 = vld [vmem:[%s437 + $0x130] sm:$0xff]
        %v702 = vld [vmem:[%s437 + $0x138] sm:$0xff]
        %v703 = vld [vmem:[%s437 + $0x140] sm:$0xff]
        %v704 = vld [vmem:[%s437 + $0x158] sm:$0xff]
        %v705 = vld [vmem:[%s437 + $0x160] sm:$0xff]
        %v706 = vld [vmem:[%s437 + $0x168] sm:$0xff]
        %v707 = vld [vmem:[%s437 + $0x170] sm:$0xff]
        %v708 = vld [vmem:[%s437 + $0x188] sm:$0xff]
        %v709 = vld [vmem:[%s437 + $0x190] sm:$0xff]
        %v710 = vld [vmem:[%s437 + $0x198] sm:$0xff]
        %v711 = vld [vmem:[%s437 + $0x1a0] sm:$0xff]
        %v712 = vld [vmem:[%s437 + $0x1b8] sm:$0xff]
        %v713 = vld [vmem:[%s437 + $0x1c0] sm:$0xff]
        %v714 = vld [vmem:[%s437 + $0x1c8] sm:$0xff]
        %v715 = vld [vmem:[%s437 + $0x1d0] sm:$0xff]
        %v716 = vld [vmem:[%s437 + $0x1e8] sm:$0xff]
        %v717 = vld [vmem:[%s437 + $0x1f0] sm:$0xff]
        %v718 = vld [vmem:[%s437 + $0x1f8] sm:$0xff]
        %v719 = vld [vmem:[%s437 + $0x200] sm:$0xff]
        %v720 = vld [vmem:[%s437 + $0x218] sm:$0xff]
        %v721 = vld [vmem:[%s437 + $0x220] sm:$0xff]
        %v722 = vld [vmem:[%s437 + $0x228] sm:$0xff]
        %v723 = vld [vmem:[%s437 + $0x230] sm:$0xff]
        %v724 = vld [vmem:[%s437 + $0x248] sm:$0xff]
        %v725 = vld [vmem:[%s437 + $0x250] sm:$0xff]
        %v726 = vld [vmem:[%s437 + $0x258] sm:$0xff]
        %v727 = vld [vmem:[%s437 + $0x260] sm:$0xff]
        %v728 = vld [vmem:[%s437 + $0x278] sm:$0xff]
        %v729 = vld [vmem:[%s437 + $0x280] sm:$0xff]
        %v730 = vld [vmem:[%s437 + $0x288] sm:$0xff]
        %v731 = vld [vmem:[%s437 + $0x290] sm:$0xff]
        %v732 = vld [vmem:[%s437 + $0x2a8] sm:$0xff]
        %v733 = vld [vmem:[%s437 + $0x2b0] sm:$0xff]
        %v734 = vld [vmem:[%s437 + $0x2b8] sm:$0xff]
        %v735 = vld [vmem:[%s437 + $0x2c0] sm:$0xff]
        %v736 = vld [vmem:[%s437 + $0x2d8] sm:$0xff]
        %v737 = vld [vmem:[%s437 + $0x2e0] sm:$0xff]
        %v738 = vld [vmem:[%s437 + $0x2e8] sm:$0xff]
        %v739 = vld [vmem:[%s437 + $0x2f0] sm:$0xff]
        %v740 = vld [vmem:[%s437 + $0x308] sm:$0xff]
        %v741 = vld [vmem:[%s437 + $0x310] sm:$0xff]
        %v742 = vld [vmem:[%s437 + $0x318] sm:$0xff]
        %v743 = vld [vmem:[%s437 + $0x320] sm:$0xff]
        %v744 = vld [vmem:[%s437 + $0x338] sm:$0xff]
        %v745 = vld [vmem:[%s437 + $0x340] sm:$0xff]
        %v746 = vld [vmem:[%s437 + $0x348] sm:$0xff]
        %v747 = vld [vmem:[%s437 + $0x350] sm:$0xff]
        %v748 = vld [vmem:[%s437 + $0x368] sm:$0xff]
        %v749 = vld [vmem:[%s437 + $0x370] sm:$0xff]
        %v750 = vld [vmem:[%s437 + $0x378] sm:$0xff]
        %v751 = vld [vmem:[%s437 + $0x380] sm:$0xff]
        %v752 = vld [vmem:[%s437 + $0x398] sm:$0xff]
        %v753 = vld [vmem:[%s437 + $0x3a0] sm:$0xff]
        %v754 = vld [vmem:[%s437 + $0x3a8] sm:$0xff]
        %v755 = vld [vmem:[%s437 + $0x3b0] sm:$0xff]
        %v756 = vld [vmem:[%s437 + $0x3c8] sm:$0xff]
        %v757 = vld [vmem:[%s437 + $0x3d0] sm:$0xff]
        %v758 = vld [vmem:[%s437 + $0x3d8] sm:$0xff]
        %v759 = vld [vmem:[%s437 + $0x3e0] sm:$0xff]
        %v760 = vld [vmem:[%s437 + $0x3f8] sm:$0xff]
        %v761 = vld [vmem:[%s437 + $0x400] sm:$0xff]
        %v762 = vld [vmem:[%s437 + $0x408] sm:$0xff]
        %v763 = vld [vmem:[%s437 + $0x410] sm:$0xff]
        %v764 = vld [vmem:[%s437 + $0x428] sm:$0xff]
        %v765 = vld [vmem:[%s437 + $0x430] sm:$0xff]
        %v766 = vld [vmem:[%s437 + $0x438] sm:$0xff]
        %v767 = vld [vmem:[%s437 + $0x440] sm:$0xff]
        %v768 = vld [vmem:[%s437 + $0x458] sm:$0xff]
        %v769 = vld [vmem:[%s437 + $0x460] sm:$0xff]
        %v770 = vld [vmem:[%s437 + $0x468] sm:$0xff]
        %v771 = vld [vmem:[%s437 + $0x470] sm:$0xff]
        %v772 = vld [vmem:[%s437 + $0x488] sm:$0xff]
        %v773 = vld [vmem:[%s437 + $0x490] sm:$0xff]
        %v774 = vld [vmem:[%s437 + $0x498] sm:$0xff]
        %v775 = vld [vmem:[%s437 + $0x4a0] sm:$0xff]
        %v776 = vld [vmem:[%s437 + $0x4b8] sm:$0xff]
        %v777 = vld [vmem:[%s437 + $0x4c0] sm:$0xff]
        %v778 = vld [vmem:[%s437 + $0x4c8] sm:$0xff]
        %v779 = vld [vmem:[%s437 + $0x4d0] sm:$0xff]
        %v780 = vld [vmem:[%s437 + $0x4e8] sm:$0xff]
        %v781 = vld [vmem:[%s437 + $0x4f0] sm:$0xff]
        %v782 = vld [vmem:[%s437 + $0x4f8] sm:$0xff]
        %v783 = vld [vmem:[%s437 + $0x500] sm:$0xff]
        %v784 = vld [vmem:[%s437 + $0x518] sm:$0xff]
        %v785 = vld [vmem:[%s437 + $0x520] sm:$0xff]
        %v786 = vld [vmem:[%s437 + $0x528] sm:$0xff]
        %v787 = vld [vmem:[%s437 + $0x530] sm:$0xff]
        %v788 = vld [vmem:[%s437 + $0x548] sm:$0xff]
        %v789 = vld [vmem:[%s437 + $0x550] sm:$0xff]
        %v790 = vld [vmem:[%s437 + $0x558] sm:$0xff]
        %v791 = vld [vmem:[%s437 + $0x560] sm:$0xff]
        %v792 = vld [vmem:[%s437 + $0x578] sm:$0xff]
        %v793 = vld [vmem:[%s437 + $0x580] sm:$0xff]
        %v794 = vld [vmem:[%s437 + $0x588] sm:$0xff]
        %v795 = vld [vmem:[%s437 + $0x590] sm:$0xff]
        %v796 = vld [vmem:[%s437 + $0x5a8] sm:$0xff]
        %v797 = vld [vmem:[%s437 + $0x5b0] sm:$0xff]
        %v798 = vld [vmem:[%s437 + $0x5b8] sm:$0xff]
        %v799 = vld [vmem:[%s437 + $0x5c0] sm:$0xff]
        %v800 = vld [vmem:[%s437 + $0x5d8] sm:$0xff]
        %v801 = vld [vmem:[%s437 + $0x5e0] sm:$0xff]
        %v802 = vld [vmem:[%s437 + $0x5e8] sm:$0xff]
        %v803 = vld [vmem:[%s437 + $0x5f0] sm:$0xff]
        %v804 = vld [vmem:[%s437 + $0x608] sm:$0xff]
        %v805 = vld [vmem:[%s437 + $0x610] sm:$0xff]
        %v806 = vld [vmem:[%s437 + $0x618] sm:$0xff]
        %v807 = vld [vmem:[%s437 + $0x620] sm:$0xff]
        %v808 = vld [vmem:[%s437 + $0x638] sm:$0xff]
        %v809 = vld [vmem:[%s437 + $0x640] sm:$0xff]
        %v810 = vld [vmem:[%s437 + $0x648] sm:$0xff]
        %v811 = vld [vmem:[%s437 + $0x650] sm:$0xff]
        %v812 = vld [vmem:[%s437 + $0x9] sm:$0xff]
        %v813 = vld [vmem:[%s437 + $0x11] sm:$0xff]
        %v814 = vld [vmem:[%s437 + $0x19] sm:$0xff]
        %v815 = vld [vmem:[%s437 + $0x21] sm:$0xff]
        %v816 = vld [vmem:[%s437 + $0x39] sm:$0xff]
        %v817 = vld [vmem:[%s437 + $0x41] sm:$0xff]
        %v818 = vld [vmem:[%s437 + $0x49] sm:$0xff]
        %v819 = vld [vmem:[%s437 + $0x51] sm:$0xff]
        %v820 = vld [vmem:[%s437 + $0x69] sm:$0xff]
        %v821 = vld [vmem:[%s437 + $0x71] sm:$0xff]
        %v822 = vld [vmem:[%s437 + $0x79] sm:$0xff]
        %v823 = vld [vmem:[%s437 + $0x81] sm:$0xff]
        %v824 = vld [vmem:[%s437 + $0x99] sm:$0xff]
        %v825 = vld [vmem:[%s437 + $0xa1] sm:$0xff]
        %v826 = vld [vmem:[%s437 + $0xa9] sm:$0xff]
        %v827 = vld [vmem:[%s437 + $0xb1] sm:$0xff]
        %v828 = vld [vmem:[%s437 + $0xc9] sm:$0xff]
        %v829 = vld [vmem:[%s437 + $0xd1] sm:$0xff]
        %v830 = vld [vmem:[%s437 + $0xd9] sm:$0xff]
        %v831 = vld [vmem:[%s437 + $0xe1] sm:$0xff]
        %v832 = vld [vmem:[%s437 + $0xf9] sm:$0xff]
        %v833 = vld [vmem:[%s437 + $0x101] sm:$0xff]
        %v834 = vld [vmem:[%s437 + $0x109] sm:$0xff]
        %v835 = vld [vmem:[%s437 + $0x111] sm:$0xff]
        %v836 = vld [vmem:[%s437 + $0x129] sm:$0xff]
        %v837 = vld [vmem:[%s437 + $0x131] sm:$0xff]
        %v838 = vld [vmem:[%s437 + $0x139] sm:$0xff]
        %v839 = vld [vmem:[%s437 + $0x141] sm:$0xff]
        %v840 = vld [vmem:[%s437 + $0x159] sm:$0xff]
        %v841 = vld [vmem:[%s437 + $0x161] sm:$0xff]
        %v842 = vld [vmem:[%s437 + $0x169] sm:$0xff]
        %v843 = vld [vmem:[%s437 + $0x171] sm:$0xff]
        %v844 = vld [vmem:[%s437 + $0x189] sm:$0xff]
        %v845 = vld [vmem:[%s437 + $0x191] sm:$0xff]
        %v846 = vld [vmem:[%s437 + $0x199] sm:$0xff]
        %v847 = vld [vmem:[%s437 + $0x1a1] sm:$0xff]
        %v848 = vld [vmem:[%s437 + $0x1b9] sm:$0xff]
        %v849 = vld [vmem:[%s437 + $0x1c1] sm:$0xff]
        %v850 = vld [vmem:[%s437 + $0x1c9] sm:$0xff]
        %v851 = vld [vmem:[%s437 + $0x1d1] sm:$0xff]
        %v852 = vld [vmem:[%s437 + $0x1e9] sm:$0xff]
        %v853 = vld [vmem:[%s437 + $0x1f1] sm:$0xff]
        %v854 = vld [vmem:[%s437 + $0x1f9] sm:$0xff]
        %v855 = vld [vmem:[%s437 + $0x201] sm:$0xff]
        %v856 = vld [vmem:[%s437 + $0x219] sm:$0xff]
        %v857 = vld [vmem:[%s437 + $0x221] sm:$0xff]
        %v858 = vld [vmem:[%s437 + $0x229] sm:$0xff]
        %v859 = vld [vmem:[%s437 + $0x231] sm:$0xff]
        %v860 = vld [vmem:[%s437 + $0x249] sm:$0xff]
        %v861 = vld [vmem:[%s437 + $0x251] sm:$0xff]
        %v862 = vld [vmem:[%s437 + $0x259] sm:$0xff]
        %v863 = vld [vmem:[%s437 + $0x261] sm:$0xff]
        %v864 = vld [vmem:[%s437 + $0x279] sm:$0xff]
        %v865 = vld [vmem:[%s437 + $0x281] sm:$0xff]
        %v866 = vld [vmem:[%s437 + $0x289] sm:$0xff]
        %v867 = vld [vmem:[%s437 + $0x291] sm:$0xff]
        %v868 = vld [vmem:[%s437 + $0x2a9] sm:$0xff]
        %v869 = vld [vmem:[%s437 + $0x2b1] sm:$0xff]
        %v870 = vld [vmem:[%s437 + $0x2b9] sm:$0xff]
        %v871 = vld [vmem:[%s437 + $0x2c1] sm:$0xff]
        %v872 = vld [vmem:[%s437 + $0x2d9] sm:$0xff]
        %v873 = vld [vmem:[%s437 + $0x2e1] sm:$0xff]
        %v874 = vld [vmem:[%s437 + $0x2e9] sm:$0xff]
        %v875 = vld [vmem:[%s437 + $0x2f1] sm:$0xff]
        %v876 = vld [vmem:[%s437 + $0x309] sm:$0xff]
        %v877 = vld [vmem:[%s437 + $0x311] sm:$0xff]
        %v878 = vld [vmem:[%s437 + $0x319] sm:$0xff]
        %v879 = vld [vmem:[%s437 + $0x321] sm:$0xff]
        %v880 = vld [vmem:[%s437 + $0x339] sm:$0xff]
        %v881 = vld [vmem:[%s437 + $0x341] sm:$0xff]
        %v882 = vld [vmem:[%s437 + $0x349] sm:$0xff]
        %v883 = vld [vmem:[%s437 + $0x351] sm:$0xff]
        %v884 = vld [vmem:[%s437 + $0x369] sm:$0xff]
        %v885 = vld [vmem:[%s437 + $0x371] sm:$0xff]
        %v886 = vld [vmem:[%s437 + $0x379] sm:$0xff]
        %v887 = vld [vmem:[%s437 + $0x381] sm:$0xff]
        %v888 = vld [vmem:[%s437 + $0x399] sm:$0xff]
        %v889 = vld [vmem:[%s437 + $0x3a1] sm:$0xff]
        %v890 = vld [vmem:[%s437 + $0x3a9] sm:$0xff]
        %v891 = vld [vmem:[%s437 + $0x3b1] sm:$0xff]
        %v892 = vld [vmem:[%s437 + $0x3c9] sm:$0xff]
        %v893 = vld [vmem:[%s437 + $0x3d1] sm:$0xff]
        %v894 = vld [vmem:[%s437 + $0x3d9] sm:$0xff]
        %v895 = vld [vmem:[%s437 + $0x3e1] sm:$0xff]
        %v896 = vld [vmem:[%s437 + $0x3f9] sm:$0xff]
        %v897 = vld [vmem:[%s437 + $0x401] sm:$0xff]
        %v898 = vld [vmem:[%s437 + $0x409] sm:$0xff]
        %v899 = vld [vmem:[%s437 + $0x411] sm:$0xff]
        %v900 = vld [vmem:[%s437 + $0x429] sm:$0xff]
        %v901 = vld [vmem:[%s437 + $0x431] sm:$0xff]
        %v902 = vld [vmem:[%s437 + $0x439] sm:$0xff]
        %v903 = vld [vmem:[%s437 + $0x441] sm:$0xff]
        %v904 = vld [vmem:[%s437 + $0x459] sm:$0xff]
        %v905 = vld [vmem:[%s437 + $0x461] sm:$0xff]
        %v906 = vld [vmem:[%s437 + $0x469] sm:$0xff]
        %v907 = vld [vmem:[%s437 + $0x471] sm:$0xff]
        %v908 = vld [vmem:[%s437 + $0x489] sm:$0xff]
        %v909 = vld [vmem:[%s437 + $0x491] sm:$0xff]
        %v910 = vld [vmem:[%s437 + $0x499] sm:$0xff]
        %v911 = vld [vmem:[%s437 + $0x4a1] sm:$0xff]
        %v912 = vld [vmem:[%s437 + $0x4b9] sm:$0xff]
        %v913 = vld [vmem:[%s437 + $0x4c1] sm:$0xff]
        %v914 = vld [vmem:[%s437 + $0x4c9] sm:$0xff]
        %v915 = vld [vmem:[%s437 + $0x4d1] sm:$0xff]
        %v916 = vld [vmem:[%s437 + $0x4e9] sm:$0xff]
        %v917 = vld [vmem:[%s437 + $0x4f1] sm:$0xff]
        %v918 = vld [vmem:[%s437 + $0x4f9] sm:$0xff]
        %v919 = vld [vmem:[%s437 + $0x501] sm:$0xff]
        %v920 = vld [vmem:[%s437 + $0x519] sm:$0xff]
        %v921 = vld [vmem:[%s437 + $0x521] sm:$0xff]
        %v922 = vld [vmem:[%s437 + $0x529] sm:$0xff]
        %v923 = vld [vmem:[%s437 + $0x531] sm:$0xff]
        %v924 = vld [vmem:[%s437 + $0x549] sm:$0xff]
        %v925 = vld [vmem:[%s437 + $0x551] sm:$0xff]
        %v926 = vld [vmem:[%s437 + $0x559] sm:$0xff]
        %v927 = vld [vmem:[%s437 + $0x561] sm:$0xff]
        %v928 = vld [vmem:[%s437 + $0x579] sm:$0xff]
        %v929 = vld [vmem:[%s437 + $0x581] sm:$0xff]
        %v930 = vld [vmem:[%s437 + $0x589] sm:$0xff]
        %v931 = vld [vmem:[%s437 + $0x591] sm:$0xff]
        %v932 = vld [vmem:[%s437 + $0x5a9] sm:$0xff]
        %v933 = vld [vmem:[%s437 + $0x5b1] sm:$0xff]
        %v934 = vld [vmem:[%s437 + $0x5b9] sm:$0xff]
        %v935 = vld [vmem:[%s437 + $0x5c1] sm:$0xff]
        %v936 = vld [vmem:[%s437 + $0x5d9] sm:$0xff]
        %v937 = vld [vmem:[%s437 + $0x5e1] sm:$0xff]
        %v938 = vld [vmem:[%s437 + $0x5e9] sm:$0xff]
        %v939 = vld [vmem:[%s437 + $0x5f1] sm:$0xff]
        %v940 = vld [vmem:[%s437 + $0x609] sm:$0xff]
        %v941 = vld [vmem:[%s437 + $0x611] sm:$0xff]
        %v942 = vld [vmem:[%s437 + $0x619] sm:$0xff]
        %v943 = vld [vmem:[%s437 + $0x621] sm:$0xff]
        %v944 = vld [vmem:[%s437 + $0x639] sm:$0xff]
        %v945 = vld [vmem:[%s437 + $0x641] sm:$0xff]
        %v946 = vld [vmem:[%s437 + $0x649] sm:$0xff]
        %v947 = vld [vmem:[%s437 + $0x651] sm:$0xff]
        %v948 = vld [vmem:[%s1] sm:$0xff]
        %v949 = vld [vmem:[%s1 + $0x8] sm:$0xff]
        %v950 = vld [vmem:[%s1 + $0x10] sm:$0xff]
        %v951 = vld [vmem:[%s1 + $0x18] sm:$0xff]
        %s952 = scalar_lea.vmem %s1, 32
        %v953 = vld [vmem:[%s952] sm:$0xff]
        %v954 = vld [vmem:[%s952 + $0x8] sm:$0xff]
        %v955 = vld [vmem:[%s952 + $0x10] sm:$0xff]
        %v956 = vld [vmem:[%s952 + $0x18] sm:$0xff]
        %vm957 = vcmask 261120
        %v959 = vsel %vm957, %v676, 0
        %v962 = vsel %vm957, %v677, 0
        %v965 = vsel %vm957, %v678, 0
        %v968 = vsel %vm957, %v679, 0
        %v971 = vsel %vm957, %v680, 0
        %v974 = vsel %vm957, %v681, 0
        %v977 = vsel %vm957, %v682, 0
        %v980 = vsel %vm957, %v683, 0
        %v983 = vsel %vm957, %v684, 0
        %v986 = vsel %vm957, %v685, 0
        %v989 = vsel %vm957, %v686, 0
        %v992 = vsel %vm957, %v687, 0
        %v995 = vsel %vm957, %v688, 0
        %v998 = vsel %vm957, %v689, 0
        %v1001 = vsel %vm957, %v690, 0
        %v1004 = vsel %vm957, %v691, 0
        %v1007 = vsel %vm957, %v692, 0
        %v1010 = vsel %vm957, %v693, 0
        %v1013 = vsel %vm957, %v694, 0
        %v1016 = vsel %vm957, %v695, 0
        %v1019 = vsel %vm957, %v696, 0
        %v1022 = vsel %vm957, %v697, 0
        %v1025 = vsel %vm957, %v698, 0
        %v1028 = vsel %vm957, %v699, 0
        %v1031 = vsel %vm957, %v700, 0
        %v1034 = vsel %vm957, %v701, 0
        %v1037 = vsel %vm957, %v702, 0
        %v1040 = vsel %vm957, %v703, 0
        %v1043 = vsel %vm957, %v704, 0
        %v1046 = vsel %vm957, %v705, 0
        %v1049 = vsel %vm957, %v706, 0
        %v1052 = vsel %vm957, %v707, 0
        %v1055 = vsel %vm957, %v708, 0
        %v1058 = vsel %vm957, %v709, 0
        %v1061 = vsel %vm957, %v710, 0
        %v1064 = vsel %vm957, %v711, 0
        %v1067 = vsel %vm957, %v712, 0
        %v1070 = vsel %vm957, %v713, 0
        %v1073 = vsel %vm957, %v714, 0
        %v1076 = vsel %vm957, %v715, 0
        %v1079 = vsel %vm957, %v716, 0
        %v1082 = vsel %vm957, %v717, 0
        %v1085 = vsel %vm957, %v718, 0
        %v1088 = vsel %vm957, %v719, 0
        %v1091 = vsel %vm957, %v720, 0
        %v1094 = vsel %vm957, %v721, 0
        %v1097 = vsel %vm957, %v722, 0
        %v1100 = vsel %vm957, %v723, 0
        %v1103 = vsel %vm957, %v724, 0
        %v1106 = vsel %vm957, %v725, 0
        %v1109 = vsel %vm957, %v726, 0
        %v1112 = vsel %vm957, %v727, 0
        %v1115 = vsel %vm957, %v728, 0
        %v1118 = vsel %vm957, %v729, 0
        %v1121 = vsel %vm957, %v730, 0
        %v1124 = vsel %vm957, %v731, 0
        %v1127 = vsel %vm957, %v732, 0
        %v1130 = vsel %vm957, %v733, 0
        %v1133 = vsel %vm957, %v734, 0
        %v1136 = vsel %vm957, %v735, 0
        %v1139 = vsel %vm957, %v736, 0
        %v1142 = vsel %vm957, %v737, 0
        %v1145 = vsel %vm957, %v738, 0
        %v1148 = vsel %vm957, %v739, 0
        %v1151 = vsel %vm957, %v740, 0
        %v1154 = vsel %vm957, %v741, 0
        %v1157 = vsel %vm957, %v742, 0
        %v1160 = vsel %vm957, %v743, 0
        %v1163 = vsel %vm957, %v744, 0
        %v1166 = vsel %vm957, %v745, 0
        %v1169 = vsel %vm957, %v746, 0
        %v1172 = vsel %vm957, %v747, 0
        %v1175 = vsel %vm957, %v748, 0
        %v1178 = vsel %vm957, %v749, 0
        %v1181 = vsel %vm957, %v750, 0
        %v1184 = vsel %vm957, %v751, 0
        %v1187 = vsel %vm957, %v752, 0
        %v1190 = vsel %vm957, %v753, 0
        %v1193 = vsel %vm957, %v754, 0
        %v1196 = vsel %vm957, %v755, 0
        %v1199 = vsel %vm957, %v756, 0
        %v1202 = vsel %vm957, %v757, 0
        %v1205 = vsel %vm957, %v758, 0
        %v1208 = vsel %vm957, %v759, 0
        %v1211 = vsel %vm957, %v760, 0
        %v1214 = vsel %vm957, %v761, 0
        %v1217 = vsel %vm957, %v762, 0
        %v1220 = vsel %vm957, %v763, 0
        %v1223 = vsel %vm957, %v764, 0
        %v1226 = vsel %vm957, %v765, 0
        %v1229 = vsel %vm957, %v766, 0
        %v1232 = vsel %vm957, %v767, 0
        %v1235 = vsel %vm957, %v768, 0
        %v1238 = vsel %vm957, %v769, 0
        %v1241 = vsel %vm957, %v770, 0
        %v1244 = vsel %vm957, %v771, 0
        %v1247 = vsel %vm957, %v772, 0
        %v1250 = vsel %vm957, %v773, 0
        %v1253 = vsel %vm957, %v774, 0
        %v1256 = vsel %vm957, %v775, 0
        %v1259 = vsel %vm957, %v776, 0
        %v1262 = vsel %vm957, %v777, 0
        %v1265 = vsel %vm957, %v778, 0
        %v1268 = vsel %vm957, %v779, 0
        %v1271 = vsel %vm957, %v780, 0
        %v1274 = vsel %vm957, %v781, 0
        %v1277 = vsel %vm957, %v782, 0
        %v1280 = vsel %vm957, %v783, 0
        %v1283 = vsel %vm957, %v784, 0
        %v1286 = vsel %vm957, %v785, 0
        %v1289 = vsel %vm957, %v786, 0
        %v1292 = vsel %vm957, %v787, 0
        %v1295 = vsel %vm957, %v788, 0
        %v1298 = vsel %vm957, %v789, 0
        %v1301 = vsel %vm957, %v790, 0
        %v1304 = vsel %vm957, %v791, 0
        %v1307 = vsel %vm957, %v792, 0
        %v1310 = vsel %vm957, %v793, 0
        %v1313 = vsel %vm957, %v794, 0
        %v1316 = vsel %vm957, %v795, 0
        %v1319 = vsel %vm957, %v796, 0
        %v1322 = vsel %vm957, %v797, 0
        %v1325 = vsel %vm957, %v798, 0
        %v1328 = vsel %vm957, %v799, 0
        %v1331 = vsel %vm957, %v800, 0
        %v1334 = vsel %vm957, %v801, 0
        %v1337 = vsel %vm957, %v802, 0
        %v1340 = vsel %vm957, %v803, 0
        %1342 = vmatpush.msra.mxu0 0.0
        %1343 = vmatpush.msra.mxu0 0.0
        %1344 = vmatpush.msra.mxu0 0.0
        %1345 = vmatpush.msra.mxu0 0.0
        %1346 = vmatpush.msra.mxu0 0.0
        %1347 = vmatpush.msra.mxu0 0.0
        %1348 = vmatpush.msra.mxu0 0.0
        %1349 = vmatpush.msra.mxu0 0.0
        %1350 = vmatpush.msra.mxu0 0.0
        %1351 = vmatpush.msra.mxu0 0.0
        %1352 = vmatpush.msra.mxu0 0.0
        %1353 = vmatpush.msra.mxu0 0.0
        %1354 = vmatpush.msra.mxu0 %v956
        %1355 = vmatpush.msra.mxu0 %v955
        %1356 = vmatpush.msra.mxu0 %v954
        %1357 = vmatpush.msra.mxu0 %v953
        %1358 = vmatmul.f32.gmra.mxu0 %v959
        %v1359 = vpop.f32.mrf.mxu0
        %v1360 = vadd.f32 0.0, %v1359
        %1361 = vmatmul.f32.gmra.mxu0 %v962
        %v1362 = vpop.f32.mrf.mxu0
        %v1363 = vadd.f32 0.0, %v1362
        %1364 = vmatmul.f32.gmra.mxu0 %v965
        %v1365 = vpop.f32.mrf.mxu0
        %v1366 = vadd.f32 0.0, %v1365
        %1367 = vmatmul.f32.gmra.mxu0 %v968
        %v1368 = vpop.f32.mrf.mxu0
        %v1369 = vadd.f32 0.0, %v1368
        %1370 = vmatmul.f32.gmra.mxu0 %v971
        %v1371 = vpop.f32.mrf.mxu0
        %v1372 = vadd.f32 0.0, %v1371
        %1373 = vmatmul.f32.gmra.mxu0 %v974
        %v1374 = vpop.f32.mrf.mxu0
        %v1375 = vadd.f32 0.0, %v1374
        %1376 = vmatmul.f32.gmra.mxu0 %v977
        %v1377 = vpop.f32.mrf.mxu0
        %v1378 = vadd.f32 0.0, %v1377
        %1379 = vmatmul.f32.gmra.mxu0 %v980
        %v1380 = vpop.f32.mrf.mxu0
        %v1381 = vadd.f32 0.0, %v1380
        %1382 = vmatmul.f32.gmra.mxu0 %v983
        %v1383 = vpop.f32.mrf.mxu0
        %v1384 = vadd.f32 0.0, %v1383
        %1385 = vmatmul.f32.gmra.mxu0 %v986
        %v1386 = vpop.f32.mrf.mxu0
        %v1387 = vadd.f32 0.0, %v1386
        %1388 = vmatmul.f32.gmra.mxu0 %v989
        %v1389 = vpop.f32.mrf.mxu0
        %v1390 = vadd.f32 0.0, %v1389
        %1391 = vmatmul.f32.gmra.mxu0 %v992
        %v1392 = vpop.f32.mrf.mxu0
        %v1393 = vadd.f32 0.0, %v1392
        %1394 = vmatmul.f32.gmra.mxu0 %v995
        %v1395 = vpop.f32.mrf.mxu0
        %v1396 = vadd.f32 0.0, %v1395
        %1397 = vmatmul.f32.gmra.mxu0 %v998
        %v1398 = vpop.f32.mrf.mxu0
        %v1399 = vadd.f32 0.0, %v1398
        %1400 = vmatmul.f32.gmra.mxu0 %v1001
        %v1401 = vpop.f32.mrf.mxu0
        %v1402 = vadd.f32 0.0, %v1401
        %1403 = vmatmul.f32.gmra.mxu0 %v1004
        %v1404 = vpop.f32.mrf.mxu0
        %v1405 = vadd.f32 0.0, %v1404
        %1406 = vmatmul.f32.gmra.mxu0 %v1007
        %v1407 = vpop.f32.mrf.mxu0
        %v1408 = vadd.f32 0.0, %v1407
        %1409 = vmatmul.f32.gmra.mxu0 %v1010
        %v1410 = vpop.f32.mrf.mxu0
        %v1411 = vadd.f32 0.0, %v1410
        %1412 = vmatmul.f32.gmra.mxu0 %v1013
        %v1413 = vpop.f32.mrf.mxu0
        %v1414 = vadd.f32 0.0, %v1413
        %1415 = vmatmul.f32.gmra.mxu0 %v1016
        %v1416 = vpop.f32.mrf.mxu0
        %v1417 = vadd.f32 0.0, %v1416
        %1418 = vmatmul.f32.gmra.mxu0 %v1019
        %v1419 = vpop.f32.mrf.mxu0
        %v1420 = vadd.f32 0.0, %v1419
        %1421 = vmatmul.f32.gmra.mxu0 %v1022
        %v1422 = vpop.f32.mrf.mxu0
        %v1423 = vadd.f32 0.0, %v1422
        %1424 = vmatmul.f32.gmra.mxu0 %v1025
        %v1425 = vpop.f32.mrf.mxu0
        %v1426 = vadd.f32 0.0, %v1425
        %1427 = vmatmul.f32.gmra.mxu0 %v1028
        %v1428 = vpop.f32.mrf.mxu0
        %v1429 = vadd.f32 0.0, %v1428
        %1430 = vmatmul.f32.gmra.mxu0 %v1031
        %v1431 = vpop.f32.mrf.mxu0
        %v1432 = vadd.f32 0.0, %v1431
        %1433 = vmatmul.f32.gmra.mxu0 %v1034
        %v1434 = vpop.f32.mrf.mxu0
        %v1435 = vadd.f32 0.0, %v1434
        %1436 = vmatmul.f32.gmra.mxu0 %v1037
        %v1437 = vpop.f32.mrf.mxu0
        %v1438 = vadd.f32 0.0, %v1437
        %1439 = vmatmul.f32.gmra.mxu0 %v1040
        %v1440 = vpop.f32.mrf.mxu0
        %v1441 = vadd.f32 0.0, %v1440
        %1442 = vmatmul.f32.gmra.mxu0 %v1043
        %v1443 = vpop.f32.mrf.mxu0
        %v1444 = vadd.f32 0.0, %v1443
        %1445 = vmatmul.f32.gmra.mxu0 %v1046
        %v1446 = vpop.f32.mrf.mxu0
        %v1447 = vadd.f32 0.0, %v1446
        %1448 = vmatmul.f32.gmra.mxu0 %v1049
        %v1449 = vpop.f32.mrf.mxu0
        %v1450 = vadd.f32 0.0, %v1449
        %1451 = vmatmul.f32.gmra.mxu0 %v1052
        %v1452 = vpop.f32.mrf.mxu0
        %v1453 = vadd.f32 0.0, %v1452
        %1454 = vmatmul.f32.gmra.mxu0 %v1055
        %v1455 = vpop.f32.mrf.mxu0
        %v1456 = vadd.f32 0.0, %v1455
        %1457 = vmatmul.f32.gmra.mxu0 %v1058
        %v1458 = vpop.f32.mrf.mxu0
        %v1459 = vadd.f32 0.0, %v1458
        %1460 = vmatmul.f32.gmra.mxu0 %v1061
        %v1461 = vpop.f32.mrf.mxu0
        %v1462 = vadd.f32 0.0, %v1461
        %1463 = vmatmul.f32.gmra.mxu0 %v1064
        %v1464 = vpop.f32.mrf.mxu0
        %v1465 = vadd.f32 0.0, %v1464
        %1466 = vmatmul.f32.gmra.mxu0 %v1067
        %v1467 = vpop.f32.mrf.mxu0
        %v1468 = vadd.f32 0.0, %v1467
        %1469 = vmatmul.f32.gmra.mxu0 %v1070
        %v1470 = vpop.f32.mrf.mxu0
        %v1471 = vadd.f32 0.0, %v1470
        %1472 = vmatmul.f32.gmra.mxu0 %v1073
        %v1473 = vpop.f32.mrf.mxu0
        %v1474 = vadd.f32 0.0, %v1473
        %1475 = vmatmul.f32.gmra.mxu0 %v1076
        %v1476 = vpop.f32.mrf.mxu0
        %v1477 = vadd.f32 0.0, %v1476
        %1478 = vmatmul.f32.gmra.mxu0 %v1079
        %v1479 = vpop.f32.mrf.mxu0
        %v1480 = vadd.f32 0.0, %v1479
        %1481 = vmatmul.f32.gmra.mxu0 %v1082
        %v1482 = vpop.f32.mrf.mxu0
        %v1483 = vadd.f32 0.0, %v1482
        %1484 = vmatmul.f32.gmra.mxu0 %v1085
        %v1485 = vpop.f32.mrf.mxu0
        %v1486 = vadd.f32 0.0, %v1485
        %1487 = vmatmul.f32.gmra.mxu0 %v1088
        %v1488 = vpop.f32.mrf.mxu0
        %v1489 = vadd.f32 0.0, %v1488
        %1490 = vmatmul.f32.gmra.mxu0 %v1091
        %v1491 = vpop.f32.mrf.mxu0
        %v1492 = vadd.f32 0.0, %v1491
        %1493 = vmatmul.f32.gmra.mxu0 %v1094
        %v1494 = vpop.f32.mrf.mxu0
        %v1495 = vadd.f32 0.0, %v1494
        %1496 = vmatmul.f32.gmra.mxu0 %v1097
        %v1497 = vpop.f32.mrf.mxu0
        %v1498 = vadd.f32 0.0, %v1497
        %1499 = vmatmul.f32.gmra.mxu0 %v1100
        %v1500 = vpop.f32.mrf.mxu0
        %v1501 = vadd.f32 0.0, %v1500
        %1502 = vmatmul.f32.gmra.mxu0 %v1103
        %v1503 = vpop.f32.mrf.mxu0
        %v1504 = vadd.f32 0.0, %v1503
        %1505 = vmatmul.f32.gmra.mxu0 %v1106
        %v1506 = vpop.f32.mrf.mxu0
        %v1507 = vadd.f32 0.0, %v1506
        %1508 = vmatmul.f32.gmra.mxu0 %v1109
        %v1509 = vpop.f32.mrf.mxu0
        %v1510 = vadd.f32 0.0, %v1509
        %1511 = vmatmul.f32.gmra.mxu0 %v1112
        %v1512 = vpop.f32.mrf.mxu0
        %v1513 = vadd.f32 0.0, %v1512
        %1514 = vmatmul.f32.gmra.mxu0 %v1115
        %v1515 = vpop.f32.mrf.mxu0
        %v1516 = vadd.f32 0.0, %v1515
        %1517 = vmatmul.f32.gmra.mxu0 %v1118
        %v1518 = vpop.f32.mrf.mxu0
        %v1519 = vadd.f32 0.0, %v1518
        %1520 = vmatmul.f32.gmra.mxu0 %v1121
        %v1521 = vpop.f32.mrf.mxu0
        %v1522 = vadd.f32 0.0, %v1521
        %1523 = vmatmul.f32.gmra.mxu0 %v1124
        %v1524 = vpop.f32.mrf.mxu0
        %v1525 = vadd.f32 0.0, %v1524
        %1526 = vmatmul.f32.gmra.mxu0 %v1127
        %v1527 = vpop.f32.mrf.mxu0
        %v1528 = vadd.f32 0.0, %v1527
        %1529 = vmatmul.f32.gmra.mxu0 %v1130
        %v1530 = vpop.f32.mrf.mxu0
        %v1531 = vadd.f32 0.0, %v1530
        %1532 = vmatmul.f32.gmra.mxu0 %v1133
        %v1533 = vpop.f32.mrf.mxu0
        %v1534 = vadd.f32 0.0, %v1533
        %1535 = vmatmul.f32.gmra.mxu0 %v1136
        %v1536 = vpop.f32.mrf.mxu0
        %v1537 = vadd.f32 0.0, %v1536
        %1538 = vmatmul.f32.gmra.mxu0 %v1139
        %v1539 = vpop.f32.mrf.mxu0
        %v1540 = vadd.f32 0.0, %v1539
        %1541 = vmatmul.f32.gmra.mxu0 %v1142
        %v1542 = vpop.f32.mrf.mxu0
        %v1543 = vadd.f32 0.0, %v1542
        %1544 = vmatmul.f32.gmra.mxu0 %v1145
        %v1545 = vpop.f32.mrf.mxu0
        %v1546 = vadd.f32 0.0, %v1545
        %1547 = vmatmul.f32.gmra.mxu0 %v1148
        %v1548 = vpop.f32.mrf.mxu0
        %v1549 = vadd.f32 0.0, %v1548
        %1550 = vmatmul.f32.gmra.mxu0 %v1151
        %v1551 = vpop.f32.mrf.mxu0
        %v1552 = vadd.f32 0.0, %v1551
        %1553 = vmatmul.f32.gmra.mxu0 %v1154
        %v1554 = vpop.f32.mrf.mxu0
        %v1555 = vadd.f32 0.0, %v1554
        %1556 = vmatmul.f32.gmra.mxu0 %v1157
        %v1557 = vpop.f32.mrf.mxu0
        %v1558 = vadd.f32 0.0, %v1557
        %1559 = vmatmul.f32.gmra.mxu0 %v1160
        %v1560 = vpop.f32.mrf.mxu0
        %v1561 = vadd.f32 0.0, %v1560
        %1562 = vmatmul.f32.gmra.mxu0 %v1163
        %v1563 = vpop.f32.mrf.mxu0
        %v1564 = vadd.f32 0.0, %v1563
        %1565 = vmatmul.f32.gmra.mxu0 %v1166
        %v1566 = vpop.f32.mrf.mxu0
        %v1567 = vadd.f32 0.0, %v1566
        %1568 = vmatmul.f32.gmra.mxu0 %v1169
        %v1569 = vpop.f32.mrf.mxu0
        %v1570 = vadd.f32 0.0, %v1569
        %1571 = vmatmul.f32.gmra.mxu0 %v1172
        %v1572 = vpop.f32.mrf.mxu0
        %v1573 = vadd.f32 0.0, %v1572
        %1574 = vmatmul.f32.gmra.mxu0 %v1175
        %v1575 = vpop.f32.mrf.mxu0
        %v1576 = vadd.f32 0.0, %v1575
        %1577 = vmatmul.f32.gmra.mxu0 %v1178
        %v1578 = vpop.f32.mrf.mxu0
        %v1579 = vadd.f32 0.0, %v1578
        %1580 = vmatmul.f32.gmra.mxu0 %v1181
        %v1581 = vpop.f32.mrf.mxu0
        %v1582 = vadd.f32 0.0, %v1581
        %1583 = vmatmul.f32.gmra.mxu0 %v1184
        %v1584 = vpop.f32.mrf.mxu0
        %v1585 = vadd.f32 0.0, %v1584
        %1586 = vmatmul.f32.gmra.mxu0 %v1187
        %v1587 = vpop.f32.mrf.mxu0
        %v1588 = vadd.f32 0.0, %v1587
        %1589 = vmatmul.f32.gmra.mxu0 %v1190
        %v1590 = vpop.f32.mrf.mxu0
        %v1591 = vadd.f32 0.0, %v1590
        %1592 = vmatmul.f32.gmra.mxu0 %v1193
        %v1593 = vpop.f32.mrf.mxu0
        %v1594 = vadd.f32 0.0, %v1593
        %1595 = vmatmul.f32.gmra.mxu0 %v1196
        %v1596 = vpop.f32.mrf.mxu0
        %v1597 = vadd.f32 0.0, %v1596
        %1598 = vmatmul.f32.gmra.mxu0 %v1199
        %v1599 = vpop.f32.mrf.mxu0
        %v1600 = vadd.f32 0.0, %v1599
        %1601 = vmatmul.f32.gmra.mxu0 %v1202
        %v1602 = vpop.f32.mrf.mxu0
        %v1603 = vadd.f32 0.0, %v1602
        %1604 = vmatmul.f32.gmra.mxu0 %v1205
        %v1605 = vpop.f32.mrf.mxu0
        %v1606 = vadd.f32 0.0, %v1605
        %1607 = vmatmul.f32.gmra.mxu0 %v1208
        %v1608 = vpop.f32.mrf.mxu0
        %v1609 = vadd.f32 0.0, %v1608
        %1610 = vmatmul.f32.gmra.mxu0 %v1211
        %v1611 = vpop.f32.mrf.mxu0
        %v1612 = vadd.f32 0.0, %v1611
        %1613 = vmatmul.f32.gmra.mxu0 %v1214
        %v1614 = vpop.f32.mrf.mxu0
        %v1615 = vadd.f32 0.0, %v1614
        %1616 = vmatmul.f32.gmra.mxu0 %v1217
        %v1617 = vpop.f32.mrf.mxu0
        %v1618 = vadd.f32 0.0, %v1617
        %1619 = vmatmul.f32.gmra.mxu0 %v1220
        %v1620 = vpop.f32.mrf.mxu0
        %v1621 = vadd.f32 0.0, %v1620
        %1622 = vmatmul.f32.gmra.mxu0 %v1223
        %v1623 = vpop.f32.mrf.mxu0
        %v1624 = vadd.f32 0.0, %v1623
        %1625 = vmatmul.f32.gmra.mxu0 %v1226
        %v1626 = vpop.f32.mrf.mxu0
        %v1627 = vadd.f32 0.0, %v1626
        %1628 = vmatmul.f32.gmra.mxu0 %v1229
        %v1629 = vpop.f32.mrf.mxu0
        %v1630 = vadd.f32 0.0, %v1629
        %1631 = vmatmul.f32.gmra.mxu0 %v1232
        %v1632 = vpop.f32.mrf.mxu0
        %v1633 = vadd.f32 0.0, %v1632
        %1634 = vmatmul.f32.gmra.mxu0 %v1235
        %v1635 = vpop.f32.mrf.mxu0
        %v1636 = vadd.f32 0.0, %v1635
        %1637 = vmatmul.f32.gmra.mxu0 %v1238
        %v1638 = vpop.f32.mrf.mxu0
        %v1639 = vadd.f32 0.0, %v1638
        %1640 = vmatmul.f32.gmra.mxu0 %v1241
        %v1641 = vpop.f32.mrf.mxu0
        %v1642 = vadd.f32 0.0, %v1641
        %1643 = vmatmul.f32.gmra.mxu0 %v1244
        %v1644 = vpop.f32.mrf.mxu0
        %v1645 = vadd.f32 0.0, %v1644
        %1646 = vmatmul.f32.gmra.mxu0 %v1247
        %v1647 = vpop.f32.mrf.mxu0
        %v1648 = vadd.f32 0.0, %v1647
        %1649 = vmatmul.f32.gmra.mxu0 %v1250
        %v1650 = vpop.f32.mrf.mxu0
        %v1651 = vadd.f32 0.0, %v1650
        %1652 = vmatmul.f32.gmra.mxu0 %v1253
        %v1653 = vpop.f32.mrf.mxu0
        %v1654 = vadd.f32 0.0, %v1653
        %1655 = vmatmul.f32.gmra.mxu0 %v1256
        %v1656 = vpop.f32.mrf.mxu0
        %v1657 = vadd.f32 0.0, %v1656
        %1658 = vmatmul.f32.gmra.mxu0 %v1259
        %v1659 = vpop.f32.mrf.mxu0
        %v1660 = vadd.f32 0.0, %v1659
        %1661 = vmatmul.f32.gmra.mxu0 %v1262
        %v1662 = vpop.f32.mrf.mxu0
        %v1663 = vadd.f32 0.0, %v1662
        %1664 = vmatmul.f32.gmra.mxu0 %v1265
        %v1665 = vpop.f32.mrf.mxu0
        %v1666 = vadd.f32 0.0, %v1665
        %1667 = vmatmul.f32.gmra.mxu0 %v1268
        %v1668 = vpop.f32.mrf.mxu0
        %v1669 = vadd.f32 0.0, %v1668
        %1670 = vmatmul.f32.gmra.mxu0 %v1271
        %v1671 = vpop.f32.mrf.mxu0
        %v1672 = vadd.f32 0.0, %v1671
        %1673 = vmatmul.f32.gmra.mxu0 %v1274
        %v1674 = vpop.f32.mrf.mxu0
        %v1675 = vadd.f32 0.0, %v1674
        %1676 = vmatmul.f32.gmra.mxu0 %v1277
        %v1677 = vpop.f32.mrf.mxu0
        %v1678 = vadd.f32 0.0, %v1677
        %1679 = vmatmul.f32.gmra.mxu0 %v1280
        %v1680 = vpop.f32.mrf.mxu0
        %v1681 = vadd.f32 0.0, %v1680
        %1682 = vmatmul.f32.gmra.mxu0 %v1283
        %v1683 = vpop.f32.mrf.mxu0
        %v1684 = vadd.f32 0.0, %v1683
        %1685 = vmatmul.f32.gmra.mxu0 %v1286
        %v1686 = vpop.f32.mrf.mxu0
        %v1687 = vadd.f32 0.0, %v1686
        %1688 = vmatmul.f32.gmra.mxu0 %v1289
        %v1689 = vpop.f32.mrf.mxu0
        %v1690 = vadd.f32 0.0, %v1689
        %1691 = vmatmul.f32.gmra.mxu0 %v1292
        %v1692 = vpop.f32.mrf.mxu0
        %v1693 = vadd.f32 0.0, %v1692
        %1694 = vmatmul.f32.gmra.mxu0 %v1295
        %v1695 = vpop.f32.mrf.mxu0
        %v1696 = vadd.f32 0.0, %v1695
        %1697 = vmatmul.f32.gmra.mxu0 %v1298
        %v1698 = vpop.f32.mrf.mxu0
        %v1699 = vadd.f32 0.0, %v1698
        %1700 = vmatmul.f32.gmra.mxu0 %v1301
        %v1701 = vpop.f32.mrf.mxu0
        %v1702 = vadd.f32 0.0, %v1701
        %1703 = vmatmul.f32.gmra.mxu0 %v1304
        %v1704 = vpop.f32.mrf.mxu0
        %v1705 = vadd.f32 0.0, %v1704
        %1706 = vmatmul.f32.gmra.mxu0 %v1307
        %v1707 = vpop.f32.mrf.mxu0
        %v1708 = vadd.f32 0.0, %v1707
        %1709 = vmatmul.f32.gmra.mxu0 %v1310
        %v1710 = vpop.f32.mrf.mxu0
        %v1711 = vadd.f32 0.0, %v1710
        %1712 = vmatmul.f32.gmra.mxu0 %v1313
        %v1713 = vpop.f32.mrf.mxu0
        %v1714 = vadd.f32 0.0, %v1713
        %1715 = vmatmul.f32.gmra.mxu0 %v1316
        %v1716 = vpop.f32.mrf.mxu0
        %v1717 = vadd.f32 0.0, %v1716
        %1718 = vmatmul.f32.gmra.mxu0 %v1319
        %v1719 = vpop.f32.mrf.mxu0
        %v1720 = vadd.f32 0.0, %v1719
        %1721 = vmatmul.f32.gmra.mxu0 %v1322
        %v1722 = vpop.f32.mrf.mxu0
        %v1723 = vadd.f32 0.0, %v1722
        %1724 = vmatmul.f32.gmra.mxu0 %v1325
        %v1725 = vpop.f32.mrf.mxu0
        %v1726 = vadd.f32 0.0, %v1725
        %1727 = vmatmul.f32.gmra.mxu0 %v1328
        %v1728 = vpop.f32.mrf.mxu0
        %v1729 = vadd.f32 0.0, %v1728
        %1730 = vmatmul.f32.gmra.mxu0 %v1331
        %v1731 = vpop.f32.mrf.mxu0
        %v1732 = vadd.f32 0.0, %v1731
        %1733 = vmatmul.f32.gmra.mxu0 %v1334
        %v1734 = vpop.f32.mrf.mxu0
        %v1735 = vadd.f32 0.0, %v1734
        %1736 = vmatmul.f32.gmra.mxu0 %v1337
        %v1737 = vpop.f32.mrf.mxu0
        %v1738 = vadd.f32 0.0, %v1737
        %1739 = vmatmul.f32.gmra.mxu0 %v1340
        %v1740 = vpop.f32.mrf.mxu0
        %v1741 = vadd.f32 0.0, %v1740
        %1742 = vdwg.mxu0
        %v1744 = vsel %vm957, %v540, 0
        %v1747 = vsel %vm957, %v541, 0
        %v1750 = vsel %vm957, %v542, 0
        %v1753 = vsel %vm957, %v543, 0
        %v1756 = vsel %vm957, %v544, 0
        %v1759 = vsel %vm957, %v545, 0
        %v1762 = vsel %vm957, %v546, 0
        %v1765 = vsel %vm957, %v547, 0
        %v1768 = vsel %vm957, %v548, 0
        %v1771 = vsel %vm957, %v549, 0
        %v1774 = vsel %vm957, %v550, 0
        %v1777 = vsel %vm957, %v551, 0
        %v1780 = vsel %vm957, %v552, 0
        %v1783 = vsel %vm957, %v553, 0
        %v1786 = vsel %vm957, %v554, 0
        %v1789 = vsel %vm957, %v555, 0
        %v1792 = vsel %vm957, %v556, 0
        %v1795 = vsel %vm957, %v557, 0
        %v1798 = vsel %vm957, %v558, 0
        %v1801 = vsel %vm957, %v559, 0
        %v1804 = vsel %vm957, %v560, 0
        %v1807 = vsel %vm957, %v561, 0
        %v1810 = vsel %vm957, %v562, 0
        %v1813 = vsel %vm957, %v563, 0
        %v1816 = vsel %vm957, %v564, 0
        %v1819 = vsel %vm957, %v565, 0
        %v1822 = vsel %vm957, %v566, 0
        %v1825 = vsel %vm957, %v567, 0
        %v1828 = vsel %vm957, %v568, 0
        %v1831 = vsel %vm957, %v569, 0
        %v1834 = vsel %vm957, %v570, 0
        %v1837 = vsel %vm957, %v571, 0
        %v1840 = vsel %vm957, %v572, 0
        %v1843 = vsel %vm957, %v573, 0
        %v1846 = vsel %vm957, %v574, 0
        %v1849 = vsel %vm957, %v575, 0
        %v1852 = vsel %vm957, %v576, 0
        %v1855 = vsel %vm957, %v577, 0
        %v1858 = vsel %vm957, %v578, 0
        %v1861 = vsel %vm957, %v579, 0
        %v1864 = vsel %vm957, %v580, 0
        %v1867 = vsel %vm957, %v581, 0
        %v1870 = vsel %vm957, %v582, 0
        %v1873 = vsel %vm957, %v583, 0
        %v1876 = vsel %vm957, %v584, 0
        %v1879 = vsel %vm957, %v585, 0
        %v1882 = vsel %vm957, %v586, 0
        %v1885 = vsel %vm957, %v587, 0
        %v1888 = vsel %vm957, %v588, 0
        %v1891 = vsel %vm957, %v589, 0
        %v1894 = vsel %vm957, %v590, 0
        %v1897 = vsel %vm957, %v591, 0
        %v1900 = vsel %vm957, %v592, 0
        %v1903 = vsel %vm957, %v593, 0
        %v1906 = vsel %vm957, %v594, 0
        %v1909 = vsel %vm957, %v595, 0
        %v1912 = vsel %vm957, %v596, 0
        %v1915 = vsel %vm957, %v597, 0
        %v1918 = vsel %vm957, %v598, 0
        %v1921 = vsel %vm957, %v599, 0
        %v1924 = vsel %vm957, %v600, 0
        %v1927 = vsel %vm957, %v601, 0
        %v1930 = vsel %vm957, %v602, 0
        %v1933 = vsel %vm957, %v603, 0
        %v1936 = vsel %vm957, %v604, 0
        %v1939 = vsel %vm957, %v605, 0
        %v1942 = vsel %vm957, %v606, 0
        %v1945 = vsel %vm957, %v607, 0
        %v1948 = vsel %vm957, %v608, 0
        %v1951 = vsel %vm957, %v609, 0
        %v1954 = vsel %vm957, %v610, 0
        %v1957 = vsel %vm957, %v611, 0
        %v1960 = vsel %vm957, %v612, 0
        %v1963 = vsel %vm957, %v613, 0
        %v1966 = vsel %vm957, %v614, 0
        %v1969 = vsel %vm957, %v615, 0
        %v1972 = vsel %vm957, %v616, 0
        %v1975 = vsel %vm957, %v617, 0
        %v1978 = vsel %vm957, %v618, 0
        %v1981 = vsel %vm957, %v619, 0
        %v1984 = vsel %vm957, %v620, 0
        %v1987 = vsel %vm957, %v621, 0
        %v1990 = vsel %vm957, %v622, 0
        %v1993 = vsel %vm957, %v623, 0
        %v1996 = vsel %vm957, %v624, 0
        %v1999 = vsel %vm957, %v625, 0
        %v2002 = vsel %vm957, %v626, 0
        %v2005 = vsel %vm957, %v627, 0
        %v2008 = vsel %vm957, %v628, 0
        %v2011 = vsel %vm957, %v629, 0
        %v2014 = vsel %vm957, %v630, 0
        %v2017 = vsel %vm957, %v631, 0
        %v2020 = vsel %vm957, %v632, 0
        %v2023 = vsel %vm957, %v633, 0
        %v2026 = vsel %vm957, %v634, 0
        %v2029 = vsel %vm957, %v635, 0
        %v2032 = vsel %vm957, %v636, 0
        %v2035 = vsel %vm957, %v637, 0
        %v2038 = vsel %vm957, %v638, 0
        %v2041 = vsel %vm957, %v639, 0
        %v2044 = vsel %vm957, %v640, 0
        %v2047 = vsel %vm957, %v641, 0
        %v2050 = vsel %vm957, %v642, 0
        %v2053 = vsel %vm957, %v643, 0
        %v2056 = vsel %vm957, %v644, 0
        %v2059 = vsel %vm957, %v645, 0
        %v2062 = vsel %vm957, %v646, 0
        %v2065 = vsel %vm957, %v647, 0
        %v2068 = vsel %vm957, %v648, 0
        %v2071 = vsel %vm957, %v649, 0
        %v2074 = vsel %vm957, %v650, 0
        %v2077 = vsel %vm957, %v651, 0
        %v2080 = vsel %vm957, %v652, 0
        %v2083 = vsel %vm957, %v653, 0
        %v2086 = vsel %vm957, %v654, 0
        %v2089 = vsel %vm957, %v655, 0
        %v2092 = vsel %vm957, %v656, 0
        %v2095 = vsel %vm957, %v657, 0
        %v2098 = vsel %vm957, %v658, 0
        %v2101 = vsel %vm957, %v659, 0
        %v2104 = vsel %vm957, %v660, 0
        %v2107 = vsel %vm957, %v661, 0
        %v2110 = vsel %vm957, %v662, 0
        %v2113 = vsel %vm957, %v663, 0
        %v2116 = vsel %vm957, %v664, 0
        %v2119 = vsel %vm957, %v665, 0
        %v2122 = vsel %vm957, %v666, 0
        %v2125 = vsel %vm957, %v667, 0
        %2127 = vmatpush.msra.mxu0 0.0
        %2128 = vmatpush.msra.mxu0 0.0
        %2129 = vmatpush.msra.mxu0 0.0
        %2130 = vmatpush.msra.mxu0 0.0
        %2131 = vmatpush.msra.mxu0 0.0
        %2132 = vmatpush.msra.mxu0 0.0
        %2133 = vmatpush.msra.mxu0 0.0
        %2134 = vmatpush.msra.mxu0 0.0
        %2135 = vmatpush.msra.mxu0 0.0
        %2136 = vmatpush.msra.mxu0 0.0
        %2137 = vmatpush.msra.mxu0 0.0
        %2138 = vmatpush.msra.mxu0 0.0
        %2139 = vmatpush.msra.mxu0 %v951
        %2140 = vmatpush.msra.mxu0 %v950
        %2141 = vmatpush.msra.mxu0 %v949
        %2142 = vmatpush.msra.mxu0 %v948
        %2143 = vmatmul.f32.gmra.mxu0 %v1744
        %v2144 = vpop.f32.mrf.mxu0
        %v2145 = vadd.f32 %v1360, %v2144
        %2146 = vmatmul.f32.gmra.mxu0 %v1747
        %v2147 = vpop.f32.mrf.mxu0
        %v2148 = vadd.f32 %v1363, %v2147
        %2149 = vmatmul.f32.gmra.mxu0 %v1750
        %v2150 = vpop.f32.mrf.mxu0
        %v2151 = vadd.f32 %v1366, %v2150
        %2152 = vmatmul.f32.gmra.mxu0 %v1753
        %v2153 = vpop.f32.mrf.mxu0
        %v2154 = vadd.f32 %v1369, %v2153
        %2155 = vmatmul.f32.gmra.mxu0 %v1756
        %v2156 = vpop.f32.mrf.mxu0
        %v2157 = vadd.f32 %v1372, %v2156
        %2158 = vmatmul.f32.gmra.mxu0 %v1759
        %v2159 = vpop.f32.mrf.mxu0
        %v2160 = vadd.f32 %v1375, %v2159
        %2161 = vmatmul.f32.gmra.mxu0 %v1762
        %v2162 = vpop.f32.mrf.mxu0
        %v2163 = vadd.f32 %v1378, %v2162
        %2164 = vmatmul.f32.gmra.mxu0 %v1765
        %v2165 = vpop.f32.mrf.mxu0
        %v2166 = vadd.f32 %v1381, %v2165
        %2167 = vmatmul.f32.gmra.mxu0 %v1768
        %v2168 = vpop.f32.mrf.mxu0
        %v2169 = vadd.f32 %v1384, %v2168
        %2170 = vmatmul.f32.gmra.mxu0 %v1771
        %v2171 = vpop.f32.mrf.mxu0
        %v2172 = vadd.f32 %v1387, %v2171
        %2173 = vmatmul.f32.gmra.mxu0 %v1774
        %v2174 = vpop.f32.mrf.mxu0
        %v2175 = vadd.f32 %v1390, %v2174
        %2176 = vmatmul.f32.gmra.mxu0 %v1777
        %v2177 = vpop.f32.mrf.mxu0
        %v2178 = vadd.f32 %v1393, %v2177
        %2179 = vmatmul.f32.gmra.mxu0 %v1780
        %v2180 = vpop.f32.mrf.mxu0
        %v2181 = vadd.f32 %v1396, %v2180
        %2182 = vmatmul.f32.gmra.mxu0 %v1783
        %v2183 = vpop.f32.mrf.mxu0
        %v2184 = vadd.f32 %v1399, %v2183
        %2185 = vmatmul.f32.gmra.mxu0 %v1786
        %v2186 = vpop.f32.mrf.mxu0
        %v2187 = vadd.f32 %v1402, %v2186
        %2188 = vmatmul.f32.gmra.mxu0 %v1789
        %v2189 = vpop.f32.mrf.mxu0
        %v2190 = vadd.f32 %v1405, %v2189
        %2191 = vmatmul.f32.gmra.mxu0 %v1792
        %v2192 = vpop.f32.mrf.mxu0
        %v2193 = vadd.f32 %v1408, %v2192
        %2194 = vmatmul.f32.gmra.mxu0 %v1795
        %v2195 = vpop.f32.mrf.mxu0
        %v2196 = vadd.f32 %v1411, %v2195
        %2197 = vmatmul.f32.gmra.mxu0 %v1798
        %v2198 = vpop.f32.mrf.mxu0
        %v2199 = vadd.f32 %v1414, %v2198
        %2200 = vmatmul.f32.gmra.mxu0 %v1801
        %v2201 = vpop.f32.mrf.mxu0
        %v2202 = vadd.f32 %v1417, %v2201
        %2203 = vmatmul.f32.gmra.mxu0 %v1804
        %v2204 = vpop.f32.mrf.mxu0
        %v2205 = vadd.f32 %v1420, %v2204
        %2206 = vmatmul.f32.gmra.mxu0 %v1807
        %v2207 = vpop.f32.mrf.mxu0
        %v2208 = vadd.f32 %v1423, %v2207
        %2209 = vmatmul.f32.gmra.mxu0 %v1810
        %v2210 = vpop.f32.mrf.mxu0
        %v2211 = vadd.f32 %v1426, %v2210
        %2212 = vmatmul.f32.gmra.mxu0 %v1813
        %v2213 = vpop.f32.mrf.mxu0
        %v2214 = vadd.f32 %v1429, %v2213
        %2215 = vmatmul.f32.gmra.mxu0 %v1816
        %v2216 = vpop.f32.mrf.mxu0
        %v2217 = vadd.f32 %v1432, %v2216
        %2218 = vmatmul.f32.gmra.mxu0 %v1819
        %v2219 = vpop.f32.mrf.mxu0
        %v2220 = vadd.f32 %v1435, %v2219
        %2221 = vmatmul.f32.gmra.mxu0 %v1822
        %v2222 = vpop.f32.mrf.mxu0
        %v2223 = vadd.f32 %v1438, %v2222
        %2224 = vmatmul.f32.gmra.mxu0 %v1825
        %v2225 = vpop.f32.mrf.mxu0
        %v2226 = vadd.f32 %v1441, %v2225
        %2227 = vmatmul.f32.gmra.mxu0 %v1828
        %v2228 = vpop.f32.mrf.mxu0
        %v2229 = vadd.f32 %v1444, %v2228
        %2230 = vmatmul.f32.gmra.mxu0 %v1831
        %v2231 = vpop.f32.mrf.mxu0
        %v2232 = vadd.f32 %v1447, %v2231
        %2233 = vmatmul.f32.gmra.mxu0 %v1834
        %v2234 = vpop.f32.mrf.mxu0
        %v2235 = vadd.f32 %v1450, %v2234
        %2236 = vmatmul.f32.gmra.mxu0 %v1837
        %v2237 = vpop.f32.mrf.mxu0
        %v2238 = vadd.f32 %v1453, %v2237
        %2239 = vmatmul.f32.gmra.mxu0 %v1840
        %v2240 = vpop.f32.mrf.mxu0
        %v2241 = vadd.f32 %v1456, %v2240
        %2242 = vmatmul.f32.gmra.mxu0 %v1843
        %v2243 = vpop.f32.mrf.mxu0
        %v2244 = vadd.f32 %v1459, %v2243
        %2245 = vmatmul.f32.gmra.mxu0 %v1846
        %v2246 = vpop.f32.mrf.mxu0
        %v2247 = vadd.f32 %v1462, %v2246
        %2248 = vmatmul.f32.gmra.mxu0 %v1849
        %v2249 = vpop.f32.mrf.mxu0
        %v2250 = vadd.f32 %v1465, %v2249
        %2251 = vmatmul.f32.gmra.mxu0 %v1852
        %v2252 = vpop.f32.mrf.mxu0
        %v2253 = vadd.f32 %v1468, %v2252
        %2254 = vmatmul.f32.gmra.mxu0 %v1855
        %v2255 = vpop.f32.mrf.mxu0
        %v2256 = vadd.f32 %v1471, %v2255
        %2257 = vmatmul.f32.gmra.mxu0 %v1858
        %v2258 = vpop.f32.mrf.mxu0
        %v2259 = vadd.f32 %v1474, %v2258
        %2260 = vmatmul.f32.gmra.mxu0 %v1861
        %v2261 = vpop.f32.mrf.mxu0
        %v2262 = vadd.f32 %v1477, %v2261
        %2263 = vmatmul.f32.gmra.mxu0 %v1864
        %v2264 = vpop.f32.mrf.mxu0
        %v2265 = vadd.f32 %v1480, %v2264
        %2266 = vmatmul.f32.gmra.mxu0 %v1867
        %v2267 = vpop.f32.mrf.mxu0
        %v2268 = vadd.f32 %v1483, %v2267
        %2269 = vmatmul.f32.gmra.mxu0 %v1870
        %v2270 = vpop.f32.mrf.mxu0
        %v2271 = vadd.f32 %v1486, %v2270
        %2272 = vmatmul.f32.gmra.mxu0 %v1873
        %v2273 = vpop.f32.mrf.mxu0
        %v2274 = vadd.f32 %v1489, %v2273
        %2275 = vmatmul.f32.gmra.mxu0 %v1876
        %v2276 = vpop.f32.mrf.mxu0
        %v2277 = vadd.f32 %v1492, %v2276
        %2278 = vmatmul.f32.gmra.mxu0 %v1879
        %v2279 = vpop.f32.mrf.mxu0
        %v2280 = vadd.f32 %v1495, %v2279
        %2281 = vmatmul.f32.gmra.mxu0 %v1882
        %v2282 = vpop.f32.mrf.mxu0
        %v2283 = vadd.f32 %v1498, %v2282
        %2284 = vmatmul.f32.gmra.mxu0 %v1885
        %v2285 = vpop.f32.mrf.mxu0
        %v2286 = vadd.f32 %v1501, %v2285
        %2287 = vmatmul.f32.gmra.mxu0 %v1888
        %v2288 = vpop.f32.mrf.mxu0
        %v2289 = vadd.f32 %v1504, %v2288
        %2290 = vmatmul.f32.gmra.mxu0 %v1891
        %v2291 = vpop.f32.mrf.mxu0
        %v2292 = vadd.f32 %v1507, %v2291
        %2293 = vmatmul.f32.gmra.mxu0 %v1894
        %v2294 = vpop.f32.mrf.mxu0
        %v2295 = vadd.f32 %v1510, %v2294
        %2296 = vmatmul.f32.gmra.mxu0 %v1897
        %v2297 = vpop.f32.mrf.mxu0
        %v2298 = vadd.f32 %v1513, %v2297
        %2299 = vmatmul.f32.gmra.mxu0 %v1900
        %v2300 = vpop.f32.mrf.mxu0
        %v2301 = vadd.f32 %v1516, %v2300
        %2302 = vmatmul.f32.gmra.mxu0 %v1903
        %v2303 = vpop.f32.mrf.mxu0
        %v2304 = vadd.f32 %v1519, %v2303
        %2305 = vmatmul.f32.gmra.mxu0 %v1906
        %v2306 = vpop.f32.mrf.mxu0
        %v2307 = vadd.f32 %v1522, %v2306
        %2308 = vmatmul.f32.gmra.mxu0 %v1909
        %v2309 = vpop.f32.mrf.mxu0
        %v2310 = vadd.f32 %v1525, %v2309
        %2311 = vmatmul.f32.gmra.mxu0 %v1912
        %v2312 = vpop.f32.mrf.mxu0
        %v2313 = vadd.f32 %v1528, %v2312
        %2314 = vmatmul.f32.gmra.mxu0 %v1915
        %v2315 = vpop.f32.mrf.mxu0
        %v2316 = vadd.f32 %v1531, %v2315
        %2317 = vmatmul.f32.gmra.mxu0 %v1918
        %v2318 = vpop.f32.mrf.mxu0
        %v2319 = vadd.f32 %v1534, %v2318
        %2320 = vmatmul.f32.gmra.mxu0 %v1921
        %v2321 = vpop.f32.mrf.mxu0
        %v2322 = vadd.f32 %v1537, %v2321
        %2323 = vmatmul.f32.gmra.mxu0 %v1924
        %v2324 = vpop.f32.mrf.mxu0
        %v2325 = vadd.f32 %v1540, %v2324
        %2326 = vmatmul.f32.gmra.mxu0 %v1927
        %v2327 = vpop.f32.mrf.mxu0
        %v2328 = vadd.f32 %v1543, %v2327
        %2329 = vmatmul.f32.gmra.mxu0 %v1930
        %v2330 = vpop.f32.mrf.mxu0
        %v2331 = vadd.f32 %v1546, %v2330
        %2332 = vmatmul.f32.gmra.mxu0 %v1933
        %v2333 = vpop.f32.mrf.mxu0
        %v2334 = vadd.f32 %v1549, %v2333
        %2335 = vmatmul.f32.gmra.mxu0 %v1936
        %v2336 = vpop.f32.mrf.mxu0
        %v2337 = vadd.f32 %v1552, %v2336
        %2338 = vmatmul.f32.gmra.mxu0 %v1939
        %v2339 = vpop.f32.mrf.mxu0
        %v2340 = vadd.f32 %v1555, %v2339
        %2341 = vmatmul.f32.gmra.mxu0 %v1942
        %v2342 = vpop.f32.mrf.mxu0
        %v2343 = vadd.f32 %v1558, %v2342
        %2344 = vmatmul.f32.gmra.mxu0 %v1945
        %v2345 = vpop.f32.mrf.mxu0
        %v2346 = vadd.f32 %v1561, %v2345
        %2347 = vmatmul.f32.gmra.mxu0 %v1948
        %v2348 = vpop.f32.mrf.mxu0
        %v2349 = vadd.f32 %v1564, %v2348
        %2350 = vmatmul.f32.gmra.mxu0 %v1951
        %v2351 = vpop.f32.mrf.mxu0
        %v2352 = vadd.f32 %v1567, %v2351
        %2353 = vmatmul.f32.gmra.mxu0 %v1954
        %v2354 = vpop.f32.mrf.mxu0
        %v2355 = vadd.f32 %v1570, %v2354
        %2356 = vmatmul.f32.gmra.mxu0 %v1957
        %v2357 = vpop.f32.mrf.mxu0
        %v2358 = vadd.f32 %v1573, %v2357
        %2359 = vmatmul.f32.gmra.mxu0 %v1960
        %v2360 = vpop.f32.mrf.mxu0
        %v2361 = vadd.f32 %v1576, %v2360
        %2362 = vmatmul.f32.gmra.mxu0 %v1963
        %v2363 = vpop.f32.mrf.mxu0
        %v2364 = vadd.f32 %v1579, %v2363
        %2365 = vmatmul.f32.gmra.mxu0 %v1966
        %v2366 = vpop.f32.mrf.mxu0
        %v2367 = vadd.f32 %v1582, %v2366
        %2368 = vmatmul.f32.gmra.mxu0 %v1969
        %v2369 = vpop.f32.mrf.mxu0
        %v2370 = vadd.f32 %v1585, %v2369
        %2371 = vmatmul.f32.gmra.mxu0 %v1972
        %v2372 = vpop.f32.mrf.mxu0
        %v2373 = vadd.f32 %v1588, %v2372
        %2374 = vmatmul.f32.gmra.mxu0 %v1975
        %v2375 = vpop.f32.mrf.mxu0
        %v2376 = vadd.f32 %v1591, %v2375
        %2377 = vmatmul.f32.gmra.mxu0 %v1978
        %v2378 = vpop.f32.mrf.mxu0
        %v2379 = vadd.f32 %v1594, %v2378
        %2380 = vmatmul.f32.gmra.mxu0 %v1981
        %v2381 = vpop.f32.mrf.mxu0
        %v2382 = vadd.f32 %v1597, %v2381
        %2383 = vmatmul.f32.gmra.mxu0 %v1984
        %v2384 = vpop.f32.mrf.mxu0
        %v2385 = vadd.f32 %v1600, %v2384
        %2386 = vmatmul.f32.gmra.mxu0 %v1987
        %v2387 = vpop.f32.mrf.mxu0
        %v2388 = vadd.f32 %v1603, %v2387
        %2389 = vmatmul.f32.gmra.mxu0 %v1990
        %v2390 = vpop.f32.mrf.mxu0
        %v2391 = vadd.f32 %v1606, %v2390
        %2392 = vmatmul.f32.gmra.mxu0 %v1993
        %v2393 = vpop.f32.mrf.mxu0
        %v2394 = vadd.f32 %v1609, %v2393
        %2395 = vmatmul.f32.gmra.mxu0 %v1996
        %v2396 = vpop.f32.mrf.mxu0
        %v2397 = vadd.f32 %v1612, %v2396
        %2398 = vmatmul.f32.gmra.mxu0 %v1999
        %v2399 = vpop.f32.mrf.mxu0
        %v2400 = vadd.f32 %v1615, %v2399
        %2401 = vmatmul.f32.gmra.mxu0 %v2002
        %v2402 = vpop.f32.mrf.mxu0
        %v2403 = vadd.f32 %v1618, %v2402
        %2404 = vmatmul.f32.gmra.mxu0 %v2005
        %v2405 = vpop.f32.mrf.mxu0
        %v2406 = vadd.f32 %v1621, %v2405
        %2407 = vmatmul.f32.gmra.mxu0 %v2008
        %v2408 = vpop.f32.mrf.mxu0
        %v2409 = vadd.f32 %v1624, %v2408
        %2410 = vmatmul.f32.gmra.mxu0 %v2011
        %v2411 = vpop.f32.mrf.mxu0
        %v2412 = vadd.f32 %v1627, %v2411
        %2413 = vmatmul.f32.gmra.mxu0 %v2014
        %v2414 = vpop.f32.mrf.mxu0
        %v2415 = vadd.f32 %v1630, %v2414
        %2416 = vmatmul.f32.gmra.mxu0 %v2017
        %v2417 = vpop.f32.mrf.mxu0
        %v2418 = vadd.f32 %v1633, %v2417
        %2419 = vmatmul.f32.gmra.mxu0 %v2020
        %v2420 = vpop.f32.mrf.mxu0
        %v2421 = vadd.f32 %v1636, %v2420
        %2422 = vmatmul.f32.gmra.mxu0 %v2023
        %v2423 = vpop.f32.mrf.mxu0
        %v2424 = vadd.f32 %v1639, %v2423
        %2425 = vmatmul.f32.gmra.mxu0 %v2026
        %v2426 = vpop.f32.mrf.mxu0
        %v2427 = vadd.f32 %v1642, %v2426
        %2428 = vmatmul.f32.gmra.mxu0 %v2029
        %v2429 = vpop.f32.mrf.mxu0
        %v2430 = vadd.f32 %v1645, %v2429
        %2431 = vmatmul.f32.gmra.mxu0 %v2032
        %v2432 = vpop.f32.mrf.mxu0
        %v2433 = vadd.f32 %v1648, %v2432
        %2434 = vmatmul.f32.gmra.mxu0 %v2035
        %v2435 = vpop.f32.mrf.mxu0
        %v2436 = vadd.f32 %v1651, %v2435
        %2437 = vmatmul.f32.gmra.mxu0 %v2038
        %v2438 = vpop.f32.mrf.mxu0
        %v2439 = vadd.f32 %v1654, %v2438
        %2440 = vmatmul.f32.gmra.mxu0 %v2041
        %v2441 = vpop.f32.mrf.mxu0
        %v2442 = vadd.f32 %v1657, %v2441
        %2443 = vmatmul.f32.gmra.mxu0 %v2044
        %v2444 = vpop.f32.mrf.mxu0
        %v2445 = vadd.f32 %v1660, %v2444
        %2446 = vmatmul.f32.gmra.mxu0 %v2047
        %v2447 = vpop.f32.mrf.mxu0
        %v2448 = vadd.f32 %v1663, %v2447
        %2449 = vmatmul.f32.gmra.mxu0 %v2050
        %v2450 = vpop.f32.mrf.mxu0
        %v2451 = vadd.f32 %v1666, %v2450
        %2452 = vmatmul.f32.gmra.mxu0 %v2053
        %v2453 = vpop.f32.mrf.mxu0
        %v2454 = vadd.f32 %v1669, %v2453
        %2455 = vmatmul.f32.gmra.mxu0 %v2056
        %v2456 = vpop.f32.mrf.mxu0
        %v2457 = vadd.f32 %v1672, %v2456
        %2458 = vmatmul.f32.gmra.mxu0 %v2059
        %v2459 = vpop.f32.mrf.mxu0
        %v2460 = vadd.f32 %v1675, %v2459
        %2461 = vmatmul.f32.gmra.mxu0 %v2062
        %v2462 = vpop.f32.mrf.mxu0
        %v2463 = vadd.f32 %v1678, %v2462
        %2464 = vmatmul.f32.gmra.mxu0 %v2065
        %v2465 = vpop.f32.mrf.mxu0
        %v2466 = vadd.f32 %v1681, %v2465
        %2467 = vmatmul.f32.gmra.mxu0 %v2068
        %v2468 = vpop.f32.mrf.mxu0
        %v2469 = vadd.f32 %v1684, %v2468
        %2470 = vmatmul.f32.gmra.mxu0 %v2071
        %v2471 = vpop.f32.mrf.mxu0
        %v2472 = vadd.f32 %v1687, %v2471
        %2473 = vmatmul.f32.gmra.mxu0 %v2074
        %v2474 = vpop.f32.mrf.mxu0
        %v2475 = vadd.f32 %v1690, %v2474
        %2476 = vmatmul.f32.gmra.mxu0 %v2077
        %v2477 = vpop.f32.mrf.mxu0
        %v2478 = vadd.f32 %v1693, %v2477
        %2479 = vmatmul.f32.gmra.mxu0 %v2080
        %v2480 = vpop.f32.mrf.mxu0
        %v2481 = vadd.f32 %v1696, %v2480
        %2482 = vmatmul.f32.gmra.mxu0 %v2083
        %v2483 = vpop.f32.mrf.mxu0
        %v2484 = vadd.f32 %v1699, %v2483
        %2485 = vmatmul.f32.gmra.mxu0 %v2086
        %v2486 = vpop.f32.mrf.mxu0
        %v2487 = vadd.f32 %v1702, %v2486
        %2488 = vmatmul.f32.gmra.mxu0 %v2089
        %v2489 = vpop.f32.mrf.mxu0
        %v2490 = vadd.f32 %v1705, %v2489
        %2491 = vmatmul.f32.gmra.mxu0 %v2092
        %v2492 = vpop.f32.mrf.mxu0
        %v2493 = vadd.f32 %v1708, %v2492
        %2494 = vmatmul.f32.gmra.mxu0 %v2095
        %v2495 = vpop.f32.mrf.mxu0
        %v2496 = vadd.f32 %v1711, %v2495
        %2497 = vmatmul.f32.gmra.mxu0 %v2098
        %v2498 = vpop.f32.mrf.mxu0
        %v2499 = vadd.f32 %v1714, %v2498
        %2500 = vmatmul.f32.gmra.mxu0 %v2101
        %v2501 = vpop.f32.mrf.mxu0
        %v2502 = vadd.f32 %v1717, %v2501
        %2503 = vmatmul.f32.gmra.mxu0 %v2104
        %v2504 = vpop.f32.mrf.mxu0
        %v2505 = vadd.f32 %v1720, %v2504
        %2506 = vmatmul.f32.gmra.mxu0 %v2107
        %v2507 = vpop.f32.mrf.mxu0
        %v2508 = vadd.f32 %v1723, %v2507
        %2509 = vmatmul.f32.gmra.mxu0 %v2110
        %v2510 = vpop.f32.mrf.mxu0
        %v2511 = vadd.f32 %v1726, %v2510
        %2512 = vmatmul.f32.gmra.mxu0 %v2113
        %v2513 = vpop.f32.mrf.mxu0
        %v2514 = vadd.f32 %v1729, %v2513
        %2515 = vmatmul.f32.gmra.mxu0 %v2116
        %v2516 = vpop.f32.mrf.mxu0
        %v2517 = vadd.f32 %v1732, %v2516
        %2518 = vmatmul.f32.gmra.mxu0 %v2119
        %v2519 = vpop.f32.mrf.mxu0
        %v2520 = vadd.f32 %v1735, %v2519
        %2521 = vmatmul.f32.gmra.mxu0 %v2122
        %v2522 = vpop.f32.mrf.mxu0
        %v2523 = vadd.f32 %v1738, %v2522
        %2524 = vmatmul.f32.gmra.mxu0 %v2125
        %v2525 = vpop.f32.mrf.mxu0
        %v2526 = vadd.f32 %v1741, %v2525
        %2527 = vdwg.mxu0
        %s2528 = scalar_lea.vmem %s1, 64
        %v2529 = vld [vmem:[%s2528] sm:$0xff]
        %v2530 = vld [vmem:[%s2528 + $0x8] sm:$0xff]
        %v2531 = vld [vmem:[%s2528 + $0x10] sm:$0xff]
        %v2532 = vld [vmem:[%s2528 + $0x18] sm:$0xff]
        %v2534 = vsel %vm957, %v812, 0
        %v2537 = vsel %vm957, %v813, 0
        %v2540 = vsel %vm957, %v814, 0
        %v2543 = vsel %vm957, %v815, 0
        %v2546 = vsel %vm957, %v816, 0
        %v2549 = vsel %vm957, %v817, 0
        %v2552 = vsel %vm957, %v818, 0
        %v2555 = vsel %vm957, %v819, 0
        %v2558 = vsel %vm957, %v820, 0
        %v2561 = vsel %vm957, %v821, 0
        %v2564 = vsel %vm957, %v822, 0
        %v2567 = vsel %vm957, %v823, 0
        %v2570 = vsel %vm957, %v824, 0
        %v2573 = vsel %vm957, %v825, 0
        %v2576 = vsel %vm957, %v826, 0
        %v2579 = vsel %vm957, %v827, 0
        %v2582 = vsel %vm957, %v828, 0
        %v2585 = vsel %vm957, %v829, 0
        %v2588 = vsel %vm957, %v830, 0
        %v2591 = vsel %vm957, %v831, 0
        %v2594 = vsel %vm957, %v832, 0
        %v2597 = vsel %vm957, %v833, 0
        %v2600 = vsel %vm957, %v834, 0
        %v2603 = vsel %vm957, %v835, 0
        %v2606 = vsel %vm957, %v836, 0
        %v2609 = vsel %vm957, %v837, 0
        %v2612 = vsel %vm957, %v838, 0
        %v2615 = vsel %vm957, %v839, 0
        %v2618 = vsel %vm957, %v840, 0
        %v2621 = vsel %vm957, %v841, 0
        %v2624 = vsel %vm957, %v842, 0
        %v2627 = vsel %vm957, %v843, 0
        %v2630 = vsel %vm957, %v844, 0
        %v2633 = vsel %vm957, %v845, 0
        %v2636 = vsel %vm957, %v846, 0
        %v2639 = vsel %vm957, %v847, 0
        %v2642 = vsel %vm957, %v848, 0
        %v2645 = vsel %vm957, %v849, 0
        %v2648 = vsel %vm957, %v850, 0
        %v2651 = vsel %vm957, %v851, 0
        %v2654 = vsel %vm957, %v852, 0
        %v2657 = vsel %vm957, %v853, 0
        %v2660 = vsel %vm957, %v854, 0
        %v2663 = vsel %vm957, %v855, 0
        %v2666 = vsel %vm957, %v856, 0
        %v2669 = vsel %vm957, %v857, 0
        %v2672 = vsel %vm957, %v858, 0
        %v2675 = vsel %vm957, %v859, 0
        %v2678 = vsel %vm957, %v860, 0
        %v2681 = vsel %vm957, %v861, 0
        %v2684 = vsel %vm957, %v862, 0
        %v2687 = vsel %vm957, %v863, 0
        %v2690 = vsel %vm957, %v864, 0
        %v2693 = vsel %vm957, %v865, 0
        %v2696 = vsel %vm957, %v866, 0
        %v2699 = vsel %vm957, %v867, 0
        %v2702 = vsel %vm957, %v868, 0
        %v2705 = vsel %vm957, %v869, 0
        %v2708 = vsel %vm957, %v870, 0
        %v2711 = vsel %vm957, %v871, 0
        %v2714 = vsel %vm957, %v872, 0
        %v2717 = vsel %vm957, %v873, 0
        %v2720 = vsel %vm957, %v874, 0
        %v2723 = vsel %vm957, %v875, 0
        %v2726 = vsel %vm957, %v876, 0
        %v2729 = vsel %vm957, %v877, 0
        %v2732 = vsel %vm957, %v878, 0
        %v2735 = vsel %vm957, %v879, 0
        %v2738 = vsel %vm957, %v880, 0
        %v2741 = vsel %vm957, %v881, 0
        %v2744 = vsel %vm957, %v882, 0
        %v2747 = vsel %vm957, %v883, 0
        %v2750 = vsel %vm957, %v884, 0
        %v2753 = vsel %vm957, %v885, 0
        %v2756 = vsel %vm957, %v886, 0
        %v2759 = vsel %vm957, %v887, 0
        %v2762 = vsel %vm957, %v888, 0
        %v2765 = vsel %vm957, %v889, 0
        %v2768 = vsel %vm957, %v890, 0
        %v2771 = vsel %vm957, %v891, 0
        %v2774 = vsel %vm957, %v892, 0
        %v2777 = vsel %vm957, %v893, 0
        %v2780 = vsel %vm957, %v894, 0
        %v2783 = vsel %vm957, %v895, 0
        %v2786 = vsel %vm957, %v896, 0
        %v2789 = vsel %vm957, %v897, 0
        %v2792 = vsel %vm957, %v898, 0
        %v2795 = vsel %vm957, %v899, 0
        %v2798 = vsel %vm957, %v900, 0
        %v2801 = vsel %vm957, %v901, 0
        %v2804 = vsel %vm957, %v902, 0
        %v2807 = vsel %vm957, %v903, 0
        %v2810 = vsel %vm957, %v904, 0
        %v2813 = vsel %vm957, %v905, 0
        %v2816 = vsel %vm957, %v906, 0
        %v2819 = vsel %vm957, %v907, 0
        %v2822 = vsel %vm957, %v908, 0
        %v2825 = vsel %vm957, %v909, 0
        %v2828 = vsel %vm957, %v910, 0
        %v2831 = vsel %vm957, %v911, 0
        %v2834 = vsel %vm957, %v912, 0
        %v2837 = vsel %vm957, %v913, 0
        %v2840 = vsel %vm957, %v914, 0
        %v2843 = vsel %vm957, %v915, 0
        %v2846 = vsel %vm957, %v916, 0
        %v2849 = vsel %vm957, %v917, 0
        %v2852 = vsel %vm957, %v918, 0
        %v2855 = vsel %vm957, %v919, 0
        %v2858 = vsel %vm957, %v920, 0
        %v2861 = vsel %vm957, %v921, 0
        %v2864 = vsel %vm957, %v922, 0
        %v2867 = vsel %vm957, %v923, 0
        %v2870 = vsel %vm957, %v924, 0
        %v2873 = vsel %vm957, %v925, 0
        %v2876 = vsel %vm957, %v926, 0
        %v2879 = vsel %vm957, %v927, 0
        %v2882 = vsel %vm957, %v928, 0
        %v2885 = vsel %vm957, %v929, 0
        %v2888 = vsel %vm957, %v930, 0
        %v2891 = vsel %vm957, %v931, 0
        %v2894 = vsel %vm957, %v932, 0
        %v2897 = vsel %vm957, %v933, 0
        %v2900 = vsel %vm957, %v934, 0
        %v2903 = vsel %vm957, %v935, 0
        %v2906 = vsel %vm957, %v936, 0
        %v2909 = vsel %vm957, %v937, 0
        %v2912 = vsel %vm957, %v938, 0
        %v2915 = vsel %vm957, %v939, 0
        %2917 = vmatpush.msra.mxu0 0.0
        %2918 = vmatpush.msra.mxu0 0.0
        %2919 = vmatpush.msra.mxu0 0.0
        %2920 = vmatpush.msra.mxu0 0.0
        %2921 = vmatpush.msra.mxu0 0.0
        %2922 = vmatpush.msra.mxu0 0.0
        %2923 = vmatpush.msra.mxu0 0.0
        %2924 = vmatpush.msra.mxu0 0.0
        %2925 = vmatpush.msra.mxu0 0.0
        %2926 = vmatpush.msra.mxu0 0.0
        %2927 = vmatpush.msra.mxu0 0.0
        %2928 = vmatpush.msra.mxu0 0.0
        %2929 = vmatpush.msra.mxu0 %v2532
        %2930 = vmatpush.msra.mxu0 %v2531
        %2931 = vmatpush.msra.mxu0 %v2530
        %2932 = vmatpush.msra.mxu0 %v2529
        %2933 = vmatmul.f32.gmra.mxu0 %v2534
        %v2934 = vpop.f32.mrf.mxu0
        %v2935 = vadd.f32 0.0, %v2934
        %2936 = vmatmul.f32.gmra.mxu0 %v2537
        %v2937 = vpop.f32.mrf.mxu0
        %v2938 = vadd.f32 0.0, %v2937
        %2939 = vmatmul.f32.gmra.mxu0 %v2540
        %v2940 = vpop.f32.mrf.mxu0
        %v2941 = vadd.f32 0.0, %v2940
        %2942 = vmatmul.f32.gmra.mxu0 %v2543
        %v2943 = vpop.f32.mrf.mxu0
        %v2944 = vadd.f32 0.0, %v2943
        %2945 = vmatmul.f32.gmra.mxu0 %v2546
        %v2946 = vpop.f32.mrf.mxu0
        %v2947 = vadd.f32 0.0, %v2946
        %2948 = vmatmul.f32.gmra.mxu0 %v2549
        %v2949 = vpop.f32.mrf.mxu0
        %v2950 = vadd.f32 0.0, %v2949
        %2951 = vmatmul.f32.gmra.mxu0 %v2552
        %v2952 = vpop.f32.mrf.mxu0
        %v2953 = vadd.f32 0.0, %v2952
        %2954 = vmatmul.f32.gmra.mxu0 %v2555
        %v2955 = vpop.f32.mrf.mxu0
        %v2956 = vadd.f32 0.0, %v2955
        %2957 = vmatmul.f32.gmra.mxu0 %v2558
        %v2958 = vpop.f32.mrf.mxu0
        %v2959 = vadd.f32 0.0, %v2958
        %2960 = vmatmul.f32.gmra.mxu0 %v2561
        %v2961 = vpop.f32.mrf.mxu0
        %v2962 = vadd.f32 0.0, %v2961
        %2963 = vmatmul.f32.gmra.mxu0 %v2564
        %v2964 = vpop.f32.mrf.mxu0
        %v2965 = vadd.f32 0.0, %v2964
        %2966 = vmatmul.f32.gmra.mxu0 %v2567
        %v2967 = vpop.f32.mrf.mxu0
        %v2968 = vadd.f32 0.0, %v2967
        %2969 = vmatmul.f32.gmra.mxu0 %v2570
        %v2970 = vpop.f32.mrf.mxu0
        %v2971 = vadd.f32 0.0, %v2970
        %2972 = vmatmul.f32.gmra.mxu0 %v2573
        %v2973 = vpop.f32.mrf.mxu0
        %v2974 = vadd.f32 0.0, %v2973
        %2975 = vmatmul.f32.gmra.mxu0 %v2576
        %v2976 = vpop.f32.mrf.mxu0
        %v2977 = vadd.f32 0.0, %v2976
        %2978 = vmatmul.f32.gmra.mxu0 %v2579
        %v2979 = vpop.f32.mrf.mxu0
        %v2980 = vadd.f32 0.0, %v2979
        %2981 = vmatmul.f32.gmra.mxu0 %v2582
        %v2982 = vpop.f32.mrf.mxu0
        %v2983 = vadd.f32 0.0, %v2982
        %2984 = vmatmul.f32.gmra.mxu0 %v2585
        %v2985 = vpop.f32.mrf.mxu0
        %v2986 = vadd.f32 0.0, %v2985
        %2987 = vmatmul.f32.gmra.mxu0 %v2588
        %v2988 = vpop.f32.mrf.mxu0
        %v2989 = vadd.f32 0.0, %v2988
        %2990 = vmatmul.f32.gmra.mxu0 %v2591
        %v2991 = vpop.f32.mrf.mxu0
        %v2992 = vadd.f32 0.0, %v2991
        %2993 = vmatmul.f32.gmra.mxu0 %v2594
        %v2994 = vpop.f32.mrf.mxu0
        %v2995 = vadd.f32 0.0, %v2994
        %2996 = vmatmul.f32.gmra.mxu0 %v2597
        %v2997 = vpop.f32.mrf.mxu0
        %v2998 = vadd.f32 0.0, %v2997
        %2999 = vmatmul.f32.gmra.mxu0 %v2600
        %v3000 = vpop.f32.mrf.mxu0
        %v3001 = vadd.f32 0.0, %v3000
        %3002 = vmatmul.f32.gmra.mxu0 %v2603
        %v3003 = vpop.f32.mrf.mxu0
        %v3004 = vadd.f32 0.0, %v3003
        %3005 = vmatmul.f32.gmra.mxu0 %v2606
        %v3006 = vpop.f32.mrf.mxu0
        %v3007 = vadd.f32 0.0, %v3006
        %3008 = vmatmul.f32.gmra.mxu0 %v2609
        %v3009 = vpop.f32.mrf.mxu0
        %v3010 = vadd.f32 0.0, %v3009
        %3011 = vmatmul.f32.gmra.mxu0 %v2612
        %v3012 = vpop.f32.mrf.mxu0
        %v3013 = vadd.f32 0.0, %v3012
        %3014 = vmatmul.f32.gmra.mxu0 %v2615
        %v3015 = vpop.f32.mrf.mxu0
        %v3016 = vadd.f32 0.0, %v3015
        %3017 = vmatmul.f32.gmra.mxu0 %v2618
        %v3018 = vpop.f32.mrf.mxu0
        %v3019 = vadd.f32 0.0, %v3018
        %3020 = vmatmul.f32.gmra.mxu0 %v2621
        %v3021 = vpop.f32.mrf.mxu0
        %v3022 = vadd.f32 0.0, %v3021
        %3023 = vmatmul.f32.gmra.mxu0 %v2624
        %v3024 = vpop.f32.mrf.mxu0
        %v3025 = vadd.f32 0.0, %v3024
        %3026 = vmatmul.f32.gmra.mxu0 %v2627
        %v3027 = vpop.f32.mrf.mxu0
        %v3028 = vadd.f32 0.0, %v3027
        %3029 = vmatmul.f32.gmra.mxu0 %v2630
        %v3030 = vpop.f32.mrf.mxu0
        %v3031 = vadd.f32 0.0, %v3030
        %3032 = vmatmul.f32.gmra.mxu0 %v2633
        %v3033 = vpop.f32.mrf.mxu0
        %v3034 = vadd.f32 0.0, %v3033
        %3035 = vmatmul.f32.gmra.mxu0 %v2636
        %v3036 = vpop.f32.mrf.mxu0
        %v3037 = vadd.f32 0.0, %v3036
        %3038 = vmatmul.f32.gmra.mxu0 %v2639
        %v3039 = vpop.f32.mrf.mxu0
        %v3040 = vadd.f32 0.0, %v3039
        %3041 = vmatmul.f32.gmra.mxu0 %v2642
        %v3042 = vpop.f32.mrf.mxu0
        %v3043 = vadd.f32 0.0, %v3042
        %3044 = vmatmul.f32.gmra.mxu0 %v2645
        %v3045 = vpop.f32.mrf.mxu0
        %v3046 = vadd.f32 0.0, %v3045
        %3047 = vmatmul.f32.gmra.mxu0 %v2648
        %v3048 = vpop.f32.mrf.mxu0
        %v3049 = vadd.f32 0.0, %v3048
        %3050 = vmatmul.f32.gmra.mxu0 %v2651
        %v3051 = vpop.f32.mrf.mxu0
        %v3052 = vadd.f32 0.0, %v3051
        %3053 = vmatmul.f32.gmra.mxu0 %v2654
        %v3054 = vpop.f32.mrf.mxu0
        %v3055 = vadd.f32 0.0, %v3054
        %3056 = vmatmul.f32.gmra.mxu0 %v2657
        %v3057 = vpop.f32.mrf.mxu0
        %v3058 = vadd.f32 0.0, %v3057
        %3059 = vmatmul.f32.gmra.mxu0 %v2660
        %v3060 = vpop.f32.mrf.mxu0
        %v3061 = vadd.f32 0.0, %v3060
        %3062 = vmatmul.f32.gmra.mxu0 %v2663
        %v3063 = vpop.f32.mrf.mxu0
        %v3064 = vadd.f32 0.0, %v3063
        %3065 = vmatmul.f32.gmra.mxu0 %v2666
        %v3066 = vpop.f32.mrf.mxu0
        %v3067 = vadd.f32 0.0, %v3066
        %3068 = vmatmul.f32.gmra.mxu0 %v2669
        %v3069 = vpop.f32.mrf.mxu0
        %v3070 = vadd.f32 0.0, %v3069
        %3071 = vmatmul.f32.gmra.mxu0 %v2672
        %v3072 = vpop.f32.mrf.mxu0
        %v3073 = vadd.f32 0.0, %v3072
        %3074 = vmatmul.f32.gmra.mxu0 %v2675
        %v3075 = vpop.f32.mrf.mxu0
        %v3076 = vadd.f32 0.0, %v3075
        %3077 = vmatmul.f32.gmra.mxu0 %v2678
        %v3078 = vpop.f32.mrf.mxu0
        %v3079 = vadd.f32 0.0, %v3078
        %3080 = vmatmul.f32.gmra.mxu0 %v2681
        %v3081 = vpop.f32.mrf.mxu0
        %v3082 = vadd.f32 0.0, %v3081
        %3083 = vmatmul.f32.gmra.mxu0 %v2684
        %v3084 = vpop.f32.mrf.mxu0
        %v3085 = vadd.f32 0.0, %v3084
        %3086 = vmatmul.f32.gmra.mxu0 %v2687
        %v3087 = vpop.f32.mrf.mxu0
        %v3088 = vadd.f32 0.0, %v3087
        %3089 = vmatmul.f32.gmra.mxu0 %v2690
        %v3090 = vpop.f32.mrf.mxu0
        %v3091 = vadd.f32 0.0, %v3090
        %3092 = vmatmul.f32.gmra.mxu0 %v2693
        %v3093 = vpop.f32.mrf.mxu0
        %v3094 = vadd.f32 0.0, %v3093
        %3095 = vmatmul.f32.gmra.mxu0 %v2696
        %v3096 = vpop.f32.mrf.mxu0
        %v3097 = vadd.f32 0.0, %v3096
        %3098 = vmatmul.f32.gmra.mxu0 %v2699
        %v3099 = vpop.f32.mrf.mxu0
        %v3100 = vadd.f32 0.0, %v3099
        %3101 = vmatmul.f32.gmra.mxu0 %v2702
        %v3102 = vpop.f32.mrf.mxu0
        %v3103 = vadd.f32 0.0, %v3102
        %3104 = vmatmul.f32.gmra.mxu0 %v2705
        %v3105 = vpop.f32.mrf.mxu0
        %v3106 = vadd.f32 0.0, %v3105
        %3107 = vmatmul.f32.gmra.mxu0 %v2708
        %v3108 = vpop.f32.mrf.mxu0
        %v3109 = vadd.f32 0.0, %v3108
        %3110 = vmatmul.f32.gmra.mxu0 %v2711
        %v3111 = vpop.f32.mrf.mxu0
        %v3112 = vadd.f32 0.0, %v3111
        %3113 = vmatmul.f32.gmra.mxu0 %v2714
        %v3114 = vpop.f32.mrf.mxu0
        %v3115 = vadd.f32 0.0, %v3114
        %3116 = vmatmul.f32.gmra.mxu0 %v2717
        %v3117 = vpop.f32.mrf.mxu0
        %v3118 = vadd.f32 0.0, %v3117
        %3119 = vmatmul.f32.gmra.mxu0 %v2720
        %v3120 = vpop.f32.mrf.mxu0
        %v3121 = vadd.f32 0.0, %v3120
        %3122 = vmatmul.f32.gmra.mxu0 %v2723
        %v3123 = vpop.f32.mrf.mxu0
        %v3124 = vadd.f32 0.0, %v3123
        %3125 = vmatmul.f32.gmra.mxu0 %v2726
        %v3126 = vpop.f32.mrf.mxu0
        %v3127 = vadd.f32 0.0, %v3126
        %3128 = vmatmul.f32.gmra.mxu0 %v2729
        %v3129 = vpop.f32.mrf.mxu0
        %v3130 = vadd.f32 0.0, %v3129
        %3131 = vmatmul.f32.gmra.mxu0 %v2732
        %v3132 = vpop.f32.mrf.mxu0
        %v3133 = vadd.f32 0.0, %v3132
        %3134 = vmatmul.f32.gmra.mxu0 %v2735
        %v3135 = vpop.f32.mrf.mxu0
        %v3136 = vadd.f32 0.0, %v3135
        %3137 = vmatmul.f32.gmra.mxu0 %v2738
        %v3138 = vpop.f32.mrf.mxu0
        %v3139 = vadd.f32 0.0, %v3138
        %3140 = vmatmul.f32.gmra.mxu0 %v2741
        %v3141 = vpop.f32.mrf.mxu0
        %v3142 = vadd.f32 0.0, %v3141
        %3143 = vmatmul.f32.gmra.mxu0 %v2744
        %v3144 = vpop.f32.mrf.mxu0
        %v3145 = vadd.f32 0.0, %v3144
        %3146 = vmatmul.f32.gmra.mxu0 %v2747
        %v3147 = vpop.f32.mrf.mxu0
        %v3148 = vadd.f32 0.0, %v3147
        %3149 = vmatmul.f32.gmra.mxu0 %v2750
        %v3150 = vpop.f32.mrf.mxu0
        %v3151 = vadd.f32 0.0, %v3150
        %3152 = vmatmul.f32.gmra.mxu0 %v2753
        %v3153 = vpop.f32.mrf.mxu0
        %v3154 = vadd.f32 0.0, %v3153
        %3155 = vmatmul.f32.gmra.mxu0 %v2756
        %v3156 = vpop.f32.mrf.mxu0
        %v3157 = vadd.f32 0.0, %v3156
        %3158 = vmatmul.f32.gmra.mxu0 %v2759
        %v3159 = vpop.f32.mrf.mxu0
        %v3160 = vadd.f32 0.0, %v3159
        %3161 = vmatmul.f32.gmra.mxu0 %v2762
        %v3162 = vpop.f32.mrf.mxu0
        %v3163 = vadd.f32 0.0, %v3162
        %3164 = vmatmul.f32.gmra.mxu0 %v2765
        %v3165 = vpop.f32.mrf.mxu0
        %v3166 = vadd.f32 0.0, %v3165
        %3167 = vmatmul.f32.gmra.mxu0 %v2768
        %v3168 = vpop.f32.mrf.mxu0
        %v3169 = vadd.f32 0.0, %v3168
        %3170 = vmatmul.f32.gmra.mxu0 %v2771
        %v3171 = vpop.f32.mrf.mxu0
        %v3172 = vadd.f32 0.0, %v3171
        %3173 = vmatmul.f32.gmra.mxu0 %v2774
        %v3174 = vpop.f32.mrf.mxu0
        %v3175 = vadd.f32 0.0, %v3174
        %3176 = vmatmul.f32.gmra.mxu0 %v2777
        %v3177 = vpop.f32.mrf.mxu0
        %v3178 = vadd.f32 0.0, %v3177
        %3179 = vmatmul.f32.gmra.mxu0 %v2780
        %v3180 = vpop.f32.mrf.mxu0
        %v3181 = vadd.f32 0.0, %v3180
        %3182 = vmatmul.f32.gmra.mxu0 %v2783
        %v3183 = vpop.f32.mrf.mxu0
        %v3184 = vadd.f32 0.0, %v3183
        %3185 = vmatmul.f32.gmra.mxu0 %v2786
        %v3186 = vpop.f32.mrf.mxu0
        %v3187 = vadd.f32 0.0, %v3186
        %3188 = vmatmul.f32.gmra.mxu0 %v2789
        %v3189 = vpop.f32.mrf.mxu0
        %v3190 = vadd.f32 0.0, %v3189
        %3191 = vmatmul.f32.gmra.mxu0 %v2792
        %v3192 = vpop.f32.mrf.mxu0
        %v3193 = vadd.f32 0.0, %v3192
        %3194 = vmatmul.f32.gmra.mxu0 %v2795
        %v3195 = vpop.f32.mrf.mxu0
        %v3196 = vadd.f32 0.0, %v3195
        %3197 = vmatmul.f32.gmra.mxu0 %v2798
        %v3198 = vpop.f32.mrf.mxu0
        %v3199 = vadd.f32 0.0, %v3198
        %3200 = vmatmul.f32.gmra.mxu0 %v2801
        %v3201 = vpop.f32.mrf.mxu0
        %v3202 = vadd.f32 0.0, %v3201
        %3203 = vmatmul.f32.gmra.mxu0 %v2804
        %v3204 = vpop.f32.mrf.mxu0
        %v3205 = vadd.f32 0.0, %v3204
        %3206 = vmatmul.f32.gmra.mxu0 %v2807
        %v3207 = vpop.f32.mrf.mxu0
        %v3208 = vadd.f32 0.0, %v3207
        %3209 = vmatmul.f32.gmra.mxu0 %v2810
        %v3210 = vpop.f32.mrf.mxu0
        %v3211 = vadd.f32 0.0, %v3210
        %3212 = vmatmul.f32.gmra.mxu0 %v2813
        %v3213 = vpop.f32.mrf.mxu0
        %v3214 = vadd.f32 0.0, %v3213
        %3215 = vmatmul.f32.gmra.mxu0 %v2816
        %v3216 = vpop.f32.mrf.mxu0
        %v3217 = vadd.f32 0.0, %v3216
        %3218 = vmatmul.f32.gmra.mxu0 %v2819
        %v3219 = vpop.f32.mrf.mxu0
        %v3220 = vadd.f32 0.0, %v3219
        %3221 = vmatmul.f32.gmra.mxu0 %v2822
        %v3222 = vpop.f32.mrf.mxu0
        %v3223 = vadd.f32 0.0, %v3222
        %3224 = vmatmul.f32.gmra.mxu0 %v2825
        %v3225 = vpop.f32.mrf.mxu0
        %v3226 = vadd.f32 0.0, %v3225
        %3227 = vmatmul.f32.gmra.mxu0 %v2828
        %v3228 = vpop.f32.mrf.mxu0
        %v3229 = vadd.f32 0.0, %v3228
        %3230 = vmatmul.f32.gmra.mxu0 %v2831
        %v3231 = vpop.f32.mrf.mxu0
        %v3232 = vadd.f32 0.0, %v3231
        %3233 = vmatmul.f32.gmra.mxu0 %v2834
        %v3234 = vpop.f32.mrf.mxu0
        %v3235 = vadd.f32 0.0, %v3234
        %3236 = vmatmul.f32.gmra.mxu0 %v2837
        %v3237 = vpop.f32.mrf.mxu0
        %v3238 = vadd.f32 0.0, %v3237
        %3239 = vmatmul.f32.gmra.mxu0 %v2840
        %v3240 = vpop.f32.mrf.mxu0
        %v3241 = vadd.f32 0.0, %v3240
        %3242 = vmatmul.f32.gmra.mxu0 %v2843
        %v3243 = vpop.f32.mrf.mxu0
        %v3244 = vadd.f32 0.0, %v3243
        %3245 = vmatmul.f32.gmra.mxu0 %v2846
        %v3246 = vpop.f32.mrf.mxu0
        %v3247 = vadd.f32 0.0, %v3246
        %3248 = vmatmul.f32.gmra.mxu0 %v2849
        %v3249 = vpop.f32.mrf.mxu0
        %v3250 = vadd.f32 0.0, %v3249
        %3251 = vmatmul.f32.gmra.mxu0 %v2852
        %v3252 = vpop.f32.mrf.mxu0
        %v3253 = vadd.f32 0.0, %v3252
        %3254 = vmatmul.f32.gmra.mxu0 %v2855
        %v3255 = vpop.f32.mrf.mxu0
        %v3256 = vadd.f32 0.0, %v3255
        %3257 = vmatmul.f32.gmra.mxu0 %v2858
        %v3258 = vpop.f32.mrf.mxu0
        %v3259 = vadd.f32 0.0, %v3258
        %3260 = vmatmul.f32.gmra.mxu0 %v2861
        %v3261 = vpop.f32.mrf.mxu0
        %v3262 = vadd.f32 0.0, %v3261
        %3263 = vmatmul.f32.gmra.mxu0 %v2864
        %v3264 = vpop.f32.mrf.mxu0
        %v3265 = vadd.f32 0.0, %v3264
        %3266 = vmatmul.f32.gmra.mxu0 %v2867
        %v3267 = vpop.f32.mrf.mxu0
        %v3268 = vadd.f32 0.0, %v3267
        %3269 = vmatmul.f32.gmra.mxu0 %v2870
        %v3270 = vpop.f32.mrf.mxu0
        %v3271 = vadd.f32 0.0, %v3270
        %3272 = vmatmul.f32.gmra.mxu0 %v2873
        %v3273 = vpop.f32.mrf.mxu0
        %v3274 = vadd.f32 0.0, %v3273
        %3275 = vmatmul.f32.gmra.mxu0 %v2876
        %v3276 = vpop.f32.mrf.mxu0
        %v3277 = vadd.f32 0.0, %v3276
        %3278 = vmatmul.f32.gmra.mxu0 %v2879
        %v3279 = vpop.f32.mrf.mxu0
        %v3280 = vadd.f32 0.0, %v3279
        %3281 = vmatmul.f32.gmra.mxu0 %v2882
        %v3282 = vpop.f32.mrf.mxu0
        %v3283 = vadd.f32 0.0, %v3282
        %3284 = vmatmul.f32.gmra.mxu0 %v2885
        %v3285 = vpop.f32.mrf.mxu0
        %v3286 = vadd.f32 0.0, %v3285
        %3287 = vmatmul.f32.gmra.mxu0 %v2888
        %v3288 = vpop.f32.mrf.mxu0
        %v3289 = vadd.f32 0.0, %v3288
        %3290 = vmatmul.f32.gmra.mxu0 %v2891
        %v3291 = vpop.f32.mrf.mxu0
        %v3292 = vadd.f32 0.0, %v3291
        %3293 = vmatmul.f32.gmra.mxu0 %v2894
        %v3294 = vpop.f32.mrf.mxu0
        %v3295 = vadd.f32 0.0, %v3294
        %3296 = vmatmul.f32.gmra.mxu0 %v2897
        %v3297 = vpop.f32.mrf.mxu0
        %v3298 = vadd.f32 0.0, %v3297
        %3299 = vmatmul.f32.gmra.mxu0 %v2900
        %v3300 = vpop.f32.mrf.mxu0
        %v3301 = vadd.f32 0.0, %v3300
        %3302 = vmatmul.f32.gmra.mxu0 %v2903
        %v3303 = vpop.f32.mrf.mxu0
        %v3304 = vadd.f32 0.0, %v3303
        %3305 = vmatmul.f32.gmra.mxu0 %v2906
        %v3306 = vpop.f32.mrf.mxu0
        %v3307 = vadd.f32 0.0, %v3306
        %3308 = vmatmul.f32.gmra.mxu0 %v2909
        %v3309 = vpop.f32.mrf.mxu0
        %v3310 = vadd.f32 0.0, %v3309
        %3311 = vmatmul.f32.gmra.mxu0 %v2912
        %v3312 = vpop.f32.mrf.mxu0
        %v3313 = vadd.f32 0.0, %v3312
        %3314 = vmatmul.f32.gmra.mxu0 %v2915
        %v3315 = vpop.f32.mrf.mxu0
        %v3316 = vadd.f32 0.0, %v3315
        %3317 = vdwg.mxu0
        %v3318 = vadd.f32 %v2145, %v2935
        %v3319 = vadd.f32 %v2148, %v2938
        %v3320 = vadd.f32 %v2151, %v2941
        %v3321 = vadd.f32 %v2154, %v2944
        %v3322 = vadd.f32 %v2157, %v2947
        %v3323 = vadd.f32 %v2160, %v2950
        %v3324 = vadd.f32 %v2163, %v2953
        %v3325 = vadd.f32 %v2166, %v2956
        %v3326 = vadd.f32 %v2169, %v2959
        %v3327 = vadd.f32 %v2172, %v2962
        %v3328 = vadd.f32 %v2175, %v2965
        %v3329 = vadd.f32 %v2178, %v2968
        %v3330 = vadd.f32 %v2181, %v2971
        %v3331 = vadd.f32 %v2184, %v2974
        %v3332 = vadd.f32 %v2187, %v2977
        %v3333 = vadd.f32 %v2190, %v2980
        %v3334 = vadd.f32 %v2193, %v2983
        %v3335 = vadd.f32 %v2196, %v2986
        %v3336 = vadd.f32 %v2199, %v2989
        %v3337 = vadd.f32 %v2202, %v2992
        %v3338 = vadd.f32 %v2205, %v2995
        %v3339 = vadd.f32 %v2208, %v2998
        %v3340 = vadd.f32 %v2211, %v3001
        %v3341 = vadd.f32 %v2214, %v3004
        %v3342 = vadd.f32 %v2217, %v3007
        %v3343 = vadd.f32 %v2220, %v3010
        %v3344 = vadd.f32 %v2223, %v3013
        %v3345 = vadd.f32 %v2226, %v3016
        %v3346 = vadd.f32 %v2229, %v3019
        %v3347 = vadd.f32 %v2232, %v3022
        %v3348 = vadd.f32 %v2235, %v3025
        %v3349 = vadd.f32 %v2238, %v3028
        %v3350 = vadd.f32 %v2241, %v3031
        %v3351 = vadd.f32 %v2244, %v3034
        %v3352 = vadd.f32 %v2247, %v3037
        %v3353 = vadd.f32 %v2250, %v3040
        %v3354 = vadd.f32 %v2253, %v3043
        %v3355 = vadd.f32 %v2256, %v3046
        %v3356 = vadd.f32 %v2259, %v3049
        %v3357 = vadd.f32 %v2262, %v3052
        %v3358 = vadd.f32 %v2265, %v3055
        %v3359 = vadd.f32 %v2268, %v3058
        %v3360 = vadd.f32 %v2271, %v3061
        %v3361 = vadd.f32 %v2274, %v3064
        %v3362 = vadd.f32 %v2277, %v3067
        %v3363 = vadd.f32 %v2280, %v3070
        %v3364 = vadd.f32 %v2283, %v3073
        %v3365 = vadd.f32 %v2286, %v3076
        %v3366 = vadd.f32 %v2289, %v3079
        %v3367 = vadd.f32 %v2292, %v3082
        %v3368 = vadd.f32 %v2295, %v3085
        %v3369 = vadd.f32 %v2298, %v3088
        %v3370 = vadd.f32 %v2301, %v3091
        %v3371 = vadd.f32 %v2304, %v3094
        %v3372 = vadd.f32 %v2307, %v3097
        %v3373 = vadd.f32 %v2310, %v3100
        %v3374 = vadd.f32 %v2313, %v3103
        %v3375 = vadd.f32 %v2316, %v3106
        %v3376 = vadd.f32 %v2319, %v3109
        %v3377 = vadd.f32 %v2322, %v3112
        %v3378 = vadd.f32 %v2325, %v3115
        %v3379 = vadd.f32 %v2328, %v3118
        %v3380 = vadd.f32 %v2331, %v3121
        %v3381 = vadd.f32 %v2334, %v3124
        %v3382 = vadd.f32 %v2337, %v3127
        %v3383 = vadd.f32 %v2340, %v3130
        %v3384 = vadd.f32 %v2343, %v3133
        %v3385 = vadd.f32 %v2346, %v3136
        %v3386 = vadd.f32 %v2349, %v3139
        %v3387 = vadd.f32 %v2352, %v3142
        %v3388 = vadd.f32 %v2355, %v3145
        %v3389 = vadd.f32 %v2358, %v3148
        %v3390 = vadd.f32 %v2361, %v3151
        %v3391 = vadd.f32 %v2364, %v3154
        %v3392 = vadd.f32 %v2367, %v3157
        %v3393 = vadd.f32 %v2370, %v3160
        %v3394 = vadd.f32 %v2373, %v3163
        %v3395 = vadd.f32 %v2376, %v3166
        %v3396 = vadd.f32 %v2379, %v3169
        %v3397 = vadd.f32 %v2382, %v3172
        %v3398 = vadd.f32 %v2385, %v3175
        %v3399 = vadd.f32 %v2388, %v3178
        %v3400 = vadd.f32 %v2391, %v3181
        %v3401 = vadd.f32 %v2394, %v3184
        %v3402 = vadd.f32 %v2397, %v3187
        %v3403 = vadd.f32 %v2400, %v3190
        %v3404 = vadd.f32 %v2403, %v3193
        %v3405 = vadd.f32 %v2406, %v3196
        %v3406 = vadd.f32 %v2409, %v3199
        %v3407 = vadd.f32 %v2412, %v3202
        %v3408 = vadd.f32 %v2415, %v3205
        %v3409 = vadd.f32 %v2418, %v3208
        %v3410 = vadd.f32 %v2421, %v3211
        %v3411 = vadd.f32 %v2424, %v3214
        %v3412 = vadd.f32 %v2427, %v3217
        %v3413 = vadd.f32 %v2430, %v3220
        %v3414 = vadd.f32 %v2433, %v3223
        %v3415 = vadd.f32 %v2436, %v3226
        %v3416 = vadd.f32 %v2439, %v3229
        %v3417 = vadd.f32 %v2442, %v3232
        %v3418 = vadd.f32 %v2445, %v3235
        %v3419 = vadd.f32 %v2448, %v3238
        %v3420 = vadd.f32 %v2451, %v3241
        %v3421 = vadd.f32 %v2454, %v3244
        %v3422 = vadd.f32 %v2457, %v3247
        %v3423 = vadd.f32 %v2460, %v3250
        %v3424 = vadd.f32 %v2463, %v3253
        %v3425 = vadd.f32 %v2466, %v3256
        %v3426 = vadd.f32 %v2469, %v3259
        %v3427 = vadd.f32 %v2472, %v3262
        %v3428 = vadd.f32 %v2475, %v3265
        %v3429 = vadd.f32 %v2478, %v3268
        %v3430 = vadd.f32 %v2481, %v3271
        %v3431 = vadd.f32 %v2484, %v3274
        %v3432 = vadd.f32 %v2487, %v3277
        %v3433 = vadd.f32 %v2490, %v3280
        %v3434 = vadd.f32 %v2493, %v3283
        %v3435 = vadd.f32 %v2496, %v3286
        %v3436 = vadd.f32 %v2499, %v3289
        %v3437 = vadd.f32 %v2502, %v3292
        %v3438 = vadd.f32 %v2505, %v3295
        %v3439 = vadd.f32 %v2508, %v3298
        %v3440 = vadd.f32 %v2511, %v3301
        %v3441 = vadd.f32 %v2514, %v3304
        %v3442 = vadd.f32 %v2517, %v3307
        %v3443 = vadd.f32 %v2520, %v3310
        %v3444 = vadd.f32 %v2523, %v3313
        %v3445 = vadd.f32 %v2526, %v3316
        %s3446 = scalar_lea.vmem %s1, 96
        %v3447 = vld [vmem:[%s3446] sm:$0xff]
        %v3448 = vld [vmem:[%s3446 + $0x8] sm:$0xff]
        %v3449 = vld [vmem:[%s3446 + $0x10] sm:$0xff]
        %v3450 = vld [vmem:[%s3446 + $0x18] sm:$0xff]
        %v3452 = vsel %vm957, %v668, 0
        %v3455 = vsel %vm957, %v669, 0
        %v3458 = vsel %vm957, %v670, 0
        %v3461 = vsel %vm957, %v671, 0
        %3463 = vmatpush.msra.mxu0 0.0
        %3464 = vmatpush.msra.mxu0 0.0
        %3465 = vmatpush.msra.mxu0 0.0
        %3466 = vmatpush.msra.mxu0 0.0
        %3467 = vmatpush.msra.mxu0 0.0
        %3468 = vmatpush.msra.mxu0 0.0
        %3469 = vmatpush.msra.mxu0 0.0
        %3470 = vmatpush.msra.mxu0 0.0
        %3471 = vmatpush.msra.mxu0 0.0
        %3472 = vmatpush.msra.mxu0 0.0
        %3473 = vmatpush.msra.mxu0 0.0
        %3474 = vmatpush.msra.mxu0 0.0
        %3475 = vmatpush.msra.mxu0 %v3450
        %3476 = vmatpush.msra.mxu0 %v3449
        %3477 = vmatpush.msra.mxu0 %v3448
        %3478 = vmatpush.msra.mxu0 %v3447
        %3479 = vmatmul.f32.gmra.mxu0 %v1756
        %v3480 = vpop.f32.mrf.mxu0
        %v3481 = vadd.f32 0.0, %v3480
        %3482 = vmatmul.f32.gmra.mxu0 %v1759
        %v3483 = vpop.f32.mrf.mxu0
        %v3484 = vadd.f32 0.0, %v3483
        %3485 = vmatmul.f32.gmra.mxu0 %v1762
        %v3486 = vpop.f32.mrf.mxu0
        %v3487 = vadd.f32 0.0, %v3486
        %3488 = vmatmul.f32.gmra.mxu0 %v1765
        %v3489 = vpop.f32.mrf.mxu0
        %v3490 = vadd.f32 0.0, %v3489
        %3491 = vmatmul.f32.gmra.mxu0 %v1768
        %v3492 = vpop.f32.mrf.mxu0
        %v3493 = vadd.f32 0.0, %v3492
        %3494 = vmatmul.f32.gmra.mxu0 %v1771
        %v3495 = vpop.f32.mrf.mxu0
        %v3496 = vadd.f32 0.0, %v3495
        %3497 = vmatmul.f32.gmra.mxu0 %v1774
        %v3498 = vpop.f32.mrf.mxu0
        %v3499 = vadd.f32 0.0, %v3498
        %3500 = vmatmul.f32.gmra.mxu0 %v1777
        %v3501 = vpop.f32.mrf.mxu0
        %v3502 = vadd.f32 0.0, %v3501
        %3503 = vmatmul.f32.gmra.mxu0 %v1780
        %v3504 = vpop.f32.mrf.mxu0
        %v3505 = vadd.f32 0.0, %v3504
        %3506 = vmatmul.f32.gmra.mxu0 %v1783
        %v3507 = vpop.f32.mrf.mxu0
        %v3508 = vadd.f32 0.0, %v3507
        %3509 = vmatmul.f32.gmra.mxu0 %v1786
        %v3510 = vpop.f32.mrf.mxu0
        %v3511 = vadd.f32 0.0, %v3510
        %3512 = vmatmul.f32.gmra.mxu0 %v1789
        %v3513 = vpop.f32.mrf.mxu0
        %v3514 = vadd.f32 0.0, %v3513
        %3515 = vmatmul.f32.gmra.mxu0 %v1792
        %v3516 = vpop.f32.mrf.mxu0
        %v3517 = vadd.f32 0.0, %v3516
        %3518 = vmatmul.f32.gmra.mxu0 %v1795
        %v3519 = vpop.f32.mrf.mxu0
        %v3520 = vadd.f32 0.0, %v3519
        %3521 = vmatmul.f32.gmra.mxu0 %v1798
        %v3522 = vpop.f32.mrf.mxu0
        %v3523 = vadd.f32 0.0, %v3522
        %3524 = vmatmul.f32.gmra.mxu0 %v1801
        %v3525 = vpop.f32.mrf.mxu0
        %v3526 = vadd.f32 0.0, %v3525
        %3527 = vmatmul.f32.gmra.mxu0 %v1804
        %v3528 = vpop.f32.mrf.mxu0
        %v3529 = vadd.f32 0.0, %v3528
        %3530 = vmatmul.f32.gmra.mxu0 %v1807
        %v3531 = vpop.f32.mrf.mxu0
        %v3532 = vadd.f32 0.0, %v3531
        %3533 = vmatmul.f32.gmra.mxu0 %v1810
        %v3534 = vpop.f32.mrf.mxu0
        %v3535 = vadd.f32 0.0, %v3534
        %3536 = vmatmul.f32.gmra.mxu0 %v1813
        %v3537 = vpop.f32.mrf.mxu0
        %v3538 = vadd.f32 0.0, %v3537
        %3539 = vmatmul.f32.gmra.mxu0 %v1816
        %v3540 = vpop.f32.mrf.mxu0
        %v3541 = vadd.f32 0.0, %v3540
        %3542 = vmatmul.f32.gmra.mxu0 %v1819
        %v3543 = vpop.f32.mrf.mxu0
        %v3544 = vadd.f32 0.0, %v3543
        %3545 = vmatmul.f32.gmra.mxu0 %v1822
        %v3546 = vpop.f32.mrf.mxu0
        %v3547 = vadd.f32 0.0, %v3546
        %3548 = vmatmul.f32.gmra.mxu0 %v1825
        %v3549 = vpop.f32.mrf.mxu0
        %v3550 = vadd.f32 0.0, %v3549
        %3551 = vmatmul.f32.gmra.mxu0 %v1828
        %v3552 = vpop.f32.mrf.mxu0
        %v3553 = vadd.f32 0.0, %v3552
        %3554 = vmatmul.f32.gmra.mxu0 %v1831
        %v3555 = vpop.f32.mrf.mxu0
        %v3556 = vadd.f32 0.0, %v3555
        %3557 = vmatmul.f32.gmra.mxu0 %v1834
        %v3558 = vpop.f32.mrf.mxu0
        %v3559 = vadd.f32 0.0, %v3558
        %3560 = vmatmul.f32.gmra.mxu0 %v1837
        %v3561 = vpop.f32.mrf.mxu0
        %v3562 = vadd.f32 0.0, %v3561
        %3563 = vmatmul.f32.gmra.mxu0 %v1840
        %v3564 = vpop.f32.mrf.mxu0
        %v3565 = vadd.f32 0.0, %v3564
        %3566 = vmatmul.f32.gmra.mxu0 %v1843
        %v3567 = vpop.f32.mrf.mxu0
        %v3568 = vadd.f32 0.0, %v3567
        %3569 = vmatmul.f32.gmra.mxu0 %v1846
        %v3570 = vpop.f32.mrf.mxu0
        %v3571 = vadd.f32 0.0, %v3570
        %3572 = vmatmul.f32.gmra.mxu0 %v1849
        %v3573 = vpop.f32.mrf.mxu0
        %v3574 = vadd.f32 0.0, %v3573
        %3575 = vmatmul.f32.gmra.mxu0 %v1852
        %v3576 = vpop.f32.mrf.mxu0
        %v3577 = vadd.f32 0.0, %v3576
        %3578 = vmatmul.f32.gmra.mxu0 %v1855
        %v3579 = vpop.f32.mrf.mxu0
        %v3580 = vadd.f32 0.0, %v3579
        %3581 = vmatmul.f32.gmra.mxu0 %v1858
        %v3582 = vpop.f32.mrf.mxu0
        %v3583 = vadd.f32 0.0, %v3582
        %3584 = vmatmul.f32.gmra.mxu0 %v1861
        %v3585 = vpop.f32.mrf.mxu0
        %v3586 = vadd.f32 0.0, %v3585
        %3587 = vmatmul.f32.gmra.mxu0 %v1864
        %v3588 = vpop.f32.mrf.mxu0
        %v3589 = vadd.f32 0.0, %v3588
        %3590 = vmatmul.f32.gmra.mxu0 %v1867
        %v3591 = vpop.f32.mrf.mxu0
        %v3592 = vadd.f32 0.0, %v3591
        %3593 = vmatmul.f32.gmra.mxu0 %v1870
        %v3594 = vpop.f32.mrf.mxu0
        %v3595 = vadd.f32 0.0, %v3594
        %3596 = vmatmul.f32.gmra.mxu0 %v1873
        %v3597 = vpop.f32.mrf.mxu0
        %v3598 = vadd.f32 0.0, %v3597
        %3599 = vmatmul.f32.gmra.mxu0 %v1876
        %v3600 = vpop.f32.mrf.mxu0
        %v3601 = vadd.f32 0.0, %v3600
        %3602 = vmatmul.f32.gmra.mxu0 %v1879
        %v3603 = vpop.f32.mrf.mxu0
        %v3604 = vadd.f32 0.0, %v3603
        %3605 = vmatmul.f32.gmra.mxu0 %v1882
        %v3606 = vpop.f32.mrf.mxu0
        %v3607 = vadd.f32 0.0, %v3606
        %3608 = vmatmul.f32.gmra.mxu0 %v1885
        %v3609 = vpop.f32.mrf.mxu0
        %v3610 = vadd.f32 0.0, %v3609
        %3611 = vmatmul.f32.gmra.mxu0 %v1888
        %v3612 = vpop.f32.mrf.mxu0
        %v3613 = vadd.f32 0.0, %v3612
        %3614 = vmatmul.f32.gmra.mxu0 %v1891
        %v3615 = vpop.f32.mrf.mxu0
        %v3616 = vadd.f32 0.0, %v3615
        %3617 = vmatmul.f32.gmra.mxu0 %v1894
        %v3618 = vpop.f32.mrf.mxu0
        %v3619 = vadd.f32 0.0, %v3618
        %3620 = vmatmul.f32.gmra.mxu0 %v1897
        %v3621 = vpop.f32.mrf.mxu0
        %v3622 = vadd.f32 0.0, %v3621
        %3623 = vmatmul.f32.gmra.mxu0 %v1900
        %v3624 = vpop.f32.mrf.mxu0
        %v3625 = vadd.f32 0.0, %v3624
        %3626 = vmatmul.f32.gmra.mxu0 %v1903
        %v3627 = vpop.f32.mrf.mxu0
        %v3628 = vadd.f32 0.0, %v3627
        %3629 = vmatmul.f32.gmra.mxu0 %v1906
        %v3630 = vpop.f32.mrf.mxu0
        %v3631 = vadd.f32 0.0, %v3630
        %3632 = vmatmul.f32.gmra.mxu0 %v1909
        %v3633 = vpop.f32.mrf.mxu0
        %v3634 = vadd.f32 0.0, %v3633
        %3635 = vmatmul.f32.gmra.mxu0 %v1912
        %v3636 = vpop.f32.mrf.mxu0
        %v3637 = vadd.f32 0.0, %v3636
        %3638 = vmatmul.f32.gmra.mxu0 %v1915
        %v3639 = vpop.f32.mrf.mxu0
        %v3640 = vadd.f32 0.0, %v3639
        %3641 = vmatmul.f32.gmra.mxu0 %v1918
        %v3642 = vpop.f32.mrf.mxu0
        %v3643 = vadd.f32 0.0, %v3642
        %3644 = vmatmul.f32.gmra.mxu0 %v1921
        %v3645 = vpop.f32.mrf.mxu0
        %v3646 = vadd.f32 0.0, %v3645
        %3647 = vmatmul.f32.gmra.mxu0 %v1924
        %v3648 = vpop.f32.mrf.mxu0
        %v3649 = vadd.f32 0.0, %v3648
        %3650 = vmatmul.f32.gmra.mxu0 %v1927
        %v3651 = vpop.f32.mrf.mxu0
        %v3652 = vadd.f32 0.0, %v3651
        %3653 = vmatmul.f32.gmra.mxu0 %v1930
        %v3654 = vpop.f32.mrf.mxu0
        %v3655 = vadd.f32 0.0, %v3654
        %3656 = vmatmul.f32.gmra.mxu0 %v1933
        %v3657 = vpop.f32.mrf.mxu0
        %v3658 = vadd.f32 0.0, %v3657
        %3659 = vmatmul.f32.gmra.mxu0 %v1936
        %v3660 = vpop.f32.mrf.mxu0
        %v3661 = vadd.f32 0.0, %v3660
        %3662 = vmatmul.f32.gmra.mxu0 %v1939
        %v3663 = vpop.f32.mrf.mxu0
        %v3664 = vadd.f32 0.0, %v3663
        %3665 = vmatmul.f32.gmra.mxu0 %v1942
        %v3666 = vpop.f32.mrf.mxu0
        %v3667 = vadd.f32 0.0, %v3666
        %3668 = vmatmul.f32.gmra.mxu0 %v1945
        %v3669 = vpop.f32.mrf.mxu0
        %v3670 = vadd.f32 0.0, %v3669
        %3671 = vmatmul.f32.gmra.mxu0 %v1948
        %v3672 = vpop.f32.mrf.mxu0
        %v3673 = vadd.f32 0.0, %v3672
        %3674 = vmatmul.f32.gmra.mxu0 %v1951
        %v3675 = vpop.f32.mrf.mxu0
        %v3676 = vadd.f32 0.0, %v3675
        %3677 = vmatmul.f32.gmra.mxu0 %v1954
        %v3678 = vpop.f32.mrf.mxu0
        %v3679 = vadd.f32 0.0, %v3678
        %3680 = vmatmul.f32.gmra.mxu0 %v1957
        %v3681 = vpop.f32.mrf.mxu0
        %v3682 = vadd.f32 0.0, %v3681
        %3683 = vmatmul.f32.gmra.mxu0 %v1960
        %v3684 = vpop.f32.mrf.mxu0
        %v3685 = vadd.f32 0.0, %v3684
        %3686 = vmatmul.f32.gmra.mxu0 %v1963
        %v3687 = vpop.f32.mrf.mxu0
        %v3688 = vadd.f32 0.0, %v3687
        %3689 = vmatmul.f32.gmra.mxu0 %v1966
        %v3690 = vpop.f32.mrf.mxu0
        %v3691 = vadd.f32 0.0, %v3690
        %3692 = vmatmul.f32.gmra.mxu0 %v1969
        %v3693 = vpop.f32.mrf.mxu0
        %v3694 = vadd.f32 0.0, %v3693
        %3695 = vmatmul.f32.gmra.mxu0 %v1972
        %v3696 = vpop.f32.mrf.mxu0
        %v3697 = vadd.f32 0.0, %v3696
        %3698 = vmatmul.f32.gmra.mxu0 %v1975
        %v3699 = vpop.f32.mrf.mxu0
        %v3700 = vadd.f32 0.0, %v3699
        %3701 = vmatmul.f32.gmra.mxu0 %v1978
        %v3702 = vpop.f32.mrf.mxu0
        %v3703 = vadd.f32 0.0, %v3702
        %3704 = vmatmul.f32.gmra.mxu0 %v1981
        %v3705 = vpop.f32.mrf.mxu0
        %v3706 = vadd.f32 0.0, %v3705
        %3707 = vmatmul.f32.gmra.mxu0 %v1984
        %v3708 = vpop.f32.mrf.mxu0
        %v3709 = vadd.f32 0.0, %v3708
        %3710 = vmatmul.f32.gmra.mxu0 %v1987
        %v3711 = vpop.f32.mrf.mxu0
        %v3712 = vadd.f32 0.0, %v3711
        %3713 = vmatmul.f32.gmra.mxu0 %v1990
        %v3714 = vpop.f32.mrf.mxu0
        %v3715 = vadd.f32 0.0, %v3714
        %3716 = vmatmul.f32.gmra.mxu0 %v1993
        %v3717 = vpop.f32.mrf.mxu0
        %v3718 = vadd.f32 0.0, %v3717
        %3719 = vmatmul.f32.gmra.mxu0 %v1996
        %v3720 = vpop.f32.mrf.mxu0
        %v3721 = vadd.f32 0.0, %v3720
        %3722 = vmatmul.f32.gmra.mxu0 %v1999
        %v3723 = vpop.f32.mrf.mxu0
        %v3724 = vadd.f32 0.0, %v3723
        %3725 = vmatmul.f32.gmra.mxu0 %v2002
        %v3726 = vpop.f32.mrf.mxu0
        %v3727 = vadd.f32 0.0, %v3726
        %3728 = vmatmul.f32.gmra.mxu0 %v2005
        %v3729 = vpop.f32.mrf.mxu0
        %v3730 = vadd.f32 0.0, %v3729
        %3731 = vmatmul.f32.gmra.mxu0 %v2008
        %v3732 = vpop.f32.mrf.mxu0
        %v3733 = vadd.f32 0.0, %v3732
        %3734 = vmatmul.f32.gmra.mxu0 %v2011
        %v3735 = vpop.f32.mrf.mxu0
        %v3736 = vadd.f32 0.0, %v3735
        %3737 = vmatmul.f32.gmra.mxu0 %v2014
        %v3738 = vpop.f32.mrf.mxu0
        %v3739 = vadd.f32 0.0, %v3738
        %3740 = vmatmul.f32.gmra.mxu0 %v2017
        %v3741 = vpop.f32.mrf.mxu0
        %v3742 = vadd.f32 0.0, %v3741
        %3743 = vmatmul.f32.gmra.mxu0 %v2020
        %v3744 = vpop.f32.mrf.mxu0
        %v3745 = vadd.f32 0.0, %v3744
        %3746 = vmatmul.f32.gmra.mxu0 %v2023
        %v3747 = vpop.f32.mrf.mxu0
        %v3748 = vadd.f32 0.0, %v3747
        %3749 = vmatmul.f32.gmra.mxu0 %v2026
        %v3750 = vpop.f32.mrf.mxu0
        %v3751 = vadd.f32 0.0, %v3750
        %3752 = vmatmul.f32.gmra.mxu0 %v2029
        %v3753 = vpop.f32.mrf.mxu0
        %v3754 = vadd.f32 0.0, %v3753
        %3755 = vmatmul.f32.gmra.mxu0 %v2032
        %v3756 = vpop.f32.mrf.mxu0
        %v3757 = vadd.f32 0.0, %v3756
        %3758 = vmatmul.f32.gmra.mxu0 %v2035
        %v3759 = vpop.f32.mrf.mxu0
        %v3760 = vadd.f32 0.0, %v3759
        %3761 = vmatmul.f32.gmra.mxu0 %v2038
        %v3762 = vpop.f32.mrf.mxu0
        %v3763 = vadd.f32 0.0, %v3762
        %3764 = vmatmul.f32.gmra.mxu0 %v2041
        %v3765 = vpop.f32.mrf.mxu0
        %v3766 = vadd.f32 0.0, %v3765
        %3767 = vmatmul.f32.gmra.mxu0 %v2044
        %v3768 = vpop.f32.mrf.mxu0
        %v3769 = vadd.f32 0.0, %v3768
        %3770 = vmatmul.f32.gmra.mxu0 %v2047
        %v3771 = vpop.f32.mrf.mxu0
        %v3772 = vadd.f32 0.0, %v3771
        %3773 = vmatmul.f32.gmra.mxu0 %v2050
        %v3774 = vpop.f32.mrf.mxu0
        %v3775 = vadd.f32 0.0, %v3774
        %3776 = vmatmul.f32.gmra.mxu0 %v2053
        %v3777 = vpop.f32.mrf.mxu0
        %v3778 = vadd.f32 0.0, %v3777
        %3779 = vmatmul.f32.gmra.mxu0 %v2056
        %v3780 = vpop.f32.mrf.mxu0
        %v3781 = vadd.f32 0.0, %v3780
        %3782 = vmatmul.f32.gmra.mxu0 %v2059
        %v3783 = vpop.f32.mrf.mxu0
        %v3784 = vadd.f32 0.0, %v3783
        %3785 = vmatmul.f32.gmra.mxu0 %v2062
        %v3786 = vpop.f32.mrf.mxu0
        %v3787 = vadd.f32 0.0, %v3786
        %3788 = vmatmul.f32.gmra.mxu0 %v2065
        %v3789 = vpop.f32.mrf.mxu0
        %v3790 = vadd.f32 0.0, %v3789
        %3791 = vmatmul.f32.gmra.mxu0 %v2068
        %v3792 = vpop.f32.mrf.mxu0
        %v3793 = vadd.f32 0.0, %v3792
        %3794 = vmatmul.f32.gmra.mxu0 %v2071
        %v3795 = vpop.f32.mrf.mxu0
        %v3796 = vadd.f32 0.0, %v3795
        %3797 = vmatmul.f32.gmra.mxu0 %v2074
        %v3798 = vpop.f32.mrf.mxu0
        %v3799 = vadd.f32 0.0, %v3798
        %3800 = vmatmul.f32.gmra.mxu0 %v2077
        %v3801 = vpop.f32.mrf.mxu0
        %v3802 = vadd.f32 0.0, %v3801
        %3803 = vmatmul.f32.gmra.mxu0 %v2080
        %v3804 = vpop.f32.mrf.mxu0
        %v3805 = vadd.f32 0.0, %v3804
        %3806 = vmatmul.f32.gmra.mxu0 %v2083
        %v3807 = vpop.f32.mrf.mxu0
        %v3808 = vadd.f32 0.0, %v3807
        %3809 = vmatmul.f32.gmra.mxu0 %v2086
        %v3810 = vpop.f32.mrf.mxu0
        %v3811 = vadd.f32 0.0, %v3810
        %3812 = vmatmul.f32.gmra.mxu0 %v2089
        %v3813 = vpop.f32.mrf.mxu0
        %v3814 = vadd.f32 0.0, %v3813
        %3815 = vmatmul.f32.gmra.mxu0 %v2092
        %v3816 = vpop.f32.mrf.mxu0
        %v3817 = vadd.f32 0.0, %v3816
        %3818 = vmatmul.f32.gmra.mxu0 %v2095
        %v3819 = vpop.f32.mrf.mxu0
        %v3820 = vadd.f32 0.0, %v3819
        %3821 = vmatmul.f32.gmra.mxu0 %v2098
        %v3822 = vpop.f32.mrf.mxu0
        %v3823 = vadd.f32 0.0, %v3822
        %3824 = vmatmul.f32.gmra.mxu0 %v2101
        %v3825 = vpop.f32.mrf.mxu0
        %v3826 = vadd.f32 0.0, %v3825
        %3827 = vmatmul.f32.gmra.mxu0 %v2104
        %v3828 = vpop.f32.mrf.mxu0
        %v3829 = vadd.f32 0.0, %v3828
        %3830 = vmatmul.f32.gmra.mxu0 %v2107
        %v3831 = vpop.f32.mrf.mxu0
        %v3832 = vadd.f32 0.0, %v3831
        %3833 = vmatmul.f32.gmra.mxu0 %v2110
        %v3834 = vpop.f32.mrf.mxu0
        %v3835 = vadd.f32 0.0, %v3834
        %3836 = vmatmul.f32.gmra.mxu0 %v2113
        %v3837 = vpop.f32.mrf.mxu0
        %v3838 = vadd.f32 0.0, %v3837
        %3839 = vmatmul.f32.gmra.mxu0 %v2116
        %v3840 = vpop.f32.mrf.mxu0
        %v3841 = vadd.f32 0.0, %v3840
        %3842 = vmatmul.f32.gmra.mxu0 %v2119
        %v3843 = vpop.f32.mrf.mxu0
        %v3844 = vadd.f32 0.0, %v3843
        %3845 = vmatmul.f32.gmra.mxu0 %v2122
        %v3846 = vpop.f32.mrf.mxu0
        %v3847 = vadd.f32 0.0, %v3846
        %3848 = vmatmul.f32.gmra.mxu0 %v2125
        %v3849 = vpop.f32.mrf.mxu0
        %v3850 = vadd.f32 0.0, %v3849
        %3851 = vmatmul.f32.gmra.mxu0 %v3452
        %v3852 = vpop.f32.mrf.mxu0
        %v3853 = vadd.f32 0.0, %v3852
        %3854 = vmatmul.f32.gmra.mxu0 %v3455
        %v3855 = vpop.f32.mrf.mxu0
        %v3856 = vadd.f32 0.0, %v3855
        %3857 = vmatmul.f32.gmra.mxu0 %v3458
        %v3858 = vpop.f32.mrf.mxu0
        %v3859 = vadd.f32 0.0, %v3858
        %3860 = vmatmul.f32.gmra.mxu0 %v3461
        %v3861 = vpop.f32.mrf.mxu0
        %v3862 = vadd.f32 0.0, %v3861
        %3863 = vdwg.mxu0
        %v3864 = vadd.f32 %v3318, %v3481
        %v3865 = vadd.f32 %v3319, %v3484
        %v3866 = vadd.f32 %v3320, %v3487
        %v3867 = vadd.f32 %v3321, %v3490
        %v3868 = vadd.f32 %v3322, %v3493
        %v3869 = vadd.f32 %v3323, %v3496
        %v3870 = vadd.f32 %v3324, %v3499
        %v3871 = vadd.f32 %v3325, %v3502
        %v3872 = vadd.f32 %v3326, %v3505
        %v3873 = vadd.f32 %v3327, %v3508
        %v3874 = vadd.f32 %v3328, %v3511
        %v3875 = vadd.f32 %v3329, %v3514
        %v3876 = vadd.f32 %v3330, %v3517
        %v3877 = vadd.f32 %v3331, %v3520
        %v3878 = vadd.f32 %v3332, %v3523
        %v3879 = vadd.f32 %v3333, %v3526
        %v3880 = vadd.f32 %v3334, %v3529
        %v3881 = vadd.f32 %v3335, %v3532
        %v3882 = vadd.f32 %v3336, %v3535
        %v3883 = vadd.f32 %v3337, %v3538
        %v3884 = vadd.f32 %v3338, %v3541
        %v3885 = vadd.f32 %v3339, %v3544
        %v3886 = vadd.f32 %v3340, %v3547
        %v3887 = vadd.f32 %v3341, %v3550
        %v3888 = vadd.f32 %v3342, %v3553
        %v3889 = vadd.f32 %v3343, %v3556
        %v3890 = vadd.f32 %v3344, %v3559
        %v3891 = vadd.f32 %v3345, %v3562
        %v3892 = vadd.f32 %v3346, %v3565
        %v3893 = vadd.f32 %v3347, %v3568
        %v3894 = vadd.f32 %v3348, %v3571
        %v3895 = vadd.f32 %v3349, %v3574
        %v3896 = vadd.f32 %v3350, %v3577
        %v3897 = vadd.f32 %v3351, %v3580
        %v3898 = vadd.f32 %v3352, %v3583
        %v3899 = vadd.f32 %v3353, %v3586
        %v3900 = vadd.f32 %v3354, %v3589
        %v3901 = vadd.f32 %v3355, %v3592
        %v3902 = vadd.f32 %v3356, %v3595
        %v3903 = vadd.f32 %v3357, %v3598
        %v3904 = vadd.f32 %v3358, %v3601
        %v3905 = vadd.f32 %v3359, %v3604
        %v3906 = vadd.f32 %v3360, %v3607
        %v3907 = vadd.f32 %v3361, %v3610
        %v3908 = vadd.f32 %v3362, %v3613
        %v3909 = vadd.f32 %v3363, %v3616
        %v3910 = vadd.f32 %v3364, %v3619
        %v3911 = vadd.f32 %v3365, %v3622
        %v3912 = vadd.f32 %v3366, %v3625
        %v3913 = vadd.f32 %v3367, %v3628
        %v3914 = vadd.f32 %v3368, %v3631
        %v3915 = vadd.f32 %v3369, %v3634
        %v3916 = vadd.f32 %v3370, %v3637
        %v3917 = vadd.f32 %v3371, %v3640
        %v3918 = vadd.f32 %v3372, %v3643
        %v3919 = vadd.f32 %v3373, %v3646
        %v3920 = vadd.f32 %v3374, %v3649
        %v3921 = vadd.f32 %v3375, %v3652
        %v3922 = vadd.f32 %v3376, %v3655
        %v3923 = vadd.f32 %v3377, %v3658
        %v3924 = vadd.f32 %v3378, %v3661
        %v3925 = vadd.f32 %v3379, %v3664
        %v3926 = vadd.f32 %v3380, %v3667
        %v3927 = vadd.f32 %v3381, %v3670
        %v3928 = vadd.f32 %v3382, %v3673
        %v3929 = vadd.f32 %v3383, %v3676
        %v3930 = vadd.f32 %v3384, %v3679
        %v3931 = vadd.f32 %v3385, %v3682
        %v3932 = vadd.f32 %v3386, %v3685
        %v3933 = vadd.f32 %v3387, %v3688
        %v3934 = vadd.f32 %v3388, %v3691
        %v3935 = vadd.f32 %v3389, %v3694
        %v3936 = vadd.f32 %v3390, %v3697
        %v3937 = vadd.f32 %v3391, %v3700
        %v3938 = vadd.f32 %v3392, %v3703
        %v3939 = vadd.f32 %v3393, %v3706
        %v3940 = vadd.f32 %v3394, %v3709
        %v3941 = vadd.f32 %v3395, %v3712
        %v3942 = vadd.f32 %v3396, %v3715
        %v3943 = vadd.f32 %v3397, %v3718
        %v3944 = vadd.f32 %v3398, %v3721
        %v3945 = vadd.f32 %v3399, %v3724
        %v3946 = vadd.f32 %v3400, %v3727
        %v3947 = vadd.f32 %v3401, %v3730
        %v3948 = vadd.f32 %v3402, %v3733
        %v3949 = vadd.f32 %v3403, %v3736
        %v3950 = vadd.f32 %v3404, %v3739
        %v3951 = vadd.f32 %v3405, %v3742
        %v3952 = vadd.f32 %v3406, %v3745
        %v3953 = vadd.f32 %v3407, %v3748
        %v3954 = vadd.f32 %v3408, %v3751
        %v3955 = vadd.f32 %v3409, %v3754
        %v3956 = vadd.f32 %v3410, %v3757
        %v3957 = vadd.f32 %v3411, %v3760
        %v3958 = vadd.f32 %v3412, %v3763
        %v3959 = vadd.f32 %v3413, %v3766
        %v3960 = vadd.f32 %v3414, %v3769
        %v3961 = vadd.f32 %v3415, %v3772
        %v3962 = vadd.f32 %v3416, %v3775
        %v3963 = vadd.f32 %v3417, %v3778
        %v3964 = vadd.f32 %v3418, %v3781
        %v3965 = vadd.f32 %v3419, %v3784
        %v3966 = vadd.f32 %v3420, %v3787
        %v3967 = vadd.f32 %v3421, %v3790
        %v3968 = vadd.f32 %v3422, %v3793
        %v3969 = vadd.f32 %v3423, %v3796
        %v3970 = vadd.f32 %v3424, %v3799
        %v3971 = vadd.f32 %v3425, %v3802
        %v3972 = vadd.f32 %v3426, %v3805
        %v3973 = vadd.f32 %v3427, %v3808
        %v3974 = vadd.f32 %v3428, %v3811
        %v3975 = vadd.f32 %v3429, %v3814
        %v3976 = vadd.f32 %v3430, %v3817
        %v3977 = vadd.f32 %v3431, %v3820
        %v3978 = vadd.f32 %v3432, %v3823
        %v3979 = vadd.f32 %v3433, %v3826
        %v3980 = vadd.f32 %v3434, %v3829
        %v3981 = vadd.f32 %v3435, %v3832
        %v3982 = vadd.f32 %v3436, %v3835
        %v3983 = vadd.f32 %v3437, %v3838
        %v3984 = vadd.f32 %v3438, %v3841
        %v3985 = vadd.f32 %v3439, %v3844
        %v3986 = vadd.f32 %v3440, %v3847
        %v3987 = vadd.f32 %v3441, %v3850
        %v3988 = vadd.f32 %v3442, %v3853
        %v3989 = vadd.f32 %v3443, %v3856
        %v3990 = vadd.f32 %v3444, %v3859
        %v3991 = vadd.f32 %v3445, %v3862
        %s3992 = scalar_lea.vmem %s1, 128
        %v3993 = vld [vmem:[%s3992] sm:$0xff]
        %v3994 = vld [vmem:[%s3992 + $0x8] sm:$0xff]
        %v3995 = vld [vmem:[%s3992 + $0x10] sm:$0xff]
        %v3996 = vld [vmem:[%s3992 + $0x18] sm:$0xff]
        %v3998 = vsel %vm957, %v804, 0
        %v4001 = vsel %vm957, %v805, 0
        %v4004 = vsel %vm957, %v806, 0
        %v4007 = vsel %vm957, %v807, 0
        %4009 = vmatpush.msra.mxu0 0.0
        %4010 = vmatpush.msra.mxu0 0.0
        %4011 = vmatpush.msra.mxu0 0.0
        %4012 = vmatpush.msra.mxu0 0.0
        %4013 = vmatpush.msra.mxu0 0.0
        %4014 = vmatpush.msra.mxu0 0.0
        %4015 = vmatpush.msra.mxu0 0.0
        %4016 = vmatpush.msra.mxu0 0.0
        %4017 = vmatpush.msra.mxu0 0.0
        %4018 = vmatpush.msra.mxu0 0.0
        %4019 = vmatpush.msra.mxu0 0.0
        %4020 = vmatpush.msra.mxu0 0.0
        %4021 = vmatpush.msra.mxu0 %v3996
        %4022 = vmatpush.msra.mxu0 %v3995
        %4023 = vmatpush.msra.mxu0 %v3994
        %4024 = vmatpush.msra.mxu0 %v3993
        %4025 = vmatmul.f32.gmra.mxu0 %v971
        %v4026 = vpop.f32.mrf.mxu0
        %v4027 = vadd.f32 0.0, %v4026
        %4028 = vmatmul.f32.gmra.mxu0 %v974
        %v4029 = vpop.f32.mrf.mxu0
        %v4030 = vadd.f32 0.0, %v4029
        %4031 = vmatmul.f32.gmra.mxu0 %v977
        %v4032 = vpop.f32.mrf.mxu0
        %v4033 = vadd.f32 0.0, %v4032
        %4034 = vmatmul.f32.gmra.mxu0 %v980
        %v4035 = vpop.f32.mrf.mxu0
        %v4036 = vadd.f32 0.0, %v4035
        %4037 = vmatmul.f32.gmra.mxu0 %v983
        %v4038 = vpop.f32.mrf.mxu0
        %v4039 = vadd.f32 0.0, %v4038
        %4040 = vmatmul.f32.gmra.mxu0 %v986
        %v4041 = vpop.f32.mrf.mxu0
        %v4042 = vadd.f32 0.0, %v4041
        %4043 = vmatmul.f32.gmra.mxu0 %v989
        %v4044 = vpop.f32.mrf.mxu0
        %v4045 = vadd.f32 0.0, %v4044
        %4046 = vmatmul.f32.gmra.mxu0 %v992
        %v4047 = vpop.f32.mrf.mxu0
        %v4048 = vadd.f32 0.0, %v4047
        %4049 = vmatmul.f32.gmra.mxu0 %v995
        %v4050 = vpop.f32.mrf.mxu0
        %v4051 = vadd.f32 0.0, %v4050
        %4052 = vmatmul.f32.gmra.mxu0 %v998
        %v4053 = vpop.f32.mrf.mxu0
        %v4054 = vadd.f32 0.0, %v4053
        %4055 = vmatmul.f32.gmra.mxu0 %v1001
        %v4056 = vpop.f32.mrf.mxu0
        %v4057 = vadd.f32 0.0, %v4056
        %4058 = vmatmul.f32.gmra.mxu0 %v1004
        %v4059 = vpop.f32.mrf.mxu0
        %v4060 = vadd.f32 0.0, %v4059
        %4061 = vmatmul.f32.gmra.mxu0 %v1007
        %v4062 = vpop.f32.mrf.mxu0
        %v4063 = vadd.f32 0.0, %v4062
        %4064 = vmatmul.f32.gmra.mxu0 %v1010
        %v4065 = vpop.f32.mrf.mxu0
        %v4066 = vadd.f32 0.0, %v4065
        %4067 = vmatmul.f32.gmra.mxu0 %v1013
        %v4068 = vpop.f32.mrf.mxu0
        %v4069 = vadd.f32 0.0, %v4068
        %4070 = vmatmul.f32.gmra.mxu0 %v1016
        %v4071 = vpop.f32.mrf.mxu0
        %v4072 = vadd.f32 0.0, %v4071
        %4073 = vmatmul.f32.gmra.mxu0 %v1019
        %v4074 = vpop.f32.mrf.mxu0
        %v4075 = vadd.f32 0.0, %v4074
        %4076 = vmatmul.f32.gmra.mxu0 %v1022
        %v4077 = vpop.f32.mrf.mxu0
        %v4078 = vadd.f32 0.0, %v4077
        %4079 = vmatmul.f32.gmra.mxu0 %v1025
        %v4080 = vpop.f32.mrf.mxu0
        %v4081 = vadd.f32 0.0, %v4080
        %4082 = vmatmul.f32.gmra.mxu0 %v1028
        %v4083 = vpop.f32.mrf.mxu0
        %v4084 = vadd.f32 0.0, %v4083
        %4085 = vmatmul.f32.gmra.mxu0 %v1031
        %v4086 = vpop.f32.mrf.mxu0
        %v4087 = vadd.f32 0.0, %v4086
        %4088 = vmatmul.f32.gmra.mxu0 %v1034
        %v4089 = vpop.f32.mrf.mxu0
        %v4090 = vadd.f32 0.0, %v4089
        %4091 = vmatmul.f32.gmra.mxu0 %v1037
        %v4092 = vpop.f32.mrf.mxu0
        %v4093 = vadd.f32 0.0, %v4092
        %4094 = vmatmul.f32.gmra.mxu0 %v1040
        %v4095 = vpop.f32.mrf.mxu0
        %v4096 = vadd.f32 0.0, %v4095
        %4097 = vmatmul.f32.gmra.mxu0 %v1043
        %v4098 = vpop.f32.mrf.mxu0
        %v4099 = vadd.f32 0.0, %v4098
        %4100 = vmatmul.f32.gmra.mxu0 %v1046
        %v4101 = vpop.f32.mrf.mxu0
        %v4102 = vadd.f32 0.0, %v4101
        %4103 = vmatmul.f32.gmra.mxu0 %v1049
        %v4104 = vpop.f32.mrf.mxu0
        %v4105 = vadd.f32 0.0, %v4104
        %4106 = vmatmul.f32.gmra.mxu0 %v1052
        %v4107 = vpop.f32.mrf.mxu0
        %v4108 = vadd.f32 0.0, %v4107
        %4109 = vmatmul.f32.gmra.mxu0 %v1055
        %v4110 = vpop.f32.mrf.mxu0
        %v4111 = vadd.f32 0.0, %v4110
        %4112 = vmatmul.f32.gmra.mxu0 %v1058
        %v4113 = vpop.f32.mrf.mxu0
        %v4114 = vadd.f32 0.0, %v4113
        %4115 = vmatmul.f32.gmra.mxu0 %v1061
        %v4116 = vpop.f32.mrf.mxu0
        %v4117 = vadd.f32 0.0, %v4116
        %4118 = vmatmul.f32.gmra.mxu0 %v1064
        %v4119 = vpop.f32.mrf.mxu0
        %v4120 = vadd.f32 0.0, %v4119
        %4121 = vmatmul.f32.gmra.mxu0 %v1067
        %v4122 = vpop.f32.mrf.mxu0
        %v4123 = vadd.f32 0.0, %v4122
        %4124 = vmatmul.f32.gmra.mxu0 %v1070
        %v4125 = vpop.f32.mrf.mxu0
        %v4126 = vadd.f32 0.0, %v4125
        %4127 = vmatmul.f32.gmra.mxu0 %v1073
        %v4128 = vpop.f32.mrf.mxu0
        %v4129 = vadd.f32 0.0, %v4128
        %4130 = vmatmul.f32.gmra.mxu0 %v1076
        %v4131 = vpop.f32.mrf.mxu0
        %v4132 = vadd.f32 0.0, %v4131
        %4133 = vmatmul.f32.gmra.mxu0 %v1079
        %v4134 = vpop.f32.mrf.mxu0
        %v4135 = vadd.f32 0.0, %v4134
        %4136 = vmatmul.f32.gmra.mxu0 %v1082
        %v4137 = vpop.f32.mrf.mxu0
        %v4138 = vadd.f32 0.0, %v4137
        %4139 = vmatmul.f32.gmra.mxu0 %v1085
        %v4140 = vpop.f32.mrf.mxu0
        %v4141 = vadd.f32 0.0, %v4140
        %4142 = vmatmul.f32.gmra.mxu0 %v1088
        %v4143 = vpop.f32.mrf.mxu0
        %v4144 = vadd.f32 0.0, %v4143
        %4145 = vmatmul.f32.gmra.mxu0 %v1091
        %v4146 = vpop.f32.mrf.mxu0
        %v4147 = vadd.f32 0.0, %v4146
        %4148 = vmatmul.f32.gmra.mxu0 %v1094
        %v4149 = vpop.f32.mrf.mxu0
        %v4150 = vadd.f32 0.0, %v4149
        %4151 = vmatmul.f32.gmra.mxu0 %v1097
        %v4152 = vpop.f32.mrf.mxu0
        %v4153 = vadd.f32 0.0, %v4152
        %4154 = vmatmul.f32.gmra.mxu0 %v1100
        %v4155 = vpop.f32.mrf.mxu0
        %v4156 = vadd.f32 0.0, %v4155
        %4157 = vmatmul.f32.gmra.mxu0 %v1103
        %v4158 = vpop.f32.mrf.mxu0
        %v4159 = vadd.f32 0.0, %v4158
        %4160 = vmatmul.f32.gmra.mxu0 %v1106
        %v4161 = vpop.f32.mrf.mxu0
        %v4162 = vadd.f32 0.0, %v4161
        %4163 = vmatmul.f32.gmra.mxu0 %v1109
        %v4164 = vpop.f32.mrf.mxu0
        %v4165 = vadd.f32 0.0, %v4164
        %4166 = vmatmul.f32.gmra.mxu0 %v1112
        %v4167 = vpop.f32.mrf.mxu0
        %v4168 = vadd.f32 0.0, %v4167
        %4169 = vmatmul.f32.gmra.mxu0 %v1115
        %v4170 = vpop.f32.mrf.mxu0
        %v4171 = vadd.f32 0.0, %v4170
        %4172 = vmatmul.f32.gmra.mxu0 %v1118
        %v4173 = vpop.f32.mrf.mxu0
        %v4174 = vadd.f32 0.0, %v4173
        %4175 = vmatmul.f32.gmra.mxu0 %v1121
        %v4176 = vpop.f32.mrf.mxu0
        %v4177 = vadd.f32 0.0, %v4176
        %4178 = vmatmul.f32.gmra.mxu0 %v1124
        %v4179 = vpop.f32.mrf.mxu0
        %v4180 = vadd.f32 0.0, %v4179
        %4181 = vmatmul.f32.gmra.mxu0 %v1127
        %v4182 = vpop.f32.mrf.mxu0
        %v4183 = vadd.f32 0.0, %v4182
        %4184 = vmatmul.f32.gmra.mxu0 %v1130
        %v4185 = vpop.f32.mrf.mxu0
        %v4186 = vadd.f32 0.0, %v4185
        %4187 = vmatmul.f32.gmra.mxu0 %v1133
        %v4188 = vpop.f32.mrf.mxu0
        %v4189 = vadd.f32 0.0, %v4188
        %4190 = vmatmul.f32.gmra.mxu0 %v1136
        %v4191 = vpop.f32.mrf.mxu0
        %v4192 = vadd.f32 0.0, %v4191
        %4193 = vmatmul.f32.gmra.mxu0 %v1139
        %v4194 = vpop.f32.mrf.mxu0
        %v4195 = vadd.f32 0.0, %v4194
        %4196 = vmatmul.f32.gmra.mxu0 %v1142
        %v4197 = vpop.f32.mrf.mxu0
        %v4198 = vadd.f32 0.0, %v4197
        %4199 = vmatmul.f32.gmra.mxu0 %v1145
        %v4200 = vpop.f32.mrf.mxu0
        %v4201 = vadd.f32 0.0, %v4200
        %4202 = vmatmul.f32.gmra.mxu0 %v1148
        %v4203 = vpop.f32.mrf.mxu0
        %v4204 = vadd.f32 0.0, %v4203
        %4205 = vmatmul.f32.gmra.mxu0 %v1151
        %v4206 = vpop.f32.mrf.mxu0
        %v4207 = vadd.f32 0.0, %v4206
        %4208 = vmatmul.f32.gmra.mxu0 %v1154
        %v4209 = vpop.f32.mrf.mxu0
        %v4210 = vadd.f32 0.0, %v4209
        %4211 = vmatmul.f32.gmra.mxu0 %v1157
        %v4212 = vpop.f32.mrf.mxu0
        %v4213 = vadd.f32 0.0, %v4212
        %4214 = vmatmul.f32.gmra.mxu0 %v1160
        %v4215 = vpop.f32.mrf.mxu0
        %v4216 = vadd.f32 0.0, %v4215
        %4217 = vmatmul.f32.gmra.mxu0 %v1163
        %v4218 = vpop.f32.mrf.mxu0
        %v4219 = vadd.f32 0.0, %v4218
        %4220 = vmatmul.f32.gmra.mxu0 %v1166
        %v4221 = vpop.f32.mrf.mxu0
        %v4222 = vadd.f32 0.0, %v4221
        %4223 = vmatmul.f32.gmra.mxu0 %v1169
        %v4224 = vpop.f32.mrf.mxu0
        %v4225 = vadd.f32 0.0, %v4224
        %4226 = vmatmul.f32.gmra.mxu0 %v1172
        %v4227 = vpop.f32.mrf.mxu0
        %v4228 = vadd.f32 0.0, %v4227
        %4229 = vmatmul.f32.gmra.mxu0 %v1175
        %v4230 = vpop.f32.mrf.mxu0
        %v4231 = vadd.f32 0.0, %v4230
        %4232 = vmatmul.f32.gmra.mxu0 %v1178
        %v4233 = vpop.f32.mrf.mxu0
        %v4234 = vadd.f32 0.0, %v4233
        %4235 = vmatmul.f32.gmra.mxu0 %v1181
        %v4236 = vpop.f32.mrf.mxu0
        %v4237 = vadd.f32 0.0, %v4236
        %4238 = vmatmul.f32.gmra.mxu0 %v1184
        %v4239 = vpop.f32.mrf.mxu0
        %v4240 = vadd.f32 0.0, %v4239
        %4241 = vmatmul.f32.gmra.mxu0 %v1187
        %v4242 = vpop.f32.mrf.mxu0
        %v4243 = vadd.f32 0.0, %v4242
        %4244 = vmatmul.f32.gmra.mxu0 %v1190
        %v4245 = vpop.f32.mrf.mxu0
        %v4246 = vadd.f32 0.0, %v4245
        %4247 = vmatmul.f32.gmra.mxu0 %v1193
        %v4248 = vpop.f32.mrf.mxu0
        %v4249 = vadd.f32 0.0, %v4248
        %4250 = vmatmul.f32.gmra.mxu0 %v1196
        %v4251 = vpop.f32.mrf.mxu0
        %v4252 = vadd.f32 0.0, %v4251
        %4253 = vmatmul.f32.gmra.mxu0 %v1199
        %v4254 = vpop.f32.mrf.mxu0
        %v4255 = vadd.f32 0.0, %v4254
        %4256 = vmatmul.f32.gmra.mxu0 %v1202
        %v4257 = vpop.f32.mrf.mxu0
        %v4258 = vadd.f32 0.0, %v4257
        %4259 = vmatmul.f32.gmra.mxu0 %v1205
        %v4260 = vpop.f32.mrf.mxu0
        %v4261 = vadd.f32 0.0, %v4260
        %4262 = vmatmul.f32.gmra.mxu0 %v1208
        %v4263 = vpop.f32.mrf.mxu0
        %v4264 = vadd.f32 0.0, %v4263
        %4265 = vmatmul.f32.gmra.mxu0 %v1211
        %v4266 = vpop.f32.mrf.mxu0
        %v4267 = vadd.f32 0.0, %v4266
        %4268 = vmatmul.f32.gmra.mxu0 %v1214
        %v4269 = vpop.f32.mrf.mxu0
        %v4270 = vadd.f32 0.0, %v4269
        %4271 = vmatmul.f32.gmra.mxu0 %v1217
        %v4272 = vpop.f32.mrf.mxu0
        %v4273 = vadd.f32 0.0, %v4272
        %4274 = vmatmul.f32.gmra.mxu0 %v1220
        %v4275 = vpop.f32.mrf.mxu0
        %v4276 = vadd.f32 0.0, %v4275
        %4277 = vmatmul.f32.gmra.mxu0 %v1223
        %v4278 = vpop.f32.mrf.mxu0
        %v4279 = vadd.f32 0.0, %v4278
        %4280 = vmatmul.f32.gmra.mxu0 %v1226
        %v4281 = vpop.f32.mrf.mxu0
        %v4282 = vadd.f32 0.0, %v4281
        %4283 = vmatmul.f32.gmra.mxu0 %v1229
        %v4284 = vpop.f32.mrf.mxu0
        %v4285 = vadd.f32 0.0, %v4284
        %4286 = vmatmul.f32.gmra.mxu0 %v1232
        %v4287 = vpop.f32.mrf.mxu0
        %v4288 = vadd.f32 0.0, %v4287
        %4289 = vmatmul.f32.gmra.mxu0 %v1235
        %v4290 = vpop.f32.mrf.mxu0
        %v4291 = vadd.f32 0.0, %v4290
        %4292 = vmatmul.f32.gmra.mxu0 %v1238
        %v4293 = vpop.f32.mrf.mxu0
        %v4294 = vadd.f32 0.0, %v4293
        %4295 = vmatmul.f32.gmra.mxu0 %v1241
        %v4296 = vpop.f32.mrf.mxu0
        %v4297 = vadd.f32 0.0, %v4296
        %4298 = vmatmul.f32.gmra.mxu0 %v1244
        %v4299 = vpop.f32.mrf.mxu0
        %v4300 = vadd.f32 0.0, %v4299
        %4301 = vmatmul.f32.gmra.mxu0 %v1247
        %v4302 = vpop.f32.mrf.mxu0
        %v4303 = vadd.f32 0.0, %v4302
        %4304 = vmatmul.f32.gmra.mxu0 %v1250
        %v4305 = vpop.f32.mrf.mxu0
        %v4306 = vadd.f32 0.0, %v4305
        %4307 = vmatmul.f32.gmra.mxu0 %v1253
        %v4308 = vpop.f32.mrf.mxu0
        %v4309 = vadd.f32 0.0, %v4308
        %4310 = vmatmul.f32.gmra.mxu0 %v1256
        %v4311 = vpop.f32.mrf.mxu0
        %v4312 = vadd.f32 0.0, %v4311
        %4313 = vmatmul.f32.gmra.mxu0 %v1259
        %v4314 = vpop.f32.mrf.mxu0
        %v4315 = vadd.f32 0.0, %v4314
        %4316 = vmatmul.f32.gmra.mxu0 %v1262
        %v4317 = vpop.f32.mrf.mxu0
        %v4318 = vadd.f32 0.0, %v4317
        %4319 = vmatmul.f32.gmra.mxu0 %v1265
        %v4320 = vpop.f32.mrf.mxu0
        %v4321 = vadd.f32 0.0, %v4320
        %4322 = vmatmul.f32.gmra.mxu0 %v1268
        %v4323 = vpop.f32.mrf.mxu0
        %v4324 = vadd.f32 0.0, %v4323
        %4325 = vmatmul.f32.gmra.mxu0 %v1271
        %v4326 = vpop.f32.mrf.mxu0
        %v4327 = vadd.f32 0.0, %v4326
        %4328 = vmatmul.f32.gmra.mxu0 %v1274
        %v4329 = vpop.f32.mrf.mxu0
        %v4330 = vadd.f32 0.0, %v4329
        %4331 = vmatmul.f32.gmra.mxu0 %v1277
        %v4332 = vpop.f32.mrf.mxu0
        %v4333 = vadd.f32 0.0, %v4332
        %4334 = vmatmul.f32.gmra.mxu0 %v1280
        %v4335 = vpop.f32.mrf.mxu0
        %v4336 = vadd.f32 0.0, %v4335
        %4337 = vmatmul.f32.gmra.mxu0 %v1283
        %v4338 = vpop.f32.mrf.mxu0
        %v4339 = vadd.f32 0.0, %v4338
        %4340 = vmatmul.f32.gmra.mxu0 %v1286
        %v4341 = vpop.f32.mrf.mxu0
        %v4342 = vadd.f32 0.0, %v4341
        %4343 = vmatmul.f32.gmra.mxu0 %v1289
        %v4344 = vpop.f32.mrf.mxu0
        %v4345 = vadd.f32 0.0, %v4344
        %4346 = vmatmul.f32.gmra.mxu0 %v1292
        %v4347 = vpop.f32.mrf.mxu0
        %v4348 = vadd.f32 0.0, %v4347
        %4349 = vmatmul.f32.gmra.mxu0 %v1295
        %v4350 = vpop.f32.mrf.mxu0
        %v4351 = vadd.f32 0.0, %v4350
        %4352 = vmatmul.f32.gmra.mxu0 %v1298
        %v4353 = vpop.f32.mrf.mxu0
        %v4354 = vadd.f32 0.0, %v4353
        %4355 = vmatmul.f32.gmra.mxu0 %v1301
        %v4356 = vpop.f32.mrf.mxu0
        %v4357 = vadd.f32 0.0, %v4356
        %4358 = vmatmul.f32.gmra.mxu0 %v1304
        %v4359 = vpop.f32.mrf.mxu0
        %v4360 = vadd.f32 0.0, %v4359
        %4361 = vmatmul.f32.gmra.mxu0 %v1307
        %v4362 = vpop.f32.mrf.mxu0
        %v4363 = vadd.f32 0.0, %v4362
        %4364 = vmatmul.f32.gmra.mxu0 %v1310
        %v4365 = vpop.f32.mrf.mxu0
        %v4366 = vadd.f32 0.0, %v4365
        %4367 = vmatmul.f32.gmra.mxu0 %v1313
        %v4368 = vpop.f32.mrf.mxu0
        %v4369 = vadd.f32 0.0, %v4368
        %4370 = vmatmul.f32.gmra.mxu0 %v1316
        %v4371 = vpop.f32.mrf.mxu0
        %v4372 = vadd.f32 0.0, %v4371
        %4373 = vmatmul.f32.gmra.mxu0 %v1319
        %v4374 = vpop.f32.mrf.mxu0
        %v4375 = vadd.f32 0.0, %v4374
        %4376 = vmatmul.f32.gmra.mxu0 %v1322
        %v4377 = vpop.f32.mrf.mxu0
        %v4378 = vadd.f32 0.0, %v4377
        %4379 = vmatmul.f32.gmra.mxu0 %v1325
        %v4380 = vpop.f32.mrf.mxu0
        %v4381 = vadd.f32 0.0, %v4380
        %4382 = vmatmul.f32.gmra.mxu0 %v1328
        %v4383 = vpop.f32.mrf.mxu0
        %v4384 = vadd.f32 0.0, %v4383
        %4385 = vmatmul.f32.gmra.mxu0 %v1331
        %v4386 = vpop.f32.mrf.mxu0
        %v4387 = vadd.f32 0.0, %v4386
        %4388 = vmatmul.f32.gmra.mxu0 %v1334
        %v4389 = vpop.f32.mrf.mxu0
        %v4390 = vadd.f32 0.0, %v4389
        %4391 = vmatmul.f32.gmra.mxu0 %v1337
        %v4392 = vpop.f32.mrf.mxu0
        %v4393 = vadd.f32 0.0, %v4392
        %4394 = vmatmul.f32.gmra.mxu0 %v1340
        %v4395 = vpop.f32.mrf.mxu0
        %v4396 = vadd.f32 0.0, %v4395
        %4397 = vmatmul.f32.gmra.mxu0 %v3998
        %v4398 = vpop.f32.mrf.mxu0
        %v4399 = vadd.f32 0.0, %v4398
        %4400 = vmatmul.f32.gmra.mxu0 %v4001
        %v4401 = vpop.f32.mrf.mxu0
        %v4402 = vadd.f32 0.0, %v4401
        %4403 = vmatmul.f32.gmra.mxu0 %v4004
        %v4404 = vpop.f32.mrf.mxu0
        %v4405 = vadd.f32 0.0, %v4404
        %4406 = vmatmul.f32.gmra.mxu0 %v4007
        %v4407 = vpop.f32.mrf.mxu0
        %v4408 = vadd.f32 0.0, %v4407
        %4409 = vdwg.mxu0
        %v4410 = vadd.f32 %v3864, %v4027
        %v4411 = vadd.f32 %v3865, %v4030
        %v4412 = vadd.f32 %v3866, %v4033
        %v4413 = vadd.f32 %v3867, %v4036
        %v4414 = vadd.f32 %v3868, %v4039
        %v4415 = vadd.f32 %v3869, %v4042
        %v4416 = vadd.f32 %v3870, %v4045
        %v4417 = vadd.f32 %v3871, %v4048
        %v4418 = vadd.f32 %v3872, %v4051
        %v4419 = vadd.f32 %v3873, %v4054
        %v4420 = vadd.f32 %v3874, %v4057
        %v4421 = vadd.f32 %v3875, %v4060
        %v4422 = vadd.f32 %v3876, %v4063
        %v4423 = vadd.f32 %v3877, %v4066
        %v4424 = vadd.f32 %v3878, %v4069
        %v4425 = vadd.f32 %v3879, %v4072
        %v4426 = vadd.f32 %v3880, %v4075
        %v4427 = vadd.f32 %v3881, %v4078
        %v4428 = vadd.f32 %v3882, %v4081
        %v4429 = vadd.f32 %v3883, %v4084
        %v4430 = vadd.f32 %v3884, %v4087
        %v4431 = vadd.f32 %v3885, %v4090
        %v4432 = vadd.f32 %v3886, %v4093
        %v4433 = vadd.f32 %v3887, %v4096
        %v4434 = vadd.f32 %v3888, %v4099
        %v4435 = vadd.f32 %v3889, %v4102
        %v4436 = vadd.f32 %v3890, %v4105
        %v4437 = vadd.f32 %v3891, %v4108
        %v4438 = vadd.f32 %v3892, %v4111
        %v4439 = vadd.f32 %v3893, %v4114
        %v4440 = vadd.f32 %v3894, %v4117
        %v4441 = vadd.f32 %v3895, %v4120
        %v4442 = vadd.f32 %v3896, %v4123
        %v4443 = vadd.f32 %v3897, %v4126
        %v4444 = vadd.f32 %v3898, %v4129
        %v4445 = vadd.f32 %v3899, %v4132
        %v4446 = vadd.f32 %v3900, %v4135
        %v4447 = vadd.f32 %v3901, %v4138
        %v4448 = vadd.f32 %v3902, %v4141
        %v4449 = vadd.f32 %v3903, %v4144
        %v4450 = vadd.f32 %v3904, %v4147
        %v4451 = vadd.f32 %v3905, %v4150
        %v4452 = vadd.f32 %v3906, %v4153
        %v4453 = vadd.f32 %v3907, %v4156
        %v4454 = vadd.f32 %v3908, %v4159
        %v4455 = vadd.f32 %v3909, %v4162
        %v4456 = vadd.f32 %v3910, %v4165
        %v4457 = vadd.f32 %v3911, %v4168
        %v4458 = vadd.f32 %v3912, %v4171
        %v4459 = vadd.f32 %v3913, %v4174
        %v4460 = vadd.f32 %v3914, %v4177
        %v4461 = vadd.f32 %v3915, %v4180
        %v4462 = vadd.f32 %v3916, %v4183
        %v4463 = vadd.f32 %v3917, %v4186
        %v4464 = vadd.f32 %v3918, %v4189
        %v4465 = vadd.f32 %v3919, %v4192
        %v4466 = vadd.f32 %v3920, %v4195
        %v4467 = vadd.f32 %v3921, %v4198
        %v4468 = vadd.f32 %v3922, %v4201
        %v4469 = vadd.f32 %v3923, %v4204
        %v4470 = vadd.f32 %v3924, %v4207
        %v4471 = vadd.f32 %v3925, %v4210
        %v4472 = vadd.f32 %v3926, %v4213
        %v4473 = vadd.f32 %v3927, %v4216
        %v4474 = vadd.f32 %v3928, %v4219
        %v4475 = vadd.f32 %v3929, %v4222
        %v4476 = vadd.f32 %v3930, %v4225
        %v4477 = vadd.f32 %v3931, %v4228
        %v4478 = vadd.f32 %v3932, %v4231
        %v4479 = vadd.f32 %v3933, %v4234
        %v4480 = vadd.f32 %v3934, %v4237
        %v4481 = vadd.f32 %v3935, %v4240
        %v4482 = vadd.f32 %v3936, %v4243
        %v4483 = vadd.f32 %v3937, %v4246
        %v4484 = vadd.f32 %v3938, %v4249
        %v4485 = vadd.f32 %v3939, %v4252
        %v4486 = vadd.f32 %v3940, %v4255
        %v4487 = vadd.f32 %v3941, %v4258
        %v4488 = vadd.f32 %v3942, %v4261
        %v4489 = vadd.f32 %v3943, %v4264
        %v4490 = vadd.f32 %v3944, %v4267
        %v4491 = vadd.f32 %v3945, %v4270
        %v4492 = vadd.f32 %v3946, %v4273
        %v4493 = vadd.f32 %v3947, %v4276
        %v4494 = vadd.f32 %v3948, %v4279
        %v4495 = vadd.f32 %v3949, %v4282
        %v4496 = vadd.f32 %v3950, %v4285
        %v4497 = vadd.f32 %v3951, %v4288
        %v4498 = vadd.f32 %v3952, %v4291
        %v4499 = vadd.f32 %v3953, %v4294
        %v4500 = vadd.f32 %v3954, %v4297
        %v4501 = vadd.f32 %v3955, %v4300
        %v4502 = vadd.f32 %v3956, %v4303
        %v4503 = vadd.f32 %v3957, %v4306
        %v4504 = vadd.f32 %v3958, %v4309
        %v4505 = vadd.f32 %v3959, %v4312
        %v4506 = vadd.f32 %v3960, %v4315
        %v4507 = vadd.f32 %v3961, %v4318
        %v4508 = vadd.f32 %v3962, %v4321
        %v4509 = vadd.f32 %v3963, %v4324
        %v4510 = vadd.f32 %v3964, %v4327
        %v4511 = vadd.f32 %v3965, %v4330
        %v4512 = vadd.f32 %v3966, %v4333
        %v4513 = vadd.f32 %v3967, %v4336
        %v4514 = vadd.f32 %v3968, %v4339
        %v4515 = vadd.f32 %v3969, %v4342
        %v4516 = vadd.f32 %v3970, %v4345
        %v4517 = vadd.f32 %v3971, %v4348
        %v4518 = vadd.f32 %v3972, %v4351
        %v4519 = vadd.f32 %v3973, %v4354
        %v4520 = vadd.f32 %v3974, %v4357
        %v4521 = vadd.f32 %v3975, %v4360
        %v4522 = vadd.f32 %v3976, %v4363
        %v4523 = vadd.f32 %v3977, %v4366
        %v4524 = vadd.f32 %v3978, %v4369
        %v4525 = vadd.f32 %v3979, %v4372
        %v4526 = vadd.f32 %v3980, %v4375
        %v4527 = vadd.f32 %v3981, %v4378
        %v4528 = vadd.f32 %v3982, %v4381
        %v4529 = vadd.f32 %v3983, %v4384
        %v4530 = vadd.f32 %v3984, %v4387
        %v4531 = vadd.f32 %v3985, %v4390
        %v4532 = vadd.f32 %v3986, %v4393
        %v4533 = vadd.f32 %v3987, %v4396
        %v4534 = vadd.f32 %v3988, %v4399
        %v4535 = vadd.f32 %v3989, %v4402
        %v4536 = vadd.f32 %v3990, %v4405
        %v4537 = vadd.f32 %v3991, %v4408
        %s4538 = scalar_lea.vmem %s1, 160
        %v4539 = vld [vmem:[%s4538] sm:$0xff]
        %v4540 = vld [vmem:[%s4538 + $0x8] sm:$0xff]
        %v4541 = vld [vmem:[%s4538 + $0x10] sm:$0xff]
        %v4542 = vld [vmem:[%s4538 + $0x18] sm:$0xff]
        %v4544 = vsel %vm957, %v940, 0
        %v4547 = vsel %vm957, %v941, 0
        %v4550 = vsel %vm957, %v942, 0
        %v4553 = vsel %vm957, %v943, 0
        %4555 = vmatpush.msra.mxu0 0.0
        %4556 = vmatpush.msra.mxu0 0.0
        %4557 = vmatpush.msra.mxu0 0.0
        %4558 = vmatpush.msra.mxu0 0.0
        %4559 = vmatpush.msra.mxu0 0.0
        %4560 = vmatpush.msra.mxu0 0.0
        %4561 = vmatpush.msra.mxu0 0.0
        %4562 = vmatpush.msra.mxu0 0.0
        %4563 = vmatpush.msra.mxu0 0.0
        %4564 = vmatpush.msra.mxu0 0.0
        %4565 = vmatpush.msra.mxu0 0.0
        %4566 = vmatpush.msra.mxu0 0.0
        %4567 = vmatpush.msra.mxu0 %v4542
        %4568 = vmatpush.msra.mxu0 %v4541
        %4569 = vmatpush.msra.mxu0 %v4540
        %4570 = vmatpush.msra.mxu0 %v4539
        %4571 = vmatmul.f32.gmra.mxu0 %v2546
        %v4572 = vpop.f32.mrf.mxu0
        %v4573 = vadd.f32 0.0, %v4572
        %4574 = vmatmul.f32.gmra.mxu0 %v2549
        %v4575 = vpop.f32.mrf.mxu0
        %v4576 = vadd.f32 0.0, %v4575
        %4577 = vmatmul.f32.gmra.mxu0 %v2552
        %v4578 = vpop.f32.mrf.mxu0
        %v4579 = vadd.f32 0.0, %v4578
        %4580 = vmatmul.f32.gmra.mxu0 %v2555
        %v4581 = vpop.f32.mrf.mxu0
        %v4582 = vadd.f32 0.0, %v4581
        %4583 = vmatmul.f32.gmra.mxu0 %v2558
        %v4584 = vpop.f32.mrf.mxu0
        %v4585 = vadd.f32 0.0, %v4584
        %4586 = vmatmul.f32.gmra.mxu0 %v2561
        %v4587 = vpop.f32.mrf.mxu0
        %v4588 = vadd.f32 0.0, %v4587
        %4589 = vmatmul.f32.gmra.mxu0 %v2564
        %v4590 = vpop.f32.mrf.mxu0
        %v4591 = vadd.f32 0.0, %v4590
        %4592 = vmatmul.f32.gmra.mxu0 %v2567
        %v4593 = vpop.f32.mrf.mxu0
        %v4594 = vadd.f32 0.0, %v4593
        %4595 = vmatmul.f32.gmra.mxu0 %v2570
        %v4596 = vpop.f32.mrf.mxu0
        %v4597 = vadd.f32 0.0, %v4596
        %4598 = vmatmul.f32.gmra.mxu0 %v2573
        %v4599 = vpop.f32.mrf.mxu0
        %v4600 = vadd.f32 0.0, %v4599
        %4601 = vmatmul.f32.gmra.mxu0 %v2576
        %v4602 = vpop.f32.mrf.mxu0
        %v4603 = vadd.f32 0.0, %v4602
        %4604 = vmatmul.f32.gmra.mxu0 %v2579
        %v4605 = vpop.f32.mrf.mxu0
        %v4606 = vadd.f32 0.0, %v4605
        %4607 = vmatmul.f32.gmra.mxu0 %v2582
        %v4608 = vpop.f32.mrf.mxu0
        %v4609 = vadd.f32 0.0, %v4608
        %4610 = vmatmul.f32.gmra.mxu0 %v2585
        %v4611 = vpop.f32.mrf.mxu0
        %v4612 = vadd.f32 0.0, %v4611
        %4613 = vmatmul.f32.gmra.mxu0 %v2588
        %v4614 = vpop.f32.mrf.mxu0
        %v4615 = vadd.f32 0.0, %v4614
        %4616 = vmatmul.f32.gmra.mxu0 %v2591
        %v4617 = vpop.f32.mrf.mxu0
        %v4618 = vadd.f32 0.0, %v4617
        %4619 = vmatmul.f32.gmra.mxu0 %v2594
        %v4620 = vpop.f32.mrf.mxu0
        %v4621 = vadd.f32 0.0, %v4620
        %4622 = vmatmul.f32.gmra.mxu0 %v2597
        %v4623 = vpop.f32.mrf.mxu0
        %v4624 = vadd.f32 0.0, %v4623
        %4625 = vmatmul.f32.gmra.mxu0 %v2600
        %v4626 = vpop.f32.mrf.mxu0
        %v4627 = vadd.f32 0.0, %v4626
        %4628 = vmatmul.f32.gmra.mxu0 %v2603
        %v4629 = vpop.f32.mrf.mxu0
        %v4630 = vadd.f32 0.0, %v4629
        %4631 = vmatmul.f32.gmra.mxu0 %v2606
        %v4632 = vpop.f32.mrf.mxu0
        %v4633 = vadd.f32 0.0, %v4632
        %4634 = vmatmul.f32.gmra.mxu0 %v2609
        %v4635 = vpop.f32.mrf.mxu0
        %v4636 = vadd.f32 0.0, %v4635
        %4637 = vmatmul.f32.gmra.mxu0 %v2612
        %v4638 = vpop.f32.mrf.mxu0
        %v4639 = vadd.f32 0.0, %v4638
        %4640 = vmatmul.f32.gmra.mxu0 %v2615
        %v4641 = vpop.f32.mrf.mxu0
        %v4642 = vadd.f32 0.0, %v4641
        %4643 = vmatmul.f32.gmra.mxu0 %v2618
        %v4644 = vpop.f32.mrf.mxu0
        %v4645 = vadd.f32 0.0, %v4644
        %4646 = vmatmul.f32.gmra.mxu0 %v2621
        %v4647 = vpop.f32.mrf.mxu0
        %v4648 = vadd.f32 0.0, %v4647
        %4649 = vmatmul.f32.gmra.mxu0 %v2624
        %v4650 = vpop.f32.mrf.mxu0
        %v4651 = vadd.f32 0.0, %v4650
        %4652 = vmatmul.f32.gmra.mxu0 %v2627
        %v4653 = vpop.f32.mrf.mxu0
        %v4654 = vadd.f32 0.0, %v4653
        %4655 = vmatmul.f32.gmra.mxu0 %v2630
        %v4656 = vpop.f32.mrf.mxu0
        %v4657 = vadd.f32 0.0, %v4656
        %4658 = vmatmul.f32.gmra.mxu0 %v2633
        %v4659 = vpop.f32.mrf.mxu0
        %v4660 = vadd.f32 0.0, %v4659
        %4661 = vmatmul.f32.gmra.mxu0 %v2636
        %v4662 = vpop.f32.mrf.mxu0
        %v4663 = vadd.f32 0.0, %v4662
        %4664 = vmatmul.f32.gmra.mxu0 %v2639
        %v4665 = vpop.f32.mrf.mxu0
        %v4666 = vadd.f32 0.0, %v4665
        %4667 = vmatmul.f32.gmra.mxu0 %v2642
        %v4668 = vpop.f32.mrf.mxu0
        %v4669 = vadd.f32 0.0, %v4668
        %4670 = vmatmul.f32.gmra.mxu0 %v2645
        %v4671 = vpop.f32.mrf.mxu0
        %v4672 = vadd.f32 0.0, %v4671
        %4673 = vmatmul.f32.gmra.mxu0 %v2648
        %v4674 = vpop.f32.mrf.mxu0
        %v4675 = vadd.f32 0.0, %v4674
        %4676 = vmatmul.f32.gmra.mxu0 %v2651
        %v4677 = vpop.f32.mrf.mxu0
        %v4678 = vadd.f32 0.0, %v4677
        %4679 = vmatmul.f32.gmra.mxu0 %v2654
        %v4680 = vpop.f32.mrf.mxu0
        %v4681 = vadd.f32 0.0, %v4680
        %4682 = vmatmul.f32.gmra.mxu0 %v2657
        %v4683 = vpop.f32.mrf.mxu0
        %v4684 = vadd.f32 0.0, %v4683
        %4685 = vmatmul.f32.gmra.mxu0 %v2660
        %v4686 = vpop.f32.mrf.mxu0
        %v4687 = vadd.f32 0.0, %v4686
        %4688 = vmatmul.f32.gmra.mxu0 %v2663
        %v4689 = vpop.f32.mrf.mxu0
        %v4690 = vadd.f32 0.0, %v4689
        %4691 = vmatmul.f32.gmra.mxu0 %v2666
        %v4692 = vpop.f32.mrf.mxu0
        %v4693 = vadd.f32 0.0, %v4692
        %4694 = vmatmul.f32.gmra.mxu0 %v2669
        %v4695 = vpop.f32.mrf.mxu0
        %v4696 = vadd.f32 0.0, %v4695
        %4697 = vmatmul.f32.gmra.mxu0 %v2672
        %v4698 = vpop.f32.mrf.mxu0
        %v4699 = vadd.f32 0.0, %v4698
        %4700 = vmatmul.f32.gmra.mxu0 %v2675
        %v4701 = vpop.f32.mrf.mxu0
        %v4702 = vadd.f32 0.0, %v4701
        %4703 = vmatmul.f32.gmra.mxu0 %v2678
        %v4704 = vpop.f32.mrf.mxu0
        %v4705 = vadd.f32 0.0, %v4704
        %4706 = vmatmul.f32.gmra.mxu0 %v2681
        %v4707 = vpop.f32.mrf.mxu0
        %v4708 = vadd.f32 0.0, %v4707
        %4709 = vmatmul.f32.gmra.mxu0 %v2684
        %v4710 = vpop.f32.mrf.mxu0
        %v4711 = vadd.f32 0.0, %v4710
        %4712 = vmatmul.f32.gmra.mxu0 %v2687
        %v4713 = vpop.f32.mrf.mxu0
        %v4714 = vadd.f32 0.0, %v4713
        %4715 = vmatmul.f32.gmra.mxu0 %v2690
        %v4716 = vpop.f32.mrf.mxu0
        %v4717 = vadd.f32 0.0, %v4716
        %4718 = vmatmul.f32.gmra.mxu0 %v2693
        %v4719 = vpop.f32.mrf.mxu0
        %v4720 = vadd.f32 0.0, %v4719
        %4721 = vmatmul.f32.gmra.mxu0 %v2696
        %v4722 = vpop.f32.mrf.mxu0
        %v4723 = vadd.f32 0.0, %v4722
        %4724 = vmatmul.f32.gmra.mxu0 %v2699
        %v4725 = vpop.f32.mrf.mxu0
        %v4726 = vadd.f32 0.0, %v4725
        %4727 = vmatmul.f32.gmra.mxu0 %v2702
        %v4728 = vpop.f32.mrf.mxu0
        %v4729 = vadd.f32 0.0, %v4728
        %4730 = vmatmul.f32.gmra.mxu0 %v2705
        %v4731 = vpop.f32.mrf.mxu0
        %v4732 = vadd.f32 0.0, %v4731
        %4733 = vmatmul.f32.gmra.mxu0 %v2708
        %v4734 = vpop.f32.mrf.mxu0
        %v4735 = vadd.f32 0.0, %v4734
        %4736 = vmatmul.f32.gmra.mxu0 %v2711
        %v4737 = vpop.f32.mrf.mxu0
        %v4738 = vadd.f32 0.0, %v4737
        %4739 = vmatmul.f32.gmra.mxu0 %v2714
        %v4740 = vpop.f32.mrf.mxu0
        %v4741 = vadd.f32 0.0, %v4740
        %4742 = vmatmul.f32.gmra.mxu0 %v2717
        %v4743 = vpop.f32.mrf.mxu0
        %v4744 = vadd.f32 0.0, %v4743
        %4745 = vmatmul.f32.gmra.mxu0 %v2720
        %v4746 = vpop.f32.mrf.mxu0
        %v4747 = vadd.f32 0.0, %v4746
        %4748 = vmatmul.f32.gmra.mxu0 %v2723
        %v4749 = vpop.f32.mrf.mxu0
        %v4750 = vadd.f32 0.0, %v4749
        %4751 = vmatmul.f32.gmra.mxu0 %v2726
        %v4752 = vpop.f32.mrf.mxu0
        %v4753 = vadd.f32 0.0, %v4752
        %4754 = vmatmul.f32.gmra.mxu0 %v2729
        %v4755 = vpop.f32.mrf.mxu0
        %v4756 = vadd.f32 0.0, %v4755
        %4757 = vmatmul.f32.gmra.mxu0 %v2732
        %v4758 = vpop.f32.mrf.mxu0
        %v4759 = vadd.f32 0.0, %v4758
        %4760 = vmatmul.f32.gmra.mxu0 %v2735
        %v4761 = vpop.f32.mrf.mxu0
        %v4762 = vadd.f32 0.0, %v4761
        %4763 = vmatmul.f32.gmra.mxu0 %v2738
        %v4764 = vpop.f32.mrf.mxu0
        %v4765 = vadd.f32 0.0, %v4764
        %4766 = vmatmul.f32.gmra.mxu0 %v2741
        %v4767 = vpop.f32.mrf.mxu0
        %v4768 = vadd.f32 0.0, %v4767
        %4769 = vmatmul.f32.gmra.mxu0 %v2744
        %v4770 = vpop.f32.mrf.mxu0
        %v4771 = vadd.f32 0.0, %v4770
        %4772 = vmatmul.f32.gmra.mxu0 %v2747
        %v4773 = vpop.f32.mrf.mxu0
        %v4774 = vadd.f32 0.0, %v4773
        %4775 = vmatmul.f32.gmra.mxu0 %v2750
        %v4776 = vpop.f32.mrf.mxu0
        %v4777 = vadd.f32 0.0, %v4776
        %4778 = vmatmul.f32.gmra.mxu0 %v2753
        %v4779 = vpop.f32.mrf.mxu0
        %v4780 = vadd.f32 0.0, %v4779
        %4781 = vmatmul.f32.gmra.mxu0 %v2756
        %v4782 = vpop.f32.mrf.mxu0
        %v4783 = vadd.f32 0.0, %v4782
        %4784 = vmatmul.f32.gmra.mxu0 %v2759
        %v4785 = vpop.f32.mrf.mxu0
        %v4786 = vadd.f32 0.0, %v4785
        %4787 = vmatmul.f32.gmra.mxu0 %v2762
        %v4788 = vpop.f32.mrf.mxu0
        %v4789 = vadd.f32 0.0, %v4788
        %4790 = vmatmul.f32.gmra.mxu0 %v2765
        %v4791 = vpop.f32.mrf.mxu0
        %v4792 = vadd.f32 0.0, %v4791
        %4793 = vmatmul.f32.gmra.mxu0 %v2768
        %v4794 = vpop.f32.mrf.mxu0
        %v4795 = vadd.f32 0.0, %v4794
        %4796 = vmatmul.f32.gmra.mxu0 %v2771
        %v4797 = vpop.f32.mrf.mxu0
        %v4798 = vadd.f32 0.0, %v4797
        %4799 = vmatmul.f32.gmra.mxu0 %v2774
        %v4800 = vpop.f32.mrf.mxu0
        %v4801 = vadd.f32 0.0, %v4800
        %4802 = vmatmul.f32.gmra.mxu0 %v2777
        %v4803 = vpop.f32.mrf.mxu0
        %v4804 = vadd.f32 0.0, %v4803
        %4805 = vmatmul.f32.gmra.mxu0 %v2780
        %v4806 = vpop.f32.mrf.mxu0
        %v4807 = vadd.f32 0.0, %v4806
        %4808 = vmatmul.f32.gmra.mxu0 %v2783
        %v4809 = vpop.f32.mrf.mxu0
        %v4810 = vadd.f32 0.0, %v4809
        %4811 = vmatmul.f32.gmra.mxu0 %v2786
        %v4812 = vpop.f32.mrf.mxu0
        %v4813 = vadd.f32 0.0, %v4812
        %4814 = vmatmul.f32.gmra.mxu0 %v2789
        %v4815 = vpop.f32.mrf.mxu0
        %v4816 = vadd.f32 0.0, %v4815
        %4817 = vmatmul.f32.gmra.mxu0 %v2792
        %v4818 = vpop.f32.mrf.mxu0
        %v4819 = vadd.f32 0.0, %v4818
        %4820 = vmatmul.f32.gmra.mxu0 %v2795
        %v4821 = vpop.f32.mrf.mxu0
        %v4822 = vadd.f32 0.0, %v4821
        %4823 = vmatmul.f32.gmra.mxu0 %v2798
        %v4824 = vpop.f32.mrf.mxu0
        %v4825 = vadd.f32 0.0, %v4824
        %4826 = vmatmul.f32.gmra.mxu0 %v2801
        %v4827 = vpop.f32.mrf.mxu0
        %v4828 = vadd.f32 0.0, %v4827
        %4829 = vmatmul.f32.gmra.mxu0 %v2804
        %v4830 = vpop.f32.mrf.mxu0
        %v4831 = vadd.f32 0.0, %v4830
        %4832 = vmatmul.f32.gmra.mxu0 %v2807
        %v4833 = vpop.f32.mrf.mxu0
        %v4834 = vadd.f32 0.0, %v4833
        %4835 = vmatmul.f32.gmra.mxu0 %v2810
        %v4836 = vpop.f32.mrf.mxu0
        %v4837 = vadd.f32 0.0, %v4836
        %4838 = vmatmul.f32.gmra.mxu0 %v2813
        %v4839 = vpop.f32.mrf.mxu0
        %v4840 = vadd.f32 0.0, %v4839
        %4841 = vmatmul.f32.gmra.mxu0 %v2816
        %v4842 = vpop.f32.mrf.mxu0
        %v4843 = vadd.f32 0.0, %v4842
        %4844 = vmatmul.f32.gmra.mxu0 %v2819
        %v4845 = vpop.f32.mrf.mxu0
        %v4846 = vadd.f32 0.0, %v4845
        %4847 = vmatmul.f32.gmra.mxu0 %v2822
        %v4848 = vpop.f32.mrf.mxu0
        %v4849 = vadd.f32 0.0, %v4848
        %4850 = vmatmul.f32.gmra.mxu0 %v2825
        %v4851 = vpop.f32.mrf.mxu0
        %v4852 = vadd.f32 0.0, %v4851
        %4853 = vmatmul.f32.gmra.mxu0 %v2828
        %v4854 = vpop.f32.mrf.mxu0
        %v4855 = vadd.f32 0.0, %v4854
        %4856 = vmatmul.f32.gmra.mxu0 %v2831
        %v4857 = vpop.f32.mrf.mxu0
        %v4858 = vadd.f32 0.0, %v4857
        %4859 = vmatmul.f32.gmra.mxu0 %v2834
        %v4860 = vpop.f32.mrf.mxu0
        %v4861 = vadd.f32 0.0, %v4860
        %4862 = vmatmul.f32.gmra.mxu0 %v2837
        %v4863 = vpop.f32.mrf.mxu0
        %v4864 = vadd.f32 0.0, %v4863
        %4865 = vmatmul.f32.gmra.mxu0 %v2840
        %v4866 = vpop.f32.mrf.mxu0
        %v4867 = vadd.f32 0.0, %v4866
        %4868 = vmatmul.f32.gmra.mxu0 %v2843
        %v4869 = vpop.f32.mrf.mxu0
        %v4870 = vadd.f32 0.0, %v4869
        %4871 = vmatmul.f32.gmra.mxu0 %v2846
        %v4872 = vpop.f32.mrf.mxu0
        %v4873 = vadd.f32 0.0, %v4872
        %4874 = vmatmul.f32.gmra.mxu0 %v2849
        %v4875 = vpop.f32.mrf.mxu0
        %v4876 = vadd.f32 0.0, %v4875
        %4877 = vmatmul.f32.gmra.mxu0 %v2852
        %v4878 = vpop.f32.mrf.mxu0
        %v4879 = vadd.f32 0.0, %v4878
        %4880 = vmatmul.f32.gmra.mxu0 %v2855
        %v4881 = vpop.f32.mrf.mxu0
        %v4882 = vadd.f32 0.0, %v4881
        %4883 = vmatmul.f32.gmra.mxu0 %v2858
        %v4884 = vpop.f32.mrf.mxu0
        %v4885 = vadd.f32 0.0, %v4884
        %4886 = vmatmul.f32.gmra.mxu0 %v2861
        %v4887 = vpop.f32.mrf.mxu0
        %v4888 = vadd.f32 0.0, %v4887
        %4889 = vmatmul.f32.gmra.mxu0 %v2864
        %v4890 = vpop.f32.mrf.mxu0
        %v4891 = vadd.f32 0.0, %v4890
        %4892 = vmatmul.f32.gmra.mxu0 %v2867
        %v4893 = vpop.f32.mrf.mxu0
        %v4894 = vadd.f32 0.0, %v4893
        %4895 = vmatmul.f32.gmra.mxu0 %v2870
        %v4896 = vpop.f32.mrf.mxu0
        %v4897 = vadd.f32 0.0, %v4896
        %4898 = vmatmul.f32.gmra.mxu0 %v2873
        %v4899 = vpop.f32.mrf.mxu0
        %v4900 = vadd.f32 0.0, %v4899
        %4901 = vmatmul.f32.gmra.mxu0 %v2876
        %v4902 = vpop.f32.mrf.mxu0
        %v4903 = vadd.f32 0.0, %v4902
        %4904 = vmatmul.f32.gmra.mxu0 %v2879
        %v4905 = vpop.f32.mrf.mxu0
        %v4906 = vadd.f32 0.0, %v4905
        %4907 = vmatmul.f32.gmra.mxu0 %v2882
        %v4908 = vpop.f32.mrf.mxu0
        %v4909 = vadd.f32 0.0, %v4908
        %4910 = vmatmul.f32.gmra.mxu0 %v2885
        %v4911 = vpop.f32.mrf.mxu0
        %v4912 = vadd.f32 0.0, %v4911
        %4913 = vmatmul.f32.gmra.mxu0 %v2888
        %v4914 = vpop.f32.mrf.mxu0
        %v4915 = vadd.f32 0.0, %v4914
        %4916 = vmatmul.f32.gmra.mxu0 %v2891
        %v4917 = vpop.f32.mrf.mxu0
        %v4918 = vadd.f32 0.0, %v4917
        %4919 = vmatmul.f32.gmra.mxu0 %v2894
        %v4920 = vpop.f32.mrf.mxu0
        %v4921 = vadd.f32 0.0, %v4920
        %4922 = vmatmul.f32.gmra.mxu0 %v2897
        %v4923 = vpop.f32.mrf.mxu0
        %v4924 = vadd.f32 0.0, %v4923
        %4925 = vmatmul.f32.gmra.mxu0 %v2900
        %v4926 = vpop.f32.mrf.mxu0
        %v4927 = vadd.f32 0.0, %v4926
        %4928 = vmatmul.f32.gmra.mxu0 %v2903
        %v4929 = vpop.f32.mrf.mxu0
        %v4930 = vadd.f32 0.0, %v4929
        %4931 = vmatmul.f32.gmra.mxu0 %v2906
        %v4932 = vpop.f32.mrf.mxu0
        %v4933 = vadd.f32 0.0, %v4932
        %4934 = vmatmul.f32.gmra.mxu0 %v2909
        %v4935 = vpop.f32.mrf.mxu0
        %v4936 = vadd.f32 0.0, %v4935
        %4937 = vmatmul.f32.gmra.mxu0 %v2912
        %v4938 = vpop.f32.mrf.mxu0
        %v4939 = vadd.f32 0.0, %v4938
        %4940 = vmatmul.f32.gmra.mxu0 %v2915
        %v4941 = vpop.f32.mrf.mxu0
        %v4942 = vadd.f32 0.0, %v4941
        %4943 = vmatmul.f32.gmra.mxu0 %v4544
        %v4944 = vpop.f32.mrf.mxu0
        %v4945 = vadd.f32 0.0, %v4944
        %4946 = vmatmul.f32.gmra.mxu0 %v4547
        %v4947 = vpop.f32.mrf.mxu0
        %v4948 = vadd.f32 0.0, %v4947
        %4949 = vmatmul.f32.gmra.mxu0 %v4550
        %v4950 = vpop.f32.mrf.mxu0
        %v4951 = vadd.f32 0.0, %v4950
        %4952 = vmatmul.f32.gmra.mxu0 %v4553
        %v4953 = vpop.f32.mrf.mxu0
        %v4954 = vadd.f32 0.0, %v4953
        %4955 = vdwg.mxu0
        %v4956 = vadd.f32 %v4410, %v4573
        %v4957 = vadd.f32 %v4411, %v4576
        %v4958 = vadd.f32 %v4412, %v4579
        %v4959 = vadd.f32 %v4413, %v4582
        %v4960 = vadd.f32 %v4414, %v4585
        %v4961 = vadd.f32 %v4415, %v4588
        %v4962 = vadd.f32 %v4416, %v4591
        %v4963 = vadd.f32 %v4417, %v4594
        %v4964 = vadd.f32 %v4418, %v4597
        %v4965 = vadd.f32 %v4419, %v4600
        %v4966 = vadd.f32 %v4420, %v4603
        %v4967 = vadd.f32 %v4421, %v4606
        %v4968 = vadd.f32 %v4422, %v4609
        %v4969 = vadd.f32 %v4423, %v4612
        %v4970 = vadd.f32 %v4424, %v4615
        %v4971 = vadd.f32 %v4425, %v4618
        %v4972 = vadd.f32 %v4426, %v4621
        %v4973 = vadd.f32 %v4427, %v4624
        %v4974 = vadd.f32 %v4428, %v4627
        %v4975 = vadd.f32 %v4429, %v4630
        %v4976 = vadd.f32 %v4430, %v4633
        %v4977 = vadd.f32 %v4431, %v4636
        %v4978 = vadd.f32 %v4432, %v4639
        %v4979 = vadd.f32 %v4433, %v4642
        %v4980 = vadd.f32 %v4434, %v4645
        %v4981 = vadd.f32 %v4435, %v4648
        %v4982 = vadd.f32 %v4436, %v4651
        %v4983 = vadd.f32 %v4437, %v4654
        %v4984 = vadd.f32 %v4438, %v4657
        %v4985 = vadd.f32 %v4439, %v4660
        %v4986 = vadd.f32 %v4440, %v4663
        %v4987 = vadd.f32 %v4441, %v4666
        %v4988 = vadd.f32 %v4442, %v4669
        %v4989 = vadd.f32 %v4443, %v4672
        %v4990 = vadd.f32 %v4444, %v4675
        %v4991 = vadd.f32 %v4445, %v4678
        %v4992 = vadd.f32 %v4446, %v4681
        %v4993 = vadd.f32 %v4447, %v4684
        %v4994 = vadd.f32 %v4448, %v4687
        %v4995 = vadd.f32 %v4449, %v4690
        %v4996 = vadd.f32 %v4450, %v4693
        %v4997 = vadd.f32 %v4451, %v4696
        %v4998 = vadd.f32 %v4452, %v4699
        %v4999 = vadd.f32 %v4453, %v4702
        %v5000 = vadd.f32 %v4454, %v4705
        %v5001 = vadd.f32 %v4455, %v4708
        %v5002 = vadd.f32 %v4456, %v4711
        %v5003 = vadd.f32 %v4457, %v4714
        %v5004 = vadd.f32 %v4458, %v4717
        %v5005 = vadd.f32 %v4459, %v4720
        %v5006 = vadd.f32 %v4460, %v4723
        %v5007 = vadd.f32 %v4461, %v4726
        %v5008 = vadd.f32 %v4462, %v4729
        %v5009 = vadd.f32 %v4463, %v4732
        %v5010 = vadd.f32 %v4464, %v4735
        %v5011 = vadd.f32 %v4465, %v4738
        %v5012 = vadd.f32 %v4466, %v4741
        %v5013 = vadd.f32 %v4467, %v4744
        %v5014 = vadd.f32 %v4468, %v4747
        %v5015 = vadd.f32 %v4469, %v4750
        %v5016 = vadd.f32 %v4470, %v4753
        %v5017 = vadd.f32 %v4471, %v4756
        %v5018 = vadd.f32 %v4472, %v4759
        %v5019 = vadd.f32 %v4473, %v4762
        %v5020 = vadd.f32 %v4474, %v4765
        %v5021 = vadd.f32 %v4475, %v4768
        %v5022 = vadd.f32 %v4476, %v4771
        %v5023 = vadd.f32 %v4477, %v4774
        %v5024 = vadd.f32 %v4478, %v4777
        %v5025 = vadd.f32 %v4479, %v4780
        %v5026 = vadd.f32 %v4480, %v4783
        %v5027 = vadd.f32 %v4481, %v4786
        %v5028 = vadd.f32 %v4482, %v4789
        %v5029 = vadd.f32 %v4483, %v4792
        %v5030 = vadd.f32 %v4484, %v4795
        %v5031 = vadd.f32 %v4485, %v4798
        %v5032 = vadd.f32 %v4486, %v4801
        %v5033 = vadd.f32 %v4487, %v4804
        %v5034 = vadd.f32 %v4488, %v4807
        %v5035 = vadd.f32 %v4489, %v4810
        %v5036 = vadd.f32 %v4490, %v4813
        %v5037 = vadd.f32 %v4491, %v4816
        %v5038 = vadd.f32 %v4492, %v4819
        %v5039 = vadd.f32 %v4493, %v4822
        %v5040 = vadd.f32 %v4494, %v4825
        %v5041 = vadd.f32 %v4495, %v4828
        %v5042 = vadd.f32 %v4496, %v4831
        %v5043 = vadd.f32 %v4497, %v4834
        %v5044 = vadd.f32 %v4498, %v4837
        %v5045 = vadd.f32 %v4499, %v4840
        %v5046 = vadd.f32 %v4500, %v4843
        %v5047 = vadd.f32 %v4501, %v4846
        %v5048 = vadd.f32 %v4502, %v4849
        %v5049 = vadd.f32 %v4503, %v4852
        %v5050 = vadd.f32 %v4504, %v4855
        %v5051 = vadd.f32 %v4505, %v4858
        %v5052 = vadd.f32 %v4506, %v4861
        %v5053 = vadd.f32 %v4507, %v4864
        %v5054 = vadd.f32 %v4508, %v4867
        %v5055 = vadd.f32 %v4509, %v4870
        %v5056 = vadd.f32 %v4510, %v4873
        %v5057 = vadd.f32 %v4511, %v4876
        %v5058 = vadd.f32 %v4512, %v4879
        %v5059 = vadd.f32 %v4513, %v4882
        %v5060 = vadd.f32 %v4514, %v4885
        %v5061 = vadd.f32 %v4515, %v4888
        %v5062 = vadd.f32 %v4516, %v4891
        %v5063 = vadd.f32 %v4517, %v4894
        %v5064 = vadd.f32 %v4518, %v4897
        %v5065 = vadd.f32 %v4519, %v4900
        %v5066 = vadd.f32 %v4520, %v4903
        %v5067 = vadd.f32 %v4521, %v4906
        %v5068 = vadd.f32 %v4522, %v4909
        %v5069 = vadd.f32 %v4523, %v4912
        %v5070 = vadd.f32 %v4524, %v4915
        %v5071 = vadd.f32 %v4525, %v4918
        %v5072 = vadd.f32 %v4526, %v4921
        %v5073 = vadd.f32 %v4527, %v4924
        %v5074 = vadd.f32 %v4528, %v4927
        %v5075 = vadd.f32 %v4529, %v4930
        %v5076 = vadd.f32 %v4530, %v4933
        %v5077 = vadd.f32 %v4531, %v4936
        %v5078 = vadd.f32 %v4532, %v4939
        %v5079 = vadd.f32 %v4533, %v4942
        %v5080 = vadd.f32 %v4534, %v4945
        %v5081 = vadd.f32 %v4535, %v4948
        %v5082 = vadd.f32 %v4536, %v4951
        %v5083 = vadd.f32 %v4537, %v4954
        %s5084 = scalar_lea.vmem %s1, 192
        %v5085 = vld [vmem:[%s5084] sm:$0xff]
        %v5086 = vld [vmem:[%s5084 + $0x8] sm:$0xff]
        %v5087 = vld [vmem:[%s5084 + $0x10] sm:$0xff]
        %v5088 = vld [vmem:[%s5084 + $0x18] sm:$0xff]
        %v5090 = vsel %vm957, %v672, 0
        %v5093 = vsel %vm957, %v673, 0
        %v5096 = vsel %vm957, %v674, 0
        %v5099 = vsel %vm957, %v675, 0
        %5101 = vmatpush.msra.mxu0 0.0
        %5102 = vmatpush.msra.mxu0 0.0
        %5103 = vmatpush.msra.mxu0 0.0
        %5104 = vmatpush.msra.mxu0 0.0
        %5105 = vmatpush.msra.mxu0 0.0
        %5106 = vmatpush.msra.mxu0 0.0
        %5107 = vmatpush.msra.mxu0 0.0
        %5108 = vmatpush.msra.mxu0 0.0
        %5109 = vmatpush.msra.mxu0 0.0
        %5110 = vmatpush.msra.mxu0 0.0
        %5111 = vmatpush.msra.mxu0 0.0
        %5112 = vmatpush.msra.mxu0 0.0
        %5113 = vmatpush.msra.mxu0 %v5088
        %5114 = vmatpush.msra.mxu0 %v5087
        %5115 = vmatpush.msra.mxu0 %v5086
        %5116 = vmatpush.msra.mxu0 %v5085
        %5117 = vmatmul.f32.gmra.mxu0 %v1768
        %v5118 = vpop.f32.mrf.mxu0
        %v5119 = vadd.f32 0.0, %v5118
        %5120 = vmatmul.f32.gmra.mxu0 %v1771
        %v5121 = vpop.f32.mrf.mxu0
        %v5122 = vadd.f32 0.0, %v5121
        %5123 = vmatmul.f32.gmra.mxu0 %v1774
        %v5124 = vpop.f32.mrf.mxu0
        %v5125 = vadd.f32 0.0, %v5124
        %5126 = vmatmul.f32.gmra.mxu0 %v1777
        %v5127 = vpop.f32.mrf.mxu0
        %v5128 = vadd.f32 0.0, %v5127
        %5129 = vmatmul.f32.gmra.mxu0 %v1780
        %v5130 = vpop.f32.mrf.mxu0
        %v5131 = vadd.f32 0.0, %v5130
        %5132 = vmatmul.f32.gmra.mxu0 %v1783
        %v5133 = vpop.f32.mrf.mxu0
        %v5134 = vadd.f32 0.0, %v5133
        %5135 = vmatmul.f32.gmra.mxu0 %v1786
        %v5136 = vpop.f32.mrf.mxu0
        %v5137 = vadd.f32 0.0, %v5136
        %5138 = vmatmul.f32.gmra.mxu0 %v1789
        %v5139 = vpop.f32.mrf.mxu0
        %v5140 = vadd.f32 0.0, %v5139
        %5141 = vmatmul.f32.gmra.mxu0 %v1792
        %v5142 = vpop.f32.mrf.mxu0
        %v5143 = vadd.f32 0.0, %v5142
        %5144 = vmatmul.f32.gmra.mxu0 %v1795
        %v5145 = vpop.f32.mrf.mxu0
        %v5146 = vadd.f32 0.0, %v5145
        %5147 = vmatmul.f32.gmra.mxu0 %v1798
        %v5148 = vpop.f32.mrf.mxu0
        %v5149 = vadd.f32 0.0, %v5148
        %5150 = vmatmul.f32.gmra.mxu0 %v1801
        %v5151 = vpop.f32.mrf.mxu0
        %v5152 = vadd.f32 0.0, %v5151
        %5153 = vmatmul.f32.gmra.mxu0 %v1804
        %v5154 = vpop.f32.mrf.mxu0
        %v5155 = vadd.f32 0.0, %v5154
        %5156 = vmatmul.f32.gmra.mxu0 %v1807
        %v5157 = vpop.f32.mrf.mxu0
        %v5158 = vadd.f32 0.0, %v5157
        %5159 = vmatmul.f32.gmra.mxu0 %v1810
        %v5160 = vpop.f32.mrf.mxu0
        %v5161 = vadd.f32 0.0, %v5160
        %5162 = vmatmul.f32.gmra.mxu0 %v1813
        %v5163 = vpop.f32.mrf.mxu0
        %v5164 = vadd.f32 0.0, %v5163
        %5165 = vmatmul.f32.gmra.mxu0 %v1816
        %v5166 = vpop.f32.mrf.mxu0
        %v5167 = vadd.f32 0.0, %v5166
        %5168 = vmatmul.f32.gmra.mxu0 %v1819
        %v5169 = vpop.f32.mrf.mxu0
        %v5170 = vadd.f32 0.0, %v5169
        %5171 = vmatmul.f32.gmra.mxu0 %v1822
        %v5172 = vpop.f32.mrf.mxu0
        %v5173 = vadd.f32 0.0, %v5172
        %5174 = vmatmul.f32.gmra.mxu0 %v1825
        %v5175 = vpop.f32.mrf.mxu0
        %v5176 = vadd.f32 0.0, %v5175
        %5177 = vmatmul.f32.gmra.mxu0 %v1828
        %v5178 = vpop.f32.mrf.mxu0
        %v5179 = vadd.f32 0.0, %v5178
        %5180 = vmatmul.f32.gmra.mxu0 %v1831
        %v5181 = vpop.f32.mrf.mxu0
        %v5182 = vadd.f32 0.0, %v5181
        %5183 = vmatmul.f32.gmra.mxu0 %v1834
        %v5184 = vpop.f32.mrf.mxu0
        %v5185 = vadd.f32 0.0, %v5184
        %5186 = vmatmul.f32.gmra.mxu0 %v1837
        %v5187 = vpop.f32.mrf.mxu0
        %v5188 = vadd.f32 0.0, %v5187
        %5189 = vmatmul.f32.gmra.mxu0 %v1840
        %v5190 = vpop.f32.mrf.mxu0
        %v5191 = vadd.f32 0.0, %v5190
        %5192 = vmatmul.f32.gmra.mxu0 %v1843
        %v5193 = vpop.f32.mrf.mxu0
        %v5194 = vadd.f32 0.0, %v5193
        %5195 = vmatmul.f32.gmra.mxu0 %v1846
        %v5196 = vpop.f32.mrf.mxu0
        %v5197 = vadd.f32 0.0, %v5196
        %5198 = vmatmul.f32.gmra.mxu0 %v1849
        %v5199 = vpop.f32.mrf.mxu0
        %v5200 = vadd.f32 0.0, %v5199
        %5201 = vmatmul.f32.gmra.mxu0 %v1852
        %v5202 = vpop.f32.mrf.mxu0
        %v5203 = vadd.f32 0.0, %v5202
        %5204 = vmatmul.f32.gmra.mxu0 %v1855
        %v5205 = vpop.f32.mrf.mxu0
        %v5206 = vadd.f32 0.0, %v5205
        %5207 = vmatmul.f32.gmra.mxu0 %v1858
        %v5208 = vpop.f32.mrf.mxu0
        %v5209 = vadd.f32 0.0, %v5208
        %5210 = vmatmul.f32.gmra.mxu0 %v1861
        %v5211 = vpop.f32.mrf.mxu0
        %v5212 = vadd.f32 0.0, %v5211
        %5213 = vmatmul.f32.gmra.mxu0 %v1864
        %v5214 = vpop.f32.mrf.mxu0
        %v5215 = vadd.f32 0.0, %v5214
        %5216 = vmatmul.f32.gmra.mxu0 %v1867
        %v5217 = vpop.f32.mrf.mxu0
        %v5218 = vadd.f32 0.0, %v5217
        %5219 = vmatmul.f32.gmra.mxu0 %v1870
        %v5220 = vpop.f32.mrf.mxu0
        %v5221 = vadd.f32 0.0, %v5220
        %5222 = vmatmul.f32.gmra.mxu0 %v1873
        %v5223 = vpop.f32.mrf.mxu0
        %v5224 = vadd.f32 0.0, %v5223
        %5225 = vmatmul.f32.gmra.mxu0 %v1876
        %v5226 = vpop.f32.mrf.mxu0
        %v5227 = vadd.f32 0.0, %v5226
        %5228 = vmatmul.f32.gmra.mxu0 %v1879
        %v5229 = vpop.f32.mrf.mxu0
        %v5230 = vadd.f32 0.0, %v5229
        %5231 = vmatmul.f32.gmra.mxu0 %v1882
        %v5232 = vpop.f32.mrf.mxu0
        %v5233 = vadd.f32 0.0, %v5232
        %5234 = vmatmul.f32.gmra.mxu0 %v1885
        %v5235 = vpop.f32.mrf.mxu0
        %v5236 = vadd.f32 0.0, %v5235
        %5237 = vmatmul.f32.gmra.mxu0 %v1888
        %v5238 = vpop.f32.mrf.mxu0
        %v5239 = vadd.f32 0.0, %v5238
        %5240 = vmatmul.f32.gmra.mxu0 %v1891
        %v5241 = vpop.f32.mrf.mxu0
        %v5242 = vadd.f32 0.0, %v5241
        %5243 = vmatmul.f32.gmra.mxu0 %v1894
        %v5244 = vpop.f32.mrf.mxu0
        %v5245 = vadd.f32 0.0, %v5244
        %5246 = vmatmul.f32.gmra.mxu0 %v1897
        %v5247 = vpop.f32.mrf.mxu0
        %v5248 = vadd.f32 0.0, %v5247
        %5249 = vmatmul.f32.gmra.mxu0 %v1900
        %v5250 = vpop.f32.mrf.mxu0
        %v5251 = vadd.f32 0.0, %v5250
        %5252 = vmatmul.f32.gmra.mxu0 %v1903
        %v5253 = vpop.f32.mrf.mxu0
        %v5254 = vadd.f32 0.0, %v5253
        %5255 = vmatmul.f32.gmra.mxu0 %v1906
        %v5256 = vpop.f32.mrf.mxu0
        %v5257 = vadd.f32 0.0, %v5256
        %5258 = vmatmul.f32.gmra.mxu0 %v1909
        %v5259 = vpop.f32.mrf.mxu0
        %v5260 = vadd.f32 0.0, %v5259
        %5261 = vmatmul.f32.gmra.mxu0 %v1912
        %v5262 = vpop.f32.mrf.mxu0
        %v5263 = vadd.f32 0.0, %v5262
        %5264 = vmatmul.f32.gmra.mxu0 %v1915
        %v5265 = vpop.f32.mrf.mxu0
        %v5266 = vadd.f32 0.0, %v5265
        %5267 = vmatmul.f32.gmra.mxu0 %v1918
        %v5268 = vpop.f32.mrf.mxu0
        %v5269 = vadd.f32 0.0, %v5268
        %5270 = vmatmul.f32.gmra.mxu0 %v1921
        %v5271 = vpop.f32.mrf.mxu0
        %v5272 = vadd.f32 0.0, %v5271
        %5273 = vmatmul.f32.gmra.mxu0 %v1924
        %v5274 = vpop.f32.mrf.mxu0
        %v5275 = vadd.f32 0.0, %v5274
        %5276 = vmatmul.f32.gmra.mxu0 %v1927
        %v5277 = vpop.f32.mrf.mxu0
        %v5278 = vadd.f32 0.0, %v5277
        %5279 = vmatmul.f32.gmra.mxu0 %v1930
        %v5280 = vpop.f32.mrf.mxu0
        %v5281 = vadd.f32 0.0, %v5280
        %5282 = vmatmul.f32.gmra.mxu0 %v1933
        %v5283 = vpop.f32.mrf.mxu0
        %v5284 = vadd.f32 0.0, %v5283
        %5285 = vmatmul.f32.gmra.mxu0 %v1936
        %v5286 = vpop.f32.mrf.mxu0
        %v5287 = vadd.f32 0.0, %v5286
        %5288 = vmatmul.f32.gmra.mxu0 %v1939
        %v5289 = vpop.f32.mrf.mxu0
        %v5290 = vadd.f32 0.0, %v5289
        %5291 = vmatmul.f32.gmra.mxu0 %v1942
        %v5292 = vpop.f32.mrf.mxu0
        %v5293 = vadd.f32 0.0, %v5292
        %5294 = vmatmul.f32.gmra.mxu0 %v1945
        %v5295 = vpop.f32.mrf.mxu0
        %v5296 = vadd.f32 0.0, %v5295
        %5297 = vmatmul.f32.gmra.mxu0 %v1948
        %v5298 = vpop.f32.mrf.mxu0
        %v5299 = vadd.f32 0.0, %v5298
        %5300 = vmatmul.f32.gmra.mxu0 %v1951
        %v5301 = vpop.f32.mrf.mxu0
        %v5302 = vadd.f32 0.0, %v5301
        %5303 = vmatmul.f32.gmra.mxu0 %v1954
        %v5304 = vpop.f32.mrf.mxu0
        %v5305 = vadd.f32 0.0, %v5304
        %5306 = vmatmul.f32.gmra.mxu0 %v1957
        %v5307 = vpop.f32.mrf.mxu0
        %v5308 = vadd.f32 0.0, %v5307
        %5309 = vmatmul.f32.gmra.mxu0 %v1960
        %v5310 = vpop.f32.mrf.mxu0
        %v5311 = vadd.f32 0.0, %v5310
        %5312 = vmatmul.f32.gmra.mxu0 %v1963
        %v5313 = vpop.f32.mrf.mxu0
        %v5314 = vadd.f32 0.0, %v5313
        %5315 = vmatmul.f32.gmra.mxu0 %v1966
        %v5316 = vpop.f32.mrf.mxu0
        %v5317 = vadd.f32 0.0, %v5316
        %5318 = vmatmul.f32.gmra.mxu0 %v1969
        %v5319 = vpop.f32.mrf.mxu0
        %v5320 = vadd.f32 0.0, %v5319
        %5321 = vmatmul.f32.gmra.mxu0 %v1972
        %v5322 = vpop.f32.mrf.mxu0
        %v5323 = vadd.f32 0.0, %v5322
        %5324 = vmatmul.f32.gmra.mxu0 %v1975
        %v5325 = vpop.f32.mrf.mxu0
        %v5326 = vadd.f32 0.0, %v5325
        %5327 = vmatmul.f32.gmra.mxu0 %v1978
        %v5328 = vpop.f32.mrf.mxu0
        %v5329 = vadd.f32 0.0, %v5328
        %5330 = vmatmul.f32.gmra.mxu0 %v1981
        %v5331 = vpop.f32.mrf.mxu0
        %v5332 = vadd.f32 0.0, %v5331
        %5333 = vmatmul.f32.gmra.mxu0 %v1984
        %v5334 = vpop.f32.mrf.mxu0
        %v5335 = vadd.f32 0.0, %v5334
        %5336 = vmatmul.f32.gmra.mxu0 %v1987
        %v5337 = vpop.f32.mrf.mxu0
        %v5338 = vadd.f32 0.0, %v5337
        %5339 = vmatmul.f32.gmra.mxu0 %v1990
        %v5340 = vpop.f32.mrf.mxu0
        %v5341 = vadd.f32 0.0, %v5340
        %5342 = vmatmul.f32.gmra.mxu0 %v1993
        %v5343 = vpop.f32.mrf.mxu0
        %v5344 = vadd.f32 0.0, %v5343
        %5345 = vmatmul.f32.gmra.mxu0 %v1996
        %v5346 = vpop.f32.mrf.mxu0
        %v5347 = vadd.f32 0.0, %v5346
        %5348 = vmatmul.f32.gmra.mxu0 %v1999
        %v5349 = vpop.f32.mrf.mxu0
        %v5350 = vadd.f32 0.0, %v5349
        %5351 = vmatmul.f32.gmra.mxu0 %v2002
        %v5352 = vpop.f32.mrf.mxu0
        %v5353 = vadd.f32 0.0, %v5352
        %5354 = vmatmul.f32.gmra.mxu0 %v2005
        %v5355 = vpop.f32.mrf.mxu0
        %v5356 = vadd.f32 0.0, %v5355
        %5357 = vmatmul.f32.gmra.mxu0 %v2008
        %v5358 = vpop.f32.mrf.mxu0
        %v5359 = vadd.f32 0.0, %v5358
        %5360 = vmatmul.f32.gmra.mxu0 %v2011
        %v5361 = vpop.f32.mrf.mxu0
        %v5362 = vadd.f32 0.0, %v5361
        %5363 = vmatmul.f32.gmra.mxu0 %v2014
        %v5364 = vpop.f32.mrf.mxu0
        %v5365 = vadd.f32 0.0, %v5364
        %5366 = vmatmul.f32.gmra.mxu0 %v2017
        %v5367 = vpop.f32.mrf.mxu0
        %v5368 = vadd.f32 0.0, %v5367
        %5369 = vmatmul.f32.gmra.mxu0 %v2020
        %v5370 = vpop.f32.mrf.mxu0
        %v5371 = vadd.f32 0.0, %v5370
        %5372 = vmatmul.f32.gmra.mxu0 %v2023
        %v5373 = vpop.f32.mrf.mxu0
        %v5374 = vadd.f32 0.0, %v5373
        %5375 = vmatmul.f32.gmra.mxu0 %v2026
        %v5376 = vpop.f32.mrf.mxu0
        %v5377 = vadd.f32 0.0, %v5376
        %5378 = vmatmul.f32.gmra.mxu0 %v2029
        %v5379 = vpop.f32.mrf.mxu0
        %v5380 = vadd.f32 0.0, %v5379
        %5381 = vmatmul.f32.gmra.mxu0 %v2032
        %v5382 = vpop.f32.mrf.mxu0
        %v5383 = vadd.f32 0.0, %v5382
        %5384 = vmatmul.f32.gmra.mxu0 %v2035
        %v5385 = vpop.f32.mrf.mxu0
        %v5386 = vadd.f32 0.0, %v5385
        %5387 = vmatmul.f32.gmra.mxu0 %v2038
        %v5388 = vpop.f32.mrf.mxu0
        %v5389 = vadd.f32 0.0, %v5388
        %5390 = vmatmul.f32.gmra.mxu0 %v2041
        %v5391 = vpop.f32.mrf.mxu0
        %v5392 = vadd.f32 0.0, %v5391
        %5393 = vmatmul.f32.gmra.mxu0 %v2044
        %v5394 = vpop.f32.mrf.mxu0
        %v5395 = vadd.f32 0.0, %v5394
        %5396 = vmatmul.f32.gmra.mxu0 %v2047
        %v5397 = vpop.f32.mrf.mxu0
        %v5398 = vadd.f32 0.0, %v5397
        %5399 = vmatmul.f32.gmra.mxu0 %v2050
        %v5400 = vpop.f32.mrf.mxu0
        %v5401 = vadd.f32 0.0, %v5400
        %5402 = vmatmul.f32.gmra.mxu0 %v2053
        %v5403 = vpop.f32.mrf.mxu0
        %v5404 = vadd.f32 0.0, %v5403
        %5405 = vmatmul.f32.gmra.mxu0 %v2056
        %v5406 = vpop.f32.mrf.mxu0
        %v5407 = vadd.f32 0.0, %v5406
        %5408 = vmatmul.f32.gmra.mxu0 %v2059
        %v5409 = vpop.f32.mrf.mxu0
        %v5410 = vadd.f32 0.0, %v5409
        %5411 = vmatmul.f32.gmra.mxu0 %v2062
        %v5412 = vpop.f32.mrf.mxu0
        %v5413 = vadd.f32 0.0, %v5412
        %5414 = vmatmul.f32.gmra.mxu0 %v2065
        %v5415 = vpop.f32.mrf.mxu0
        %v5416 = vadd.f32 0.0, %v5415
        %5417 = vmatmul.f32.gmra.mxu0 %v2068
        %v5418 = vpop.f32.mrf.mxu0
        %v5419 = vadd.f32 0.0, %v5418
        %5420 = vmatmul.f32.gmra.mxu0 %v2071
        %v5421 = vpop.f32.mrf.mxu0
        %v5422 = vadd.f32 0.0, %v5421
        %5423 = vmatmul.f32.gmra.mxu0 %v2074
        %v5424 = vpop.f32.mrf.mxu0
        %v5425 = vadd.f32 0.0, %v5424
        %5426 = vmatmul.f32.gmra.mxu0 %v2077
        %v5427 = vpop.f32.mrf.mxu0
        %v5428 = vadd.f32 0.0, %v5427
        %5429 = vmatmul.f32.gmra.mxu0 %v2080
        %v5430 = vpop.f32.mrf.mxu0
        %v5431 = vadd.f32 0.0, %v5430
        %5432 = vmatmul.f32.gmra.mxu0 %v2083
        %v5433 = vpop.f32.mrf.mxu0
        %v5434 = vadd.f32 0.0, %v5433
        %5435 = vmatmul.f32.gmra.mxu0 %v2086
        %v5436 = vpop.f32.mrf.mxu0
        %v5437 = vadd.f32 0.0, %v5436
        %5438 = vmatmul.f32.gmra.mxu0 %v2089
        %v5439 = vpop.f32.mrf.mxu0
        %v5440 = vadd.f32 0.0, %v5439
        %5441 = vmatmul.f32.gmra.mxu0 %v2092
        %v5442 = vpop.f32.mrf.mxu0
        %v5443 = vadd.f32 0.0, %v5442
        %5444 = vmatmul.f32.gmra.mxu0 %v2095
        %v5445 = vpop.f32.mrf.mxu0
        %v5446 = vadd.f32 0.0, %v5445
        %5447 = vmatmul.f32.gmra.mxu0 %v2098
        %v5448 = vpop.f32.mrf.mxu0
        %v5449 = vadd.f32 0.0, %v5448
        %5450 = vmatmul.f32.gmra.mxu0 %v2101
        %v5451 = vpop.f32.mrf.mxu0
        %v5452 = vadd.f32 0.0, %v5451
        %5453 = vmatmul.f32.gmra.mxu0 %v2104
        %v5454 = vpop.f32.mrf.mxu0
        %v5455 = vadd.f32 0.0, %v5454
        %5456 = vmatmul.f32.gmra.mxu0 %v2107
        %v5457 = vpop.f32.mrf.mxu0
        %v5458 = vadd.f32 0.0, %v5457
        %5459 = vmatmul.f32.gmra.mxu0 %v2110
        %v5460 = vpop.f32.mrf.mxu0
        %v5461 = vadd.f32 0.0, %v5460
        %5462 = vmatmul.f32.gmra.mxu0 %v2113
        %v5463 = vpop.f32.mrf.mxu0
        %v5464 = vadd.f32 0.0, %v5463
        %5465 = vmatmul.f32.gmra.mxu0 %v2116
        %v5466 = vpop.f32.mrf.mxu0
        %v5467 = vadd.f32 0.0, %v5466
        %5468 = vmatmul.f32.gmra.mxu0 %v2119
        %v5469 = vpop.f32.mrf.mxu0
        %v5470 = vadd.f32 0.0, %v5469
        %5471 = vmatmul.f32.gmra.mxu0 %v2122
        %v5472 = vpop.f32.mrf.mxu0
        %v5473 = vadd.f32 0.0, %v5472
        %5474 = vmatmul.f32.gmra.mxu0 %v2125
        %v5475 = vpop.f32.mrf.mxu0
        %v5476 = vadd.f32 0.0, %v5475
        %5477 = vmatmul.f32.gmra.mxu0 %v3452
        %v5478 = vpop.f32.mrf.mxu0
        %v5479 = vadd.f32 0.0, %v5478
        %5480 = vmatmul.f32.gmra.mxu0 %v3455
        %v5481 = vpop.f32.mrf.mxu0
        %v5482 = vadd.f32 0.0, %v5481
        %5483 = vmatmul.f32.gmra.mxu0 %v3458
        %v5484 = vpop.f32.mrf.mxu0
        %v5485 = vadd.f32 0.0, %v5484
        %5486 = vmatmul.f32.gmra.mxu0 %v3461
        %v5487 = vpop.f32.mrf.mxu0
        %v5488 = vadd.f32 0.0, %v5487
        %5489 = vmatmul.f32.gmra.mxu0 %v5090
        %v5490 = vpop.f32.mrf.mxu0
        %v5491 = vadd.f32 0.0, %v5490
        %5492 = vmatmul.f32.gmra.mxu0 %v5093
        %v5493 = vpop.f32.mrf.mxu0
        %v5494 = vadd.f32 0.0, %v5493
        %5495 = vmatmul.f32.gmra.mxu0 %v5096
        %v5496 = vpop.f32.mrf.mxu0
        %v5497 = vadd.f32 0.0, %v5496
        %5498 = vmatmul.f32.gmra.mxu0 %v5099
        %v5499 = vpop.f32.mrf.mxu0
        %v5500 = vadd.f32 0.0, %v5499
        %5501 = vdwg.mxu0
        %v5502 = vadd.f32 %v4956, %v5119
        %v5503 = vadd.f32 %v4957, %v5122
        %v5504 = vadd.f32 %v4958, %v5125
        %v5505 = vadd.f32 %v4959, %v5128
        %v5506 = vadd.f32 %v4960, %v5131
        %v5507 = vadd.f32 %v4961, %v5134
        %v5508 = vadd.f32 %v4962, %v5137
        %v5509 = vadd.f32 %v4963, %v5140
        %v5510 = vadd.f32 %v4964, %v5143
        %v5511 = vadd.f32 %v4965, %v5146
        %v5512 = vadd.f32 %v4966, %v5149
        %v5513 = vadd.f32 %v4967, %v5152
        %v5514 = vadd.f32 %v4968, %v5155
        %v5515 = vadd.f32 %v4969, %v5158
        %v5516 = vadd.f32 %v4970, %v5161
        %v5517 = vadd.f32 %v4971, %v5164
        %v5518 = vadd.f32 %v4972, %v5167
        %v5519 = vadd.f32 %v4973, %v5170
        %v5520 = vadd.f32 %v4974, %v5173
        %v5521 = vadd.f32 %v4975, %v5176
        %v5522 = vadd.f32 %v4976, %v5179
        %v5523 = vadd.f32 %v4977, %v5182
        %v5524 = vadd.f32 %v4978, %v5185
        %v5525 = vadd.f32 %v4979, %v5188
        %v5526 = vadd.f32 %v4980, %v5191
        %v5527 = vadd.f32 %v4981, %v5194
        %v5528 = vadd.f32 %v4982, %v5197
        %v5529 = vadd.f32 %v4983, %v5200
        %v5530 = vadd.f32 %v4984, %v5203
        %v5531 = vadd.f32 %v4985, %v5206
        %v5532 = vadd.f32 %v4986, %v5209
        %v5533 = vadd.f32 %v4987, %v5212
        %v5534 = vadd.f32 %v4988, %v5215
        %v5535 = vadd.f32 %v4989, %v5218
        %v5536 = vadd.f32 %v4990, %v5221
        %v5537 = vadd.f32 %v4991, %v5224
        %v5538 = vadd.f32 %v4992, %v5227
        %v5539 = vadd.f32 %v4993, %v5230
        %v5540 = vadd.f32 %v4994, %v5233
        %v5541 = vadd.f32 %v4995, %v5236
        %v5542 = vadd.f32 %v4996, %v5239
        %v5543 = vadd.f32 %v4997, %v5242
        %v5544 = vadd.f32 %v4998, %v5245
        %v5545 = vadd.f32 %v4999, %v5248
        %v5546 = vadd.f32 %v5000, %v5251
        %v5547 = vadd.f32 %v5001, %v5254
        %v5548 = vadd.f32 %v5002, %v5257
        %v5549 = vadd.f32 %v5003, %v5260
        %v5550 = vadd.f32 %v5004, %v5263
        %v5551 = vadd.f32 %v5005, %v5266
        %v5552 = vadd.f32 %v5006, %v5269
        %v5553 = vadd.f32 %v5007, %v5272
        %v5554 = vadd.f32 %v5008, %v5275
        %v5555 = vadd.f32 %v5009, %v5278
        %v5556 = vadd.f32 %v5010, %v5281
        %v5557 = vadd.f32 %v5011, %v5284
        %v5558 = vadd.f32 %v5012, %v5287
        %v5559 = vadd.f32 %v5013, %v5290
        %v5560 = vadd.f32 %v5014, %v5293
        %v5561 = vadd.f32 %v5015, %v5296
        %v5562 = vadd.f32 %v5016, %v5299
        %v5563 = vadd.f32 %v5017, %v5302
        %v5564 = vadd.f32 %v5018, %v5305
        %v5565 = vadd.f32 %v5019, %v5308
        %v5566 = vadd.f32 %v5020, %v5311
        %v5567 = vadd.f32 %v5021, %v5314
        %v5568 = vadd.f32 %v5022, %v5317
        %v5569 = vadd.f32 %v5023, %v5320
        %v5570 = vadd.f32 %v5024, %v5323
        %v5571 = vadd.f32 %v5025, %v5326
        %v5572 = vadd.f32 %v5026, %v5329
        %v5573 = vadd.f32 %v5027, %v5332
        %v5574 = vadd.f32 %v5028, %v5335
        %v5575 = vadd.f32 %v5029, %v5338
        %v5576 = vadd.f32 %v5030, %v5341
        %v5577 = vadd.f32 %v5031, %v5344
        %v5578 = vadd.f32 %v5032, %v5347
        %v5579 = vadd.f32 %v5033, %v5350
        %v5580 = vadd.f32 %v5034, %v5353
        %v5581 = vadd.f32 %v5035, %v5356
        %v5582 = vadd.f32 %v5036, %v5359
        %v5583 = vadd.f32 %v5037, %v5362
        %v5584 = vadd.f32 %v5038, %v5365
        %v5585 = vadd.f32 %v5039, %v5368
        %v5586 = vadd.f32 %v5040, %v5371
        %v5587 = vadd.f32 %v5041, %v5374
        %v5588 = vadd.f32 %v5042, %v5377
        %v5589 = vadd.f32 %v5043, %v5380
        %v5590 = vadd.f32 %v5044, %v5383
        %v5591 = vadd.f32 %v5045, %v5386
        %v5592 = vadd.f32 %v5046, %v5389
        %v5593 = vadd.f32 %v5047, %v5392
        %v5594 = vadd.f32 %v5048, %v5395
        %v5595 = vadd.f32 %v5049, %v5398
        %v5596 = vadd.f32 %v5050, %v5401
        %v5597 = vadd.f32 %v5051, %v5404
        %v5598 = vadd.f32 %v5052, %v5407
        %v5599 = vadd.f32 %v5053, %v5410
        %v5600 = vadd.f32 %v5054, %v5413
        %v5601 = vadd.f32 %v5055, %v5416
        %v5602 = vadd.f32 %v5056, %v5419
        %v5603 = vadd.f32 %v5057, %v5422
        %v5604 = vadd.f32 %v5058, %v5425
        %v5605 = vadd.f32 %v5059, %v5428
        %v5606 = vadd.f32 %v5060, %v5431
        %v5607 = vadd.f32 %v5061, %v5434
        %v5608 = vadd.f32 %v5062, %v5437
        %v5609 = vadd.f32 %v5063, %v5440
        %v5610 = vadd.f32 %v5064, %v5443
        %v5611 = vadd.f32 %v5065, %v5446
        %v5612 = vadd.f32 %v5066, %v5449
        %v5613 = vadd.f32 %v5067, %v5452
        %v5614 = vadd.f32 %v5068, %v5455
        %v5615 = vadd.f32 %v5069, %v5458
        %v5616 = vadd.f32 %v5070, %v5461
        %v5617 = vadd.f32 %v5071, %v5464
        %v5618 = vadd.f32 %v5072, %v5467
        %v5619 = vadd.f32 %v5073, %v5470
        %v5620 = vadd.f32 %v5074, %v5473
        %v5621 = vadd.f32 %v5075, %v5476
        %v5622 = vadd.f32 %v5076, %v5479
        %v5623 = vadd.f32 %v5077, %v5482
        %v5624 = vadd.f32 %v5078, %v5485
        %v5625 = vadd.f32 %v5079, %v5488
        %v5626 = vadd.f32 %v5080, %v5491
        %v5627 = vadd.f32 %v5081, %v5494
        %v5628 = vadd.f32 %v5082, %v5497
        %v5629 = vadd.f32 %v5083, %v5500
        %s5630 = scalar_lea.vmem %s1, 224
        %v5631 = vld [vmem:[%s5630] sm:$0xff]
        %v5632 = vld [vmem:[%s5630 + $0x8] sm:$0xff]
        %v5633 = vld [vmem:[%s5630 + $0x10] sm:$0xff]
        %v5634 = vld [vmem:[%s5630 + $0x18] sm:$0xff]
        %v5636 = vsel %vm957, %v808, 0
        %v5639 = vsel %vm957, %v809, 0
        %v5642 = vsel %vm957, %v810, 0
        %v5645 = vsel %vm957, %v811, 0
        %5647 = vmatpush.msra.mxu0 0.0
        %5648 = vmatpush.msra.mxu0 0.0
        %5649 = vmatpush.msra.mxu0 0.0
        %5650 = vmatpush.msra.mxu0 0.0
        %5651 = vmatpush.msra.mxu0 0.0
        %5652 = vmatpush.msra.mxu0 0.0
        %5653 = vmatpush.msra.mxu0 0.0
        %5654 = vmatpush.msra.mxu0 0.0
        %5655 = vmatpush.msra.mxu0 0.0
        %5656 = vmatpush.msra.mxu0 0.0
        %5657 = vmatpush.msra.mxu0 0.0
        %5658 = vmatpush.msra.mxu0 0.0
        %5659 = vmatpush.msra.mxu0 %v5634
        %5660 = vmatpush.msra.mxu0 %v5633
        %5661 = vmatpush.msra.mxu0 %v5632
        %5662 = vmatpush.msra.mxu0 %v5631
        %5663 = vmatmul.f32.gmra.mxu0 %v983
        %v5664 = vpop.f32.mrf.mxu0
        %v5665 = vadd.f32 0.0, %v5664
        %5666 = vmatmul.f32.gmra.mxu0 %v986
        %v5667 = vpop.f32.mrf.mxu0
        %v5668 = vadd.f32 0.0, %v5667
        %5669 = vmatmul.f32.gmra.mxu0 %v989
        %v5670 = vpop.f32.mrf.mxu0
        %v5671 = vadd.f32 0.0, %v5670
        %5672 = vmatmul.f32.gmra.mxu0 %v992
        %v5673 = vpop.f32.mrf.mxu0
        %v5674 = vadd.f32 0.0, %v5673
        %5675 = vmatmul.f32.gmra.mxu0 %v995
        %v5676 = vpop.f32.mrf.mxu0
        %v5677 = vadd.f32 0.0, %v5676
        %5678 = vmatmul.f32.gmra.mxu0 %v998
        %v5679 = vpop.f32.mrf.mxu0
        %v5680 = vadd.f32 0.0, %v5679
        %5681 = vmatmul.f32.gmra.mxu0 %v1001
        %v5682 = vpop.f32.mrf.mxu0
        %v5683 = vadd.f32 0.0, %v5682
        %5684 = vmatmul.f32.gmra.mxu0 %v1004
        %v5685 = vpop.f32.mrf.mxu0
        %v5686 = vadd.f32 0.0, %v5685
        %5687 = vmatmul.f32.gmra.mxu0 %v1007
        %v5688 = vpop.f32.mrf.mxu0
        %v5689 = vadd.f32 0.0, %v5688
        %5690 = vmatmul.f32.gmra.mxu0 %v1010
        %v5691 = vpop.f32.mrf.mxu0
        %v5692 = vadd.f32 0.0, %v5691
        %5693 = vmatmul.f32.gmra.mxu0 %v1013
        %v5694 = vpop.f32.mrf.mxu0
        %v5695 = vadd.f32 0.0, %v5694
        %5696 = vmatmul.f32.gmra.mxu0 %v1016
        %v5697 = vpop.f32.mrf.mxu0
        %v5698 = vadd.f32 0.0, %v5697
        %5699 = vmatmul.f32.gmra.mxu0 %v1019
        %v5700 = vpop.f32.mrf.mxu0
        %v5701 = vadd.f32 0.0, %v5700
        %5702 = vmatmul.f32.gmra.mxu0 %v1022
        %v5703 = vpop.f32.mrf.mxu0
        %v5704 = vadd.f32 0.0, %v5703
        %5705 = vmatmul.f32.gmra.mxu0 %v1025
        %v5706 = vpop.f32.mrf.mxu0
        %v5707 = vadd.f32 0.0, %v5706
        %5708 = vmatmul.f32.gmra.mxu0 %v1028
        %v5709 = vpop.f32.mrf.mxu0
        %v5710 = vadd.f32 0.0, %v5709
        %5711 = vmatmul.f32.gmra.mxu0 %v1031
        %v5712 = vpop.f32.mrf.mxu0
        %v5713 = vadd.f32 0.0, %v5712
        %5714 = vmatmul.f32.gmra.mxu0 %v1034
        %v5715 = vpop.f32.mrf.mxu0
        %v5716 = vadd.f32 0.0, %v5715
        %5717 = vmatmul.f32.gmra.mxu0 %v1037
        %v5718 = vpop.f32.mrf.mxu0
        %v5719 = vadd.f32 0.0, %v5718
        %5720 = vmatmul.f32.gmra.mxu0 %v1040
        %v5721 = vpop.f32.mrf.mxu0
        %v5722 = vadd.f32 0.0, %v5721
        %5723 = vmatmul.f32.gmra.mxu0 %v1043
        %v5724 = vpop.f32.mrf.mxu0
        %v5725 = vadd.f32 0.0, %v5724
        %5726 = vmatmul.f32.gmra.mxu0 %v1046
        %v5727 = vpop.f32.mrf.mxu0
        %v5728 = vadd.f32 0.0, %v5727
        %5729 = vmatmul.f32.gmra.mxu0 %v1049
        %v5730 = vpop.f32.mrf.mxu0
        %v5731 = vadd.f32 0.0, %v5730
        %5732 = vmatmul.f32.gmra.mxu0 %v1052
        %v5733 = vpop.f32.mrf.mxu0
        %v5734 = vadd.f32 0.0, %v5733
        %5735 = vmatmul.f32.gmra.mxu0 %v1055
        %v5736 = vpop.f32.mrf.mxu0
        %v5737 = vadd.f32 0.0, %v5736
        %5738 = vmatmul.f32.gmra.mxu0 %v1058
        %v5739 = vpop.f32.mrf.mxu0
        %v5740 = vadd.f32 0.0, %v5739
        %5741 = vmatmul.f32.gmra.mxu0 %v1061
        %v5742 = vpop.f32.mrf.mxu0
        %v5743 = vadd.f32 0.0, %v5742
        %5744 = vmatmul.f32.gmra.mxu0 %v1064
        %v5745 = vpop.f32.mrf.mxu0
        %v5746 = vadd.f32 0.0, %v5745
        %5747 = vmatmul.f32.gmra.mxu0 %v1067
        %v5748 = vpop.f32.mrf.mxu0
        %v5749 = vadd.f32 0.0, %v5748
        %5750 = vmatmul.f32.gmra.mxu0 %v1070
        %v5751 = vpop.f32.mrf.mxu0
        %v5752 = vadd.f32 0.0, %v5751
        %5753 = vmatmul.f32.gmra.mxu0 %v1073
        %v5754 = vpop.f32.mrf.mxu0
        %v5755 = vadd.f32 0.0, %v5754
        %5756 = vmatmul.f32.gmra.mxu0 %v1076
        %v5757 = vpop.f32.mrf.mxu0
        %v5758 = vadd.f32 0.0, %v5757
        %5759 = vmatmul.f32.gmra.mxu0 %v1079
        %v5760 = vpop.f32.mrf.mxu0
        %v5761 = vadd.f32 0.0, %v5760
        %5762 = vmatmul.f32.gmra.mxu0 %v1082
        %v5763 = vpop.f32.mrf.mxu0
        %v5764 = vadd.f32 0.0, %v5763
        %5765 = vmatmul.f32.gmra.mxu0 %v1085
        %v5766 = vpop.f32.mrf.mxu0
        %v5767 = vadd.f32 0.0, %v5766
        %5768 = vmatmul.f32.gmra.mxu0 %v1088
        %v5769 = vpop.f32.mrf.mxu0
        %v5770 = vadd.f32 0.0, %v5769
        %5771 = vmatmul.f32.gmra.mxu0 %v1091
        %v5772 = vpop.f32.mrf.mxu0
        %v5773 = vadd.f32 0.0, %v5772
        %5774 = vmatmul.f32.gmra.mxu0 %v1094
        %v5775 = vpop.f32.mrf.mxu0
        %v5776 = vadd.f32 0.0, %v5775
        %5777 = vmatmul.f32.gmra.mxu0 %v1097
        %v5778 = vpop.f32.mrf.mxu0
        %v5779 = vadd.f32 0.0, %v5778
        %5780 = vmatmul.f32.gmra.mxu0 %v1100
        %v5781 = vpop.f32.mrf.mxu0
        %v5782 = vadd.f32 0.0, %v5781
        %5783 = vmatmul.f32.gmra.mxu0 %v1103
        %v5784 = vpop.f32.mrf.mxu0
        %v5785 = vadd.f32 0.0, %v5784
        %5786 = vmatmul.f32.gmra.mxu0 %v1106
        %v5787 = vpop.f32.mrf.mxu0
        %v5788 = vadd.f32 0.0, %v5787
        %5789 = vmatmul.f32.gmra.mxu0 %v1109
        %v5790 = vpop.f32.mrf.mxu0
        %v5791 = vadd.f32 0.0, %v5790
        %5792 = vmatmul.f32.gmra.mxu0 %v1112
        %v5793 = vpop.f32.mrf.mxu0
        %v5794 = vadd.f32 0.0, %v5793
        %5795 = vmatmul.f32.gmra.mxu0 %v1115
        %v5796 = vpop.f32.mrf.mxu0
        %v5797 = vadd.f32 0.0, %v5796
        %5798 = vmatmul.f32.gmra.mxu0 %v1118
        %v5799 = vpop.f32.mrf.mxu0
        %v5800 = vadd.f32 0.0, %v5799
        %5801 = vmatmul.f32.gmra.mxu0 %v1121
        %v5802 = vpop.f32.mrf.mxu0
        %v5803 = vadd.f32 0.0, %v5802
        %5804 = vmatmul.f32.gmra.mxu0 %v1124
        %v5805 = vpop.f32.mrf.mxu0
        %v5806 = vadd.f32 0.0, %v5805
        %5807 = vmatmul.f32.gmra.mxu0 %v1127
        %v5808 = vpop.f32.mrf.mxu0
        %v5809 = vadd.f32 0.0, %v5808
        %5810 = vmatmul.f32.gmra.mxu0 %v1130
        %v5811 = vpop.f32.mrf.mxu0
        %v5812 = vadd.f32 0.0, %v5811
        %5813 = vmatmul.f32.gmra.mxu0 %v1133
        %v5814 = vpop.f32.mrf.mxu0
        %v5815 = vadd.f32 0.0, %v5814
        %5816 = vmatmul.f32.gmra.mxu0 %v1136
        %v5817 = vpop.f32.mrf.mxu0
        %v5818 = vadd.f32 0.0, %v5817
        %5819 = vmatmul.f32.gmra.mxu0 %v1139
        %v5820 = vpop.f32.mrf.mxu0
        %v5821 = vadd.f32 0.0, %v5820
        %5822 = vmatmul.f32.gmra.mxu0 %v1142
        %v5823 = vpop.f32.mrf.mxu0
        %v5824 = vadd.f32 0.0, %v5823
        %5825 = vmatmul.f32.gmra.mxu0 %v1145
        %v5826 = vpop.f32.mrf.mxu0
        %v5827 = vadd.f32 0.0, %v5826
        %5828 = vmatmul.f32.gmra.mxu0 %v1148
        %v5829 = vpop.f32.mrf.mxu0
        %v5830 = vadd.f32 0.0, %v5829
        %5831 = vmatmul.f32.gmra.mxu0 %v1151
        %v5832 = vpop.f32.mrf.mxu0
        %v5833 = vadd.f32 0.0, %v5832
        %5834 = vmatmul.f32.gmra.mxu0 %v1154
        %v5835 = vpop.f32.mrf.mxu0
        %v5836 = vadd.f32 0.0, %v5835
        %5837 = vmatmul.f32.gmra.mxu0 %v1157
        %v5838 = vpop.f32.mrf.mxu0
        %v5839 = vadd.f32 0.0, %v5838
        %5840 = vmatmul.f32.gmra.mxu0 %v1160
        %v5841 = vpop.f32.mrf.mxu0
        %v5842 = vadd.f32 0.0, %v5841
        %5843 = vmatmul.f32.gmra.mxu0 %v1163
        %v5844 = vpop.f32.mrf.mxu0
        %v5845 = vadd.f32 0.0, %v5844
        %5846 = vmatmul.f32.gmra.mxu0 %v1166
        %v5847 = vpop.f32.mrf.mxu0
        %v5848 = vadd.f32 0.0, %v5847
        %5849 = vmatmul.f32.gmra.mxu0 %v1169
        %v5850 = vpop.f32.mrf.mxu0
        %v5851 = vadd.f32 0.0, %v5850
        %5852 = vmatmul.f32.gmra.mxu0 %v1172
        %v5853 = vpop.f32.mrf.mxu0
        %v5854 = vadd.f32 0.0, %v5853
        %5855 = vmatmul.f32.gmra.mxu0 %v1175
        %v5856 = vpop.f32.mrf.mxu0
        %v5857 = vadd.f32 0.0, %v5856
        %5858 = vmatmul.f32.gmra.mxu0 %v1178
        %v5859 = vpop.f32.mrf.mxu0
        %v5860 = vadd.f32 0.0, %v5859
        %5861 = vmatmul.f32.gmra.mxu0 %v1181
        %v5862 = vpop.f32.mrf.mxu0
        %v5863 = vadd.f32 0.0, %v5862
        %5864 = vmatmul.f32.gmra.mxu0 %v1184
        %v5865 = vpop.f32.mrf.mxu0
        %v5866 = vadd.f32 0.0, %v5865
        %5867 = vmatmul.f32.gmra.mxu0 %v1187
        %v5868 = vpop.f32.mrf.mxu0
        %v5869 = vadd.f32 0.0, %v5868
        %5870 = vmatmul.f32.gmra.mxu0 %v1190
        %v5871 = vpop.f32.mrf.mxu0
        %v5872 = vadd.f32 0.0, %v5871
        %5873 = vmatmul.f32.gmra.mxu0 %v1193
        %v5874 = vpop.f32.mrf.mxu0
        %v5875 = vadd.f32 0.0, %v5874
        %5876 = vmatmul.f32.gmra.mxu0 %v1196
        %v5877 = vpop.f32.mrf.mxu0
        %v5878 = vadd.f32 0.0, %v5877
        %5879 = vmatmul.f32.gmra.mxu0 %v1199
        %v5880 = vpop.f32.mrf.mxu0
        %v5881 = vadd.f32 0.0, %v5880
        %5882 = vmatmul.f32.gmra.mxu0 %v1202
        %v5883 = vpop.f32.mrf.mxu0
        %v5884 = vadd.f32 0.0, %v5883
        %5885 = vmatmul.f32.gmra.mxu0 %v1205
        %v5886 = vpop.f32.mrf.mxu0
        %v5887 = vadd.f32 0.0, %v5886
        %5888 = vmatmul.f32.gmra.mxu0 %v1208
        %v5889 = vpop.f32.mrf.mxu0
        %v5890 = vadd.f32 0.0, %v5889
        %5891 = vmatmul.f32.gmra.mxu0 %v1211
        %v5892 = vpop.f32.mrf.mxu0
        %v5893 = vadd.f32 0.0, %v5892
        %5894 = vmatmul.f32.gmra.mxu0 %v1214
        %v5895 = vpop.f32.mrf.mxu0
        %v5896 = vadd.f32 0.0, %v5895
        %5897 = vmatmul.f32.gmra.mxu0 %v1217
        %v5898 = vpop.f32.mrf.mxu0
        %v5899 = vadd.f32 0.0, %v5898
        %5900 = vmatmul.f32.gmra.mxu0 %v1220
        %v5901 = vpop.f32.mrf.mxu0
        %v5902 = vadd.f32 0.0, %v5901
        %5903 = vmatmul.f32.gmra.mxu0 %v1223
        %v5904 = vpop.f32.mrf.mxu0
        %v5905 = vadd.f32 0.0, %v5904
        %5906 = vmatmul.f32.gmra.mxu0 %v1226
        %v5907 = vpop.f32.mrf.mxu0
        %v5908 = vadd.f32 0.0, %v5907
        %5909 = vmatmul.f32.gmra.mxu0 %v1229
        %v5910 = vpop.f32.mrf.mxu0
        %v5911 = vadd.f32 0.0, %v5910
        %5912 = vmatmul.f32.gmra.mxu0 %v1232
        %v5913 = vpop.f32.mrf.mxu0
        %v5914 = vadd.f32 0.0, %v5913
        %5915 = vmatmul.f32.gmra.mxu0 %v1235
        %v5916 = vpop.f32.mrf.mxu0
        %v5917 = vadd.f32 0.0, %v5916
        %5918 = vmatmul.f32.gmra.mxu0 %v1238
        %v5919 = vpop.f32.mrf.mxu0
        %v5920 = vadd.f32 0.0, %v5919
        %5921 = vmatmul.f32.gmra.mxu0 %v1241
        %v5922 = vpop.f32.mrf.mxu0
        %v5923 = vadd.f32 0.0, %v5922
        %5924 = vmatmul.f32.gmra.mxu0 %v1244
        %v5925 = vpop.f32.mrf.mxu0
        %v5926 = vadd.f32 0.0, %v5925
        %5927 = vmatmul.f32.gmra.mxu0 %v1247
        %v5928 = vpop.f32.mrf.mxu0
        %v5929 = vadd.f32 0.0, %v5928
        %5930 = vmatmul.f32.gmra.mxu0 %v1250
        %v5931 = vpop.f32.mrf.mxu0
        %v5932 = vadd.f32 0.0, %v5931
        %5933 = vmatmul.f32.gmra.mxu0 %v1253
        %v5934 = vpop.f32.mrf.mxu0
        %v5935 = vadd.f32 0.0, %v5934
        %5936 = vmatmul.f32.gmra.mxu0 %v1256
        %v5937 = vpop.f32.mrf.mxu0
        %v5938 = vadd.f32 0.0, %v5937
        %5939 = vmatmul.f32.gmra.mxu0 %v1259
        %v5940 = vpop.f32.mrf.mxu0
        %v5941 = vadd.f32 0.0, %v5940
        %5942 = vmatmul.f32.gmra.mxu0 %v1262
        %v5943 = vpop.f32.mrf.mxu0
        %v5944 = vadd.f32 0.0, %v5943
        %5945 = vmatmul.f32.gmra.mxu0 %v1265
        %v5946 = vpop.f32.mrf.mxu0
        %v5947 = vadd.f32 0.0, %v5946
        %5948 = vmatmul.f32.gmra.mxu0 %v1268
        %v5949 = vpop.f32.mrf.mxu0
        %v5950 = vadd.f32 0.0, %v5949
        %5951 = vmatmul.f32.gmra.mxu0 %v1271
        %v5952 = vpop.f32.mrf.mxu0
        %v5953 = vadd.f32 0.0, %v5952
        %5954 = vmatmul.f32.gmra.mxu0 %v1274
        %v5955 = vpop.f32.mrf.mxu0
        %v5956 = vadd.f32 0.0, %v5955
        %5957 = vmatmul.f32.gmra.mxu0 %v1277
        %v5958 = vpop.f32.mrf.mxu0
        %v5959 = vadd.f32 0.0, %v5958
        %5960 = vmatmul.f32.gmra.mxu0 %v1280
        %v5961 = vpop.f32.mrf.mxu0
        %v5962 = vadd.f32 0.0, %v5961
        %5963 = vmatmul.f32.gmra.mxu0 %v1283
        %v5964 = vpop.f32.mrf.mxu0
        %v5965 = vadd.f32 0.0, %v5964
        %5966 = vmatmul.f32.gmra.mxu0 %v1286
        %v5967 = vpop.f32.mrf.mxu0
        %v5968 = vadd.f32 0.0, %v5967
        %5969 = vmatmul.f32.gmra.mxu0 %v1289
        %v5970 = vpop.f32.mrf.mxu0
        %v5971 = vadd.f32 0.0, %v5970
        %5972 = vmatmul.f32.gmra.mxu0 %v1292
        %v5973 = vpop.f32.mrf.mxu0
        %v5974 = vadd.f32 0.0, %v5973
        %5975 = vmatmul.f32.gmra.mxu0 %v1295
        %v5976 = vpop.f32.mrf.mxu0
        %v5977 = vadd.f32 0.0, %v5976
        %5978 = vmatmul.f32.gmra.mxu0 %v1298
        %v5979 = vpop.f32.mrf.mxu0
        %v5980 = vadd.f32 0.0, %v5979
        %5981 = vmatmul.f32.gmra.mxu0 %v1301
        %v5982 = vpop.f32.mrf.mxu0
        %v5983 = vadd.f32 0.0, %v5982
        %5984 = vmatmul.f32.gmra.mxu0 %v1304
        %v5985 = vpop.f32.mrf.mxu0
        %v5986 = vadd.f32 0.0, %v5985
        %5987 = vmatmul.f32.gmra.mxu0 %v1307
        %v5988 = vpop.f32.mrf.mxu0
        %v5989 = vadd.f32 0.0, %v5988
        %5990 = vmatmul.f32.gmra.mxu0 %v1310
        %v5991 = vpop.f32.mrf.mxu0
        %v5992 = vadd.f32 0.0, %v5991
        %5993 = vmatmul.f32.gmra.mxu0 %v1313
        %v5994 = vpop.f32.mrf.mxu0
        %v5995 = vadd.f32 0.0, %v5994
        %5996 = vmatmul.f32.gmra.mxu0 %v1316
        %v5997 = vpop.f32.mrf.mxu0
        %v5998 = vadd.f32 0.0, %v5997
        %5999 = vmatmul.f32.gmra.mxu0 %v1319
        %v6000 = vpop.f32.mrf.mxu0
        %v6001 = vadd.f32 0.0, %v6000
        %6002 = vmatmul.f32.gmra.mxu0 %v1322
        %v6003 = vpop.f32.mrf.mxu0
        %v6004 = vadd.f32 0.0, %v6003
        %6005 = vmatmul.f32.gmra.mxu0 %v1325
        %v6006 = vpop.f32.mrf.mxu0
        %v6007 = vadd.f32 0.0, %v6006
        %6008 = vmatmul.f32.gmra.mxu0 %v1328
        %v6009 = vpop.f32.mrf.mxu0
        %v6010 = vadd.f32 0.0, %v6009
        %6011 = vmatmul.f32.gmra.mxu0 %v1331
        %v6012 = vpop.f32.mrf.mxu0
        %v6013 = vadd.f32 0.0, %v6012
        %6014 = vmatmul.f32.gmra.mxu0 %v1334
        %v6015 = vpop.f32.mrf.mxu0
        %v6016 = vadd.f32 0.0, %v6015
        %6017 = vmatmul.f32.gmra.mxu0 %v1337
        %v6018 = vpop.f32.mrf.mxu0
        %v6019 = vadd.f32 0.0, %v6018
        %6020 = vmatmul.f32.gmra.mxu0 %v1340
        %v6021 = vpop.f32.mrf.mxu0
        %v6022 = vadd.f32 0.0, %v6021
        %6023 = vmatmul.f32.gmra.mxu0 %v3998
        %v6024 = vpop.f32.mrf.mxu0
        %v6025 = vadd.f32 0.0, %v6024
        %6026 = vmatmul.f32.gmra.mxu0 %v4001
        %v6027 = vpop.f32.mrf.mxu0
        %v6028 = vadd.f32 0.0, %v6027
        %6029 = vmatmul.f32.gmra.mxu0 %v4004
        %v6030 = vpop.f32.mrf.mxu0
        %v6031 = vadd.f32 0.0, %v6030
        %6032 = vmatmul.f32.gmra.mxu0 %v4007
        %v6033 = vpop.f32.mrf.mxu0
        %v6034 = vadd.f32 0.0, %v6033
        %6035 = vmatmul.f32.gmra.mxu0 %v5636
        %v6036 = vpop.f32.mrf.mxu0
        %v6037 = vadd.f32 0.0, %v6036
        %6038 = vmatmul.f32.gmra.mxu0 %v5639
        %v6039 = vpop.f32.mrf.mxu0
        %v6040 = vadd.f32 0.0, %v6039
        %6041 = vmatmul.f32.gmra.mxu0 %v5642
        %v6042 = vpop.f32.mrf.mxu0
        %v6043 = vadd.f32 0.0, %v6042
        %6044 = vmatmul.f32.gmra.mxu0 %v5645
        %v6045 = vpop.f32.mrf.mxu0
        %v6046 = vadd.f32 0.0, %v6045
        %6047 = vdwg.mxu0
        %v6048 = vadd.f32 %v5502, %v5665
        %v6049 = vadd.f32 %v5503, %v5668
        %v6050 = vadd.f32 %v5504, %v5671
        %v6051 = vadd.f32 %v5505, %v5674
        %v6052 = vadd.f32 %v5506, %v5677
        %v6053 = vadd.f32 %v5507, %v5680
        %v6054 = vadd.f32 %v5508, %v5683
        %v6055 = vadd.f32 %v5509, %v5686
        %v6056 = vadd.f32 %v5510, %v5689
        %v6057 = vadd.f32 %v5511, %v5692
        %v6058 = vadd.f32 %v5512, %v5695
        %v6059 = vadd.f32 %v5513, %v5698
        %v6060 = vadd.f32 %v5514, %v5701
        %v6061 = vadd.f32 %v5515, %v5704
        %v6062 = vadd.f32 %v5516, %v5707
        %v6063 = vadd.f32 %v5517, %v5710
        %v6064 = vadd.f32 %v5518, %v5713
        %v6065 = vadd.f32 %v5519, %v5716
        %v6066 = vadd.f32 %v5520, %v5719
        %v6067 = vadd.f32 %v5521, %v5722
        %v6068 = vadd.f32 %v5522, %v5725
        %v6069 = vadd.f32 %v5523, %v5728
        %v6070 = vadd.f32 %v5524, %v5731
        %v6071 = vadd.f32 %v5525, %v5734
        %v6072 = vadd.f32 %v5526, %v5737
        %v6073 = vadd.f32 %v5527, %v5740
        %v6074 = vadd.f32 %v5528, %v5743
        %v6075 = vadd.f32 %v5529, %v5746
        %v6076 = vadd.f32 %v5530, %v5749
        %v6077 = vadd.f32 %v5531, %v5752
        %v6078 = vadd.f32 %v5532, %v5755
        %v6079 = vadd.f32 %v5533, %v5758
        %v6080 = vadd.f32 %v5534, %v5761
        %v6081 = vadd.f32 %v5535, %v5764
        %v6082 = vadd.f32 %v5536, %v5767
        %v6083 = vadd.f32 %v5537, %v5770
        %v6084 = vadd.f32 %v5538, %v5773
        %v6085 = vadd.f32 %v5539, %v5776
        %v6086 = vadd.f32 %v5540, %v5779
        %v6087 = vadd.f32 %v5541, %v5782
        %v6088 = vadd.f32 %v5542, %v5785
        %v6089 = vadd.f32 %v5543, %v5788
        %v6090 = vadd.f32 %v5544, %v5791
        %v6091 = vadd.f32 %v5545, %v5794
        %v6092 = vadd.f32 %v5546, %v5797
        %v6093 = vadd.f32 %v5547, %v5800
        %v6094 = vadd.f32 %v5548, %v5803
        %v6095 = vadd.f32 %v5549, %v5806
        %v6096 = vadd.f32 %v5550, %v5809
        %v6097 = vadd.f32 %v5551, %v5812
        %v6098 = vadd.f32 %v5552, %v5815
        %v6099 = vadd.f32 %v5553, %v5818
        %v6100 = vadd.f32 %v5554, %v5821
        %v6101 = vadd.f32 %v5555, %v5824
        %v6102 = vadd.f32 %v5556, %v5827
        %v6103 = vadd.f32 %v5557, %v5830
        %v6104 = vadd.f32 %v5558, %v5833
        %v6105 = vadd.f32 %v5559, %v5836
        %v6106 = vadd.f32 %v5560, %v5839
        %v6107 = vadd.f32 %v5561, %v5842
        %v6108 = vadd.f32 %v5562, %v5845
        %v6109 = vadd.f32 %v5563, %v5848
        %v6110 = vadd.f32 %v5564, %v5851
        %v6111 = vadd.f32 %v5565, %v5854
        %v6112 = vadd.f32 %v5566, %v5857
        %v6113 = vadd.f32 %v5567, %v5860
        %v6114 = vadd.f32 %v5568, %v5863
        %v6115 = vadd.f32 %v5569, %v5866
        %v6116 = vadd.f32 %v5570, %v5869
        %v6117 = vadd.f32 %v5571, %v5872
        %v6118 = vadd.f32 %v5572, %v5875
        %v6119 = vadd.f32 %v5573, %v5878
        %v6120 = vadd.f32 %v5574, %v5881
        %v6121 = vadd.f32 %v5575, %v5884
        %v6122 = vadd.f32 %v5576, %v5887
        %v6123 = vadd.f32 %v5577, %v5890
        %v6124 = vadd.f32 %v5578, %v5893
        %v6125 = vadd.f32 %v5579, %v5896
        %v6126 = vadd.f32 %v5580, %v5899
        %v6127 = vadd.f32 %v5581, %v5902
        %v6128 = vadd.f32 %v5582, %v5905
        %v6129 = vadd.f32 %v5583, %v5908
        %v6130 = vadd.f32 %v5584, %v5911
        %v6131 = vadd.f32 %v5585, %v5914
        %v6132 = vadd.f32 %v5586, %v5917
        %v6133 = vadd.f32 %v5587, %v5920
        %v6134 = vadd.f32 %v5588, %v5923
        %v6135 = vadd.f32 %v5589, %v5926
        %v6136 = vadd.f32 %v5590, %v5929
        %v6137 = vadd.f32 %v5591, %v5932
        %v6138 = vadd.f32 %v5592, %v5935
        %v6139 = vadd.f32 %v5593, %v5938
        %v6140 = vadd.f32 %v5594, %v5941
        %v6141 = vadd.f32 %v5595, %v5944
        %v6142 = vadd.f32 %v5596, %v5947
        %v6143 = vadd.f32 %v5597, %v5950
        %v6144 = vadd.f32 %v5598, %v5953
        %v6145 = vadd.f32 %v5599, %v5956
        %v6146 = vadd.f32 %v5600, %v5959
        %v6147 = vadd.f32 %v5601, %v5962
        %v6148 = vadd.f32 %v5602, %v5965
        %v6149 = vadd.f32 %v5603, %v5968
        %v6150 = vadd.f32 %v5604, %v5971
        %v6151 = vadd.f32 %v5605, %v5974
        %v6152 = vadd.f32 %v5606, %v5977
        %v6153 = vadd.f32 %v5607, %v5980
        %v6154 = vadd.f32 %v5608, %v5983
        %v6155 = vadd.f32 %v5609, %v5986
        %v6156 = vadd.f32 %v5610, %v5989
        %v6157 = vadd.f32 %v5611, %v5992
        %v6158 = vadd.f32 %v5612, %v5995
        %v6159 = vadd.f32 %v5613, %v5998
        %v6160 = vadd.f32 %v5614, %v6001
        %v6161 = vadd.f32 %v5615, %v6004
        %v6162 = vadd.f32 %v5616, %v6007
        %v6163 = vadd.f32 %v5617, %v6010
        %v6164 = vadd.f32 %v5618, %v6013
        %v6165 = vadd.f32 %v5619, %v6016
        %v6166 = vadd.f32 %v5620, %v6019
        %v6167 = vadd.f32 %v5621, %v6022
        %v6168 = vadd.f32 %v5622, %v6025
        %v6169 = vadd.f32 %v5623, %v6028
        %v6170 = vadd.f32 %v5624, %v6031
        %v6171 = vadd.f32 %v5625, %v6034
        %v6172 = vadd.f32 %v5626, %v6037
        %v6173 = vadd.f32 %v5627, %v6040
        %v6174 = vadd.f32 %v5628, %v6043
        %v6175 = vadd.f32 %v5629, %v6046
        %s6176 = scalar_lea.vmem %s1, 256
        %v6177 = vld [vmem:[%s6176] sm:$0xff]
        %v6178 = vld [vmem:[%s6176 + $0x8] sm:$0xff]
        %v6179 = vld [vmem:[%s6176 + $0x10] sm:$0xff]
        %v6180 = vld [vmem:[%s6176 + $0x18] sm:$0xff]
        %v6182 = vsel %vm957, %v944, 0
        %v6185 = vsel %vm957, %v945, 0
        %v6188 = vsel %vm957, %v946, 0
        %v6191 = vsel %vm957, %v947, 0
        %6193 = vmatpush.msra.mxu0 0.0
        %6194 = vmatpush.msra.mxu0 0.0
        %6195 = vmatpush.msra.mxu0 0.0
        %6196 = vmatpush.msra.mxu0 0.0
        %6197 = vmatpush.msra.mxu0 0.0
        %6198 = vmatpush.msra.mxu0 0.0
        %6199 = vmatpush.msra.mxu0 0.0
        %6200 = vmatpush.msra.mxu0 0.0
        %6201 = vmatpush.msra.mxu0 0.0
        %6202 = vmatpush.msra.mxu0 0.0
        %6203 = vmatpush.msra.mxu0 0.0
        %6204 = vmatpush.msra.mxu0 0.0
        %6205 = vmatpush.msra.mxu0 %v6180
        %6206 = vmatpush.msra.mxu0 %v6179
        %6207 = vmatpush.msra.mxu0 %v6178
        %6208 = vmatpush.msra.mxu0 %v6177
        %6209 = vmatmul.f32.gmra.mxu0 %v2558
        %v6210 = vpop.f32.mrf.mxu0
        %v6211 = vadd.f32 0.0, %v6210
        %6212 = vmatmul.f32.gmra.mxu0 %v2561
        %v6213 = vpop.f32.mrf.mxu0
        %v6214 = vadd.f32 0.0, %v6213
        %6215 = vmatmul.f32.gmra.mxu0 %v2564
        %v6216 = vpop.f32.mrf.mxu0
        %v6217 = vadd.f32 0.0, %v6216
        %6218 = vmatmul.f32.gmra.mxu0 %v2567
        %v6219 = vpop.f32.mrf.mxu0
        %v6220 = vadd.f32 0.0, %v6219
        %6221 = vmatmul.f32.gmra.mxu0 %v2570
        %v6222 = vpop.f32.mrf.mxu0
        %v6223 = vadd.f32 0.0, %v6222
        %6224 = vmatmul.f32.gmra.mxu0 %v2573
        %v6225 = vpop.f32.mrf.mxu0
        %v6226 = vadd.f32 0.0, %v6225
        %6227 = vmatmul.f32.gmra.mxu0 %v2576
        %v6228 = vpop.f32.mrf.mxu0
        %v6229 = vadd.f32 0.0, %v6228
        %6230 = vmatmul.f32.gmra.mxu0 %v2579
        %v6231 = vpop.f32.mrf.mxu0
        %v6232 = vadd.f32 0.0, %v6231
        %6233 = vmatmul.f32.gmra.mxu0 %v2582
        %v6234 = vpop.f32.mrf.mxu0
        %v6235 = vadd.f32 0.0, %v6234
        %6236 = vmatmul.f32.gmra.mxu0 %v2585
        %v6237 = vpop.f32.mrf.mxu0
        %v6238 = vadd.f32 0.0, %v6237
        %6239 = vmatmul.f32.gmra.mxu0 %v2588
        %v6240 = vpop.f32.mrf.mxu0
        %v6241 = vadd.f32 0.0, %v6240
        %6242 = vmatmul.f32.gmra.mxu0 %v2591
        %v6243 = vpop.f32.mrf.mxu0
        %v6244 = vadd.f32 0.0, %v6243
        %6245 = vmatmul.f32.gmra.mxu0 %v2594
        %v6246 = vpop.f32.mrf.mxu0
        %v6247 = vadd.f32 0.0, %v6246
        %6248 = vmatmul.f32.gmra.mxu0 %v2597
        %v6249 = vpop.f32.mrf.mxu0
        %v6250 = vadd.f32 0.0, %v6249
        %6251 = vmatmul.f32.gmra.mxu0 %v2600
        %v6252 = vpop.f32.mrf.mxu0
        %v6253 = vadd.f32 0.0, %v6252
        %6254 = vmatmul.f32.gmra.mxu0 %v2603
        %v6255 = vpop.f32.mrf.mxu0
        %v6256 = vadd.f32 0.0, %v6255
        %6257 = vmatmul.f32.gmra.mxu0 %v2606
        %v6258 = vpop.f32.mrf.mxu0
        %v6259 = vadd.f32 0.0, %v6258
        %6260 = vmatmul.f32.gmra.mxu0 %v2609
        %v6261 = vpop.f32.mrf.mxu0
        %v6262 = vadd.f32 0.0, %v6261
        %6263 = vmatmul.f32.gmra.mxu0 %v2612
        %v6264 = vpop.f32.mrf.mxu0
        %v6265 = vadd.f32 0.0, %v6264
        %6266 = vmatmul.f32.gmra.mxu0 %v2615
        %v6267 = vpop.f32.mrf.mxu0
        %v6268 = vadd.f32 0.0, %v6267
        %6269 = vmatmul.f32.gmra.mxu0 %v2618
        %v6270 = vpop.f32.mrf.mxu0
        %v6271 = vadd.f32 0.0, %v6270
        %6272 = vmatmul.f32.gmra.mxu0 %v2621
        %v6273 = vpop.f32.mrf.mxu0
        %v6274 = vadd.f32 0.0, %v6273
        %6275 = vmatmul.f32.gmra.mxu0 %v2624
        %v6276 = vpop.f32.mrf.mxu0
        %v6277 = vadd.f32 0.0, %v6276
        %6278 = vmatmul.f32.gmra.mxu0 %v2627
        %v6279 = vpop.f32.mrf.mxu0
        %v6280 = vadd.f32 0.0, %v6279
        %6281 = vmatmul.f32.gmra.mxu0 %v2630
        %v6282 = vpop.f32.mrf.mxu0
        %v6283 = vadd.f32 0.0, %v6282
        %6284 = vmatmul.f32.gmra.mxu0 %v2633
        %v6285 = vpop.f32.mrf.mxu0
        %v6286 = vadd.f32 0.0, %v6285
        %6287 = vmatmul.f32.gmra.mxu0 %v2636
        %v6288 = vpop.f32.mrf.mxu0
        %v6289 = vadd.f32 0.0, %v6288
        %6290 = vmatmul.f32.gmra.mxu0 %v2639
        %v6291 = vpop.f32.mrf.mxu0
        %v6292 = vadd.f32 0.0, %v6291
        %6293 = vmatmul.f32.gmra.mxu0 %v2642
        %v6294 = vpop.f32.mrf.mxu0
        %v6295 = vadd.f32 0.0, %v6294
        %6296 = vmatmul.f32.gmra.mxu0 %v2645
        %v6297 = vpop.f32.mrf.mxu0
        %v6298 = vadd.f32 0.0, %v6297
        %6299 = vmatmul.f32.gmra.mxu0 %v2648
        %v6300 = vpop.f32.mrf.mxu0
        %v6301 = vadd.f32 0.0, %v6300
        %6302 = vmatmul.f32.gmra.mxu0 %v2651
        %v6303 = vpop.f32.mrf.mxu0
        %v6304 = vadd.f32 0.0, %v6303
        %6305 = vmatmul.f32.gmra.mxu0 %v2654
        %v6306 = vpop.f32.mrf.mxu0
        %v6307 = vadd.f32 0.0, %v6306
        %6308 = vmatmul.f32.gmra.mxu0 %v2657
        %v6309 = vpop.f32.mrf.mxu0
        %v6310 = vadd.f32 0.0, %v6309
        %6311 = vmatmul.f32.gmra.mxu0 %v2660
        %v6312 = vpop.f32.mrf.mxu0
        %v6313 = vadd.f32 0.0, %v6312
        %6314 = vmatmul.f32.gmra.mxu0 %v2663
        %v6315 = vpop.f32.mrf.mxu0
        %v6316 = vadd.f32 0.0, %v6315
        %6317 = vmatmul.f32.gmra.mxu0 %v2666
        %v6318 = vpop.f32.mrf.mxu0
        %v6319 = vadd.f32 0.0, %v6318
        %6320 = vmatmul.f32.gmra.mxu0 %v2669
        %v6321 = vpop.f32.mrf.mxu0
        %v6322 = vadd.f32 0.0, %v6321
        %6323 = vmatmul.f32.gmra.mxu0 %v2672
        %v6324 = vpop.f32.mrf.mxu0
        %v6325 = vadd.f32 0.0, %v6324
        %6326 = vmatmul.f32.gmra.mxu0 %v2675
        %v6327 = vpop.f32.mrf.mxu0
        %v6328 = vadd.f32 0.0, %v6327
        %6329 = vmatmul.f32.gmra.mxu0 %v2678
        %v6330 = vpop.f32.mrf.mxu0
        %v6331 = vadd.f32 0.0, %v6330
        %6332 = vmatmul.f32.gmra.mxu0 %v2681
        %v6333 = vpop.f32.mrf.mxu0
        %v6334 = vadd.f32 0.0, %v6333
        %6335 = vmatmul.f32.gmra.mxu0 %v2684
        %v6336 = vpop.f32.mrf.mxu0
        %v6337 = vadd.f32 0.0, %v6336
        %6338 = vmatmul.f32.gmra.mxu0 %v2687
        %v6339 = vpop.f32.mrf.mxu0
        %v6340 = vadd.f32 0.0, %v6339
        %6341 = vmatmul.f32.gmra.mxu0 %v2690
        %v6342 = vpop.f32.mrf.mxu0
        %v6343 = vadd.f32 0.0, %v6342
        %6344 = vmatmul.f32.gmra.mxu0 %v2693
        %v6345 = vpop.f32.mrf.mxu0
        %v6346 = vadd.f32 0.0, %v6345
        %6347 = vmatmul.f32.gmra.mxu0 %v2696
        %v6348 = vpop.f32.mrf.mxu0
        %v6349 = vadd.f32 0.0, %v6348
        %6350 = vmatmul.f32.gmra.mxu0 %v2699
        %v6351 = vpop.f32.mrf.mxu0
        %v6352 = vadd.f32 0.0, %v6351
        %6353 = vmatmul.f32.gmra.mxu0 %v2702
        %v6354 = vpop.f32.mrf.mxu0
        %v6355 = vadd.f32 0.0, %v6354
        %6356 = vmatmul.f32.gmra.mxu0 %v2705
        %v6357 = vpop.f32.mrf.mxu0
        %v6358 = vadd.f32 0.0, %v6357
        %6359 = vmatmul.f32.gmra.mxu0 %v2708
        %v6360 = vpop.f32.mrf.mxu0
        %v6361 = vadd.f32 0.0, %v6360
        %6362 = vmatmul.f32.gmra.mxu0 %v2711
        %v6363 = vpop.f32.mrf.mxu0
        %v6364 = vadd.f32 0.0, %v6363
        %6365 = vmatmul.f32.gmra.mxu0 %v2714
        %v6366 = vpop.f32.mrf.mxu0
        %v6367 = vadd.f32 0.0, %v6366
        %6368 = vmatmul.f32.gmra.mxu0 %v2717
        %v6369 = vpop.f32.mrf.mxu0
        %v6370 = vadd.f32 0.0, %v6369
        %6371 = vmatmul.f32.gmra.mxu0 %v2720
        %v6372 = vpop.f32.mrf.mxu0
        %v6373 = vadd.f32 0.0, %v6372
        %6374 = vmatmul.f32.gmra.mxu0 %v2723
        %v6375 = vpop.f32.mrf.mxu0
        %v6376 = vadd.f32 0.0, %v6375
        %6377 = vmatmul.f32.gmra.mxu0 %v2726
        %v6378 = vpop.f32.mrf.mxu0
        %v6379 = vadd.f32 0.0, %v6378
        %6380 = vmatmul.f32.gmra.mxu0 %v2729
        %v6381 = vpop.f32.mrf.mxu0
        %v6382 = vadd.f32 0.0, %v6381
        %6383 = vmatmul.f32.gmra.mxu0 %v2732
        %v6384 = vpop.f32.mrf.mxu0
        %v6385 = vadd.f32 0.0, %v6384
        %6386 = vmatmul.f32.gmra.mxu0 %v2735
        %v6387 = vpop.f32.mrf.mxu0
        %v6388 = vadd.f32 0.0, %v6387
        %6389 = vmatmul.f32.gmra.mxu0 %v2738
        %v6390 = vpop.f32.mrf.mxu0
        %v6391 = vadd.f32 0.0, %v6390
        %6392 = vmatmul.f32.gmra.mxu0 %v2741
        %v6393 = vpop.f32.mrf.mxu0
        %v6394 = vadd.f32 0.0, %v6393
        %6395 = vmatmul.f32.gmra.mxu0 %v2744
        %v6396 = vpop.f32.mrf.mxu0
        %v6397 = vadd.f32 0.0, %v6396
        %6398 = vmatmul.f32.gmra.mxu0 %v2747
        %v6399 = vpop.f32.mrf.mxu0
        %v6400 = vadd.f32 0.0, %v6399
        %6401 = vmatmul.f32.gmra.mxu0 %v2750
        %v6402 = vpop.f32.mrf.mxu0
        %v6403 = vadd.f32 0.0, %v6402
        %6404 = vmatmul.f32.gmra.mxu0 %v2753
        %v6405 = vpop.f32.mrf.mxu0
        %v6406 = vadd.f32 0.0, %v6405
        %6407 = vmatmul.f32.gmra.mxu0 %v2756
        %v6408 = vpop.f32.mrf.mxu0
        %v6409 = vadd.f32 0.0, %v6408
        %6410 = vmatmul.f32.gmra.mxu0 %v2759
        %v6411 = vpop.f32.mrf.mxu0
        %v6412 = vadd.f32 0.0, %v6411
        %6413 = vmatmul.f32.gmra.mxu0 %v2762
        %v6414 = vpop.f32.mrf.mxu0
        %v6415 = vadd.f32 0.0, %v6414
        %6416 = vmatmul.f32.gmra.mxu0 %v2765
        %v6417 = vpop.f32.mrf.mxu0
        %v6418 = vadd.f32 0.0, %v6417
        %6419 = vmatmul.f32.gmra.mxu0 %v2768
        %v6420 = vpop.f32.mrf.mxu0
        %v6421 = vadd.f32 0.0, %v6420
        %6422 = vmatmul.f32.gmra.mxu0 %v2771
        %v6423 = vpop.f32.mrf.mxu0
        %v6424 = vadd.f32 0.0, %v6423
        %6425 = vmatmul.f32.gmra.mxu0 %v2774
        %v6426 = vpop.f32.mrf.mxu0
        %v6427 = vadd.f32 0.0, %v6426
        %6428 = vmatmul.f32.gmra.mxu0 %v2777
        %v6429 = vpop.f32.mrf.mxu0
        %v6430 = vadd.f32 0.0, %v6429
        %6431 = vmatmul.f32.gmra.mxu0 %v2780
        %v6432 = vpop.f32.mrf.mxu0
        %v6433 = vadd.f32 0.0, %v6432
        %6434 = vmatmul.f32.gmra.mxu0 %v2783
        %v6435 = vpop.f32.mrf.mxu0
        %v6436 = vadd.f32 0.0, %v6435
        %6437 = vmatmul.f32.gmra.mxu0 %v2786
        %v6438 = vpop.f32.mrf.mxu0
        %v6439 = vadd.f32 0.0, %v6438
        %6440 = vmatmul.f32.gmra.mxu0 %v2789
        %v6441 = vpop.f32.mrf.mxu0
        %v6442 = vadd.f32 0.0, %v6441
        %6443 = vmatmul.f32.gmra.mxu0 %v2792
        %v6444 = vpop.f32.mrf.mxu0
        %v6445 = vadd.f32 0.0, %v6444
        %6446 = vmatmul.f32.gmra.mxu0 %v2795
        %v6447 = vpop.f32.mrf.mxu0
        %v6448 = vadd.f32 0.0, %v6447
        %6449 = vmatmul.f32.gmra.mxu0 %v2798
        %v6450 = vpop.f32.mrf.mxu0
        %v6451 = vadd.f32 0.0, %v6450
        %6452 = vmatmul.f32.gmra.mxu0 %v2801
        %v6453 = vpop.f32.mrf.mxu0
        %v6454 = vadd.f32 0.0, %v6453
        %6455 = vmatmul.f32.gmra.mxu0 %v2804
        %v6456 = vpop.f32.mrf.mxu0
        %v6457 = vadd.f32 0.0, %v6456
        %6458 = vmatmul.f32.gmra.mxu0 %v2807
        %v6459 = vpop.f32.mrf.mxu0
        %v6460 = vadd.f32 0.0, %v6459
        %6461 = vmatmul.f32.gmra.mxu0 %v2810
        %v6462 = vpop.f32.mrf.mxu0
        %v6463 = vadd.f32 0.0, %v6462
        %6464 = vmatmul.f32.gmra.mxu0 %v2813
        %v6465 = vpop.f32.mrf.mxu0
        %v6466 = vadd.f32 0.0, %v6465
        %6467 = vmatmul.f32.gmra.mxu0 %v2816
        %v6468 = vpop.f32.mrf.mxu0
        %v6469 = vadd.f32 0.0, %v6468
        %6470 = vmatmul.f32.gmra.mxu0 %v2819
        %v6471 = vpop.f32.mrf.mxu0
        %v6472 = vadd.f32 0.0, %v6471
        %6473 = vmatmul.f32.gmra.mxu0 %v2822
        %v6474 = vpop.f32.mrf.mxu0
        %v6475 = vadd.f32 0.0, %v6474
        %6476 = vmatmul.f32.gmra.mxu0 %v2825
        %v6477 = vpop.f32.mrf.mxu0
        %v6478 = vadd.f32 0.0, %v6477
        %6479 = vmatmul.f32.gmra.mxu0 %v2828
        %v6480 = vpop.f32.mrf.mxu0
        %v6481 = vadd.f32 0.0, %v6480
        %6482 = vmatmul.f32.gmra.mxu0 %v2831
        %v6483 = vpop.f32.mrf.mxu0
        %v6484 = vadd.f32 0.0, %v6483
        %6485 = vmatmul.f32.gmra.mxu0 %v2834
        %v6486 = vpop.f32.mrf.mxu0
        %v6487 = vadd.f32 0.0, %v6486
        %6488 = vmatmul.f32.gmra.mxu0 %v2837
        %v6489 = vpop.f32.mrf.mxu0
        %v6490 = vadd.f32 0.0, %v6489
        %6491 = vmatmul.f32.gmra.mxu0 %v2840
        %v6492 = vpop.f32.mrf.mxu0
        %v6493 = vadd.f32 0.0, %v6492
        %6494 = vmatmul.f32.gmra.mxu0 %v2843
        %v6495 = vpop.f32.mrf.mxu0
        %v6496 = vadd.f32 0.0, %v6495
        %6497 = vmatmul.f32.gmra.mxu0 %v2846
        %v6498 = vpop.f32.mrf.mxu0
        %v6499 = vadd.f32 0.0, %v6498
        %6500 = vmatmul.f32.gmra.mxu0 %v2849
        %v6501 = vpop.f32.mrf.mxu0
        %v6502 = vadd.f32 0.0, %v6501
        %6503 = vmatmul.f32.gmra.mxu0 %v2852
        %v6504 = vpop.f32.mrf.mxu0
        %v6505 = vadd.f32 0.0, %v6504
        %6506 = vmatmul.f32.gmra.mxu0 %v2855
        %v6507 = vpop.f32.mrf.mxu0
        %v6508 = vadd.f32 0.0, %v6507
        %6509 = vmatmul.f32.gmra.mxu0 %v2858
        %v6510 = vpop.f32.mrf.mxu0
        %v6511 = vadd.f32 0.0, %v6510
        %6512 = vmatmul.f32.gmra.mxu0 %v2861
        %v6513 = vpop.f32.mrf.mxu0
        %v6514 = vadd.f32 0.0, %v6513
        %6515 = vmatmul.f32.gmra.mxu0 %v2864
        %v6516 = vpop.f32.mrf.mxu0
        %v6517 = vadd.f32 0.0, %v6516
        %6518 = vmatmul.f32.gmra.mxu0 %v2867
        %v6519 = vpop.f32.mrf.mxu0
        %v6520 = vadd.f32 0.0, %v6519
        %6521 = vmatmul.f32.gmra.mxu0 %v2870
        %v6522 = vpop.f32.mrf.mxu0
        %v6523 = vadd.f32 0.0, %v6522
        %6524 = vmatmul.f32.gmra.mxu0 %v2873
        %v6525 = vpop.f32.mrf.mxu0
        %v6526 = vadd.f32 0.0, %v6525
        %6527 = vmatmul.f32.gmra.mxu0 %v2876
        %v6528 = vpop.f32.mrf.mxu0
        %v6529 = vadd.f32 0.0, %v6528
        %6530 = vmatmul.f32.gmra.mxu0 %v2879
        %v6531 = vpop.f32.mrf.mxu0
        %v6532 = vadd.f32 0.0, %v6531
        %6533 = vmatmul.f32.gmra.mxu0 %v2882
        %v6534 = vpop.f32.mrf.mxu0
        %v6535 = vadd.f32 0.0, %v6534
        %6536 = vmatmul.f32.gmra.mxu0 %v2885
        %v6537 = vpop.f32.mrf.mxu0
        %v6538 = vadd.f32 0.0, %v6537
        %6539 = vmatmul.f32.gmra.mxu0 %v2888
        %v6540 = vpop.f32.mrf.mxu0
        %v6541 = vadd.f32 0.0, %v6540
        %6542 = vmatmul.f32.gmra.mxu0 %v2891
        %v6543 = vpop.f32.mrf.mxu0
        %v6544 = vadd.f32 0.0, %v6543
        %6545 = vmatmul.f32.gmra.mxu0 %v2894
        %v6546 = vpop.f32.mrf.mxu0
        %v6547 = vadd.f32 0.0, %v6546
        %6548 = vmatmul.f32.gmra.mxu0 %v2897
        %v6549 = vpop.f32.mrf.mxu0
        %v6550 = vadd.f32 0.0, %v6549
        %6551 = vmatmul.f32.gmra.mxu0 %v2900
        %v6552 = vpop.f32.mrf.mxu0
        %v6553 = vadd.f32 0.0, %v6552
        %6554 = vmatmul.f32.gmra.mxu0 %v2903
        %v6555 = vpop.f32.mrf.mxu0
        %v6556 = vadd.f32 0.0, %v6555
        %6557 = vmatmul.f32.gmra.mxu0 %v2906
        %v6558 = vpop.f32.mrf.mxu0
        %v6559 = vadd.f32 0.0, %v6558
        %6560 = vmatmul.f32.gmra.mxu0 %v2909
        %v6561 = vpop.f32.mrf.mxu0
        %v6562 = vadd.f32 0.0, %v6561
        %6563 = vmatmul.f32.gmra.mxu0 %v2912
        %v6564 = vpop.f32.mrf.mxu0
        %v6565 = vadd.f32 0.0, %v6564
        %6566 = vmatmul.f32.gmra.mxu0 %v2915
        %v6567 = vpop.f32.mrf.mxu0
        %v6568 = vadd.f32 0.0, %v6567
        %6569 = vmatmul.f32.gmra.mxu0 %v4544
        %v6570 = vpop.f32.mrf.mxu0
        %v6571 = vadd.f32 0.0, %v6570
        %6572 = vmatmul.f32.gmra.mxu0 %v4547
        %v6573 = vpop.f32.mrf.mxu0
        %v6574 = vadd.f32 0.0, %v6573
        %6575 = vmatmul.f32.gmra.mxu0 %v4550
        %v6576 = vpop.f32.mrf.mxu0
        %v6577 = vadd.f32 0.0, %v6576
        %6578 = vmatmul.f32.gmra.mxu0 %v4553
        %v6579 = vpop.f32.mrf.mxu0
        %v6580 = vadd.f32 0.0, %v6579
        %6581 = vmatmul.f32.gmra.mxu0 %v6182
        %v6582 = vpop.f32.mrf.mxu0
        %v6583 = vadd.f32 0.0, %v6582
        %6584 = vmatmul.f32.gmra.mxu0 %v6185
        %v6585 = vpop.f32.mrf.mxu0
        %v6586 = vadd.f32 0.0, %v6585
        %6587 = vmatmul.f32.gmra.mxu0 %v6188
        %v6588 = vpop.f32.mrf.mxu0
        %v6589 = vadd.f32 0.0, %v6588
        %6590 = vmatmul.f32.gmra.mxu0 %v6191
        %v6591 = vpop.f32.mrf.mxu0
        %v6592 = vadd.f32 0.0, %v6591
        %6593 = vdwg.mxu0
        %v6594 = vadd.f32 %v6048, %v6211
        %v6595 = vadd.f32 %v6049, %v6214
        %v6596 = vadd.f32 %v6050, %v6217
        %v6597 = vadd.f32 %v6051, %v6220
        %v6598 = vadd.f32 %v6052, %v6223
        %v6599 = vadd.f32 %v6053, %v6226
        %v6600 = vadd.f32 %v6054, %v6229
        %v6601 = vadd.f32 %v6055, %v6232
        %v6602 = vadd.f32 %v6056, %v6235
        %v6603 = vadd.f32 %v6057, %v6238
        %v6604 = vadd.f32 %v6058, %v6241
        %v6605 = vadd.f32 %v6059, %v6244
        %v6606 = vadd.f32 %v6060, %v6247
        %v6607 = vadd.f32 %v6061, %v6250
        %v6608 = vadd.f32 %v6062, %v6253
        %v6609 = vadd.f32 %v6063, %v6256
        %v6610 = vadd.f32 %v6064, %v6259
        %v6611 = vadd.f32 %v6065, %v6262
        %v6612 = vadd.f32 %v6066, %v6265
        %v6613 = vadd.f32 %v6067, %v6268
        %v6614 = vadd.f32 %v6068, %v6271
        %v6615 = vadd.f32 %v6069, %v6274
        %v6616 = vadd.f32 %v6070, %v6277
        %v6617 = vadd.f32 %v6071, %v6280
        %v6618 = vadd.f32 %v6072, %v6283
        %v6619 = vadd.f32 %v6073, %v6286
        %v6620 = vadd.f32 %v6074, %v6289
        %v6621 = vadd.f32 %v6075, %v6292
        %v6622 = vadd.f32 %v6076, %v6295
        %v6623 = vadd.f32 %v6077, %v6298
        %v6624 = vadd.f32 %v6078, %v6301
        %v6625 = vadd.f32 %v6079, %v6304
        %v6626 = vadd.f32 %v6080, %v6307
        %v6627 = vadd.f32 %v6081, %v6310
        %v6628 = vadd.f32 %v6082, %v6313
        %v6629 = vadd.f32 %v6083, %v6316
        %v6630 = vadd.f32 %v6084, %v6319
        %v6631 = vadd.f32 %v6085, %v6322
        %v6632 = vadd.f32 %v6086, %v6325
        %v6633 = vadd.f32 %v6087, %v6328
        %v6634 = vadd.f32 %v6088, %v6331
        %v6635 = vadd.f32 %v6089, %v6334
        %v6636 = vadd.f32 %v6090, %v6337
        %v6637 = vadd.f32 %v6091, %v6340
        %v6638 = vadd.f32 %v6092, %v6343
        %v6639 = vadd.f32 %v6093, %v6346
        %v6640 = vadd.f32 %v6094, %v6349
        %v6641 = vadd.f32 %v6095, %v6352
        %v6642 = vadd.f32 %v6096, %v6355
        %v6643 = vadd.f32 %v6097, %v6358
        %v6644 = vadd.f32 %v6098, %v6361
        %v6645 = vadd.f32 %v6099, %v6364
        %v6646 = vadd.f32 %v6100, %v6367
        %v6647 = vadd.f32 %v6101, %v6370
        %v6648 = vadd.f32 %v6102, %v6373
        %v6649 = vadd.f32 %v6103, %v6376
        %v6650 = vadd.f32 %v6104, %v6379
        %v6651 = vadd.f32 %v6105, %v6382
        %v6652 = vadd.f32 %v6106, %v6385
        %v6653 = vadd.f32 %v6107, %v6388
        %v6654 = vadd.f32 %v6108, %v6391
        %v6655 = vadd.f32 %v6109, %v6394
        %v6656 = vadd.f32 %v6110, %v6397
        %v6657 = vadd.f32 %v6111, %v6400
        %v6658 = vadd.f32 %v6112, %v6403
        %v6659 = vadd.f32 %v6113, %v6406
        %v6660 = vadd.f32 %v6114, %v6409
        %v6661 = vadd.f32 %v6115, %v6412
        %v6662 = vadd.f32 %v6116, %v6415
        %v6663 = vadd.f32 %v6117, %v6418
        %v6664 = vadd.f32 %v6118, %v6421
        %v6665 = vadd.f32 %v6119, %v6424
        %v6666 = vadd.f32 %v6120, %v6427
        %v6667 = vadd.f32 %v6121, %v6430
        %v6668 = vadd.f32 %v6122, %v6433
        %v6669 = vadd.f32 %v6123, %v6436
        %v6670 = vadd.f32 %v6124, %v6439
        %v6671 = vadd.f32 %v6125, %v6442
        %v6672 = vadd.f32 %v6126, %v6445
        %v6673 = vadd.f32 %v6127, %v6448
        %v6674 = vadd.f32 %v6128, %v6451
        %v6675 = vadd.f32 %v6129, %v6454
        %v6676 = vadd.f32 %v6130, %v6457
        %v6677 = vadd.f32 %v6131, %v6460
        %v6678 = vadd.f32 %v6132, %v6463
        %v6679 = vadd.f32 %v6133, %v6466
        %v6680 = vadd.f32 %v6134, %v6469
        %v6681 = vadd.f32 %v6135, %v6472
        %v6682 = vadd.f32 %v6136, %v6475
        %v6683 = vadd.f32 %v6137, %v6478
        %v6684 = vadd.f32 %v6138, %v6481
        %v6685 = vadd.f32 %v6139, %v6484
        %v6686 = vadd.f32 %v6140, %v6487
        %v6687 = vadd.f32 %v6141, %v6490
        %v6688 = vadd.f32 %v6142, %v6493
        %v6689 = vadd.f32 %v6143, %v6496
        %v6690 = vadd.f32 %v6144, %v6499
        %v6691 = vadd.f32 %v6145, %v6502
        %v6692 = vadd.f32 %v6146, %v6505
        %v6693 = vadd.f32 %v6147, %v6508
        %v6694 = vadd.f32 %v6148, %v6511
        %v6695 = vadd.f32 %v6149, %v6514
        %v6696 = vadd.f32 %v6150, %v6517
        %v6697 = vadd.f32 %v6151, %v6520
        %v6698 = vadd.f32 %v6152, %v6523
        %v6699 = vadd.f32 %v6153, %v6526
        %v6700 = vadd.f32 %v6154, %v6529
        %v6701 = vadd.f32 %v6155, %v6532
        %v6702 = vadd.f32 %v6156, %v6535
        %v6703 = vadd.f32 %v6157, %v6538
        %v6704 = vadd.f32 %v6158, %v6541
        %v6705 = vadd.f32 %v6159, %v6544
        %v6706 = vadd.f32 %v6160, %v6547
        %v6707 = vadd.f32 %v6161, %v6550
        %v6708 = vadd.f32 %v6162, %v6553
        %v6709 = vadd.f32 %v6163, %v6556
        %v6710 = vadd.f32 %v6164, %v6559
        %v6711 = vadd.f32 %v6165, %v6562
        %v6712 = vadd.f32 %v6166, %v6565
        %v6713 = vadd.f32 %v6167, %v6568
        %v6714 = vadd.f32 %v6168, %v6571
        %v6715 = vadd.f32 %v6169, %v6574
        %v6716 = vadd.f32 %v6170, %v6577
        %v6717 = vadd.f32 %v6171, %v6580
        %v6718 = vadd.f32 %v6172, %v6583
        %v6719 = vadd.f32 %v6173, %v6586
        %v6720 = vadd.f32 %v6174, %v6589
        %v6721 = vadd.f32 %v6175, %v6592
        %v6722 = vld [vmem:[%s2] sm:$0x1]
        %v6724 = vperm.slane %v6722, 0
        %v6726 = vadd.f32 %v6594, %v6724
        %v6727 = vadd.f32 %v6595, %v6724
        %v6728 = vadd.f32 %v6596, %v6724
        %v6729 = vadd.f32 %v6597, %v6724
        %v6730 = vadd.f32 %v6598, %v6724
        %v6731 = vadd.f32 %v6599, %v6724
        %v6732 = vadd.f32 %v6600, %v6724
        %v6733 = vadd.f32 %v6601, %v6724
        %v6734 = vadd.f32 %v6602, %v6724
        %v6735 = vadd.f32 %v6603, %v6724
        %v6736 = vadd.f32 %v6604, %v6724
        %v6737 = vadd.f32 %v6605, %v6724
        %v6738 = vadd.f32 %v6606, %v6724
        %v6739 = vadd.f32 %v6607, %v6724
        %v6740 = vadd.f32 %v6608, %v6724
        %v6741 = vadd.f32 %v6609, %v6724
        %v6742 = vadd.f32 %v6610, %v6724
        %v6743 = vadd.f32 %v6611, %v6724
        %v6744 = vadd.f32 %v6612, %v6724
        %v6745 = vadd.f32 %v6613, %v6724
        %v6746 = vadd.f32 %v6614, %v6724
        %v6747 = vadd.f32 %v6615, %v6724
        %v6748 = vadd.f32 %v6616, %v6724
        %v6749 = vadd.f32 %v6617, %v6724
        %v6750 = vadd.f32 %v6618, %v6724
        %v6751 = vadd.f32 %v6619, %v6724
        %v6752 = vadd.f32 %v6620, %v6724
        %v6753 = vadd.f32 %v6621, %v6724
        %v6754 = vadd.f32 %v6622, %v6724
        %v6755 = vadd.f32 %v6623, %v6724
        %v6756 = vadd.f32 %v6624, %v6724
        %v6757 = vadd.f32 %v6625, %v6724
        %v6758 = vadd.f32 %v6626, %v6724
        %v6759 = vadd.f32 %v6627, %v6724
        %v6760 = vadd.f32 %v6628, %v6724
        %v6761 = vadd.f32 %v6629, %v6724
        %v6762 = vadd.f32 %v6630, %v6724
        %v6763 = vadd.f32 %v6631, %v6724
        %v6764 = vadd.f32 %v6632, %v6724
        %v6765 = vadd.f32 %v6633, %v6724
        %v6766 = vadd.f32 %v6634, %v6724
        %v6767 = vadd.f32 %v6635, %v6724
        %v6768 = vadd.f32 %v6636, %v6724
        %v6769 = vadd.f32 %v6637, %v6724
        %v6770 = vadd.f32 %v6638, %v6724
        %v6771 = vadd.f32 %v6639, %v6724
        %v6772 = vadd.f32 %v6640, %v6724
        %v6773 = vadd.f32 %v6641, %v6724
        %v6774 = vadd.f32 %v6642, %v6724
        %v6775 = vadd.f32 %v6643, %v6724
        %v6776 = vadd.f32 %v6644, %v6724
        %v6777 = vadd.f32 %v6645, %v6724
        %v6778 = vadd.f32 %v6646, %v6724
        %v6779 = vadd.f32 %v6647, %v6724
        %v6780 = vadd.f32 %v6648, %v6724
        %v6781 = vadd.f32 %v6649, %v6724
        %v6782 = vadd.f32 %v6650, %v6724
        %v6783 = vadd.f32 %v6651, %v6724
        %v6784 = vadd.f32 %v6652, %v6724
        %v6785 = vadd.f32 %v6653, %v6724
        %v6786 = vadd.f32 %v6654, %v6724
        %v6787 = vadd.f32 %v6655, %v6724
        %v6788 = vadd.f32 %v6656, %v6724
        %v6789 = vadd.f32 %v6657, %v6724
        %v6790 = vadd.f32 %v6658, %v6724
        %v6791 = vadd.f32 %v6659, %v6724
        %v6792 = vadd.f32 %v6660, %v6724
        %v6793 = vadd.f32 %v6661, %v6724
        %v6794 = vadd.f32 %v6662, %v6724
        %v6795 = vadd.f32 %v6663, %v6724
        %v6796 = vadd.f32 %v6664, %v6724
        %v6797 = vadd.f32 %v6665, %v6724
        %v6798 = vadd.f32 %v6666, %v6724
        %v6799 = vadd.f32 %v6667, %v6724
        %v6800 = vadd.f32 %v6668, %v6724
        %v6801 = vadd.f32 %v6669, %v6724
        %v6802 = vadd.f32 %v6670, %v6724
        %v6803 = vadd.f32 %v6671, %v6724
        %v6804 = vadd.f32 %v6672, %v6724
        %v6805 = vadd.f32 %v6673, %v6724
        %v6806 = vadd.f32 %v6674, %v6724
        %v6807 = vadd.f32 %v6675, %v6724
        %v6808 = vadd.f32 %v6676, %v6724
        %v6809 = vadd.f32 %v6677, %v6724
        %v6810 = vadd.f32 %v6678, %v6724
        %v6811 = vadd.f32 %v6679, %v6724
        %v6812 = vadd.f32 %v6680, %v6724
        %v6813 = vadd.f32 %v6681, %v6724
        %v6814 = vadd.f32 %v6682, %v6724
        %v6815 = vadd.f32 %v6683, %v6724
        %v6816 = vadd.f32 %v6684, %v6724
        %v6817 = vadd.f32 %v6685, %v6724
        %v6818 = vadd.f32 %v6686, %v6724
        %v6819 = vadd.f32 %v6687, %v6724
        %v6820 = vadd.f32 %v6688, %v6724
        %v6821 = vadd.f32 %v6689, %v6724
        %v6822 = vadd.f32 %v6690, %v6724
        %v6823 = vadd.f32 %v6691, %v6724
        %v6824 = vadd.f32 %v6692, %v6724
        %v6825 = vadd.f32 %v6693, %v6724
        %v6826 = vadd.f32 %v6694, %v6724
        %v6827 = vadd.f32 %v6695, %v6724
        %v6828 = vadd.f32 %v6696, %v6724
        %v6829 = vadd.f32 %v6697, %v6724
        %v6830 = vadd.f32 %v6698, %v6724
        %v6831 = vadd.f32 %v6699, %v6724
        %v6832 = vadd.f32 %v6700, %v6724
        %v6833 = vadd.f32 %v6701, %v6724
        %v6834 = vadd.f32 %v6702, %v6724
        %v6835 = vadd.f32 %v6703, %v6724
        %v6836 = vadd.f32 %v6704, %v6724
        %v6837 = vadd.f32 %v6705, %v6724
        %v6838 = vadd.f32 %v6706, %v6724
        %v6839 = vadd.f32 %v6707, %v6724
        %v6840 = vadd.f32 %v6708, %v6724
        %v6841 = vadd.f32 %v6709, %v6724
        %v6842 = vadd.f32 %v6710, %v6724
        %v6843 = vadd.f32 %v6711, %v6724
        %v6844 = vadd.f32 %v6712, %v6724
        %v6845 = vadd.f32 %v6713, %v6724
        %v6846 = vadd.f32 %v6714, %v6724
        %v6847 = vadd.f32 %v6715, %v6724
        %v6848 = vadd.f32 %v6716, %v6724
        %v6849 = vadd.f32 %v6717, %v6724
        %v6850 = vadd.f32 %v6718, %v6724
        %v6851 = vadd.f32 %v6719, %v6724
        %v6852 = vadd.f32 %v6720, %v6724
        %v6853 = vadd.f32 %v6721, %v6724
        %v6854 = vmax.f32 %v6726, 0.0
        %v6855 = vmax.f32 %v6727, 0.0
        %v6856 = vmax.f32 %v6728, 0.0
        %v6857 = vmax.f32 %v6729, 0.0
        %v6858 = vmax.f32 %v6730, 0.0
        %v6859 = vmax.f32 %v6731, 0.0
        %v6860 = vmax.f32 %v6732, 0.0
        %v6861 = vmax.f32 %v6733, 0.0
        %v6862 = vmax.f32 %v6734, 0.0
        %v6863 = vmax.f32 %v6735, 0.0
        %v6864 = vmax.f32 %v6736, 0.0
        %v6865 = vmax.f32 %v6737, 0.0
        %v6866 = vmax.f32 %v6738, 0.0
        %v6867 = vmax.f32 %v6739, 0.0
        %v6868 = vmax.f32 %v6740, 0.0
        %v6869 = vmax.f32 %v6741, 0.0
        %v6870 = vmax.f32 %v6742, 0.0
        %v6871 = vmax.f32 %v6743, 0.0
        %v6872 = vmax.f32 %v6744, 0.0
        %v6873 = vmax.f32 %v6745, 0.0
        %v6874 = vmax.f32 %v6746, 0.0
        %v6875 = vmax.f32 %v6747, 0.0
        %v6876 = vmax.f32 %v6748, 0.0
        %v6877 = vmax.f32 %v6749, 0.0
        %v6878 = vmax.f32 %v6750, 0.0
        %v6879 = vmax.f32 %v6751, 0.0
        %v6880 = vmax.f32 %v6752, 0.0
        %v6881 = vmax.f32 %v6753, 0.0
        %v6882 = vmax.f32 %v6754, 0.0
        %v6883 = vmax.f32 %v6755, 0.0
        %v6884 = vmax.f32 %v6756, 0.0
        %v6885 = vmax.f32 %v6757, 0.0
        %v6886 = vmax.f32 %v6758, 0.0
        %v6887 = vmax.f32 %v6759, 0.0
        %v6888 = vmax.f32 %v6760, 0.0
        %v6889 = vmax.f32 %v6761, 0.0
        %v6890 = vmax.f32 %v6762, 0.0
        %v6891 = vmax.f32 %v6763, 0.0
        %v6892 = vmax.f32 %v6764, 0.0
        %v6893 = vmax.f32 %v6765, 0.0
        %v6894 = vmax.f32 %v6766, 0.0
        %v6895 = vmax.f32 %v6767, 0.0
        %v6896 = vmax.f32 %v6768, 0.0
        %v6897 = vmax.f32 %v6769, 0.0
        %v6898 = vmax.f32 %v6770, 0.0
        %v6899 = vmax.f32 %v6771, 0.0
        %v6900 = vmax.f32 %v6772, 0.0
        %v6901 = vmax.f32 %v6773, 0.0
        %v6902 = vmax.f32 %v6774, 0.0
        %v6903 = vmax.f32 %v6775, 0.0
        %v6904 = vmax.f32 %v6776, 0.0
        %v6905 = vmax.f32 %v6777, 0.0
        %v6906 = vmax.f32 %v6778, 0.0
        %v6907 = vmax.f32 %v6779, 0.0
        %v6908 = vmax.f32 %v6780, 0.0
        %v6909 = vmax.f32 %v6781, 0.0
        %v6910 = vmax.f32 %v6782, 0.0
        %v6911 = vmax.f32 %v6783, 0.0
        %v6912 = vmax.f32 %v6784, 0.0
        %v6913 = vmax.f32 %v6785, 0.0
        %v6914 = vmax.f32 %v6786, 0.0
        %v6915 = vmax.f32 %v6787, 0.0
        %v6916 = vmax.f32 %v6788, 0.0
        %v6917 = vmax.f32 %v6789, 0.0
        %v6918 = vmax.f32 %v6790, 0.0
        %v6919 = vmax.f32 %v6791, 0.0
        %v6920 = vmax.f32 %v6792, 0.0
        %v6921 = vmax.f32 %v6793, 0.0
        %v6922 = vmax.f32 %v6794, 0.0
        %v6923 = vmax.f32 %v6795, 0.0
        %v6924 = vmax.f32 %v6796, 0.0
        %v6925 = vmax.f32 %v6797, 0.0
        %v6926 = vmax.f32 %v6798, 0.0
        %v6927 = vmax.f32 %v6799, 0.0
        %v6928 = vmax.f32 %v6800, 0.0
        %v6929 = vmax.f32 %v6801, 0.0
        %v6930 = vmax.f32 %v6802, 0.0
        %v6931 = vmax.f32 %v6803, 0.0
        %v6932 = vmax.f32 %v6804, 0.0
        %v6933 = vmax.f32 %v6805, 0.0
        %v6934 = vmax.f32 %v6806, 0.0
        %v6935 = vmax.f32 %v6807, 0.0
        %v6936 = vmax.f32 %v6808, 0.0
        %v6937 = vmax.f32 %v6809, 0.0
        %v6938 = vmax.f32 %v6810, 0.0
        %v6939 = vmax.f32 %v6811, 0.0
        %v6940 = vmax.f32 %v6812, 0.0
        %v6941 = vmax.f32 %v6813, 0.0
        %v6942 = vmax.f32 %v6814, 0.0
        %v6943 = vmax.f32 %v6815, 0.0
        %v6944 = vmax.f32 %v6816, 0.0
        %v6945 = vmax.f32 %v6817, 0.0
        %v6946 = vmax.f32 %v6818, 0.0
        %v6947 = vmax.f32 %v6819, 0.0
        %v6948 = vmax.f32 %v6820, 0.0
        %v6949 = vmax.f32 %v6821, 0.0
        %v6950 = vmax.f32 %v6822, 0.0
        %v6951 = vmax.f32 %v6823, 0.0
        %v6952 = vmax.f32 %v6824, 0.0
        %v6953 = vmax.f32 %v6825, 0.0
        %v6954 = vmax.f32 %v6826, 0.0
        %v6955 = vmax.f32 %v6827, 0.0
        %v6956 = vmax.f32 %v6828, 0.0
        %v6957 = vmax.f32 %v6829, 0.0
        %v6958 = vmax.f32 %v6830, 0.0
        %v6959 = vmax.f32 %v6831, 0.0
        %v6960 = vmax.f32 %v6832, 0.0
        %v6961 = vmax.f32 %v6833, 0.0
        %v6962 = vmax.f32 %v6834, 0.0
        %v6963 = vmax.f32 %v6835, 0.0
        %v6964 = vmax.f32 %v6836, 0.0
        %v6965 = vmax.f32 %v6837, 0.0
        %v6966 = vmax.f32 %v6838, 0.0
        %v6967 = vmax.f32 %v6839, 0.0
        %v6968 = vmax.f32 %v6840, 0.0
        %v6969 = vmax.f32 %v6841, 0.0
        %v6970 = vmax.f32 %v6842, 0.0
        %v6971 = vmax.f32 %v6843, 0.0
        %v6972 = vmax.f32 %v6844, 0.0
        %v6973 = vmax.f32 %v6845, 0.0
        %v6974 = vmax.f32 %v6846, 0.0
        %v6975 = vmax.f32 %v6847, 0.0
        %v6976 = vmax.f32 %v6848, 0.0
        %v6977 = vmax.f32 %v6849, 0.0
        %v6978 = vmax.f32 %v6850, 0.0
        %v6979 = vmax.f32 %v6851, 0.0
        %v6980 = vmax.f32 %v6852, 0.0
        %v6981 = vmax.f32 %v6853, 0.0
        %v6982 = vmax.f32 %v6854, %v6858
        %v6983 = vmax.f32 %v6855, %v6859
        %v6984 = vmax.f32 %v6856, %v6860
        %v6985 = vmax.f32 %v6857, %v6861
        %v6986 = vmax.f32 %v6862, %v6866
        %v6987 = vmax.f32 %v6863, %v6867
        %v6988 = vmax.f32 %v6864, %v6868
        %v6989 = vmax.f32 %v6865, %v6869
        %v6990 = vmax.f32 %v6870, %v6874
        %v6991 = vmax.f32 %v6871, %v6875
        %v6992 = vmax.f32 %v6872, %v6876
        %v6993 = vmax.f32 %v6873, %v6877
        %v6994 = vmax.f32 %v6878, %v6882
        %v6995 = vmax.f32 %v6879, %v6883
        %v6996 = vmax.f32 %v6880, %v6884
        %v6997 = vmax.f32 %v6881, %v6885
        %v6998 = vmax.f32 %v6886, %v6890
        %v6999 = vmax.f32 %v6887, %v6891
        %v7000 = vmax.f32 %v6888, %v6892
        %v7001 = vmax.f32 %v6889, %v6893
        %v7002 = vmax.f32 %v6894, %v6898
        %v7003 = vmax.f32 %v6895, %v6899
        %v7004 = vmax.f32 %v6896, %v6900
        %v7005 = vmax.f32 %v6897, %v6901
        %v7006 = vmax.f32 %v6902, %v6906
        %v7007 = vmax.f32 %v6903, %v6907
        %v7008 = vmax.f32 %v6904, %v6908
        %v7009 = vmax.f32 %v6905, %v6909
        %v7010 = vmax.f32 %v6910, %v6914
        %v7011 = vmax.f32 %v6911, %v6915
        %v7012 = vmax.f32 %v6912, %v6916
        %v7013 = vmax.f32 %v6913, %v6917
        %v7014 = vmax.f32 %v6918, %v6922
        %v7015 = vmax.f32 %v6919, %v6923
        %v7016 = vmax.f32 %v6920, %v6924
        %v7017 = vmax.f32 %v6921, %v6925
        %v7018 = vmax.f32 %v6926, %v6930
        %v7019 = vmax.f32 %v6927, %v6931
        %v7020 = vmax.f32 %v6928, %v6932
        %v7021 = vmax.f32 %v6929, %v6933
        %v7022 = vmax.f32 %v6934, %v6938
        %v7023 = vmax.f32 %v6935, %v6939
        %v7024 = vmax.f32 %v6936, %v6940
        %v7025 = vmax.f32 %v6937, %v6941
        %v7026 = vmax.f32 %v6942, %v6946
        %v7027 = vmax.f32 %v6943, %v6947
        %v7028 = vmax.f32 %v6944, %v6948
        %v7029 = vmax.f32 %v6945, %v6949
        %v7030 = vmax.f32 %v6950, %v6954
        %v7031 = vmax.f32 %v6951, %v6955
        %v7032 = vmax.f32 %v6952, %v6956
        %v7033 = vmax.f32 %v6953, %v6957
        %v7034 = vmax.f32 %v6958, %v6962
        %v7035 = vmax.f32 %v6959, %v6963
        %v7036 = vmax.f32 %v6960, %v6964
        %v7037 = vmax.f32 %v6961, %v6965
        %v7038 = vmax.f32 %v6966, %v6970
        %v7039 = vmax.f32 %v6967, %v6971
        %v7040 = vmax.f32 %v6968, %v6972
        %v7041 = vmax.f32 %v6969, %v6973
        %v7042 = vmax.f32 %v6974, %v6978
        %v7043 = vmax.f32 %v6975, %v6979
        %v7044 = vmax.f32 %v6976, %v6980
        %v7045 = vmax.f32 %v6977, %v6981
        %7046 = vst [vmem:[#allocation4] sm:$0xff] %v6982
        %7047 = vst [vmem:[#allocation4 + $0x8] sm:$0xff] %v6983
        %7048 = vst [vmem:[#allocation4 + $0x10] sm:$0xff] %v6984
        %7049 = vst [vmem:[#allocation4 + $0x18] sm:$0xff] %v6985
        %7050 = vst [vmem:[#allocation4 + $0x20] sm:$0xff] %v6986
        %7051 = vst [vmem:[#allocation4 + $0x28] sm:$0xff] %v6987
        %7052 = vst [vmem:[#allocation4 + $0x30] sm:$0xff] %v6988
        %7053 = vst [vmem:[#allocation4 + $0x38] sm:$0xff] %v6989
        %7054 = vst [vmem:[#allocation4 + $0x40] sm:$0xff] %v6990
        %7055 = vst [vmem:[#allocation4 + $0x48] sm:$0xff] %v6991
        %7056 = vst [vmem:[#allocation4 + $0x50] sm:$0xff] %v6992
        %7057 = vst [vmem:[#allocation4 + $0x58] sm:$0xff] %v6993
        %7058 = vst [vmem:[#allocation4 + $0x60] sm:$0xff] %v6994
        %7059 = vst [vmem:[#allocation4 + $0x68] sm:$0xff] %v6995
        %7060 = vst [vmem:[#allocation4 + $0x70] sm:$0xff] %v6996
        %7061 = vst [vmem:[#allocation4 + $0x78] sm:$0xff] %v6997
        %7062 = vst [vmem:[#allocation4 + $0x80] sm:$0xff] %v6998
        %7063 = vst [vmem:[#allocation4 + $0x88] sm:$0xff] %v6999
        %7064 = vst [vmem:[#allocation4 + $0x90] sm:$0xff] %v7000
        %7065 = vst [vmem:[#allocation4 + $0x98] sm:$0xff] %v7001
        %7066 = vst [vmem:[#allocation4 + $0xa0] sm:$0xff] %v7002
        %7067 = vst [vmem:[#allocation4 + $0xa8] sm:$0xff] %v7003
        %7068 = vst [vmem:[#allocation4 + $0xb0] sm:$0xff] %v7004
        %7069 = vst [vmem:[#allocation4 + $0xb8] sm:$0xff] %v7005
        %7070 = vst [vmem:[#allocation4 + $0xc0] sm:$0xff] %v7006
        %7071 = vst [vmem:[#allocation4 + $0xc8] sm:$0xff] %v7007
        %7072 = vst [vmem:[#allocation4 + $0xd0] sm:$0xff] %v7008
        %7073 = vst [vmem:[#allocation4 + $0xd8] sm:$0xff] %v7009
        %7074 = vst [vmem:[#allocation4 + $0xe0] sm:$0xff] %v7010
        %7075 = vst [vmem:[#allocation4 + $0xe8] sm:$0xff] %v7011
        %7076 = vst [vmem:[#allocation4 + $0xf0] sm:$0xff] %v7012
        %7077 = vst [vmem:[#allocation4 + $0xf8] sm:$0xff] %v7013
        %7078 = vst [vmem:[#allocation4 + $0x100] sm:$0xff] %v7014
        %7079 = vst [vmem:[#allocation4 + $0x108] sm:$0xff] %v7015
        %7080 = vst [vmem:[#allocation4 + $0x110] sm:$0xff] %v7016
        %7081 = vst [vmem:[#allocation4 + $0x118] sm:$0xff] %v7017
        %7082 = vst [vmem:[#allocation4 + $0x120] sm:$0xff] %v7018
        %7083 = vst [vmem:[#allocation4 + $0x128] sm:$0xff] %v7019
        %7084 = vst [vmem:[#allocation4 + $0x130] sm:$0xff] %v7020
        %7085 = vst [vmem:[#allocation4 + $0x138] sm:$0xff] %v7021
        %7086 = vst [vmem:[#allocation4 + $0x140] sm:$0xff] %v7022
        %7087 = vst [vmem:[#allocation4 + $0x148] sm:$0xff] %v7023
        %7088 = vst [vmem:[#allocation4 + $0x150] sm:$0xff] %v7024
        %7089 = vst [vmem:[#allocation4 + $0x158] sm:$0xff] %v7025
        %7090 = vst [vmem:[#allocation4 + $0x160] sm:$0xff] %v7026
        %7091 = vst [vmem:[#allocation4 + $0x168] sm:$0xff] %v7027
        %7092 = vst [vmem:[#allocation4 + $0x170] sm:$0xff] %v7028
        %7093 = vst [vmem:[#allocation4 + $0x178] sm:$0xff] %v7029
        %7094 = vst [vmem:[#allocation4 + $0x180] sm:$0xff] %v7030
        %7095 = vst [vmem:[#allocation4 + $0x188] sm:$0xff] %v7031
        %7096 = vst [vmem:[#allocation4 + $0x190] sm:$0xff] %v7032
        %7097 = vst [vmem:[#allocation4 + $0x198] sm:$0xff] %v7033
        %7098 = vst [vmem:[#allocation4 + $0x1a0] sm:$0xff] %v7034
        %7099 = vst [vmem:[#allocation4 + $0x1a8] sm:$0xff] %v7035
        %7100 = vst [vmem:[#allocation4 + $0x1b0] sm:$0xff] %v7036
        %7101 = vst [vmem:[#allocation4 + $0x1b8] sm:$0xff] %v7037
        %7102 = vst [vmem:[#allocation4 + $0x1c0] sm:$0xff] %v7038
        %7103 = vst [vmem:[#allocation4 + $0x1c8] sm:$0xff] %v7039
        %7104 = vst [vmem:[#allocation4 + $0x1d0] sm:$0xff] %v7040
        %7105 = vst [vmem:[#allocation4 + $0x1d8] sm:$0xff] %v7041
        %7106 = vst [vmem:[#allocation4 + $0x1e0] sm:$0xff] %v7042
        %7107 = vst [vmem:[#allocation4 + $0x1e8] sm:$0xff] %v7043
        %7108 = vst [vmem:[#allocation4 + $0x1f0] sm:$0xff] %v7044
        %7109 = vst [vmem:[#allocation4 + $0x1f8] sm:$0xff] %v7045
        %v7110 = vld [vmem:[#allocation4] ss:$2 sm:$0xff]
        %s7111 = scalar_lea.vmem [#allocation4], 16
        %v7112 = vld [vmem:[%s7111] ss:$2 sm:$0xff]
        %s7113 = scalar_lea.vmem [#allocation4], 32
        %v7114 = vld [vmem:[%s7113] ss:$2 sm:$0xff]
        %s7115 = scalar_lea.vmem [#allocation4], 48
        %v7116 = vld [vmem:[%s7115] ss:$2 sm:$0xff]
        %s7117 = scalar_lea.vmem [#allocation4], 64
        %v7118 = vld [vmem:[%s7117] ss:$2 sm:$0xff]
        %s7119 = scalar_lea.vmem [#allocation4], 80
        %v7120 = vld [vmem:[%s7119] ss:$2 sm:$0xff]
        %s7121 = scalar_lea.vmem [#allocation4], 96
        %v7122 = vld [vmem:[%s7121] ss:$2 sm:$0xff]
        %s7123 = scalar_lea.vmem [#allocation4], 112
        %v7124 = vld [vmem:[%s7123] ss:$2 sm:$0xff]
        %s7125 = scalar_lea.vmem [#allocation4], 128
        %v7126 = vld [vmem:[%s7125] ss:$2 sm:$0xff]
        %s7127 = scalar_lea.vmem [#allocation4], 144
        %v7128 = vld [vmem:[%s7127] ss:$2 sm:$0xff]
        %s7129 = scalar_lea.vmem [#allocation4], 160
        %v7130 = vld [vmem:[%s7129] ss:$2 sm:$0xff]
        %s7131 = scalar_lea.vmem [#allocation4], 176
        %v7132 = vld [vmem:[%s7131] ss:$2 sm:$0xff]
        %s7133 = scalar_lea.vmem [#allocation4], 192
        %v7134 = vld [vmem:[%s7133] ss:$2 sm:$0xff]
        %s7135 = scalar_lea.vmem [#allocation4], 208
        %v7136 = vld [vmem:[%s7135] ss:$2 sm:$0xff]
        %s7137 = scalar_lea.vmem [#allocation4], 224
        %v7138 = vld [vmem:[%s7137] ss:$2 sm:$0xff]
        %s7139 = scalar_lea.vmem [#allocation4], 240
        %v7140 = vld [vmem:[%s7139] ss:$2 sm:$0xff]
        %s7141 = scalar_lea.vmem [#allocation4], 256
        %v7142 = vld [vmem:[%s7141] ss:$2 sm:$0xff]
        %s7143 = scalar_lea.vmem [#allocation4], 272
        %v7144 = vld [vmem:[%s7143] ss:$2 sm:$0xff]
        %s7145 = scalar_lea.vmem [#allocation4], 288
        %v7146 = vld [vmem:[%s7145] ss:$2 sm:$0xff]
        %s7147 = scalar_lea.vmem [#allocation4], 304
        %v7148 = vld [vmem:[%s7147] ss:$2 sm:$0xff]
        %s7149 = scalar_lea.vmem [#allocation4], 320
        %v7150 = vld [vmem:[%s7149] ss:$2 sm:$0xff]
        %s7151 = scalar_lea.vmem [#allocation4], 336
        %v7152 = vld [vmem:[%s7151] ss:$2 sm:$0xff]
        %s7153 = scalar_lea.vmem [#allocation4], 352
        %v7154 = vld [vmem:[%s7153] ss:$2 sm:$0xff]
        %s7155 = scalar_lea.vmem [#allocation4], 368
        %v7156 = vld [vmem:[%s7155] ss:$2 sm:$0xff]
        %s7157 = scalar_lea.vmem [#allocation4], 384
        %v7158 = vld [vmem:[%s7157] ss:$2 sm:$0xff]
        %s7159 = scalar_lea.vmem [#allocation4], 400
        %v7160 = vld [vmem:[%s7159] ss:$2 sm:$0xff]
        %s7161 = scalar_lea.vmem [#allocation4], 416
        %v7162 = vld [vmem:[%s7161] ss:$2 sm:$0xff]
        %s7163 = scalar_lea.vmem [#allocation4], 432
        %v7164 = vld [vmem:[%s7163] ss:$2 sm:$0xff]
        %s7165 = scalar_lea.vmem [#allocation4], 448
        %v7166 = vld [vmem:[%s7165] ss:$2 sm:$0xff]
        %s7167 = scalar_lea.vmem [#allocation4], 464
        %v7168 = vld [vmem:[%s7167] ss:$2 sm:$0xff]
        %s7169 = scalar_lea.vmem [#allocation4], 480
        %v7170 = vld [vmem:[%s7169] ss:$2 sm:$0xff]
        %s7171 = scalar_lea.vmem [#allocation4], 496
        %v7172 = vld [vmem:[%s7171] ss:$2 sm:$0xff]
        %s7173 = scalar_lea.vmem [#allocation4], 1
        %v7174 = vld [vmem:[%s7173] ss:$2 sm:$0xff]
        %s7175 = scalar_lea.vmem [#allocation4], 17
        %v7176 = vld [vmem:[%s7175] ss:$2 sm:$0xff]
        %s7177 = scalar_lea.vmem [#allocation4], 33
        %v7178 = vld [vmem:[%s7177] ss:$2 sm:$0xff]
        %s7179 = scalar_lea.vmem [#allocation4], 49
        %v7180 = vld [vmem:[%s7179] ss:$2 sm:$0xff]
        %s7181 = scalar_lea.vmem [#allocation4], 65
        %v7182 = vld [vmem:[%s7181] ss:$2 sm:$0xff]
        %s7183 = scalar_lea.vmem [#allocation4], 81
        %v7184 = vld [vmem:[%s7183] ss:$2 sm:$0xff]
        %s7185 = scalar_lea.vmem [#allocation4], 97
        %v7186 = vld [vmem:[%s7185] ss:$2 sm:$0xff]
        %s7187 = scalar_lea.vmem [#allocation4], 113
        %v7188 = vld [vmem:[%s7187] ss:$2 sm:$0xff]
        %s7189 = scalar_lea.vmem [#allocation4], 129
        %v7190 = vld [vmem:[%s7189] ss:$2 sm:$0xff]
        %s7191 = scalar_lea.vmem [#allocation4], 145
        %v7192 = vld [vmem:[%s7191] ss:$2 sm:$0xff]
        %s7193 = scalar_lea.vmem [#allocation4], 161
        %v7194 = vld [vmem:[%s7193] ss:$2 sm:$0xff]
        %s7195 = scalar_lea.vmem [#allocation4], 177
        %v7196 = vld [vmem:[%s7195] ss:$2 sm:$0xff]
        %s7197 = scalar_lea.vmem [#allocation4], 193
        %v7198 = vld [vmem:[%s7197] ss:$2 sm:$0xff]
        %s7199 = scalar_lea.vmem [#allocation4], 209
        %v7200 = vld [vmem:[%s7199] ss:$2 sm:$0xff]
        %s7201 = scalar_lea.vmem [#allocation4], 225
        %v7202 = vld [vmem:[%s7201] ss:$2 sm:$0xff]
        %s7203 = scalar_lea.vmem [#allocation4], 241
        %v7204 = vld [vmem:[%s7203] ss:$2 sm:$0xff]
        %s7205 = scalar_lea.vmem [#allocation4], 257
        %v7206 = vld [vmem:[%s7205] ss:$2 sm:$0xff]
        %s7207 = scalar_lea.vmem [#allocation4], 273
        %v7208 = vld [vmem:[%s7207] ss:$2 sm:$0xff]
        %s7209 = scalar_lea.vmem [#allocation4], 289
        %v7210 = vld [vmem:[%s7209] ss:$2 sm:$0xff]
        %s7211 = scalar_lea.vmem [#allocation4], 305
        %v7212 = vld [vmem:[%s7211] ss:$2 sm:$0xff]
        %s7213 = scalar_lea.vmem [#allocation4], 321
        %v7214 = vld [vmem:[%s7213] ss:$2 sm:$0xff]
        %s7215 = scalar_lea.vmem [#allocation4], 337
        %v7216 = vld [vmem:[%s7215] ss:$2 sm:$0xff]
        %s7217 = scalar_lea.vmem [#allocation4], 353
        %v7218 = vld [vmem:[%s7217] ss:$2 sm:$0xff]
        %s7219 = scalar_lea.vmem [#allocation4], 369
        %v7220 = vld [vmem:[%s7219] ss:$2 sm:$0xff]
        %s7221 = scalar_lea.vmem [#allocation4], 385
        %v7222 = vld [vmem:[%s7221] ss:$2 sm:$0xff]
        %s7223 = scalar_lea.vmem [#allocation4], 401
        %v7224 = vld [vmem:[%s7223] ss:$2 sm:$0xff]
        %s7225 = scalar_lea.vmem [#allocation4], 417
        %v7226 = vld [vmem:[%s7225] ss:$2 sm:$0xff]
        %s7227 = scalar_lea.vmem [#allocation4], 433
        %v7228 = vld [vmem:[%s7227] ss:$2 sm:$0xff]
        %s7229 = scalar_lea.vmem [#allocation4], 449
        %v7230 = vld [vmem:[%s7229] ss:$2 sm:$0xff]
        %s7231 = scalar_lea.vmem [#allocation4], 465
        %v7232 = vld [vmem:[%s7231] ss:$2 sm:$0xff]
        %s7233 = scalar_lea.vmem [#allocation4], 481
        %v7234 = vld [vmem:[%s7233] ss:$2 sm:$0xff]
        %s7235 = scalar_lea.vmem [#allocation4], 497
        %v7236 = vld [vmem:[%s7235] ss:$2 sm:$0xff]
        %v7237 = vmax.f32 %v7110, %v7174
        %v7238 = vmax.f32 %v7112, %v7176
        %v7239 = vmax.f32 %v7114, %v7178
        %v7240 = vmax.f32 %v7116, %v7180
        %v7241 = vmax.f32 %v7118, %v7182
        %v7242 = vmax.f32 %v7120, %v7184
        %v7243 = vmax.f32 %v7122, %v7186
        %v7244 = vmax.f32 %v7124, %v7188
        %v7245 = vmax.f32 %v7126, %v7190
        %v7246 = vmax.f32 %v7128, %v7192
        %v7247 = vmax.f32 %v7130, %v7194
        %v7248 = vmax.f32 %v7132, %v7196
        %v7249 = vmax.f32 %v7134, %v7198
        %v7250 = vmax.f32 %v7136, %v7200
        %v7251 = vmax.f32 %v7138, %v7202
        %v7252 = vmax.f32 %v7140, %v7204
        %v7253 = vmax.f32 %v7142, %v7206
        %v7254 = vmax.f32 %v7144, %v7208
        %v7255 = vmax.f32 %v7146, %v7210
        %v7256 = vmax.f32 %v7148, %v7212
        %v7257 = vmax.f32 %v7150, %v7214
        %v7258 = vmax.f32 %v7152, %v7216
        %v7259 = vmax.f32 %v7154, %v7218
        %v7260 = vmax.f32 %v7156, %v7220
        %v7261 = vmax.f32 %v7158, %v7222
        %v7262 = vmax.f32 %v7160, %v7224
        %v7263 = vmax.f32 %v7162, %v7226
        %v7264 = vmax.f32 %v7164, %v7228
        %v7265 = vmax.f32 %v7166, %v7230
        %v7266 = vmax.f32 %v7168, %v7232
        %v7267 = vmax.f32 %v7170, %v7234
        %v7268 = vmax.f32 %v7172, %v7236
        %s7269 = scalar_lea.vmem [#allocation2], 32
        %7270 = vst [vmem:[%s7269 + $0x8] sm:$0xff] %v7237
        %7271 = vst [vmem:[%s7269 + $0x10] sm:$0xff] %v7238
        %7272 = vst [vmem:[%s7269 + $0x28] sm:$0xff] %v7239
        %7273 = vst [vmem:[%s7269 + $0x30] sm:$0xff] %v7240
        %7274 = vst [vmem:[%s7269 + $0x48] sm:$0xff] %v7241
        %7275 = vst [vmem:[%s7269 + $0x50] sm:$0xff] %v7242
        %7276 = vst [vmem:[%s7269 + $0x68] sm:$0xff] %v7243
        %7277 = vst [vmem:[%s7269 + $0x70] sm:$0xff] %v7244
        %7278 = vst [vmem:[%s7269 + $0x88] sm:$0xff] %v7245
        %7279 = vst [vmem:[%s7269 + $0x90] sm:$0xff] %v7246
        %7280 = vst [vmem:[%s7269 + $0xa8] sm:$0xff] %v7247
        %7281 = vst [vmem:[%s7269 + $0xb0] sm:$0xff] %v7248
        %7282 = vst [vmem:[%s7269 + $0xc8] sm:$0xff] %v7249
        %7283 = vst [vmem:[%s7269 + $0xd0] sm:$0xff] %v7250
        %7284 = vst [vmem:[%s7269 + $0xe8] sm:$0xff] %v7251
        %7285 = vst [vmem:[%s7269 + $0xf0] sm:$0xff] %v7252
        %7286 = vst [vmem:[%s7269 + $0x108] sm:$0xff] %v7253
        %7287 = vst [vmem:[%s7269 + $0x110] sm:$0xff] %v7254
        %7288 = vst [vmem:[%s7269 + $0x128] sm:$0xff] %v7255
        %7289 = vst [vmem:[%s7269 + $0x130] sm:$0xff] %v7256
        %7290 = vst [vmem:[%s7269 + $0x148] sm:$0xff] %v7257
        %7291 = vst [vmem:[%s7269 + $0x150] sm:$0xff] %v7258
        %7292 = vst [vmem:[%s7269 + $0x168] sm:$0xff] %v7259
        %7293 = vst [vmem:[%s7269 + $0x170] sm:$0xff] %v7260
        %7294 = vst [vmem:[%s7269 + $0x188] sm:$0xff] %v7261
        %7295 = vst [vmem:[%s7269 + $0x190] sm:$0xff] %v7262
        %7296 = vst [vmem:[%s7269 + $0x1a8] sm:$0xff] %v7263
        %7297 = vst [vmem:[%s7269 + $0x1b0] sm:$0xff] %v7264
        %7298 = vst [vmem:[%s7269 + $0x1c8] sm:$0xff] %v7265
        %7299 = vst [vmem:[%s7269 + $0x1d0] sm:$0xff] %v7266
        %7300 = vst [vmem:[%s7269 + $0x1e8] sm:$0xff] %v7267
        %7301 = vst [vmem:[%s7269 + $0x1f0] sm:$0xff] %v7268
        %v7302 = vld [vmem:[#allocation2 + $0x7] sm:$0xff]
        %v7303 = vld [vmem:[#allocation2 + $0xf] sm:$0xff]
        %v7304 = vld [vmem:[#allocation2 + $0x27] sm:$0xff]
        %v7305 = vld [vmem:[#allocation2 + $0x2f] sm:$0xff]
        %v7306 = vld [vmem:[#allocation2 + $0x47] sm:$0xff]
        %v7307 = vld [vmem:[#allocation2 + $0x4f] sm:$0xff]
        %v7308 = vld [vmem:[#allocation2 + $0x67] sm:$0xff]
        %v7309 = vld [vmem:[#allocation2 + $0x6f] sm:$0xff]
        %v7310 = vld [vmem:[#allocation2 + $0x87] sm:$0xff]
        %v7311 = vld [vmem:[#allocation2 + $0x8f] sm:$0xff]
        %v7312 = vld [vmem:[#allocation2 + $0xa7] sm:$0xff]
        %v7313 = vld [vmem:[#allocation2 + $0xaf] sm:$0xff]
        %v7314 = vld [vmem:[#allocation2 + $0xc7] sm:$0xff]
        %v7315 = vld [vmem:[#allocation2 + $0xcf] sm:$0xff]
        %v7316 = vld [vmem:[#allocation2 + $0xe7] sm:$0xff]
        %v7317 = vld [vmem:[#allocation2 + $0xef] sm:$0xff]
        %v7318 = vld [vmem:[#allocation2 + $0x107] sm:$0xff]
        %v7319 = vld [vmem:[#allocation2 + $0x10f] sm:$0xff]
        %v7320 = vld [vmem:[#allocation2 + $0x127] sm:$0xff]
        %v7321 = vld [vmem:[#allocation2 + $0x12f] sm:$0xff]
        %v7322 = vld [vmem:[#allocation2 + $0x147] sm:$0xff]
        %v7323 = vld [vmem:[#allocation2 + $0x14f] sm:$0xff]
        %v7324 = vld [vmem:[#allocation2 + $0x167] sm:$0xff]
        %v7325 = vld [vmem:[#allocation2 + $0x16f] sm:$0xff]
        %v7326 = vld [vmem:[#allocation2 + $0x187] sm:$0xff]
        %v7327 = vld [vmem:[#allocation2 + $0x18f] sm:$0xff]
        %v7328 = vld [vmem:[#allocation2 + $0x1a7] sm:$0xff]
        %v7329 = vld [vmem:[#allocation2 + $0x1af] sm:$0xff]
        %v7330 = vld [vmem:[#allocation2 + $0x1c7] sm:$0xff]
        %v7331 = vld [vmem:[#allocation2 + $0x1cf] sm:$0xff]
        %v7332 = vld [vmem:[#allocation2 + $0x1e7] sm:$0xff]
        %v7333 = vld [vmem:[#allocation2 + $0x1ef] sm:$0xff]
        %v7334 = vld [vmem:[#allocation2 + $0x207] sm:$0xff]
        %v7335 = vld [vmem:[#allocation2 + $0x20f] sm:$0xff]
        %v7336 = vld [vmem:[#allocation2 + $0x227] sm:$0xff]
        %v7337 = vld [vmem:[#allocation2 + $0x22f] sm:$0xff]
        %v7338 = vld [vmem:[#allocation2 + $0x8] sm:$0xff]
        %v7339 = vld [vmem:[#allocation2 + $0x10] sm:$0xff]
        %v7340 = vld [vmem:[#allocation2 + $0x28] sm:$0xff]
        %v7341 = vld [vmem:[#allocation2 + $0x30] sm:$0xff]
        %v7342 = vld [vmem:[#allocation2 + $0x48] sm:$0xff]
        %v7343 = vld [vmem:[#allocation2 + $0x50] sm:$0xff]
        %v7344 = vld [vmem:[#allocation2 + $0x68] sm:$0xff]
        %v7345 = vld [vmem:[#allocation2 + $0x70] sm:$0xff]
        %v7346 = vld [vmem:[#allocation2 + $0x88] sm:$0xff]
        %v7347 = vld [vmem:[#allocation2 + $0x90] sm:$0xff]
        %v7348 = vld [vmem:[#allocation2 + $0xa8] sm:$0xff]
        %v7349 = vld [vmem:[#allocation2 + $0xb0] sm:$0xff]
        %v7350 = vld [vmem:[#allocation2 + $0xc8] sm:$0xff]
        %v7351 = vld [vmem:[#allocation2 + $0xd0] sm:$0xff]
        %v7352 = vld [vmem:[#allocation2 + $0xe8] sm:$0xff]
        %v7353 = vld [vmem:[#allocation2 + $0xf0] sm:$0xff]
        %v7354 = vld [vmem:[#allocation2 + $0x108] sm:$0xff]
        %v7355 = vld [vmem:[#allocation2 + $0x110] sm:$0xff]
        %v7356 = vld [vmem:[#allocation2 + $0x128] sm:$0xff]
        %v7357 = vld [vmem:[#allocation2 + $0x130] sm:$0xff]
        %v7358 = vld [vmem:[#allocation2 + $0x148] sm:$0xff]
        %v7359 = vld [vmem:[#allocation2 + $0x150] sm:$0xff]
        %v7360 = vld [vmem:[#allocation2 + $0x168] sm:$0xff]
        %v7361 = vld [vmem:[#allocation2 + $0x170] sm:$0xff]
        %v7362 = vld [vmem:[#allocation2 + $0x188] sm:$0xff]
        %v7363 = vld [vmem:[#allocation2 + $0x190] sm:$0xff]
        %v7364 = vld [vmem:[#allocation2 + $0x1a8] sm:$0xff]
        %v7365 = vld [vmem:[#allocation2 + $0x1b0] sm:$0xff]
        %v7366 = vld [vmem:[#allocation2 + $0x1c8] sm:$0xff]
        %v7367 = vld [vmem:[#allocation2 + $0x1d0] sm:$0xff]
        %v7368 = vld [vmem:[#allocation2 + $0x1e8] sm:$0xff]
        %v7369 = vld [vmem:[#allocation2 + $0x1f0] sm:$0xff]
        %v7370 = vld [vmem:[#allocation2 + $0x208] sm:$0xff]
        %v7371 = vld [vmem:[#allocation2 + $0x210] sm:$0xff]
        %v7372 = vld [vmem:[#allocation2 + $0x228] sm:$0xff]
        %v7373 = vld [vmem:[#allocation2 + $0x230] sm:$0xff]
        %v7374 = vld [vmem:[#allocation2 + $0x9] sm:$0xff]
        %v7375 = vld [vmem:[#allocation2 + $0x11] sm:$0xff]
        %v7376 = vld [vmem:[#allocation2 + $0x29] sm:$0xff]
        %v7377 = vld [vmem:[#allocation2 + $0x31] sm:$0xff]
        %v7378 = vld [vmem:[#allocation2 + $0x49] sm:$0xff]
        %v7379 = vld [vmem:[#allocation2 + $0x51] sm:$0xff]
        %v7380 = vld [vmem:[#allocation2 + $0x69] sm:$0xff]
        %v7381 = vld [vmem:[#allocation2 + $0x71] sm:$0xff]
        %v7382 = vld [vmem:[#allocation2 + $0x89] sm:$0xff]
        %v7383 = vld [vmem:[#allocation2 + $0x91] sm:$0xff]
        %v7384 = vld [vmem:[#allocation2 + $0xa9] sm:$0xff]
        %v7385 = vld [vmem:[#allocation2 + $0xb1] sm:$0xff]
        %v7386 = vld [vmem:[#allocation2 + $0xc9] sm:$0xff]
        %v7387 = vld [vmem:[#allocation2 + $0xd1] sm:$0xff]
        %v7388 = vld [vmem:[#allocation2 + $0xe9] sm:$0xff]
        %v7389 = vld [vmem:[#allocation2 + $0xf1] sm:$0xff]
        %v7390 = vld [vmem:[#allocation2 + $0x109] sm:$0xff]
        %v7391 = vld [vmem:[#allocation2 + $0x111] sm:$0xff]
        %v7392 = vld [vmem:[#allocation2 + $0x129] sm:$0xff]
        %v7393 = vld [vmem:[#allocation2 + $0x131] sm:$0xff]
        %v7394 = vld [vmem:[#allocation2 + $0x149] sm:$0xff]
        %v7395 = vld [vmem:[#allocation2 + $0x151] sm:$0xff]
        %v7396 = vld [vmem:[#allocation2 + $0x169] sm:$0xff]
        %v7397 = vld [vmem:[#allocation2 + $0x171] sm:$0xff]
        %v7398 = vld [vmem:[#allocation2 + $0x189] sm:$0xff]
        %v7399 = vld [vmem:[#allocation2 + $0x191] sm:$0xff]
        %v7400 = vld [vmem:[#allocation2 + $0x1a9] sm:$0xff]
        %v7401 = vld [vmem:[#allocation2 + $0x1b1] sm:$0xff]
        %v7402 = vld [vmem:[#allocation2 + $0x1c9] sm:$0xff]
        %v7403 = vld [vmem:[#allocation2 + $0x1d1] sm:$0xff]
        %v7404 = vld [vmem:[#allocation2 + $0x1e9] sm:$0xff]
        %v7405 = vld [vmem:[#allocation2 + $0x1f1] sm:$0xff]
        %v7406 = vld [vmem:[#allocation2 + $0x209] sm:$0xff]
        %v7407 = vld [vmem:[#allocation2 + $0x211] sm:$0xff]
        %v7408 = vld [vmem:[#allocation2 + $0x229] sm:$0xff]
        %v7409 = vld [vmem:[#allocation2 + $0x231] sm:$0xff]
        %v7410 = vld [vmem:[%s3] sm:$0xff]
        %v7411 = vld [vmem:[%s3 + $0x8] sm:$0xff]
        %v7412 = vld [vmem:[%s3 + $0x10] sm:$0xff]
        %v7413 = vld [vmem:[%s3 + $0x18] sm:$0xff]
        %v7414 = vld [vmem:[%s3 + $0x20] sm:$0xff]
        %v7415 = vld [vmem:[%s3 + $0x28] sm:$0xff]
        %v7416 = vld [vmem:[%s3 + $0x30] sm:$0xff]
        %v7417 = vld [vmem:[%s3 + $0x38] sm:$0xff]
        %v7418 = vld [vmem:[%s3 + $0x40] sm:$0xff]
        %v7419 = vld [vmem:[%s3 + $0x48] sm:$0xff]
        %v7420 = vld [vmem:[%s3 + $0x50] sm:$0xff]
        %v7421 = vld [vmem:[%s3 + $0x58] sm:$0xff]
        %v7422 = vld [vmem:[%s3 + $0x60] sm:$0xff]
        %v7423 = vld [vmem:[%s3 + $0x68] sm:$0xff]
        %v7424 = vld [vmem:[%s3 + $0x70] sm:$0xff]
        %v7425 = vld [vmem:[%s3 + $0x78] sm:$0xff]
        %s7426 = scalar_lea.vmem %s3, 128
        %v7427 = vld [vmem:[%s7426] sm:$0xff]
        %v7428 = vld [vmem:[%s7426 + $0x8] sm:$0xff]
        %v7429 = vld [vmem:[%s7426 + $0x10] sm:$0xff]
        %v7430 = vld [vmem:[%s7426 + $0x18] sm:$0xff]
        %v7431 = vld [vmem:[%s7426 + $0x20] sm:$0xff]
        %v7432 = vld [vmem:[%s7426 + $0x28] sm:$0xff]
        %v7433 = vld [vmem:[%s7426 + $0x30] sm:$0xff]
        %v7434 = vld [vmem:[%s7426 + $0x38] sm:$0xff]
        %v7435 = vld [vmem:[%s7426 + $0x40] sm:$0xff]
        %v7436 = vld [vmem:[%s7426 + $0x48] sm:$0xff]
        %v7437 = vld [vmem:[%s7426 + $0x50] sm:$0xff]
        %v7438 = vld [vmem:[%s7426 + $0x58] sm:$0xff]
        %v7439 = vld [vmem:[%s7426 + $0x60] sm:$0xff]
        %v7440 = vld [vmem:[%s7426 + $0x68] sm:$0xff]
        %v7441 = vld [vmem:[%s7426 + $0x70] sm:$0xff]
        %v7442 = vld [vmem:[%s7426 + $0x78] sm:$0xff]
        %7443 = vmatpush.msra.mxu0 %v7442
        %7444 = vmatpush.msra.mxu0 %v7441
        %7445 = vmatpush.msra.mxu0 %v7440
        %7446 = vmatpush.msra.mxu0 %v7439
        %7447 = vmatpush.msra.mxu0 %v7438
        %7448 = vmatpush.msra.mxu0 %v7437
        %7449 = vmatpush.msra.mxu0 %v7436
        %7450 = vmatpush.msra.mxu0 %v7435
        %7451 = vmatpush.msra.mxu0 %v7434
        %7452 = vmatpush.msra.mxu0 %v7433
        %7453 = vmatpush.msra.mxu0 %v7432
        %7454 = vmatpush.msra.mxu0 %v7431
        %7455 = vmatpush.msra.mxu0 %v7430
        %7456 = vmatpush.msra.mxu0 %v7429
        %7457 = vmatpush.msra.mxu0 %v7428
        %7458 = vmatpush.msra.mxu0 %v7427
        %7459 = vmatmul.f32.gmra.mxu0 %v7338
        %v7460 = vpop.f32.mrf.mxu0
        %v7461 = vadd.f32 0.0, %v7460
        %7462 = vmatmul.f32.gmra.mxu0 %v7339
        %v7463 = vpop.f32.mrf.mxu0
        %v7464 = vadd.f32 0.0, %v7463
        %7465 = vmatmul.f32.gmra.mxu0 %v7340
        %v7466 = vpop.f32.mrf.mxu0
        %v7467 = vadd.f32 0.0, %v7466
        %7468 = vmatmul.f32.gmra.mxu0 %v7341
        %v7469 = vpop.f32.mrf.mxu0
        %v7470 = vadd.f32 0.0, %v7469
        %7471 = vmatmul.f32.gmra.mxu0 %v7342
        %v7472 = vpop.f32.mrf.mxu0
        %v7473 = vadd.f32 0.0, %v7472
        %7474 = vmatmul.f32.gmra.mxu0 %v7343
        %v7475 = vpop.f32.mrf.mxu0
        %v7476 = vadd.f32 0.0, %v7475
        %7477 = vmatmul.f32.gmra.mxu0 %v7344
        %v7478 = vpop.f32.mrf.mxu0
        %v7479 = vadd.f32 0.0, %v7478
        %7480 = vmatmul.f32.gmra.mxu0 %v7345
        %v7481 = vpop.f32.mrf.mxu0
        %v7482 = vadd.f32 0.0, %v7481
        %7483 = vmatmul.f32.gmra.mxu0 %v7346
        %v7484 = vpop.f32.mrf.mxu0
        %v7485 = vadd.f32 0.0, %v7484
        %7486 = vmatmul.f32.gmra.mxu0 %v7347
        %v7487 = vpop.f32.mrf.mxu0
        %v7488 = vadd.f32 0.0, %v7487
        %7489 = vmatmul.f32.gmra.mxu0 %v7348
        %v7490 = vpop.f32.mrf.mxu0
        %v7491 = vadd.f32 0.0, %v7490
        %7492 = vmatmul.f32.gmra.mxu0 %v7349
        %v7493 = vpop.f32.mrf.mxu0
        %v7494 = vadd.f32 0.0, %v7493
        %7495 = vmatmul.f32.gmra.mxu0 %v7350
        %v7496 = vpop.f32.mrf.mxu0
        %v7497 = vadd.f32 0.0, %v7496
        %7498 = vmatmul.f32.gmra.mxu0 %v7351
        %v7499 = vpop.f32.mrf.mxu0
        %v7500 = vadd.f32 0.0, %v7499
        %7501 = vmatmul.f32.gmra.mxu0 %v7352
        %v7502 = vpop.f32.mrf.mxu0
        %v7503 = vadd.f32 0.0, %v7502
        %7504 = vmatmul.f32.gmra.mxu0 %v7353
        %v7505 = vpop.f32.mrf.mxu0
        %v7506 = vadd.f32 0.0, %v7505
        %7507 = vmatmul.f32.gmra.mxu0 %v7354
        %v7508 = vpop.f32.mrf.mxu0
        %v7509 = vadd.f32 0.0, %v7508
        %7510 = vmatmul.f32.gmra.mxu0 %v7355
        %v7511 = vpop.f32.mrf.mxu0
        %v7512 = vadd.f32 0.0, %v7511
        %7513 = vmatmul.f32.gmra.mxu0 %v7356
        %v7514 = vpop.f32.mrf.mxu0
        %v7515 = vadd.f32 0.0, %v7514
        %7516 = vmatmul.f32.gmra.mxu0 %v7357
        %v7517 = vpop.f32.mrf.mxu0
        %v7518 = vadd.f32 0.0, %v7517
        %7519 = vmatmul.f32.gmra.mxu0 %v7358
        %v7520 = vpop.f32.mrf.mxu0
        %v7521 = vadd.f32 0.0, %v7520
        %7522 = vmatmul.f32.gmra.mxu0 %v7359
        %v7523 = vpop.f32.mrf.mxu0
        %v7524 = vadd.f32 0.0, %v7523
        %7525 = vmatmul.f32.gmra.mxu0 %v7360
        %v7526 = vpop.f32.mrf.mxu0
        %v7527 = vadd.f32 0.0, %v7526
        %7528 = vmatmul.f32.gmra.mxu0 %v7361
        %v7529 = vpop.f32.mrf.mxu0
        %v7530 = vadd.f32 0.0, %v7529
        %7531 = vmatmul.f32.gmra.mxu0 %v7362
        %v7532 = vpop.f32.mrf.mxu0
        %v7533 = vadd.f32 0.0, %v7532
        %7534 = vmatmul.f32.gmra.mxu0 %v7363
        %v7535 = vpop.f32.mrf.mxu0
        %v7536 = vadd.f32 0.0, %v7535
        %7537 = vmatmul.f32.gmra.mxu0 %v7364
        %v7538 = vpop.f32.mrf.mxu0
        %v7539 = vadd.f32 0.0, %v7538
        %7540 = vmatmul.f32.gmra.mxu0 %v7365
        %v7541 = vpop.f32.mrf.mxu0
        %v7542 = vadd.f32 0.0, %v7541
        %7543 = vmatmul.f32.gmra.mxu0 %v7366
        %v7544 = vpop.f32.mrf.mxu0
        %v7545 = vadd.f32 0.0, %v7544
        %7546 = vmatmul.f32.gmra.mxu0 %v7367
        %v7547 = vpop.f32.mrf.mxu0
        %v7548 = vadd.f32 0.0, %v7547
        %7549 = vmatmul.f32.gmra.mxu0 %v7368
        %v7550 = vpop.f32.mrf.mxu0
        %v7551 = vadd.f32 0.0, %v7550
        %7552 = vmatmul.f32.gmra.mxu0 %v7369
        %v7553 = vpop.f32.mrf.mxu0
        %v7554 = vadd.f32 0.0, %v7553
        %7555 = vdwg.mxu0
        %7556 = vmatpush.msra.mxu0 %v7425
        %7557 = vmatpush.msra.mxu0 %v7424
        %7558 = vmatpush.msra.mxu0 %v7423
        %7559 = vmatpush.msra.mxu0 %v7422
        %7560 = vmatpush.msra.mxu0 %v7421
        %7561 = vmatpush.msra.mxu0 %v7420
        %7562 = vmatpush.msra.mxu0 %v7419
        %7563 = vmatpush.msra.mxu0 %v7418
        %7564 = vmatpush.msra.mxu0 %v7417
        %7565 = vmatpush.msra.mxu0 %v7416
        %7566 = vmatpush.msra.mxu0 %v7415
        %7567 = vmatpush.msra.mxu0 %v7414
        %7568 = vmatpush.msra.mxu0 %v7413
        %7569 = vmatpush.msra.mxu0 %v7412
        %7570 = vmatpush.msra.mxu0 %v7411
        %7571 = vmatpush.msra.mxu0 %v7410
        %7572 = vmatmul.f32.gmra.mxu0 %v7302
        %v7573 = vpop.f32.mrf.mxu0
        %v7574 = vadd.f32 %v7461, %v7573
        %7575 = vmatmul.f32.gmra.mxu0 %v7303
        %v7576 = vpop.f32.mrf.mxu0
        %v7577 = vadd.f32 %v7464, %v7576
        %7578 = vmatmul.f32.gmra.mxu0 %v7304
        %v7579 = vpop.f32.mrf.mxu0
        %v7580 = vadd.f32 %v7467, %v7579
        %7581 = vmatmul.f32.gmra.mxu0 %v7305
        %v7582 = vpop.f32.mrf.mxu0
        %v7583 = vadd.f32 %v7470, %v7582
        %7584 = vmatmul.f32.gmra.mxu0 %v7306
        %v7585 = vpop.f32.mrf.mxu0
        %v7586 = vadd.f32 %v7473, %v7585
        %7587 = vmatmul.f32.gmra.mxu0 %v7307
        %v7588 = vpop.f32.mrf.mxu0
        %v7589 = vadd.f32 %v7476, %v7588
        %7590 = vmatmul.f32.gmra.mxu0 %v7308
        %v7591 = vpop.f32.mrf.mxu0
        %v7592 = vadd.f32 %v7479, %v7591
        %7593 = vmatmul.f32.gmra.mxu0 %v7309
        %v7594 = vpop.f32.mrf.mxu0
        %v7595 = vadd.f32 %v7482, %v7594
        %7596 = vmatmul.f32.gmra.mxu0 %v7310
        %v7597 = vpop.f32.mrf.mxu0
        %v7598 = vadd.f32 %v7485, %v7597
        %7599 = vmatmul.f32.gmra.mxu0 %v7311
        %v7600 = vpop.f32.mrf.mxu0
        %v7601 = vadd.f32 %v7488, %v7600
        %7602 = vmatmul.f32.gmra.mxu0 %v7312
        %v7603 = vpop.f32.mrf.mxu0
        %v7604 = vadd.f32 %v7491, %v7603
        %7605 = vmatmul.f32.gmra.mxu0 %v7313
        %v7606 = vpop.f32.mrf.mxu0
        %v7607 = vadd.f32 %v7494, %v7606
        %7608 = vmatmul.f32.gmra.mxu0 %v7314
        %v7609 = vpop.f32.mrf.mxu0
        %v7610 = vadd.f32 %v7497, %v7609
        %7611 = vmatmul.f32.gmra.mxu0 %v7315
        %v7612 = vpop.f32.mrf.mxu0
        %v7613 = vadd.f32 %v7500, %v7612
        %7614 = vmatmul.f32.gmra.mxu0 %v7316
        %v7615 = vpop.f32.mrf.mxu0
        %v7616 = vadd.f32 %v7503, %v7615
        %7617 = vmatmul.f32.gmra.mxu0 %v7317
        %v7618 = vpop.f32.mrf.mxu0
        %v7619 = vadd.f32 %v7506, %v7618
        %7620 = vmatmul.f32.gmra.mxu0 %v7318
        %v7621 = vpop.f32.mrf.mxu0
        %v7622 = vadd.f32 %v7509, %v7621
        %7623 = vmatmul.f32.gmra.mxu0 %v7319
        %v7624 = vpop.f32.mrf.mxu0
        %v7625 = vadd.f32 %v7512, %v7624
        %7626 = vmatmul.f32.gmra.mxu0 %v7320
        %v7627 = vpop.f32.mrf.mxu0
        %v7628 = vadd.f32 %v7515, %v7627
        %7629 = vmatmul.f32.gmra.mxu0 %v7321
        %v7630 = vpop.f32.mrf.mxu0
        %v7631 = vadd.f32 %v7518, %v7630
        %7632 = vmatmul.f32.gmra.mxu0 %v7322
        %v7633 = vpop.f32.mrf.mxu0
        %v7634 = vadd.f32 %v7521, %v7633
        %7635 = vmatmul.f32.gmra.mxu0 %v7323
        %v7636 = vpop.f32.mrf.mxu0
        %v7637 = vadd.f32 %v7524, %v7636
        %7638 = vmatmul.f32.gmra.mxu0 %v7324
        %v7639 = vpop.f32.mrf.mxu0
        %v7640 = vadd.f32 %v7527, %v7639
        %7641 = vmatmul.f32.gmra.mxu0 %v7325
        %v7642 = vpop.f32.mrf.mxu0
        %v7643 = vadd.f32 %v7530, %v7642
        %7644 = vmatmul.f32.gmra.mxu0 %v7326
        %v7645 = vpop.f32.mrf.mxu0
        %v7646 = vadd.f32 %v7533, %v7645
        %7647 = vmatmul.f32.gmra.mxu0 %v7327
        %v7648 = vpop.f32.mrf.mxu0
        %v7649 = vadd.f32 %v7536, %v7648
        %7650 = vmatmul.f32.gmra.mxu0 %v7328
        %v7651 = vpop.f32.mrf.mxu0
        %v7652 = vadd.f32 %v7539, %v7651
        %7653 = vmatmul.f32.gmra.mxu0 %v7329
        %v7654 = vpop.f32.mrf.mxu0
        %v7655 = vadd.f32 %v7542, %v7654
        %7656 = vmatmul.f32.gmra.mxu0 %v7330
        %v7657 = vpop.f32.mrf.mxu0
        %v7658 = vadd.f32 %v7545, %v7657
        %7659 = vmatmul.f32.gmra.mxu0 %v7331
        %v7660 = vpop.f32.mrf.mxu0
        %v7661 = vadd.f32 %v7548, %v7660
        %7662 = vmatmul.f32.gmra.mxu0 %v7332
        %v7663 = vpop.f32.mrf.mxu0
        %v7664 = vadd.f32 %v7551, %v7663
        %7665 = vmatmul.f32.gmra.mxu0 %v7333
        %v7666 = vpop.f32.mrf.mxu0
        %v7667 = vadd.f32 %v7554, %v7666
        %7668 = vdwg.mxu0
        %s7669 = scalar_lea.vmem %s3, 256
        %v7670 = vld [vmem:[%s7669] sm:$0xff]
        %v7671 = vld [vmem:[%s7669 + $0x8] sm:$0xff]
        %v7672 = vld [vmem:[%s7669 + $0x10] sm:$0xff]
        %v7673 = vld [vmem:[%s7669 + $0x18] sm:$0xff]
        %v7674 = vld [vmem:[%s7669 + $0x20] sm:$0xff]
        %v7675 = vld [vmem:[%s7669 + $0x28] sm:$0xff]
        %v7676 = vld [vmem:[%s7669 + $0x30] sm:$0xff]
        %v7677 = vld [vmem:[%s7669 + $0x38] sm:$0xff]
        %v7678 = vld [vmem:[%s7669 + $0x40] sm:$0xff]
        %v7679 = vld [vmem:[%s7669 + $0x48] sm:$0xff]
        %v7680 = vld [vmem:[%s7669 + $0x50] sm:$0xff]
        %v7681 = vld [vmem:[%s7669 + $0x58] sm:$0xff]
        %v7682 = vld [vmem:[%s7669 + $0x60] sm:$0xff]
        %v7683 = vld [vmem:[%s7669 + $0x68] sm:$0xff]
        %v7684 = vld [vmem:[%s7669 + $0x70] sm:$0xff]
        %v7685 = vld [vmem:[%s7669 + $0x78] sm:$0xff]
        %7686 = vmatpush.msra.mxu0 %v7685
        %7687 = vmatpush.msra.mxu0 %v7684
        %7688 = vmatpush.msra.mxu0 %v7683
        %7689 = vmatpush.msra.mxu0 %v7682
        %7690 = vmatpush.msra.mxu0 %v7681
        %7691 = vmatpush.msra.mxu0 %v7680
        %7692 = vmatpush.msra.mxu0 %v7679
        %7693 = vmatpush.msra.mxu0 %v7678
        %7694 = vmatpush.msra.mxu0 %v7677
        %7695 = vmatpush.msra.mxu0 %v7676
        %7696 = vmatpush.msra.mxu0 %v7675
        %7697 = vmatpush.msra.mxu0 %v7674
        %7698 = vmatpush.msra.mxu0 %v7673
        %7699 = vmatpush.msra.mxu0 %v7672
        %7700 = vmatpush.msra.mxu0 %v7671
        %7701 = vmatpush.msra.mxu0 %v7670
        %7702 = vmatmul.f32.gmra.mxu0 %v7374
        %v7703 = vpop.f32.mrf.mxu0
        %v7704 = vadd.f32 0.0, %v7703
        %7705 = vmatmul.f32.gmra.mxu0 %v7375
        %v7706 = vpop.f32.mrf.mxu0
        %v7707 = vadd.f32 0.0, %v7706
        %7708 = vmatmul.f32.gmra.mxu0 %v7376
        %v7709 = vpop.f32.mrf.mxu0
        %v7710 = vadd.f32 0.0, %v7709
        %7711 = vmatmul.f32.gmra.mxu0 %v7377
        %v7712 = vpop.f32.mrf.mxu0
        %v7713 = vadd.f32 0.0, %v7712
        %7714 = vmatmul.f32.gmra.mxu0 %v7378
        %v7715 = vpop.f32.mrf.mxu0
        %v7716 = vadd.f32 0.0, %v7715
        %7717 = vmatmul.f32.gmra.mxu0 %v7379
        %v7718 = vpop.f32.mrf.mxu0
        %v7719 = vadd.f32 0.0, %v7718
        %7720 = vmatmul.f32.gmra.mxu0 %v7380
        %v7721 = vpop.f32.mrf.mxu0
        %v7722 = vadd.f32 0.0, %v7721
        %7723 = vmatmul.f32.gmra.mxu0 %v7381
        %v7724 = vpop.f32.mrf.mxu0
        %v7725 = vadd.f32 0.0, %v7724
        %7726 = vmatmul.f32.gmra.mxu0 %v7382
        %v7727 = vpop.f32.mrf.mxu0
        %v7728 = vadd.f32 0.0, %v7727
        %7729 = vmatmul.f32.gmra.mxu0 %v7383
        %v7730 = vpop.f32.mrf.mxu0
        %v7731 = vadd.f32 0.0, %v7730
        %7732 = vmatmul.f32.gmra.mxu0 %v7384
        %v7733 = vpop.f32.mrf.mxu0
        %v7734 = vadd.f32 0.0, %v7733
        %7735 = vmatmul.f32.gmra.mxu0 %v7385
        %v7736 = vpop.f32.mrf.mxu0
        %v7737 = vadd.f32 0.0, %v7736
        %7738 = vmatmul.f32.gmra.mxu0 %v7386
        %v7739 = vpop.f32.mrf.mxu0
        %v7740 = vadd.f32 0.0, %v7739
        %7741 = vmatmul.f32.gmra.mxu0 %v7387
        %v7742 = vpop.f32.mrf.mxu0
        %v7743 = vadd.f32 0.0, %v7742
        %7744 = vmatmul.f32.gmra.mxu0 %v7388
        %v7745 = vpop.f32.mrf.mxu0
        %v7746 = vadd.f32 0.0, %v7745
        %7747 = vmatmul.f32.gmra.mxu0 %v7389
        %v7748 = vpop.f32.mrf.mxu0
        %v7749 = vadd.f32 0.0, %v7748
        %7750 = vmatmul.f32.gmra.mxu0 %v7390
        %v7751 = vpop.f32.mrf.mxu0
        %v7752 = vadd.f32 0.0, %v7751
        %7753 = vmatmul.f32.gmra.mxu0 %v7391
        %v7754 = vpop.f32.mrf.mxu0
        %v7755 = vadd.f32 0.0, %v7754
        %7756 = vmatmul.f32.gmra.mxu0 %v7392
        %v7757 = vpop.f32.mrf.mxu0
        %v7758 = vadd.f32 0.0, %v7757
        %7759 = vmatmul.f32.gmra.mxu0 %v7393
        %v7760 = vpop.f32.mrf.mxu0
        %v7761 = vadd.f32 0.0, %v7760
        %7762 = vmatmul.f32.gmra.mxu0 %v7394
        %v7763 = vpop.f32.mrf.mxu0
        %v7764 = vadd.f32 0.0, %v7763
        %7765 = vmatmul.f32.gmra.mxu0 %v7395
        %v7766 = vpop.f32.mrf.mxu0
        %v7767 = vadd.f32 0.0, %v7766
        %7768 = vmatmul.f32.gmra.mxu0 %v7396
        %v7769 = vpop.f32.mrf.mxu0
        %v7770 = vadd.f32 0.0, %v7769
        %7771 = vmatmul.f32.gmra.mxu0 %v7397
        %v7772 = vpop.f32.mrf.mxu0
        %v7773 = vadd.f32 0.0, %v7772
        %7774 = vmatmul.f32.gmra.mxu0 %v7398
        %v7775 = vpop.f32.mrf.mxu0
        %v7776 = vadd.f32 0.0, %v7775
        %7777 = vmatmul.f32.gmra.mxu0 %v7399
        %v7778 = vpop.f32.mrf.mxu0
        %v7779 = vadd.f32 0.0, %v7778
        %7780 = vmatmul.f32.gmra.mxu0 %v7400
        %v7781 = vpop.f32.mrf.mxu0
        %v7782 = vadd.f32 0.0, %v7781
        %7783 = vmatmul.f32.gmra.mxu0 %v7401
        %v7784 = vpop.f32.mrf.mxu0
        %v7785 = vadd.f32 0.0, %v7784
        %7786 = vmatmul.f32.gmra.mxu0 %v7402
        %v7787 = vpop.f32.mrf.mxu0
        %v7788 = vadd.f32 0.0, %v7787
        %7789 = vmatmul.f32.gmra.mxu0 %v7403
        %v7790 = vpop.f32.mrf.mxu0
        %v7791 = vadd.f32 0.0, %v7790
        %7792 = vmatmul.f32.gmra.mxu0 %v7404
        %v7793 = vpop.f32.mrf.mxu0
        %v7794 = vadd.f32 0.0, %v7793
        %7795 = vmatmul.f32.gmra.mxu0 %v7405
        %v7796 = vpop.f32.mrf.mxu0
        %v7797 = vadd.f32 0.0, %v7796
        %7798 = vdwg.mxu0
        %v7799 = vadd.f32 %v7574, %v7704
        %v7800 = vadd.f32 %v7577, %v7707
        %v7801 = vadd.f32 %v7580, %v7710
        %v7802 = vadd.f32 %v7583, %v7713
        %v7803 = vadd.f32 %v7586, %v7716
        %v7804 = vadd.f32 %v7589, %v7719
        %v7805 = vadd.f32 %v7592, %v7722
        %v7806 = vadd.f32 %v7595, %v7725
        %v7807 = vadd.f32 %v7598, %v7728
        %v7808 = vadd.f32 %v7601, %v7731
        %v7809 = vadd.f32 %v7604, %v7734
        %v7810 = vadd.f32 %v7607, %v7737
        %v7811 = vadd.f32 %v7610, %v7740
        %v7812 = vadd.f32 %v7613, %v7743
        %v7813 = vadd.f32 %v7616, %v7746
        %v7814 = vadd.f32 %v7619, %v7749
        %v7815 = vadd.f32 %v7622, %v7752
        %v7816 = vadd.f32 %v7625, %v7755
        %v7817 = vadd.f32 %v7628, %v7758
        %v7818 = vadd.f32 %v7631, %v7761
        %v7819 = vadd.f32 %v7634, %v7764
        %v7820 = vadd.f32 %v7637, %v7767
        %v7821 = vadd.f32 %v7640, %v7770
        %v7822 = vadd.f32 %v7643, %v7773
        %v7823 = vadd.f32 %v7646, %v7776
        %v7824 = vadd.f32 %v7649, %v7779
        %v7825 = vadd.f32 %v7652, %v7782
        %v7826 = vadd.f32 %v7655, %v7785
        %v7827 = vadd.f32 %v7658, %v7788
        %v7828 = vadd.f32 %v7661, %v7791
        %v7829 = vadd.f32 %v7664, %v7794
        %v7830 = vadd.f32 %v7667, %v7797
        %s7831 = scalar_lea.vmem %s3, 384
        %v7832 = vld [vmem:[%s7831] sm:$0xff]
        %v7833 = vld [vmem:[%s7831 + $0x8] sm:$0xff]
        %v7834 = vld [vmem:[%s7831 + $0x10] sm:$0xff]
        %v7835 = vld [vmem:[%s7831 + $0x18] sm:$0xff]
        %v7836 = vld [vmem:[%s7831 + $0x20] sm:$0xff]
        %v7837 = vld [vmem:[%s7831 + $0x28] sm:$0xff]
        %v7838 = vld [vmem:[%s7831 + $0x30] sm:$0xff]
        %v7839 = vld [vmem:[%s7831 + $0x38] sm:$0xff]
        %v7840 = vld [vmem:[%s7831 + $0x40] sm:$0xff]
        %v7841 = vld [vmem:[%s7831 + $0x48] sm:$0xff]
        %v7842 = vld [vmem:[%s7831 + $0x50] sm:$0xff]
        %v7843 = vld [vmem:[%s7831 + $0x58] sm:$0xff]
        %v7844 = vld [vmem:[%s7831 + $0x60] sm:$0xff]
        %v7845 = vld [vmem:[%s7831 + $0x68] sm:$0xff]
        %v7846 = vld [vmem:[%s7831 + $0x70] sm:$0xff]
        %v7847 = vld [vmem:[%s7831 + $0x78] sm:$0xff]
        %7848 = vmatpush.msra.mxu0 %v7847
        %7849 = vmatpush.msra.mxu0 %v7846
        %7850 = vmatpush.msra.mxu0 %v7845
        %7851 = vmatpush.msra.mxu0 %v7844
        %7852 = vmatpush.msra.mxu0 %v7843
        %7853 = vmatpush.msra.mxu0 %v7842
        %7854 = vmatpush.msra.mxu0 %v7841
        %7855 = vmatpush.msra.mxu0 %v7840
        %7856 = vmatpush.msra.mxu0 %v7839
        %7857 = vmatpush.msra.mxu0 %v7838
        %7858 = vmatpush.msra.mxu0 %v7837
        %7859 = vmatpush.msra.mxu0 %v7836
        %7860 = vmatpush.msra.mxu0 %v7835
        %7861 = vmatpush.msra.mxu0 %v7834
        %7862 = vmatpush.msra.mxu0 %v7833
        %7863 = vmatpush.msra.mxu0 %v7832
        %7864 = vmatmul.f32.gmra.mxu0 %v7304
        %v7865 = vpop.f32.mrf.mxu0
        %v7866 = vadd.f32 0.0, %v7865
        %7867 = vmatmul.f32.gmra.mxu0 %v7305
        %v7868 = vpop.f32.mrf.mxu0
        %v7869 = vadd.f32 0.0, %v7868
        %7870 = vmatmul.f32.gmra.mxu0 %v7306
        %v7871 = vpop.f32.mrf.mxu0
        %v7872 = vadd.f32 0.0, %v7871
        %7873 = vmatmul.f32.gmra.mxu0 %v7307
        %v7874 = vpop.f32.mrf.mxu0
        %v7875 = vadd.f32 0.0, %v7874
        %7876 = vmatmul.f32.gmra.mxu0 %v7308
        %v7877 = vpop.f32.mrf.mxu0
        %v7878 = vadd.f32 0.0, %v7877
        %7879 = vmatmul.f32.gmra.mxu0 %v7309
        %v7880 = vpop.f32.mrf.mxu0
        %v7881 = vadd.f32 0.0, %v7880
        %7882 = vmatmul.f32.gmra.mxu0 %v7310
        %v7883 = vpop.f32.mrf.mxu0
        %v7884 = vadd.f32 0.0, %v7883
        %7885 = vmatmul.f32.gmra.mxu0 %v7311
        %v7886 = vpop.f32.mrf.mxu0
        %v7887 = vadd.f32 0.0, %v7886
        %7888 = vmatmul.f32.gmra.mxu0 %v7312
        %v7889 = vpop.f32.mrf.mxu0
        %v7890 = vadd.f32 0.0, %v7889
        %7891 = vmatmul.f32.gmra.mxu0 %v7313
        %v7892 = vpop.f32.mrf.mxu0
        %v7893 = vadd.f32 0.0, %v7892
        %7894 = vmatmul.f32.gmra.mxu0 %v7314
        %v7895 = vpop.f32.mrf.mxu0
        %v7896 = vadd.f32 0.0, %v7895
        %7897 = vmatmul.f32.gmra.mxu0 %v7315
        %v7898 = vpop.f32.mrf.mxu0
        %v7899 = vadd.f32 0.0, %v7898
        %7900 = vmatmul.f32.gmra.mxu0 %v7316
        %v7901 = vpop.f32.mrf.mxu0
        %v7902 = vadd.f32 0.0, %v7901
        %7903 = vmatmul.f32.gmra.mxu0 %v7317
        %v7904 = vpop.f32.mrf.mxu0
        %v7905 = vadd.f32 0.0, %v7904
        %7906 = vmatmul.f32.gmra.mxu0 %v7318
        %v7907 = vpop.f32.mrf.mxu0
        %v7908 = vadd.f32 0.0, %v7907
        %7909 = vmatmul.f32.gmra.mxu0 %v7319
        %v7910 = vpop.f32.mrf.mxu0
        %v7911 = vadd.f32 0.0, %v7910
        %7912 = vmatmul.f32.gmra.mxu0 %v7320
        %v7913 = vpop.f32.mrf.mxu0
        %v7914 = vadd.f32 0.0, %v7913
        %7915 = vmatmul.f32.gmra.mxu0 %v7321
        %v7916 = vpop.f32.mrf.mxu0
        %v7917 = vadd.f32 0.0, %v7916
        %7918 = vmatmul.f32.gmra.mxu0 %v7322
        %v7919 = vpop.f32.mrf.mxu0
        %v7920 = vadd.f32 0.0, %v7919
        %7921 = vmatmul.f32.gmra.mxu0 %v7323
        %v7922 = vpop.f32.mrf.mxu0
        %v7923 = vadd.f32 0.0, %v7922
        %7924 = vmatmul.f32.gmra.mxu0 %v7324
        %v7925 = vpop.f32.mrf.mxu0
        %v7926 = vadd.f32 0.0, %v7925
        %7927 = vmatmul.f32.gmra.mxu0 %v7325
        %v7928 = vpop.f32.mrf.mxu0
        %v7929 = vadd.f32 0.0, %v7928
        %7930 = vmatmul.f32.gmra.mxu0 %v7326
        %v7931 = vpop.f32.mrf.mxu0
        %v7932 = vadd.f32 0.0, %v7931
        %7933 = vmatmul.f32.gmra.mxu0 %v7327
        %v7934 = vpop.f32.mrf.mxu0
        %v7935 = vadd.f32 0.0, %v7934
        %7936 = vmatmul.f32.gmra.mxu0 %v7328
        %v7937 = vpop.f32.mrf.mxu0
        %v7938 = vadd.f32 0.0, %v7937
        %7939 = vmatmul.f32.gmra.mxu0 %v7329
        %v7940 = vpop.f32.mrf.mxu0
        %v7941 = vadd.f32 0.0, %v7940
        %7942 = vmatmul.f32.gmra.mxu0 %v7330
        %v7943 = vpop.f32.mrf.mxu0
        %v7944 = vadd.f32 0.0, %v7943
        %7945 = vmatmul.f32.gmra.mxu0 %v7331
        %v7946 = vpop.f32.mrf.mxu0
        %v7947 = vadd.f32 0.0, %v7946
        %7948 = vmatmul.f32.gmra.mxu0 %v7332
        %v7949 = vpop.f32.mrf.mxu0
        %v7950 = vadd.f32 0.0, %v7949
        %7951 = vmatmul.f32.gmra.mxu0 %v7333
        %v7952 = vpop.f32.mrf.mxu0
        %v7953 = vadd.f32 0.0, %v7952
        %7954 = vmatmul.f32.gmra.mxu0 %v7334
        %v7955 = vpop.f32.mrf.mxu0
        %v7956 = vadd.f32 0.0, %v7955
        %7957 = vmatmul.f32.gmra.mxu0 %v7335
        %v7958 = vpop.f32.mrf.mxu0
        %v7959 = vadd.f32 0.0, %v7958
        %7960 = vdwg.mxu0
        %v7961 = vadd.f32 %v7799, %v7866
        %v7962 = vadd.f32 %v7800, %v7869
        %v7963 = vadd.f32 %v7801, %v7872
        %v7964 = vadd.f32 %v7802, %v7875
        %v7965 = vadd.f32 %v7803, %v7878
        %v7966 = vadd.f32 %v7804, %v7881
        %v7967 = vadd.f32 %v7805, %v7884
        %v7968 = vadd.f32 %v7806, %v7887
        %v7969 = vadd.f32 %v7807, %v7890
        %v7970 = vadd.f32 %v7808, %v7893
        %v7971 = vadd.f32 %v7809, %v7896
        %v7972 = vadd.f32 %v7810, %v7899
        %v7973 = vadd.f32 %v7811, %v7902
        %v7974 = vadd.f32 %v7812, %v7905
        %v7975 = vadd.f32 %v7813, %v7908
        %v7976 = vadd.f32 %v7814, %v7911
        %v7977 = vadd.f32 %v7815, %v7914
        %v7978 = vadd.f32 %v7816, %v7917
        %v7979 = vadd.f32 %v7817, %v7920
        %v7980 = vadd.f32 %v7818, %v7923
        %v7981 = vadd.f32 %v7819, %v7926
        %v7982 = vadd.f32 %v7820, %v7929
        %v7983 = vadd.f32 %v7821, %v7932
        %v7984 = vadd.f32 %v7822, %v7935
        %v7985 = vadd.f32 %v7823, %v7938
        %v7986 = vadd.f32 %v7824, %v7941
        %v7987 = vadd.f32 %v7825, %v7944
        %v7988 = vadd.f32 %v7826, %v7947
        %v7989 = vadd.f32 %v7827, %v7950
        %v7990 = vadd.f32 %v7828, %v7953
        %v7991 = vadd.f32 %v7829, %v7956
        %v7992 = vadd.f32 %v7830, %v7959
        %s7993 = scalar_lea.vmem %s3, 512
        %v7994 = vld [vmem:[%s7993] sm:$0xff]
        %v7995 = vld [vmem:[%s7993 + $0x8] sm:$0xff]
        %v7996 = vld [vmem:[%s7993 + $0x10] sm:$0xff]
        %v7997 = vld [vmem:[%s7993 + $0x18] sm:$0xff]
        %v7998 = vld [vmem:[%s7993 + $0x20] sm:$0xff]
        %v7999 = vld [vmem:[%s7993 + $0x28] sm:$0xff]
        %v8000 = vld [vmem:[%s7993 + $0x30] sm:$0xff]
        %v8001 = vld [vmem:[%s7993 + $0x38] sm:$0xff]
        %v8002 = vld [vmem:[%s7993 + $0x40] sm:$0xff]
        %v8003 = vld [vmem:[%s7993 + $0x48] sm:$0xff]
        %v8004 = vld [vmem:[%s7993 + $0x50] sm:$0xff]
        %v8005 = vld [vmem:[%s7993 + $0x58] sm:$0xff]
        %v8006 = vld [vmem:[%s7993 + $0x60] sm:$0xff]
        %v8007 = vld [vmem:[%s7993 + $0x68] sm:$0xff]
        %v8008 = vld [vmem:[%s7993 + $0x70] sm:$0xff]
        %v8009 = vld [vmem:[%s7993 + $0x78] sm:$0xff]
        %8010 = vmatpush.msra.mxu0 %v8009
        %8011 = vmatpush.msra.mxu0 %v8008
        %8012 = vmatpush.msra.mxu0 %v8007
        %8013 = vmatpush.msra.mxu0 %v8006
        %8014 = vmatpush.msra.mxu0 %v8005
        %8015 = vmatpush.msra.mxu0 %v8004
        %8016 = vmatpush.msra.mxu0 %v8003
        %8017 = vmatpush.msra.mxu0 %v8002
        %8018 = vmatpush.msra.mxu0 %v8001
        %8019 = vmatpush.msra.mxu0 %v8000
        %8020 = vmatpush.msra.mxu0 %v7999
        %8021 = vmatpush.msra.mxu0 %v7998
        %8022 = vmatpush.msra.mxu0 %v7997
        %8023 = vmatpush.msra.mxu0 %v7996
        %8024 = vmatpush.msra.mxu0 %v7995
        %8025 = vmatpush.msra.mxu0 %v7994
        %8026 = vmatmul.f32.gmra.mxu0 %v7340
        %v8027 = vpop.f32.mrf.mxu0
        %v8028 = vadd.f32 0.0, %v8027
        %8029 = vmatmul.f32.gmra.mxu0 %v7341
        %v8030 = vpop.f32.mrf.mxu0
        %v8031 = vadd.f32 0.0, %v8030
        %8032 = vmatmul.f32.gmra.mxu0 %v7342
        %v8033 = vpop.f32.mrf.mxu0
        %v8034 = vadd.f32 0.0, %v8033
        %8035 = vmatmul.f32.gmra.mxu0 %v7343
        %v8036 = vpop.f32.mrf.mxu0
        %v8037 = vadd.f32 0.0, %v8036
        %8038 = vmatmul.f32.gmra.mxu0 %v7344
        %v8039 = vpop.f32.mrf.mxu0
        %v8040 = vadd.f32 0.0, %v8039
        %8041 = vmatmul.f32.gmra.mxu0 %v7345
        %v8042 = vpop.f32.mrf.mxu0
        %v8043 = vadd.f32 0.0, %v8042
        %8044 = vmatmul.f32.gmra.mxu0 %v7346
        %v8045 = vpop.f32.mrf.mxu0
        %v8046 = vadd.f32 0.0, %v8045
        %8047 = vmatmul.f32.gmra.mxu0 %v7347
        %v8048 = vpop.f32.mrf.mxu0
        %v8049 = vadd.f32 0.0, %v8048
        %8050 = vmatmul.f32.gmra.mxu0 %v7348
        %v8051 = vpop.f32.mrf.mxu0
        %v8052 = vadd.f32 0.0, %v8051
        %8053 = vmatmul.f32.gmra.mxu0 %v7349
        %v8054 = vpop.f32.mrf.mxu0
        %v8055 = vadd.f32 0.0, %v8054
        %8056 = vmatmul.f32.gmra.mxu0 %v7350
        %v8057 = vpop.f32.mrf.mxu0
        %v8058 = vadd.f32 0.0, %v8057
        %8059 = vmatmul.f32.gmra.mxu0 %v7351
        %v8060 = vpop.f32.mrf.mxu0
        %v8061 = vadd.f32 0.0, %v8060
        %8062 = vmatmul.f32.gmra.mxu0 %v7352
        %v8063 = vpop.f32.mrf.mxu0
        %v8064 = vadd.f32 0.0, %v8063
        %8065 = vmatmul.f32.gmra.mxu0 %v7353
        %v8066 = vpop.f32.mrf.mxu0
        %v8067 = vadd.f32 0.0, %v8066
        %8068 = vmatmul.f32.gmra.mxu0 %v7354
        %v8069 = vpop.f32.mrf.mxu0
        %v8070 = vadd.f32 0.0, %v8069
        %8071 = vmatmul.f32.gmra.mxu0 %v7355
        %v8072 = vpop.f32.mrf.mxu0
        %v8073 = vadd.f32 0.0, %v8072
        %8074 = vmatmul.f32.gmra.mxu0 %v7356
        %v8075 = vpop.f32.mrf.mxu0
        %v8076 = vadd.f32 0.0, %v8075
        %8077 = vmatmul.f32.gmra.mxu0 %v7357
        %v8078 = vpop.f32.mrf.mxu0
        %v8079 = vadd.f32 0.0, %v8078
        %8080 = vmatmul.f32.gmra.mxu0 %v7358
        %v8081 = vpop.f32.mrf.mxu0
        %v8082 = vadd.f32 0.0, %v8081
        %8083 = vmatmul.f32.gmra.mxu0 %v7359
        %v8084 = vpop.f32.mrf.mxu0
        %v8085 = vadd.f32 0.0, %v8084
        %8086 = vmatmul.f32.gmra.mxu0 %v7360
        %v8087 = vpop.f32.mrf.mxu0
        %v8088 = vadd.f32 0.0, %v8087
        %8089 = vmatmul.f32.gmra.mxu0 %v7361
        %v8090 = vpop.f32.mrf.mxu0
        %v8091 = vadd.f32 0.0, %v8090
        %8092 = vmatmul.f32.gmra.mxu0 %v7362
        %v8093 = vpop.f32.mrf.mxu0
        %v8094 = vadd.f32 0.0, %v8093
        %8095 = vmatmul.f32.gmra.mxu0 %v7363
        %v8096 = vpop.f32.mrf.mxu0
        %v8097 = vadd.f32 0.0, %v8096
        %8098 = vmatmul.f32.gmra.mxu0 %v7364
        %v8099 = vpop.f32.mrf.mxu0
        %v8100 = vadd.f32 0.0, %v8099
        %8101 = vmatmul.f32.gmra.mxu0 %v7365
        %v8102 = vpop.f32.mrf.mxu0
        %v8103 = vadd.f32 0.0, %v8102
        %8104 = vmatmul.f32.gmra.mxu0 %v7366
        %v8105 = vpop.f32.mrf.mxu0
        %v8106 = vadd.f32 0.0, %v8105
        %8107 = vmatmul.f32.gmra.mxu0 %v7367
        %v8108 = vpop.f32.mrf.mxu0
        %v8109 = vadd.f32 0.0, %v8108
        %8110 = vmatmul.f32.gmra.mxu0 %v7368
        %v8111 = vpop.f32.mrf.mxu0
        %v8112 = vadd.f32 0.0, %v8111
        %8113 = vmatmul.f32.gmra.mxu0 %v7369
        %v8114 = vpop.f32.mrf.mxu0
        %v8115 = vadd.f32 0.0, %v8114
        %8116 = vmatmul.f32.gmra.mxu0 %v7370
        %v8117 = vpop.f32.mrf.mxu0
        %v8118 = vadd.f32 0.0, %v8117
        %8119 = vmatmul.f32.gmra.mxu0 %v7371
        %v8120 = vpop.f32.mrf.mxu0
        %v8121 = vadd.f32 0.0, %v8120
        %8122 = vdwg.mxu0
        %v8123 = vadd.f32 %v7961, %v8028
        %v8124 = vadd.f32 %v7962, %v8031
        %v8125 = vadd.f32 %v7963, %v8034
        %v8126 = vadd.f32 %v7964, %v8037
        %v8127 = vadd.f32 %v7965, %v8040
        %v8128 = vadd.f32 %v7966, %v8043
        %v8129 = vadd.f32 %v7967, %v8046
        %v8130 = vadd.f32 %v7968, %v8049
        %v8131 = vadd.f32 %v7969, %v8052
        %v8132 = vadd.f32 %v7970, %v8055
        %v8133 = vadd.f32 %v7971, %v8058
        %v8134 = vadd.f32 %v7972, %v8061
        %v8135 = vadd.f32 %v7973, %v8064
        %v8136 = vadd.f32 %v7974, %v8067
        %v8137 = vadd.f32 %v7975, %v8070
        %v8138 = vadd.f32 %v7976, %v8073
        %v8139 = vadd.f32 %v7977, %v8076
        %v8140 = vadd.f32 %v7978, %v8079
        %v8141 = vadd.f32 %v7979, %v8082
        %v8142 = vadd.f32 %v7980, %v8085
        %v8143 = vadd.f32 %v7981, %v8088
        %v8144 = vadd.f32 %v7982, %v8091
        %v8145 = vadd.f32 %v7983, %v8094
        %v8146 = vadd.f32 %v7984, %v8097
        %v8147 = vadd.f32 %v7985, %v8100
        %v8148 = vadd.f32 %v7986, %v8103
        %v8149 = vadd.f32 %v7987, %v8106
        %v8150 = vadd.f32 %v7988, %v8109
        %v8151 = vadd.f32 %v7989, %v8112
        %v8152 = vadd.f32 %v7990, %v8115
        %v8153 = vadd.f32 %v7991, %v8118
        %v8154 = vadd.f32 %v7992, %v8121
        %s8155 = scalar_lea.vmem %s3, 640
        %v8156 = vld [vmem:[%s8155] sm:$0xff]
        %v8157 = vld [vmem:[%s8155 + $0x8] sm:$0xff]
        %v8158 = vld [vmem:[%s8155 + $0x10] sm:$0xff]
        %v8159 = vld [vmem:[%s8155 + $0x18] sm:$0xff]
        %v8160 = vld [vmem:[%s8155 + $0x20] sm:$0xff]
        %v8161 = vld [vmem:[%s8155 + $0x28] sm:$0xff]
        %v8162 = vld [vmem:[%s8155 + $0x30] sm:$0xff]
        %v8163 = vld [vmem:[%s8155 + $0x38] sm:$0xff]
        %v8164 = vld [vmem:[%s8155 + $0x40] sm:$0xff]
        %v8165 = vld [vmem:[%s8155 + $0x48] sm:$0xff]
        %v8166 = vld [vmem:[%s8155 + $0x50] sm:$0xff]
        %v8167 = vld [vmem:[%s8155 + $0x58] sm:$0xff]
        %v8168 = vld [vmem:[%s8155 + $0x60] sm:$0xff]
        %v8169 = vld [vmem:[%s8155 + $0x68] sm:$0xff]
        %v8170 = vld [vmem:[%s8155 + $0x70] sm:$0xff]
        %v8171 = vld [vmem:[%s8155 + $0x78] sm:$0xff]
        %8172 = vmatpush.msra.mxu0 %v8171
        %8173 = vmatpush.msra.mxu0 %v8170
        %8174 = vmatpush.msra.mxu0 %v8169
        %8175 = vmatpush.msra.mxu0 %v8168
        %8176 = vmatpush.msra.mxu0 %v8167
        %8177 = vmatpush.msra.mxu0 %v8166
        %8178 = vmatpush.msra.mxu0 %v8165
        %8179 = vmatpush.msra.mxu0 %v8164
        %8180 = vmatpush.msra.mxu0 %v8163
        %8181 = vmatpush.msra.mxu0 %v8162
        %8182 = vmatpush.msra.mxu0 %v8161
        %8183 = vmatpush.msra.mxu0 %v8160
        %8184 = vmatpush.msra.mxu0 %v8159
        %8185 = vmatpush.msra.mxu0 %v8158
        %8186 = vmatpush.msra.mxu0 %v8157
        %8187 = vmatpush.msra.mxu0 %v8156
        %8188 = vmatmul.f32.gmra.mxu0 %v7376
        %v8189 = vpop.f32.mrf.mxu0
        %v8190 = vadd.f32 0.0, %v8189
        %8191 = vmatmul.f32.gmra.mxu0 %v7377
        %v8192 = vpop.f32.mrf.mxu0
        %v8193 = vadd.f32 0.0, %v8192
        %8194 = vmatmul.f32.gmra.mxu0 %v7378
        %v8195 = vpop.f32.mrf.mxu0
        %v8196 = vadd.f32 0.0, %v8195
        %8197 = vmatmul.f32.gmra.mxu0 %v7379
        %v8198 = vpop.f32.mrf.mxu0
        %v8199 = vadd.f32 0.0, %v8198
        %8200 = vmatmul.f32.gmra.mxu0 %v7380
        %v8201 = vpop.f32.mrf.mxu0
        %v8202 = vadd.f32 0.0, %v8201
        %8203 = vmatmul.f32.gmra.mxu0 %v7381
        %v8204 = vpop.f32.mrf.mxu0
        %v8205 = vadd.f32 0.0, %v8204
        %8206 = vmatmul.f32.gmra.mxu0 %v7382
        %v8207 = vpop.f32.mrf.mxu0
        %v8208 = vadd.f32 0.0, %v8207
        %8209 = vmatmul.f32.gmra.mxu0 %v7383
        %v8210 = vpop.f32.mrf.mxu0
        %v8211 = vadd.f32 0.0, %v8210
        %8212 = vmatmul.f32.gmra.mxu0 %v7384
        %v8213 = vpop.f32.mrf.mxu0
        %v8214 = vadd.f32 0.0, %v8213
        %8215 = vmatmul.f32.gmra.mxu0 %v7385
        %v8216 = vpop.f32.mrf.mxu0
        %v8217 = vadd.f32 0.0, %v8216
        %8218 = vmatmul.f32.gmra.mxu0 %v7386
        %v8219 = vpop.f32.mrf.mxu0
        %v8220 = vadd.f32 0.0, %v8219
        %8221 = vmatmul.f32.gmra.mxu0 %v7387
        %v8222 = vpop.f32.mrf.mxu0
        %v8223 = vadd.f32 0.0, %v8222
        %8224 = vmatmul.f32.gmra.mxu0 %v7388
        %v8225 = vpop.f32.mrf.mxu0
        %v8226 = vadd.f32 0.0, %v8225
        %8227 = vmatmul.f32.gmra.mxu0 %v7389
        %v8228 = vpop.f32.mrf.mxu0
        %v8229 = vadd.f32 0.0, %v8228
        %8230 = vmatmul.f32.gmra.mxu0 %v7390
        %v8231 = vpop.f32.mrf.mxu0
        %v8232 = vadd.f32 0.0, %v8231
        %8233 = vmatmul.f32.gmra.mxu0 %v7391
        %v8234 = vpop.f32.mrf.mxu0
        %v8235 = vadd.f32 0.0, %v8234
        %8236 = vmatmul.f32.gmra.mxu0 %v7392
        %v8237 = vpop.f32.mrf.mxu0
        %v8238 = vadd.f32 0.0, %v8237
        %8239 = vmatmul.f32.gmra.mxu0 %v7393
        %v8240 = vpop.f32.mrf.mxu0
        %v8241 = vadd.f32 0.0, %v8240
        %8242 = vmatmul.f32.gmra.mxu0 %v7394
        %v8243 = vpop.f32.mrf.mxu0
        %v8244 = vadd.f32 0.0, %v8243
        %8245 = vmatmul.f32.gmra.mxu0 %v7395
        %v8246 = vpop.f32.mrf.mxu0
        %v8247 = vadd.f32 0.0, %v8246
        %8248 = vmatmul.f32.gmra.mxu0 %v7396
        %v8249 = vpop.f32.mrf.mxu0
        %v8250 = vadd.f32 0.0, %v8249
        %8251 = vmatmul.f32.gmra.mxu0 %v7397
        %v8252 = vpop.f32.mrf.mxu0
        %v8253 = vadd.f32 0.0, %v8252
        %8254 = vmatmul.f32.gmra.mxu0 %v7398
        %v8255 = vpop.f32.mrf.mxu0
        %v8256 = vadd.f32 0.0, %v8255
        %8257 = vmatmul.f32.gmra.mxu0 %v7399
        %v8258 = vpop.f32.mrf.mxu0
        %v8259 = vadd.f32 0.0, %v8258
        %8260 = vmatmul.f32.gmra.mxu0 %v7400
        %v8261 = vpop.f32.mrf.mxu0
        %v8262 = vadd.f32 0.0, %v8261
        %8263 = vmatmul.f32.gmra.mxu0 %v7401
        %v8264 = vpop.f32.mrf.mxu0
        %v8265 = vadd.f32 0.0, %v8264
        %8266 = vmatmul.f32.gmra.mxu0 %v7402
        %v8267 = vpop.f32.mrf.mxu0
        %v8268 = vadd.f32 0.0, %v8267
        %8269 = vmatmul.f32.gmra.mxu0 %v7403
        %v8270 = vpop.f32.mrf.mxu0
        %v8271 = vadd.f32 0.0, %v8270
        %8272 = vmatmul.f32.gmra.mxu0 %v7404
        %v8273 = vpop.f32.mrf.mxu0
        %v8274 = vadd.f32 0.0, %v8273
        %8275 = vmatmul.f32.gmra.mxu0 %v7405
        %v8276 = vpop.f32.mrf.mxu0
        %v8277 = vadd.f32 0.0, %v8276
        %8278 = vmatmul.f32.gmra.mxu0 %v7406
        %v8279 = vpop.f32.mrf.mxu0
        %v8280 = vadd.f32 0.0, %v8279
        %8281 = vmatmul.f32.gmra.mxu0 %v7407
        %v8282 = vpop.f32.mrf.mxu0
        %v8283 = vadd.f32 0.0, %v8282
        %8284 = vdwg.mxu0
        %v8285 = vadd.f32 %v8123, %v8190
        %v8286 = vadd.f32 %v8124, %v8193
        %v8287 = vadd.f32 %v8125, %v8196
        %v8288 = vadd.f32 %v8126, %v8199
        %v8289 = vadd.f32 %v8127, %v8202
        %v8290 = vadd.f32 %v8128, %v8205
        %v8291 = vadd.f32 %v8129, %v8208
        %v8292 = vadd.f32 %v8130, %v8211
        %v8293 = vadd.f32 %v8131, %v8214
        %v8294 = vadd.f32 %v8132, %v8217
        %v8295 = vadd.f32 %v8133, %v8220
        %v8296 = vadd.f32 %v8134, %v8223
        %v8297 = vadd.f32 %v8135, %v8226
        %v8298 = vadd.f32 %v8136, %v8229
        %v8299 = vadd.f32 %v8137, %v8232
        %v8300 = vadd.f32 %v8138, %v8235
        %v8301 = vadd.f32 %v8139, %v8238
        %v8302 = vadd.f32 %v8140, %v8241
        %v8303 = vadd.f32 %v8141, %v8244
        %v8304 = vadd.f32 %v8142, %v8247
        %v8305 = vadd.f32 %v8143, %v8250
        %v8306 = vadd.f32 %v8144, %v8253
        %v8307 = vadd.f32 %v8145, %v8256
        %v8308 = vadd.f32 %v8146, %v8259
        %v8309 = vadd.f32 %v8147, %v8262
        %v8310 = vadd.f32 %v8148, %v8265
        %v8311 = vadd.f32 %v8149, %v8268
        %v8312 = vadd.f32 %v8150, %v8271
        %v8313 = vadd.f32 %v8151, %v8274
        %v8314 = vadd.f32 %v8152, %v8277
        %v8315 = vadd.f32 %v8153, %v8280
        %v8316 = vadd.f32 %v8154, %v8283
        %s8317 = scalar_lea.vmem %s3, 768
        %v8318 = vld [vmem:[%s8317] sm:$0xff]
        %v8319 = vld [vmem:[%s8317 + $0x8] sm:$0xff]
        %v8320 = vld [vmem:[%s8317 + $0x10] sm:$0xff]
        %v8321 = vld [vmem:[%s8317 + $0x18] sm:$0xff]
        %v8322 = vld [vmem:[%s8317 + $0x20] sm:$0xff]
        %v8323 = vld [vmem:[%s8317 + $0x28] sm:$0xff]
        %v8324 = vld [vmem:[%s8317 + $0x30] sm:$0xff]
        %v8325 = vld [vmem:[%s8317 + $0x38] sm:$0xff]
        %v8326 = vld [vmem:[%s8317 + $0x40] sm:$0xff]
        %v8327 = vld [vmem:[%s8317 + $0x48] sm:$0xff]
        %v8328 = vld [vmem:[%s8317 + $0x50] sm:$0xff]
        %v8329 = vld [vmem:[%s8317 + $0x58] sm:$0xff]
        %v8330 = vld [vmem:[%s8317 + $0x60] sm:$0xff]
        %v8331 = vld [vmem:[%s8317 + $0x68] sm:$0xff]
        %v8332 = vld [vmem:[%s8317 + $0x70] sm:$0xff]
        %v8333 = vld [vmem:[%s8317 + $0x78] sm:$0xff]
        %8334 = vmatpush.msra.mxu0 %v8333
        %8335 = vmatpush.msra.mxu0 %v8332
        %8336 = vmatpush.msra.mxu0 %v8331
        %8337 = vmatpush.msra.mxu0 %v8330
        %8338 = vmatpush.msra.mxu0 %v8329
        %8339 = vmatpush.msra.mxu0 %v8328
        %8340 = vmatpush.msra.mxu0 %v8327
        %8341 = vmatpush.msra.mxu0 %v8326
        %8342 = vmatpush.msra.mxu0 %v8325
        %8343 = vmatpush.msra.mxu0 %v8324
        %8344 = vmatpush.msra.mxu0 %v8323
        %8345 = vmatpush.msra.mxu0 %v8322
        %8346 = vmatpush.msra.mxu0 %v8321
        %8347 = vmatpush.msra.mxu0 %v8320
        %8348 = vmatpush.msra.mxu0 %v8319
        %8349 = vmatpush.msra.mxu0 %v8318
        %8350 = vmatmul.f32.gmra.mxu0 %v7306
        %v8351 = vpop.f32.mrf.mxu0
        %v8352 = vadd.f32 0.0, %v8351
        %8353 = vmatmul.f32.gmra.mxu0 %v7307
        %v8354 = vpop.f32.mrf.mxu0
        %v8355 = vadd.f32 0.0, %v8354
        %8356 = vmatmul.f32.gmra.mxu0 %v7308
        %v8357 = vpop.f32.mrf.mxu0
        %v8358 = vadd.f32 0.0, %v8357
        %8359 = vmatmul.f32.gmra.mxu0 %v7309
        %v8360 = vpop.f32.mrf.mxu0
        %v8361 = vadd.f32 0.0, %v8360
        %8362 = vmatmul.f32.gmra.mxu0 %v7310
        %v8363 = vpop.f32.mrf.mxu0
        %v8364 = vadd.f32 0.0, %v8363
        %8365 = vmatmul.f32.gmra.mxu0 %v7311
        %v8366 = vpop.f32.mrf.mxu0
        %v8367 = vadd.f32 0.0, %v8366
        %8368 = vmatmul.f32.gmra.mxu0 %v7312
        %v8369 = vpop.f32.mrf.mxu0
        %v8370 = vadd.f32 0.0, %v8369
        %8371 = vmatmul.f32.gmra.mxu0 %v7313
        %v8372 = vpop.f32.mrf.mxu0
        %v8373 = vadd.f32 0.0, %v8372
        %8374 = vmatmul.f32.gmra.mxu0 %v7314
        %v8375 = vpop.f32.mrf.mxu0
        %v8376 = vadd.f32 0.0, %v8375
        %8377 = vmatmul.f32.gmra.mxu0 %v7315
        %v8378 = vpop.f32.mrf.mxu0
        %v8379 = vadd.f32 0.0, %v8378
        %8380 = vmatmul.f32.gmra.mxu0 %v7316
        %v8381 = vpop.f32.mrf.mxu0
        %v8382 = vadd.f32 0.0, %v8381
        %8383 = vmatmul.f32.gmra.mxu0 %v7317
        %v8384 = vpop.f32.mrf.mxu0
        %v8385 = vadd.f32 0.0, %v8384
        %8386 = vmatmul.f32.gmra.mxu0 %v7318
        %v8387 = vpop.f32.mrf.mxu0
        %v8388 = vadd.f32 0.0, %v8387
        %8389 = vmatmul.f32.gmra.mxu0 %v7319
        %v8390 = vpop.f32.mrf.mxu0
        %v8391 = vadd.f32 0.0, %v8390
        %8392 = vmatmul.f32.gmra.mxu0 %v7320
        %v8393 = vpop.f32.mrf.mxu0
        %v8394 = vadd.f32 0.0, %v8393
        %8395 = vmatmul.f32.gmra.mxu0 %v7321
        %v8396 = vpop.f32.mrf.mxu0
        %v8397 = vadd.f32 0.0, %v8396
        %8398 = vmatmul.f32.gmra.mxu0 %v7322
        %v8399 = vpop.f32.mrf.mxu0
        %v8400 = vadd.f32 0.0, %v8399
        %8401 = vmatmul.f32.gmra.mxu0 %v7323
        %v8402 = vpop.f32.mrf.mxu0
        %v8403 = vadd.f32 0.0, %v8402
        %8404 = vmatmul.f32.gmra.mxu0 %v7324
        %v8405 = vpop.f32.mrf.mxu0
        %v8406 = vadd.f32 0.0, %v8405
        %8407 = vmatmul.f32.gmra.mxu0 %v7325
        %v8408 = vpop.f32.mrf.mxu0
        %v8409 = vadd.f32 0.0, %v8408
        %8410 = vmatmul.f32.gmra.mxu0 %v7326
        %v8411 = vpop.f32.mrf.mxu0
        %v8412 = vadd.f32 0.0, %v8411
        %8413 = vmatmul.f32.gmra.mxu0 %v7327
        %v8414 = vpop.f32.mrf.mxu0
        %v8415 = vadd.f32 0.0, %v8414
        %8416 = vmatmul.f32.gmra.mxu0 %v7328
        %v8417 = vpop.f32.mrf.mxu0
        %v8418 = vadd.f32 0.0, %v8417
        %8419 = vmatmul.f32.gmra.mxu0 %v7329
        %v8420 = vpop.f32.mrf.mxu0
        %v8421 = vadd.f32 0.0, %v8420
        %8422 = vmatmul.f32.gmra.mxu0 %v7330
        %v8423 = vpop.f32.mrf.mxu0
        %v8424 = vadd.f32 0.0, %v8423
        %8425 = vmatmul.f32.gmra.mxu0 %v7331
        %v8426 = vpop.f32.mrf.mxu0
        %v8427 = vadd.f32 0.0, %v8426
        %8428 = vmatmul.f32.gmra.mxu0 %v7332
        %v8429 = vpop.f32.mrf.mxu0
        %v8430 = vadd.f32 0.0, %v8429
        %8431 = vmatmul.f32.gmra.mxu0 %v7333
        %v8432 = vpop.f32.mrf.mxu0
        %v8433 = vadd.f32 0.0, %v8432
        %8434 = vmatmul.f32.gmra.mxu0 %v7334
        %v8435 = vpop.f32.mrf.mxu0
        %v8436 = vadd.f32 0.0, %v8435
        %8437 = vmatmul.f32.gmra.mxu0 %v7335
        %v8438 = vpop.f32.mrf.mxu0
        %v8439 = vadd.f32 0.0, %v8438
        %8440 = vmatmul.f32.gmra.mxu0 %v7336
        %v8441 = vpop.f32.mrf.mxu0
        %v8442 = vadd.f32 0.0, %v8441
        %8443 = vmatmul.f32.gmra.mxu0 %v7337
        %v8444 = vpop.f32.mrf.mxu0
        %v8445 = vadd.f32 0.0, %v8444
        %8446 = vdwg.mxu0
        %v8447 = vadd.f32 %v8285, %v8352
        %v8448 = vadd.f32 %v8286, %v8355
        %v8449 = vadd.f32 %v8287, %v8358
        %v8450 = vadd.f32 %v8288, %v8361
        %v8451 = vadd.f32 %v8289, %v8364
        %v8452 = vadd.f32 %v8290, %v8367
        %v8453 = vadd.f32 %v8291, %v8370
        %v8454 = vadd.f32 %v8292, %v8373
        %v8455 = vadd.f32 %v8293, %v8376
        %v8456 = vadd.f32 %v8294, %v8379
        %v8457 = vadd.f32 %v8295, %v8382
        %v8458 = vadd.f32 %v8296, %v8385
        %v8459 = vadd.f32 %v8297, %v8388
        %v8460 = vadd.f32 %v8298, %v8391
        %v8461 = vadd.f32 %v8299, %v8394
        %v8462 = vadd.f32 %v8300, %v8397
        %v8463 = vadd.f32 %v8301, %v8400
        %v8464 = vadd.f32 %v8302, %v8403
        %v8465 = vadd.f32 %v8303, %v8406
        %v8466 = vadd.f32 %v8304, %v8409
        %v8467 = vadd.f32 %v8305, %v8412
        %v8468 = vadd.f32 %v8306, %v8415
        %v8469 = vadd.f32 %v8307, %v8418
        %v8470 = vadd.f32 %v8308, %v8421
        %v8471 = vadd.f32 %v8309, %v8424
        %v8472 = vadd.f32 %v8310, %v8427
        %v8473 = vadd.f32 %v8311, %v8430
        %v8474 = vadd.f32 %v8312, %v8433
        %v8475 = vadd.f32 %v8313, %v8436
        %v8476 = vadd.f32 %v8314, %v8439
        %v8477 = vadd.f32 %v8315, %v8442
        %v8478 = vadd.f32 %v8316, %v8445
        %s8479 = scalar_lea.vmem %s3, 896
        %v8480 = vld [vmem:[%s8479] sm:$0xff]
        %v8481 = vld [vmem:[%s8479 + $0x8] sm:$0xff]
        %v8482 = vld [vmem:[%s8479 + $0x10] sm:$0xff]
        %v8483 = vld [vmem:[%s8479 + $0x18] sm:$0xff]
        %v8484 = vld [vmem:[%s8479 + $0x20] sm:$0xff]
        %v8485 = vld [vmem:[%s8479 + $0x28] sm:$0xff]
        %v8486 = vld [vmem:[%s8479 + $0x30] sm:$0xff]
        %v8487 = vld [vmem:[%s8479 + $0x38] sm:$0xff]
        %v8488 = vld [vmem:[%s8479 + $0x40] sm:$0xff]
        %v8489 = vld [vmem:[%s8479 + $0x48] sm:$0xff]
        %v8490 = vld [vmem:[%s8479 + $0x50] sm:$0xff]
        %v8491 = vld [vmem:[%s8479 + $0x58] sm:$0xff]
        %v8492 = vld [vmem:[%s8479 + $0x60] sm:$0xff]
        %v8493 = vld [vmem:[%s8479 + $0x68] sm:$0xff]
        %v8494 = vld [vmem:[%s8479 + $0x70] sm:$0xff]
        %v8495 = vld [vmem:[%s8479 + $0x78] sm:$0xff]
        %8496 = vmatpush.msra.mxu0 %v8495
        %8497 = vmatpush.msra.mxu0 %v8494
        %8498 = vmatpush.msra.mxu0 %v8493
        %8499 = vmatpush.msra.mxu0 %v8492
        %8500 = vmatpush.msra.mxu0 %v8491
        %8501 = vmatpush.msra.mxu0 %v8490
        %8502 = vmatpush.msra.mxu0 %v8489
        %8503 = vmatpush.msra.mxu0 %v8488
        %8504 = vmatpush.msra.mxu0 %v8487
        %8505 = vmatpush.msra.mxu0 %v8486
        %8506 = vmatpush.msra.mxu0 %v8485
        %8507 = vmatpush.msra.mxu0 %v8484
        %8508 = vmatpush.msra.mxu0 %v8483
        %8509 = vmatpush.msra.mxu0 %v8482
        %8510 = vmatpush.msra.mxu0 %v8481
        %8511 = vmatpush.msra.mxu0 %v8480
        %8512 = vmatmul.f32.gmra.mxu0 %v7342
        %v8513 = vpop.f32.mrf.mxu0
        %v8514 = vadd.f32 0.0, %v8513
        %8515 = vmatmul.f32.gmra.mxu0 %v7343
        %v8516 = vpop.f32.mrf.mxu0
        %v8517 = vadd.f32 0.0, %v8516
        %8518 = vmatmul.f32.gmra.mxu0 %v7344
        %v8519 = vpop.f32.mrf.mxu0
        %v8520 = vadd.f32 0.0, %v8519
        %8521 = vmatmul.f32.gmra.mxu0 %v7345
        %v8522 = vpop.f32.mrf.mxu0
        %v8523 = vadd.f32 0.0, %v8522
        %8524 = vmatmul.f32.gmra.mxu0 %v7346
        %v8525 = vpop.f32.mrf.mxu0
        %v8526 = vadd.f32 0.0, %v8525
        %8527 = vmatmul.f32.gmra.mxu0 %v7347
        %v8528 = vpop.f32.mrf.mxu0
        %v8529 = vadd.f32 0.0, %v8528
        %8530 = vmatmul.f32.gmra.mxu0 %v7348
        %v8531 = vpop.f32.mrf.mxu0
        %v8532 = vadd.f32 0.0, %v8531
        %8533 = vmatmul.f32.gmra.mxu0 %v7349
        %v8534 = vpop.f32.mrf.mxu0
        %v8535 = vadd.f32 0.0, %v8534
        %8536 = vmatmul.f32.gmra.mxu0 %v7350
        %v8537 = vpop.f32.mrf.mxu0
        %v8538 = vadd.f32 0.0, %v8537
        %8539 = vmatmul.f32.gmra.mxu0 %v7351
        %v8540 = vpop.f32.mrf.mxu0
        %v8541 = vadd.f32 0.0, %v8540
        %8542 = vmatmul.f32.gmra.mxu0 %v7352
        %v8543 = vpop.f32.mrf.mxu0
        %v8544 = vadd.f32 0.0, %v8543
        %8545 = vmatmul.f32.gmra.mxu0 %v7353
        %v8546 = vpop.f32.mrf.mxu0
        %v8547 = vadd.f32 0.0, %v8546
        %8548 = vmatmul.f32.gmra.mxu0 %v7354
        %v8549 = vpop.f32.mrf.mxu0
        %v8550 = vadd.f32 0.0, %v8549
        %8551 = vmatmul.f32.gmra.mxu0 %v7355
        %v8552 = vpop.f32.mrf.mxu0
        %v8553 = vadd.f32 0.0, %v8552
        %8554 = vmatmul.f32.gmra.mxu0 %v7356
        %v8555 = vpop.f32.mrf.mxu0
        %v8556 = vadd.f32 0.0, %v8555
        %8557 = vmatmul.f32.gmra.mxu0 %v7357
        %v8558 = vpop.f32.mrf.mxu0
        %v8559 = vadd.f32 0.0, %v8558
        %8560 = vmatmul.f32.gmra.mxu0 %v7358
        %v8561 = vpop.f32.mrf.mxu0
        %v8562 = vadd.f32 0.0, %v8561
        %8563 = vmatmul.f32.gmra.mxu0 %v7359
        %v8564 = vpop.f32.mrf.mxu0
        %v8565 = vadd.f32 0.0, %v8564
        %8566 = vmatmul.f32.gmra.mxu0 %v7360
        %v8567 = vpop.f32.mrf.mxu0
        %v8568 = vadd.f32 0.0, %v8567
        %8569 = vmatmul.f32.gmra.mxu0 %v7361
        %v8570 = vpop.f32.mrf.mxu0
        %v8571 = vadd.f32 0.0, %v8570
        %8572 = vmatmul.f32.gmra.mxu0 %v7362
        %v8573 = vpop.f32.mrf.mxu0
        %v8574 = vadd.f32 0.0, %v8573
        %8575 = vmatmul.f32.gmra.mxu0 %v7363
        %v8576 = vpop.f32.mrf.mxu0
        %v8577 = vadd.f32 0.0, %v8576
        %8578 = vmatmul.f32.gmra.mxu0 %v7364
        %v8579 = vpop.f32.mrf.mxu0
        %v8580 = vadd.f32 0.0, %v8579
        %8581 = vmatmul.f32.gmra.mxu0 %v7365
        %v8582 = vpop.f32.mrf.mxu0
        %v8583 = vadd.f32 0.0, %v8582
        %8584 = vmatmul.f32.gmra.mxu0 %v7366
        %v8585 = vpop.f32.mrf.mxu0
        %v8586 = vadd.f32 0.0, %v8585
        %8587 = vmatmul.f32.gmra.mxu0 %v7367
        %v8588 = vpop.f32.mrf.mxu0
        %v8589 = vadd.f32 0.0, %v8588
        %8590 = vmatmul.f32.gmra.mxu0 %v7368
        %v8591 = vpop.f32.mrf.mxu0
        %v8592 = vadd.f32 0.0, %v8591
        %8593 = vmatmul.f32.gmra.mxu0 %v7369
        %v8594 = vpop.f32.mrf.mxu0
        %v8595 = vadd.f32 0.0, %v8594
        %8596 = vmatmul.f32.gmra.mxu0 %v7370
        %v8597 = vpop.f32.mrf.mxu0
        %v8598 = vadd.f32 0.0, %v8597
        %8599 = vmatmul.f32.gmra.mxu0 %v7371
        %v8600 = vpop.f32.mrf.mxu0
        %v8601 = vadd.f32 0.0, %v8600
        %8602 = vmatmul.f32.gmra.mxu0 %v7372
        %v8603 = vpop.f32.mrf.mxu0
        %v8604 = vadd.f32 0.0, %v8603
        %8605 = vmatmul.f32.gmra.mxu0 %v7373
        %v8606 = vpop.f32.mrf.mxu0
        %v8607 = vadd.f32 0.0, %v8606
        %8608 = vdwg.mxu0
        %v8609 = vadd.f32 %v8447, %v8514
        %v8610 = vadd.f32 %v8448, %v8517
        %v8611 = vadd.f32 %v8449, %v8520
        %v8612 = vadd.f32 %v8450, %v8523
        %v8613 = vadd.f32 %v8451, %v8526
        %v8614 = vadd.f32 %v8452, %v8529
        %v8615 = vadd.f32 %v8453, %v8532
        %v8616 = vadd.f32 %v8454, %v8535
        %v8617 = vadd.f32 %v8455, %v8538
        %v8618 = vadd.f32 %v8456, %v8541
        %v8619 = vadd.f32 %v8457, %v8544
        %v8620 = vadd.f32 %v8458, %v8547
        %v8621 = vadd.f32 %v8459, %v8550
        %v8622 = vadd.f32 %v8460, %v8553
        %v8623 = vadd.f32 %v8461, %v8556
        %v8624 = vadd.f32 %v8462, %v8559
        %v8625 = vadd.f32 %v8463, %v8562
        %v8626 = vadd.f32 %v8464, %v8565
        %v8627 = vadd.f32 %v8465, %v8568
        %v8628 = vadd.f32 %v8466, %v8571
        %v8629 = vadd.f32 %v8467, %v8574
        %v8630 = vadd.f32 %v8468, %v8577
        %v8631 = vadd.f32 %v8469, %v8580
        %v8632 = vadd.f32 %v8470, %v8583
        %v8633 = vadd.f32 %v8471, %v8586
        %v8634 = vadd.f32 %v8472, %v8589
        %v8635 = vadd.f32 %v8473, %v8592
        %v8636 = vadd.f32 %v8474, %v8595
        %v8637 = vadd.f32 %v8475, %v8598
        %v8638 = vadd.f32 %v8476, %v8601
        %v8639 = vadd.f32 %v8477, %v8604
        %v8640 = vadd.f32 %v8478, %v8607
        %s8641 = scalar_lea.vmem %s3, 1024
        %v8642 = vld [vmem:[%s8641] sm:$0xff]
        %v8643 = vld [vmem:[%s8641 + $0x8] sm:$0xff]
        %v8644 = vld [vmem:[%s8641 + $0x10] sm:$0xff]
        %v8645 = vld [vmem:[%s8641 + $0x18] sm:$0xff]
        %v8646 = vld [vmem:[%s8641 + $0x20] sm:$0xff]
        %v8647 = vld [vmem:[%s8641 + $0x28] sm:$0xff]
        %v8648 = vld [vmem:[%s8641 + $0x30] sm:$0xff]
        %v8649 = vld [vmem:[%s8641 + $0x38] sm:$0xff]
        %v8650 = vld [vmem:[%s8641 + $0x40] sm:$0xff]
        %v8651 = vld [vmem:[%s8641 + $0x48] sm:$0xff]
        %v8652 = vld [vmem:[%s8641 + $0x50] sm:$0xff]
        %v8653 = vld [vmem:[%s8641 + $0x58] sm:$0xff]
        %v8654 = vld [vmem:[%s8641 + $0x60] sm:$0xff]
        %v8655 = vld [vmem:[%s8641 + $0x68] sm:$0xff]
        %v8656 = vld [vmem:[%s8641 + $0x70] sm:$0xff]
        %v8657 = vld [vmem:[%s8641 + $0x78] sm:$0xff]
        %8658 = vmatpush.msra.mxu0 %v8657
        %8659 = vmatpush.msra.mxu0 %v8656
        %8660 = vmatpush.msra.mxu0 %v8655
        %8661 = vmatpush.msra.mxu0 %v8654
        %8662 = vmatpush.msra.mxu0 %v8653
        %8663 = vmatpush.msra.mxu0 %v8652
        %8664 = vmatpush.msra.mxu0 %v8651
        %8665 = vmatpush.msra.mxu0 %v8650
        %8666 = vmatpush.msra.mxu0 %v8649
        %8667 = vmatpush.msra.mxu0 %v8648
        %8668 = vmatpush.msra.mxu0 %v8647
        %8669 = vmatpush.msra.mxu0 %v8646
        %8670 = vmatpush.msra.mxu0 %v8645
        %8671 = vmatpush.msra.mxu0 %v8644
        %8672 = vmatpush.msra.mxu0 %v8643
        %8673 = vmatpush.msra.mxu0 %v8642
        %8674 = vmatmul.f32.gmra.mxu0 %v7378
        %v8675 = vpop.f32.mrf.mxu0
        %v8676 = vadd.f32 0.0, %v8675
        %8677 = vmatmul.f32.gmra.mxu0 %v7379
        %v8678 = vpop.f32.mrf.mxu0
        %v8679 = vadd.f32 0.0, %v8678
        %8680 = vmatmul.f32.gmra.mxu0 %v7380
        %v8681 = vpop.f32.mrf.mxu0
        %v8682 = vadd.f32 0.0, %v8681
        %8683 = vmatmul.f32.gmra.mxu0 %v7381
        %v8684 = vpop.f32.mrf.mxu0
        %v8685 = vadd.f32 0.0, %v8684
        %8686 = vmatmul.f32.gmra.mxu0 %v7382
        %v8687 = vpop.f32.mrf.mxu0
        %v8688 = vadd.f32 0.0, %v8687
        %8689 = vmatmul.f32.gmra.mxu0 %v7383
        %v8690 = vpop.f32.mrf.mxu0
        %v8691 = vadd.f32 0.0, %v8690
        %8692 = vmatmul.f32.gmra.mxu0 %v7384
        %v8693 = vpop.f32.mrf.mxu0
        %v8694 = vadd.f32 0.0, %v8693
        %8695 = vmatmul.f32.gmra.mxu0 %v7385
        %v8696 = vpop.f32.mrf.mxu0
        %v8697 = vadd.f32 0.0, %v8696
        %8698 = vmatmul.f32.gmra.mxu0 %v7386
        %v8699 = vpop.f32.mrf.mxu0
        %v8700 = vadd.f32 0.0, %v8699
        %8701 = vmatmul.f32.gmra.mxu0 %v7387
        %v8702 = vpop.f32.mrf.mxu0
        %v8703 = vadd.f32 0.0, %v8702
        %8704 = vmatmul.f32.gmra.mxu0 %v7388
        %v8705 = vpop.f32.mrf.mxu0
        %v8706 = vadd.f32 0.0, %v8705
        %8707 = vmatmul.f32.gmra.mxu0 %v7389
        %v8708 = vpop.f32.mrf.mxu0
        %v8709 = vadd.f32 0.0, %v8708
        %8710 = vmatmul.f32.gmra.mxu0 %v7390
        %v8711 = vpop.f32.mrf.mxu0
        %v8712 = vadd.f32 0.0, %v8711
        %8713 = vmatmul.f32.gmra.mxu0 %v7391
        %v8714 = vpop.f32.mrf.mxu0
        %v8715 = vadd.f32 0.0, %v8714
        %8716 = vmatmul.f32.gmra.mxu0 %v7392
        %v8717 = vpop.f32.mrf.mxu0
        %v8718 = vadd.f32 0.0, %v8717
        %8719 = vmatmul.f32.gmra.mxu0 %v7393
        %v8720 = vpop.f32.mrf.mxu0
        %v8721 = vadd.f32 0.0, %v8720
        %8722 = vmatmul.f32.gmra.mxu0 %v7394
        %v8723 = vpop.f32.mrf.mxu0
        %v8724 = vadd.f32 0.0, %v8723
        %8725 = vmatmul.f32.gmra.mxu0 %v7395
        %v8726 = vpop.f32.mrf.mxu0
        %v8727 = vadd.f32 0.0, %v8726
        %8728 = vmatmul.f32.gmra.mxu0 %v7396
        %v8729 = vpop.f32.mrf.mxu0
        %v8730 = vadd.f32 0.0, %v8729
        %8731 = vmatmul.f32.gmra.mxu0 %v7397
        %v8732 = vpop.f32.mrf.mxu0
        %v8733 = vadd.f32 0.0, %v8732
        %8734 = vmatmul.f32.gmra.mxu0 %v7398
        %v8735 = vpop.f32.mrf.mxu0
        %v8736 = vadd.f32 0.0, %v8735
        %8737 = vmatmul.f32.gmra.mxu0 %v7399
        %v8738 = vpop.f32.mrf.mxu0
        %v8739 = vadd.f32 0.0, %v8738
        %8740 = vmatmul.f32.gmra.mxu0 %v7400
        %v8741 = vpop.f32.mrf.mxu0
        %v8742 = vadd.f32 0.0, %v8741
        %8743 = vmatmul.f32.gmra.mxu0 %v7401
        %v8744 = vpop.f32.mrf.mxu0
        %v8745 = vadd.f32 0.0, %v8744
        %8746 = vmatmul.f32.gmra.mxu0 %v7402
        %v8747 = vpop.f32.mrf.mxu0
        %v8748 = vadd.f32 0.0, %v8747
        %8749 = vmatmul.f32.gmra.mxu0 %v7403
        %v8750 = vpop.f32.mrf.mxu0
        %v8751 = vadd.f32 0.0, %v8750
        %8752 = vmatmul.f32.gmra.mxu0 %v7404
        %v8753 = vpop.f32.mrf.mxu0
        %v8754 = vadd.f32 0.0, %v8753
        %8755 = vmatmul.f32.gmra.mxu0 %v7405
        %v8756 = vpop.f32.mrf.mxu0
        %v8757 = vadd.f32 0.0, %v8756
        %8758 = vmatmul.f32.gmra.mxu0 %v7406
        %v8759 = vpop.f32.mrf.mxu0
        %v8760 = vadd.f32 0.0, %v8759
        %8761 = vmatmul.f32.gmra.mxu0 %v7407
        %v8762 = vpop.f32.mrf.mxu0
        %v8763 = vadd.f32 0.0, %v8762
        %8764 = vmatmul.f32.gmra.mxu0 %v7408
        %v8765 = vpop.f32.mrf.mxu0
        %v8766 = vadd.f32 0.0, %v8765
        %8767 = vmatmul.f32.gmra.mxu0 %v7409
        %v8768 = vpop.f32.mrf.mxu0
        %v8769 = vadd.f32 0.0, %v8768
        %8770 = vdwg.mxu0
        %v8771 = vadd.f32 %v8609, %v8676
        %v8772 = vadd.f32 %v8610, %v8679
        %v8773 = vadd.f32 %v8611, %v8682
        %v8774 = vadd.f32 %v8612, %v8685
        %v8775 = vadd.f32 %v8613, %v8688
        %v8776 = vadd.f32 %v8614, %v8691
        %v8777 = vadd.f32 %v8615, %v8694
        %v8778 = vadd.f32 %v8616, %v8697
        %v8779 = vadd.f32 %v8617, %v8700
        %v8780 = vadd.f32 %v8618, %v8703
        %v8781 = vadd.f32 %v8619, %v8706
        %v8782 = vadd.f32 %v8620, %v8709
        %v8783 = vadd.f32 %v8621, %v8712
        %v8784 = vadd.f32 %v8622, %v8715
        %v8785 = vadd.f32 %v8623, %v8718
        %v8786 = vadd.f32 %v8624, %v8721
        %v8787 = vadd.f32 %v8625, %v8724
        %v8788 = vadd.f32 %v8626, %v8727
        %v8789 = vadd.f32 %v8627, %v8730
        %v8790 = vadd.f32 %v8628, %v8733
        %v8791 = vadd.f32 %v8629, %v8736
        %v8792 = vadd.f32 %v8630, %v8739
        %v8793 = vadd.f32 %v8631, %v8742
        %v8794 = vadd.f32 %v8632, %v8745
        %v8795 = vadd.f32 %v8633, %v8748
        %v8796 = vadd.f32 %v8634, %v8751
        %v8797 = vadd.f32 %v8635, %v8754
        %v8798 = vadd.f32 %v8636, %v8757
        %v8799 = vadd.f32 %v8637, %v8760
        %v8800 = vadd.f32 %v8638, %v8763
        %v8801 = vadd.f32 %v8639, %v8766
        %v8802 = vadd.f32 %v8640, %v8769
        %v8803 = vld [vmem:[%s4] sm:$0x1]
        %v8805 = vperm.slane %v8803, 0
        %v8807 = vadd.f32 %v8771, %v8805
        %v8808 = vadd.f32 %v8772, %v8805
        %v8809 = vadd.f32 %v8773, %v8805
        %v8810 = vadd.f32 %v8774, %v8805
        %v8811 = vadd.f32 %v8775, %v8805
        %v8812 = vadd.f32 %v8776, %v8805
        %v8813 = vadd.f32 %v8777, %v8805
        %v8814 = vadd.f32 %v8778, %v8805
        %v8815 = vadd.f32 %v8779, %v8805
        %v8816 = vadd.f32 %v8780, %v8805
        %v8817 = vadd.f32 %v8781, %v8805
        %v8818 = vadd.f32 %v8782, %v8805
        %v8819 = vadd.f32 %v8783, %v8805
        %v8820 = vadd.f32 %v8784, %v8805
        %v8821 = vadd.f32 %v8785, %v8805
        %v8822 = vadd.f32 %v8786, %v8805
        %v8823 = vadd.f32 %v8787, %v8805
        %v8824 = vadd.f32 %v8788, %v8805
        %v8825 = vadd.f32 %v8789, %v8805
        %v8826 = vadd.f32 %v8790, %v8805
        %v8827 = vadd.f32 %v8791, %v8805
        %v8828 = vadd.f32 %v8792, %v8805
        %v8829 = vadd.f32 %v8793, %v8805
        %v8830 = vadd.f32 %v8794, %v8805
        %v8831 = vadd.f32 %v8795, %v8805
        %v8832 = vadd.f32 %v8796, %v8805
        %v8833 = vadd.f32 %v8797, %v8805
        %v8834 = vadd.f32 %v8798, %v8805
        %v8835 = vadd.f32 %v8799, %v8805
        %v8836 = vadd.f32 %v8800, %v8805
        %v8837 = vadd.f32 %v8801, %v8805
        %v8838 = vadd.f32 %v8802, %v8805
        %v8839 = vmax.f32 %v8807, 0.0
        %v8840 = vmax.f32 %v8808, 0.0
        %v8841 = vmax.f32 %v8809, 0.0
        %v8842 = vmax.f32 %v8810, 0.0
        %v8843 = vmax.f32 %v8811, 0.0
        %v8844 = vmax.f32 %v8812, 0.0
        %v8845 = vmax.f32 %v8813, 0.0
        %v8846 = vmax.f32 %v8814, 0.0
        %v8847 = vmax.f32 %v8815, 0.0
        %v8848 = vmax.f32 %v8816, 0.0
        %v8849 = vmax.f32 %v8817, 0.0
        %v8850 = vmax.f32 %v8818, 0.0
        %v8851 = vmax.f32 %v8819, 0.0
        %v8852 = vmax.f32 %v8820, 0.0
        %v8853 = vmax.f32 %v8821, 0.0
        %v8854 = vmax.f32 %v8822, 0.0
        %v8855 = vmax.f32 %v8823, 0.0
        %v8856 = vmax.f32 %v8824, 0.0
        %v8857 = vmax.f32 %v8825, 0.0
        %v8858 = vmax.f32 %v8826, 0.0
        %v8859 = vmax.f32 %v8827, 0.0
        %v8860 = vmax.f32 %v8828, 0.0
        %v8861 = vmax.f32 %v8829, 0.0
        %v8862 = vmax.f32 %v8830, 0.0
        %v8863 = vmax.f32 %v8831, 0.0
        %v8864 = vmax.f32 %v8832, 0.0
        %v8865 = vmax.f32 %v8833, 0.0
        %v8866 = vmax.f32 %v8834, 0.0
        %v8867 = vmax.f32 %v8835, 0.0
        %v8868 = vmax.f32 %v8836, 0.0
        %v8869 = vmax.f32 %v8837, 0.0
        %v8870 = vmax.f32 %v8838, 0.0
        %v8871 = vmax.f32 %v8839, %v8841
        %v8872 = vmax.f32 %v8840, %v8842
        %v8873 = vmax.f32 %v8843, %v8845
        %v8874 = vmax.f32 %v8844, %v8846
        %v8875 = vmax.f32 %v8847, %v8849
        %v8876 = vmax.f32 %v8848, %v8850
        %v8877 = vmax.f32 %v8851, %v8853
        %v8878 = vmax.f32 %v8852, %v8854
        %v8879 = vmax.f32 %v8855, %v8857
        %v8880 = vmax.f32 %v8856, %v8858
        %v8881 = vmax.f32 %v8859, %v8861
        %v8882 = vmax.f32 %v8860, %v8862
        %v8883 = vmax.f32 %v8863, %v8865
        %v8884 = vmax.f32 %v8864, %v8866
        %v8885 = vmax.f32 %v8867, %v8869
        %v8886 = vmax.f32 %v8868, %v8870
        %8887 = vst [vmem:[#allocation4] sm:$0xff] %v8871
        %8888 = vst [vmem:[#allocation4 + $0x8] sm:$0xff] %v8872
        %8889 = vst [vmem:[#allocation4 + $0x20] sm:$0xff] %v8873
        %8890 = vst [vmem:[#allocation4 + $0x28] sm:$0xff] %v8874
        %8891 = vst [vmem:[#allocation4 + $0x40] sm:$0xff] %v8875
        %8892 = vst [vmem:[#allocation4 + $0x48] sm:$0xff] %v8876
        %8893 = vst [vmem:[#allocation4 + $0x60] sm:$0xff] %v8877
        %8894 = vst [vmem:[#allocation4 + $0x68] sm:$0xff] %v8878
        %8895 = vst [vmem:[#allocation4 + $0x80] sm:$0xff] %v8879
        %8896 = vst [vmem:[#allocation4 + $0x88] sm:$0xff] %v8880
        %8897 = vst [vmem:[#allocation4 + $0xa0] sm:$0xff] %v8881
        %8898 = vst [vmem:[#allocation4 + $0xa8] sm:$0xff] %v8882
        %8899 = vst [vmem:[#allocation4 + $0xc0] sm:$0xff] %v8883
        %8900 = vst [vmem:[#allocation4 + $0xc8] sm:$0xff] %v8884
        %8901 = vst [vmem:[#allocation4 + $0xe0] sm:$0xff] %v8885
        %8902 = vst [vmem:[#allocation4 + $0xe8] sm:$0xff] %v8886
        %v8903 = vld [vmem:[#allocation4] ss:$2 sm:$0xff]
        %s8904 = scalar_lea.vmem [#allocation4], 32
        %v8905 = vld [vmem:[%s8904] ss:$2 sm:$0xff]
        %s8906 = scalar_lea.vmem [#allocation4], 64
        %v8907 = vld [vmem:[%s8906] ss:$2 sm:$0xff]
        %s8908 = scalar_lea.vmem [#allocation4], 96
        %v8909 = vld [vmem:[%s8908] ss:$2 sm:$0xff]
        %s8910 = scalar_lea.vmem [#allocation4], 128
        %v8911 = vld [vmem:[%s8910] ss:$2 sm:$0xff]
        %s8912 = scalar_lea.vmem [#allocation4], 160
        %v8913 = vld [vmem:[%s8912] ss:$2 sm:$0xff]
        %s8914 = scalar_lea.vmem [#allocation4], 192
        %v8915 = vld [vmem:[%s8914] ss:$2 sm:$0xff]
        %s8916 = scalar_lea.vmem [#allocation4], 224
        %v8917 = vld [vmem:[%s8916] ss:$2 sm:$0xff]
        %v8918 = vld [vmem:[%s7173] ss:$2 sm:$0xff]
        %v8919 = vld [vmem:[%s7177] ss:$2 sm:$0xff]
        %v8920 = vld [vmem:[%s7181] ss:$2 sm:$0xff]
        %v8921 = vld [vmem:[%s7185] ss:$2 sm:$0xff]
        %v8922 = vld [vmem:[%s7189] ss:$2 sm:$0xff]
        %v8923 = vld [vmem:[%s7193] ss:$2 sm:$0xff]
        %v8924 = vld [vmem:[%s7197] ss:$2 sm:$0xff]
        %v8925 = vld [vmem:[%s7201] ss:$2 sm:$0xff]
        %v8926 = vmax.f32 %v8903, %v8918
        %v8927 = vmax.f32 %v8905, %v8919
        %v8928 = vmax.f32 %v8907, %v8920
        %v8929 = vmax.f32 %v8909, %v8921
        %v8930 = vmax.f32 %v8911, %v8922
        %v8931 = vmax.f32 %v8913, %v8923
        %v8932 = vmax.f32 %v8915, %v8924
        %v8933 = vmax.f32 %v8917, %v8925
        %s8934 = scalar_lea.vmem [#allocation3], 24
        %8935 = vst [vmem:[%s8934 + $0x8] sm:$0xff] %v8926
        %8936 = vst [vmem:[%s8934 + $0x20] sm:$0xff] %v8927
        %8937 = vst [vmem:[%s8934 + $0x38] sm:$0xff] %v8928
        %8938 = vst [vmem:[%s8934 + $0x50] sm:$0xff] %v8929
        %8939 = vst [vmem:[%s8934 + $0x68] sm:$0xff] %v8930
        %8940 = vst [vmem:[%s8934 + $0x80] sm:$0xff] %v8931
        %8941 = vst [vmem:[%s8934 + $0x98] sm:$0xff] %v8932
        %8942 = vst [vmem:[%s8934 + $0xb0] sm:$0xff] %v8933
        %v8943 = vld [vmem:[#allocation3 + $0x7] sm:$0xff]
        %v8944 = vld [vmem:[#allocation3 + $0x1f] sm:$0xff]
        %v8945 = vld [vmem:[#allocation3 + $0x37] sm:$0xff]
        %v8946 = vld [vmem:[#allocation3 + $0x4f] sm:$0xff]
        %v8947 = vld [vmem:[#allocation3 + $0x67] sm:$0xff]
        %v8948 = vld [vmem:[#allocation3 + $0x7f] sm:$0xff]
        %v8949 = vld [vmem:[#allocation3 + $0x97] sm:$0xff]
        %v8950 = vld [vmem:[#allocation3 + $0xaf] sm:$0xff]
        %v8951 = vld [vmem:[#allocation3 + $0xc7] sm:$0xff]
        %v8952 = vld [vmem:[#allocation3 + $0xdf] sm:$0xff]
        %v8953 = vld [vmem:[#allocation3 + $0x8] sm:$0xff]
        %v8954 = vld [vmem:[#allocation3 + $0x20] sm:$0xff]
        %v8955 = vld [vmem:[#allocation3 + $0x38] sm:$0xff]
        %v8956 = vld [vmem:[#allocation3 + $0x50] sm:$0xff]
        %v8957 = vld [vmem:[#allocation3 + $0x68] sm:$0xff]
        %v8958 = vld [vmem:[#allocation3 + $0x80] sm:$0xff]
        %v8959 = vld [vmem:[#allocation3 + $0x98] sm:$0xff]
        %v8960 = vld [vmem:[#allocation3 + $0xb0] sm:$0xff]
        %v8961 = vld [vmem:[#allocation3 + $0xc8] sm:$0xff]
        %v8962 = vld [vmem:[#allocation3 + $0xe0] sm:$0xff]
        %v8963 = vld [vmem:[#allocation3 + $0x9] sm:$0xff]
        %v8964 = vld [vmem:[#allocation3 + $0x21] sm:$0xff]
        %v8965 = vld [vmem:[#allocation3 + $0x39] sm:$0xff]
        %v8966 = vld [vmem:[#allocation3 + $0x51] sm:$0xff]
        %v8967 = vld [vmem:[#allocation3 + $0x69] sm:$0xff]
        %v8968 = vld [vmem:[#allocation3 + $0x81] sm:$0xff]
        %v8969 = vld [vmem:[#allocation3 + $0x99] sm:$0xff]
        %v8970 = vld [vmem:[#allocation3 + $0xb1] sm:$0xff]
        %v8971 = vld [vmem:[#allocation3 + $0xc9] sm:$0xff]
        %v8972 = vld [vmem:[#allocation3 + $0xe1] sm:$0xff]
        %v8973 = vld [vmem:[%s5] sm:$0xff]
        %v8974 = vld [vmem:[%s5 + $0x8] sm:$0xff]
        %v8975 = vld [vmem:[%s5 + $0x10] sm:$0xff]
        %v8976 = vld [vmem:[%s5 + $0x18] sm:$0xff]
        %v8977 = vld [vmem:[%s5 + $0x20] sm:$0xff]
        %v8978 = vld [vmem:[%s5 + $0x28] sm:$0xff]
        %v8979 = vld [vmem:[%s5 + $0x30] sm:$0xff]
        %v8980 = vld [vmem:[%s5 + $0x38] sm:$0xff]
        %v8981 = vld [vmem:[%s5 + $0x40] sm:$0xff]
        %v8982 = vld [vmem:[%s5 + $0x48] sm:$0xff]
        %v8983 = vld [vmem:[%s5 + $0x50] sm:$0xff]
        %v8984 = vld [vmem:[%s5 + $0x58] sm:$0xff]
        %v8985 = vld [vmem:[%s5 + $0x60] sm:$0xff]
        %v8986 = vld [vmem:[%s5 + $0x68] sm:$0xff]
        %v8987 = vld [vmem:[%s5 + $0x70] sm:$0xff]
        %v8988 = vld [vmem:[%s5 + $0x78] sm:$0xff]
        %s8989 = scalar_lea.vmem %s5, 128
        %v8990 = vld [vmem:[%s8989] sm:$0xff]
        %v8991 = vld [vmem:[%s8989 + $0x8] sm:$0xff]
        %v8992 = vld [vmem:[%s8989 + $0x10] sm:$0xff]
        %v8993 = vld [vmem:[%s8989 + $0x18] sm:$0xff]
        %v8994 = vld [vmem:[%s8989 + $0x20] sm:$0xff]
        %v8995 = vld [vmem:[%s8989 + $0x28] sm:$0xff]
        %v8996 = vld [vmem:[%s8989 + $0x30] sm:$0xff]
        %v8997 = vld [vmem:[%s8989 + $0x38] sm:$0xff]
        %v8998 = vld [vmem:[%s8989 + $0x40] sm:$0xff]
        %v8999 = vld [vmem:[%s8989 + $0x48] sm:$0xff]
        %v9000 = vld [vmem:[%s8989 + $0x50] sm:$0xff]
        %v9001 = vld [vmem:[%s8989 + $0x58] sm:$0xff]
        %v9002 = vld [vmem:[%s8989 + $0x60] sm:$0xff]
        %v9003 = vld [vmem:[%s8989 + $0x68] sm:$0xff]
        %v9004 = vld [vmem:[%s8989 + $0x70] sm:$0xff]
        %v9005 = vld [vmem:[%s8989 + $0x78] sm:$0xff]
        %9006 = vmatpush.msra.mxu0 %v9005
        %9007 = vmatpush.msra.mxu0 %v9004
        %9008 = vmatpush.msra.mxu0 %v9003
        %9009 = vmatpush.msra.mxu0 %v9002
        %9010 = vmatpush.msra.mxu0 %v9001
        %9011 = vmatpush.msra.mxu0 %v9000
        %9012 = vmatpush.msra.mxu0 %v8999
        %9013 = vmatpush.msra.mxu0 %v8998
        %9014 = vmatpush.msra.mxu0 %v8997
        %9015 = vmatpush.msra.mxu0 %v8996
        %9016 = vmatpush.msra.mxu0 %v8995
        %9017 = vmatpush.msra.mxu0 %v8994
        %9018 = vmatpush.msra.mxu0 %v8993
        %9019 = vmatpush.msra.mxu0 %v8992
        %9020 = vmatpush.msra.mxu0 %v8991
        %9021 = vmatpush.msra.mxu0 %v8990
        %9022 = vmatmul.f32.gmra.mxu0 %v8953
        %v9023 = vpop.f32.mrf.mxu0
        %v9024 = vadd.f32 0.0, %v9023
        %9025 = vmatmul.f32.gmra.mxu0 %v8954
        %v9026 = vpop.f32.mrf.mxu0
        %v9027 = vadd.f32 0.0, %v9026
        %9028 = vmatmul.f32.gmra.mxu0 %v8955
        %v9029 = vpop.f32.mrf.mxu0
        %v9030 = vadd.f32 0.0, %v9029
        %9031 = vmatmul.f32.gmra.mxu0 %v8956
        %v9032 = vpop.f32.mrf.mxu0
        %v9033 = vadd.f32 0.0, %v9032
        %9034 = vmatmul.f32.gmra.mxu0 %v8957
        %v9035 = vpop.f32.mrf.mxu0
        %v9036 = vadd.f32 0.0, %v9035
        %9037 = vmatmul.f32.gmra.mxu0 %v8958
        %v9038 = vpop.f32.mrf.mxu0
        %v9039 = vadd.f32 0.0, %v9038
        %9040 = vmatmul.f32.gmra.mxu0 %v8959
        %v9041 = vpop.f32.mrf.mxu0
        %v9042 = vadd.f32 0.0, %v9041
        %9043 = vmatmul.f32.gmra.mxu0 %v8960
        %v9044 = vpop.f32.mrf.mxu0
        %v9045 = vadd.f32 0.0, %v9044
        %9046 = vdwg.mxu0
        %9047 = vmatpush.msra.mxu0 %v8988
        %9048 = vmatpush.msra.mxu0 %v8987
        %9049 = vmatpush.msra.mxu0 %v8986
        %9050 = vmatpush.msra.mxu0 %v8985
        %9051 = vmatpush.msra.mxu0 %v8984
        %9052 = vmatpush.msra.mxu0 %v8983
        %9053 = vmatpush.msra.mxu0 %v8982
        %9054 = vmatpush.msra.mxu0 %v8981
        %9055 = vmatpush.msra.mxu0 %v8980
        %9056 = vmatpush.msra.mxu0 %v8979
        %9057 = vmatpush.msra.mxu0 %v8978
        %9058 = vmatpush.msra.mxu0 %v8977
        %9059 = vmatpush.msra.mxu0 %v8976
        %9060 = vmatpush.msra.mxu0 %v8975
        %9061 = vmatpush.msra.mxu0 %v8974
        %9062 = vmatpush.msra.mxu0 %v8973
        %9063 = vmatmul.f32.gmra.mxu0 %v8943
        %v9064 = vpop.f32.mrf.mxu0
        %v9065 = vadd.f32 %v9024, %v9064
        %9066 = vmatmul.f32.gmra.mxu0 %v8944
        %v9067 = vpop.f32.mrf.mxu0
        %v9068 = vadd.f32 %v9027, %v9067
        %9069 = vmatmul.f32.gmra.mxu0 %v8945
        %v9070 = vpop.f32.mrf.mxu0
        %v9071 = vadd.f32 %v9030, %v9070
        %9072 = vmatmul.f32.gmra.mxu0 %v8946
        %v9073 = vpop.f32.mrf.mxu0
        %v9074 = vadd.f32 %v9033, %v9073
        %9075 = vmatmul.f32.gmra.mxu0 %v8947
        %v9076 = vpop.f32.mrf.mxu0
        %v9077 = vadd.f32 %v9036, %v9076
        %9078 = vmatmul.f32.gmra.mxu0 %v8948
        %v9079 = vpop.f32.mrf.mxu0
        %v9080 = vadd.f32 %v9039, %v9079
        %9081 = vmatmul.f32.gmra.mxu0 %v8949
        %v9082 = vpop.f32.mrf.mxu0
        %v9083 = vadd.f32 %v9042, %v9082
        %9084 = vmatmul.f32.gmra.mxu0 %v8950
        %v9085 = vpop.f32.mrf.mxu0
        %v9086 = vadd.f32 %v9045, %v9085
        %9087 = vdwg.mxu0
        %s9088 = scalar_lea.vmem %s5, 256
        %v9089 = vld [vmem:[%s9088] sm:$0xff]
        %v9090 = vld [vmem:[%s9088 + $0x8] sm:$0xff]
        %v9091 = vld [vmem:[%s9088 + $0x10] sm:$0xff]
        %v9092 = vld [vmem:[%s9088 + $0x18] sm:$0xff]
        %v9093 = vld [vmem:[%s9088 + $0x20] sm:$0xff]
        %v9094 = vld [vmem:[%s9088 + $0x28] sm:$0xff]
        %v9095 = vld [vmem:[%s9088 + $0x30] sm:$0xff]
        %v9096 = vld [vmem:[%s9088 + $0x38] sm:$0xff]
        %v9097 = vld [vmem:[%s9088 + $0x40] sm:$0xff]
        %v9098 = vld [vmem:[%s9088 + $0x48] sm:$0xff]
        %v9099 = vld [vmem:[%s9088 + $0x50] sm:$0xff]
        %v9100 = vld [vmem:[%s9088 + $0x58] sm:$0xff]
        %v9101 = vld [vmem:[%s9088 + $0x60] sm:$0xff]
        %v9102 = vld [vmem:[%s9088 + $0x68] sm:$0xff]
        %v9103 = vld [vmem:[%s9088 + $0x70] sm:$0xff]
        %v9104 = vld [vmem:[%s9088 + $0x78] sm:$0xff]
        %9105 = vmatpush.msra.mxu0 %v9104
        %9106 = vmatpush.msra.mxu0 %v9103
        %9107 = vmatpush.msra.mxu0 %v9102
        %9108 = vmatpush.msra.mxu0 %v9101
        %9109 = vmatpush.msra.mxu0 %v9100
        %9110 = vmatpush.msra.mxu0 %v9099
        %9111 = vmatpush.msra.mxu0 %v9098
        %9112 = vmatpush.msra.mxu0 %v9097
        %9113 = vmatpush.msra.mxu0 %v9096
        %9114 = vmatpush.msra.mxu0 %v9095
        %9115 = vmatpush.msra.mxu0 %v9094
        %9116 = vmatpush.msra.mxu0 %v9093
        %9117 = vmatpush.msra.mxu0 %v9092
        %9118 = vmatpush.msra.mxu0 %v9091
        %9119 = vmatpush.msra.mxu0 %v9090
        %9120 = vmatpush.msra.mxu0 %v9089
        %9121 = vmatmul.f32.gmra.mxu0 %v8963
        %v9122 = vpop.f32.mrf.mxu0
        %v9123 = vadd.f32 0.0, %v9122
        %9124 = vmatmul.f32.gmra.mxu0 %v8964
        %v9125 = vpop.f32.mrf.mxu0
        %v9126 = vadd.f32 0.0, %v9125
        %9127 = vmatmul.f32.gmra.mxu0 %v8965
        %v9128 = vpop.f32.mrf.mxu0
        %v9129 = vadd.f32 0.0, %v9128
        %9130 = vmatmul.f32.gmra.mxu0 %v8966
        %v9131 = vpop.f32.mrf.mxu0
        %v9132 = vadd.f32 0.0, %v9131
        %9133 = vmatmul.f32.gmra.mxu0 %v8967
        %v9134 = vpop.f32.mrf.mxu0
        %v9135 = vadd.f32 0.0, %v9134
        %9136 = vmatmul.f32.gmra.mxu0 %v8968
        %v9137 = vpop.f32.mrf.mxu0
        %v9138 = vadd.f32 0.0, %v9137
        %9139 = vmatmul.f32.gmra.mxu0 %v8969
        %v9140 = vpop.f32.mrf.mxu0
        %v9141 = vadd.f32 0.0, %v9140
        %9142 = vmatmul.f32.gmra.mxu0 %v8970
        %v9143 = vpop.f32.mrf.mxu0
        %v9144 = vadd.f32 0.0, %v9143
        %9145 = vdwg.mxu0
        %v9146 = vadd.f32 %v9065, %v9123
        %v9147 = vadd.f32 %v9068, %v9126
        %v9148 = vadd.f32 %v9071, %v9129
        %v9149 = vadd.f32 %v9074, %v9132
        %v9150 = vadd.f32 %v9077, %v9135
        %v9151 = vadd.f32 %v9080, %v9138
        %v9152 = vadd.f32 %v9083, %v9141
        %v9153 = vadd.f32 %v9086, %v9144
        %s9154 = scalar_lea.vmem %s5, 384
        %v9155 = vld [vmem:[%s9154] sm:$0xff]
        %v9156 = vld [vmem:[%s9154 + $0x8] sm:$0xff]
        %v9157 = vld [vmem:[%s9154 + $0x10] sm:$0xff]
        %v9158 = vld [vmem:[%s9154 + $0x18] sm:$0xff]
        %v9159 = vld [vmem:[%s9154 + $0x20] sm:$0xff]
        %v9160 = vld [vmem:[%s9154 + $0x28] sm:$0xff]
        %v9161 = vld [vmem:[%s9154 + $0x30] sm:$0xff]
        %v9162 = vld [vmem:[%s9154 + $0x38] sm:$0xff]
        %v9163 = vld [vmem:[%s9154 + $0x40] sm:$0xff]
        %v9164 = vld [vmem:[%s9154 + $0x48] sm:$0xff]
        %v9165 = vld [vmem:[%s9154 + $0x50] sm:$0xff]
        %v9166 = vld [vmem:[%s9154 + $0x58] sm:$0xff]
        %v9167 = vld [vmem:[%s9154 + $0x60] sm:$0xff]
        %v9168 = vld [vmem:[%s9154 + $0x68] sm:$0xff]
        %v9169 = vld [vmem:[%s9154 + $0x70] sm:$0xff]
        %v9170 = vld [vmem:[%s9154 + $0x78] sm:$0xff]
        %9171 = vmatpush.msra.mxu0 %v9170
        %9172 = vmatpush.msra.mxu0 %v9169
        %9173 = vmatpush.msra.mxu0 %v9168
        %9174 = vmatpush.msra.mxu0 %v9167
        %9175 = vmatpush.msra.mxu0 %v9166
        %9176 = vmatpush.msra.mxu0 %v9165
        %9177 = vmatpush.msra.mxu0 %v9164
        %9178 = vmatpush.msra.mxu0 %v9163
        %9179 = vmatpush.msra.mxu0 %v9162
        %9180 = vmatpush.msra.mxu0 %v9161
        %9181 = vmatpush.msra.mxu0 %v9160
        %9182 = vmatpush.msra.mxu0 %v9159
        %9183 = vmatpush.msra.mxu0 %v9158
        %9184 = vmatpush.msra.mxu0 %v9157
        %9185 = vmatpush.msra.mxu0 %v9156
        %9186 = vmatpush.msra.mxu0 %v9155
        %9187 = vmatmul.f32.gmra.mxu0 %v8944
        %v9188 = vpop.f32.mrf.mxu0
        %v9189 = vadd.f32 0.0, %v9188
        %9190 = vmatmul.f32.gmra.mxu0 %v8945
        %v9191 = vpop.f32.mrf.mxu0
        %v9192 = vadd.f32 0.0, %v9191
        %9193 = vmatmul.f32.gmra.mxu0 %v8946
        %v9194 = vpop.f32.mrf.mxu0
        %v9195 = vadd.f32 0.0, %v9194
        %9196 = vmatmul.f32.gmra.mxu0 %v8947
        %v9197 = vpop.f32.mrf.mxu0
        %v9198 = vadd.f32 0.0, %v9197
        %9199 = vmatmul.f32.gmra.mxu0 %v8948
        %v9200 = vpop.f32.mrf.mxu0
        %v9201 = vadd.f32 0.0, %v9200
        %9202 = vmatmul.f32.gmra.mxu0 %v8949
        %v9203 = vpop.f32.mrf.mxu0
        %v9204 = vadd.f32 0.0, %v9203
        %9205 = vmatmul.f32.gmra.mxu0 %v8950
        %v9206 = vpop.f32.mrf.mxu0
        %v9207 = vadd.f32 0.0, %v9206
        %9208 = vmatmul.f32.gmra.mxu0 %v8951
        %v9209 = vpop.f32.mrf.mxu0
        %v9210 = vadd.f32 0.0, %v9209
        %9211 = vdwg.mxu0
        %v9212 = vadd.f32 %v9146, %v9189
        %v9213 = vadd.f32 %v9147, %v9192
        %v9214 = vadd.f32 %v9148, %v9195
        %v9215 = vadd.f32 %v9149, %v9198
        %v9216 = vadd.f32 %v9150, %v9201
        %v9217 = vadd.f32 %v9151, %v9204
        %v9218 = vadd.f32 %v9152, %v9207
        %v9219 = vadd.f32 %v9153, %v9210
        %s9220 = scalar_lea.vmem %s5, 512
        %v9221 = vld [vmem:[%s9220] sm:$0xff]
        %v9222 = vld [vmem:[%s9220 + $0x8] sm:$0xff]
        %v9223 = vld [vmem:[%s9220 + $0x10] sm:$0xff]
        %v9224 = vld [vmem:[%s9220 + $0x18] sm:$0xff]
        %v9225 = vld [vmem:[%s9220 + $0x20] sm:$0xff]
        %v9226 = vld [vmem:[%s9220 + $0x28] sm:$0xff]
        %v9227 = vld [vmem:[%s9220 + $0x30] sm:$0xff]
        %v9228 = vld [vmem:[%s9220 + $0x38] sm:$0xff]
        %v9229 = vld [vmem:[%s9220 + $0x40] sm:$0xff]
        %v9230 = vld [vmem:[%s9220 + $0x48] sm:$0xff]
        %v9231 = vld [vmem:[%s9220 + $0x50] sm:$0xff]
        %v9232 = vld [vmem:[%s9220 + $0x58] sm:$0xff]
        %v9233 = vld [vmem:[%s9220 + $0x60] sm:$0xff]
        %v9234 = vld [vmem:[%s9220 + $0x68] sm:$0xff]
        %v9235 = vld [vmem:[%s9220 + $0x70] sm:$0xff]
        %v9236 = vld [vmem:[%s9220 + $0x78] sm:$0xff]
        %9237 = vmatpush.msra.mxu0 %v9236
        %9238 = vmatpush.msra.mxu0 %v9235
        %9239 = vmatpush.msra.mxu0 %v9234
        %9240 = vmatpush.msra.mxu0 %v9233
        %9241 = vmatpush.msra.mxu0 %v9232
        %9242 = vmatpush.msra.mxu0 %v9231
        %9243 = vmatpush.msra.mxu0 %v9230
        %9244 = vmatpush.msra.mxu0 %v9229
        %9245 = vmatpush.msra.mxu0 %v9228
        %9246 = vmatpush.msra.mxu0 %v9227
        %9247 = vmatpush.msra.mxu0 %v9226
        %9248 = vmatpush.msra.mxu0 %v9225
        %9249 = vmatpush.msra.mxu0 %v9224
        %9250 = vmatpush.msra.mxu0 %v9223
        %9251 = vmatpush.msra.mxu0 %v9222
        %9252 = vmatpush.msra.mxu0 %v9221
        %9253 = vmatmul.f32.gmra.mxu0 %v8954
        %v9254 = vpop.f32.mrf.mxu0
        %v9255 = vadd.f32 0.0, %v9254
        %9256 = vmatmul.f32.gmra.mxu0 %v8955
        %v9257 = vpop.f32.mrf.mxu0
        %v9258 = vadd.f32 0.0, %v9257
        %9259 = vmatmul.f32.gmra.mxu0 %v8956
        %v9260 = vpop.f32.mrf.mxu0
        %v9261 = vadd.f32 0.0, %v9260
        %9262 = vmatmul.f32.gmra.mxu0 %v8957
        %v9263 = vpop.f32.mrf.mxu0
        %v9264 = vadd.f32 0.0, %v9263
        %9265 = vmatmul.f32.gmra.mxu0 %v8958
        %v9266 = vpop.f32.mrf.mxu0
        %v9267 = vadd.f32 0.0, %v9266
        %9268 = vmatmul.f32.gmra.mxu0 %v8959
        %v9269 = vpop.f32.mrf.mxu0
        %v9270 = vadd.f32 0.0, %v9269
        %9271 = vmatmul.f32.gmra.mxu0 %v8960
        %v9272 = vpop.f32.mrf.mxu0
        %v9273 = vadd.f32 0.0, %v9272
        %9274 = vmatmul.f32.gmra.mxu0 %v8961
        %v9275 = vpop.f32.mrf.mxu0
        %v9276 = vadd.f32 0.0, %v9275
        %9277 = vdwg.mxu0
        %v9278 = vadd.f32 %v9212, %v9255
        %v9279 = vadd.f32 %v9213, %v9258
        %v9280 = vadd.f32 %v9214, %v9261
        %v9281 = vadd.f32 %v9215, %v9264
        %v9282 = vadd.f32 %v9216, %v9267
        %v9283 = vadd.f32 %v9217, %v9270
        %v9284 = vadd.f32 %v9218, %v9273
        %v9285 = vadd.f32 %v9219, %v9276
        %s9286 = scalar_lea.vmem %s5, 640
        %v9287 = vld [vmem:[%s9286] sm:$0xff]
        %v9288 = vld [vmem:[%s9286 + $0x8] sm:$0xff]
        %v9289 = vld [vmem:[%s9286 + $0x10] sm:$0xff]
        %v9290 = vld [vmem:[%s9286 + $0x18] sm:$0xff]
        %v9291 = vld [vmem:[%s9286 + $0x20] sm:$0xff]
        %v9292 = vld [vmem:[%s9286 + $0x28] sm:$0xff]
        %v9293 = vld [vmem:[%s9286 + $0x30] sm:$0xff]
        %v9294 = vld [vmem:[%s9286 + $0x38] sm:$0xff]
        %v9295 = vld [vmem:[%s9286 + $0x40] sm:$0xff]
        %v9296 = vld [vmem:[%s9286 + $0x48] sm:$0xff]
        %v9297 = vld [vmem:[%s9286 + $0x50] sm:$0xff]
        %v9298 = vld [vmem:[%s9286 + $0x58] sm:$0xff]
        %v9299 = vld [vmem:[%s9286 + $0x60] sm:$0xff]
        %v9300 = vld [vmem:[%s9286 + $0x68] sm:$0xff]
        %v9301 = vld [vmem:[%s9286 + $0x70] sm:$0xff]
        %v9302 = vld [vmem:[%s9286 + $0x78] sm:$0xff]
        %9303 = vmatpush.msra.mxu0 %v9302
        %9304 = vmatpush.msra.mxu0 %v9301
        %9305 = vmatpush.msra.mxu0 %v9300
        %9306 = vmatpush.msra.mxu0 %v9299
        %9307 = vmatpush.msra.mxu0 %v9298
        %9308 = vmatpush.msra.mxu0 %v9297
        %9309 = vmatpush.msra.mxu0 %v9296
        %9310 = vmatpush.msra.mxu0 %v9295
        %9311 = vmatpush.msra.mxu0 %v9294
        %9312 = vmatpush.msra.mxu0 %v9293
        %9313 = vmatpush.msra.mxu0 %v9292
        %9314 = vmatpush.msra.mxu0 %v9291
        %9315 = vmatpush.msra.mxu0 %v9290
        %9316 = vmatpush.msra.mxu0 %v9289
        %9317 = vmatpush.msra.mxu0 %v9288
        %9318 = vmatpush.msra.mxu0 %v9287
        %9319 = vmatmul.f32.gmra.mxu0 %v8964
        %v9320 = vpop.f32.mrf.mxu0
        %v9321 = vadd.f32 0.0, %v9320
        %9322 = vmatmul.f32.gmra.mxu0 %v8965
        %v9323 = vpop.f32.mrf.mxu0
        %v9324 = vadd.f32 0.0, %v9323
        %9325 = vmatmul.f32.gmra.mxu0 %v8966
        %v9326 = vpop.f32.mrf.mxu0
        %v9327 = vadd.f32 0.0, %v9326
        %9328 = vmatmul.f32.gmra.mxu0 %v8967
        %v9329 = vpop.f32.mrf.mxu0
        %v9330 = vadd.f32 0.0, %v9329
        %9331 = vmatmul.f32.gmra.mxu0 %v8968
        %v9332 = vpop.f32.mrf.mxu0
        %v9333 = vadd.f32 0.0, %v9332
        %9334 = vmatmul.f32.gmra.mxu0 %v8969
        %v9335 = vpop.f32.mrf.mxu0
        %v9336 = vadd.f32 0.0, %v9335
        %9337 = vmatmul.f32.gmra.mxu0 %v8970
        %v9338 = vpop.f32.mrf.mxu0
        %v9339 = vadd.f32 0.0, %v9338
        %9340 = vmatmul.f32.gmra.mxu0 %v8971
        %v9341 = vpop.f32.mrf.mxu0
        %v9342 = vadd.f32 0.0, %v9341
        %9343 = vdwg.mxu0
        %v9344 = vadd.f32 %v9278, %v9321
        %v9345 = vadd.f32 %v9279, %v9324
        %v9346 = vadd.f32 %v9280, %v9327
        %v9347 = vadd.f32 %v9281, %v9330
        %v9348 = vadd.f32 %v9282, %v9333
        %v9349 = vadd.f32 %v9283, %v9336
        %v9350 = vadd.f32 %v9284, %v9339
        %v9351 = vadd.f32 %v9285, %v9342
        %s9352 = scalar_lea.vmem %s5, 768
        %v9353 = vld [vmem:[%s9352] sm:$0xff]
        %v9354 = vld [vmem:[%s9352 + $0x8] sm:$0xff]
        %v9355 = vld [vmem:[%s9352 + $0x10] sm:$0xff]
        %v9356 = vld [vmem:[%s9352 + $0x18] sm:$0xff]
        %v9357 = vld [vmem:[%s9352 + $0x20] sm:$0xff]
        %v9358 = vld [vmem:[%s9352 + $0x28] sm:$0xff]
        %v9359 = vld [vmem:[%s9352 + $0x30] sm:$0xff]
        %v9360 = vld [vmem:[%s9352 + $0x38] sm:$0xff]
        %v9361 = vld [vmem:[%s9352 + $0x40] sm:$0xff]
        %v9362 = vld [vmem:[%s9352 + $0x48] sm:$0xff]
        %v9363 = vld [vmem:[%s9352 + $0x50] sm:$0xff]
        %v9364 = vld [vmem:[%s9352 + $0x58] sm:$0xff]
        %v9365 = vld [vmem:[%s9352 + $0x60] sm:$0xff]
        %v9366 = vld [vmem:[%s9352 + $0x68] sm:$0xff]
        %v9367 = vld [vmem:[%s9352 + $0x70] sm:$0xff]
        %v9368 = vld [vmem:[%s9352 + $0x78] sm:$0xff]
        %9369 = vmatpush.msra.mxu0 %v9368
        %9370 = vmatpush.msra.mxu0 %v9367
        %9371 = vmatpush.msra.mxu0 %v9366
        %9372 = vmatpush.msra.mxu0 %v9365
        %9373 = vmatpush.msra.mxu0 %v9364
        %9374 = vmatpush.msra.mxu0 %v9363
        %9375 = vmatpush.msra.mxu0 %v9362
        %9376 = vmatpush.msra.mxu0 %v9361
        %9377 = vmatpush.msra.mxu0 %v9360
        %9378 = vmatpush.msra.mxu0 %v9359
        %9379 = vmatpush.msra.mxu0 %v9358
        %9380 = vmatpush.msra.mxu0 %v9357
        %9381 = vmatpush.msra.mxu0 %v9356
        %9382 = vmatpush.msra.mxu0 %v9355
        %9383 = vmatpush.msra.mxu0 %v9354
        %9384 = vmatpush.msra.mxu0 %v9353
        %9385 = vmatmul.f32.gmra.mxu0 %v8945
        %v9386 = vpop.f32.mrf.mxu0
        %v9387 = vadd.f32 0.0, %v9386
        %9388 = vmatmul.f32.gmra.mxu0 %v8946
        %v9389 = vpop.f32.mrf.mxu0
        %v9390 = vadd.f32 0.0, %v9389
        %9391 = vmatmul.f32.gmra.mxu0 %v8947
        %v9392 = vpop.f32.mrf.mxu0
        %v9393 = vadd.f32 0.0, %v9392
        %9394 = vmatmul.f32.gmra.mxu0 %v8948
        %v9395 = vpop.f32.mrf.mxu0
        %v9396 = vadd.f32 0.0, %v9395
        %9397 = vmatmul.f32.gmra.mxu0 %v8949
        %v9398 = vpop.f32.mrf.mxu0
        %v9399 = vadd.f32 0.0, %v9398
        %9400 = vmatmul.f32.gmra.mxu0 %v8950
        %v9401 = vpop.f32.mrf.mxu0
        %v9402 = vadd.f32 0.0, %v9401
        %9403 = vmatmul.f32.gmra.mxu0 %v8951
        %v9404 = vpop.f32.mrf.mxu0
        %v9405 = vadd.f32 0.0, %v9404
        %9406 = vmatmul.f32.gmra.mxu0 %v8952
        %v9407 = vpop.f32.mrf.mxu0
        %v9408 = vadd.f32 0.0, %v9407
        %9409 = vdwg.mxu0
        %v9410 = vadd.f32 %v9344, %v9387
        %v9411 = vadd.f32 %v9345, %v9390
        %v9412 = vadd.f32 %v9346, %v9393
        %v9413 = vadd.f32 %v9347, %v9396
        %v9414 = vadd.f32 %v9348, %v9399
        %v9415 = vadd.f32 %v9349, %v9402
        %v9416 = vadd.f32 %v9350, %v9405
        %v9417 = vadd.f32 %v9351, %v9408
        %s9418 = scalar_lea.vmem %s5, 896
        %v9419 = vld [vmem:[%s9418] sm:$0xff]
        %v9420 = vld [vmem:[%s9418 + $0x8] sm:$0xff]
        %v9421 = vld [vmem:[%s9418 + $0x10] sm:$0xff]
        %v9422 = vld [vmem:[%s9418 + $0x18] sm:$0xff]
        %v9423 = vld [vmem:[%s9418 + $0x20] sm:$0xff]
        %v9424 = vld [vmem:[%s9418 + $0x28] sm:$0xff]
        %v9425 = vld [vmem:[%s9418 + $0x30] sm:$0xff]
        %v9426 = vld [vmem:[%s9418 + $0x38] sm:$0xff]
        %v9427 = vld [vmem:[%s9418 + $0x40] sm:$0xff]
        %v9428 = vld [vmem:[%s9418 + $0x48] sm:$0xff]
        %v9429 = vld [vmem:[%s9418 + $0x50] sm:$0xff]
        %v9430 = vld [vmem:[%s9418 + $0x58] sm:$0xff]
        %v9431 = vld [vmem:[%s9418 + $0x60] sm:$0xff]
        %v9432 = vld [vmem:[%s9418 + $0x68] sm:$0xff]
        %v9433 = vld [vmem:[%s9418 + $0x70] sm:$0xff]
        %v9434 = vld [vmem:[%s9418 + $0x78] sm:$0xff]
        %9435 = vmatpush.msra.mxu0 %v9434
        %9436 = vmatpush.msra.mxu0 %v9433
        %9437 = vmatpush.msra.mxu0 %v9432
        %9438 = vmatpush.msra.mxu0 %v9431
        %9439 = vmatpush.msra.mxu0 %v9430
        %9440 = vmatpush.msra.mxu0 %v9429
        %9441 = vmatpush.msra.mxu0 %v9428
        %9442 = vmatpush.msra.mxu0 %v9427
        %9443 = vmatpush.msra.mxu0 %v9426
        %9444 = vmatpush.msra.mxu0 %v9425
        %9445 = vmatpush.msra.mxu0 %v9424
        %9446 = vmatpush.msra.mxu0 %v9423
        %9447 = vmatpush.msra.mxu0 %v9422
        %9448 = vmatpush.msra.mxu0 %v9421
        %9449 = vmatpush.msra.mxu0 %v9420
        %9450 = vmatpush.msra.mxu0 %v9419
        %9451 = vmatmul.f32.gmra.mxu0 %v8955
        %v9452 = vpop.f32.mrf.mxu0
        %v9453 = vadd.f32 0.0, %v9452
        %9454 = vmatmul.f32.gmra.mxu0 %v8956
        %v9455 = vpop.f32.mrf.mxu0
        %v9456 = vadd.f32 0.0, %v9455
        %9457 = vmatmul.f32.gmra.mxu0 %v8957
        %v9458 = vpop.f32.mrf.mxu0
        %v9459 = vadd.f32 0.0, %v9458
        %9460 = vmatmul.f32.gmra.mxu0 %v8958
        %v9461 = vpop.f32.mrf.mxu0
        %v9462 = vadd.f32 0.0, %v9461
        %9463 = vmatmul.f32.gmra.mxu0 %v8959
        %v9464 = vpop.f32.mrf.mxu0
        %v9465 = vadd.f32 0.0, %v9464
        %9466 = vmatmul.f32.gmra.mxu0 %v8960
        %v9467 = vpop.f32.mrf.mxu0
        %v9468 = vadd.f32 0.0, %v9467
        %9469 = vmatmul.f32.gmra.mxu0 %v8961
        %v9470 = vpop.f32.mrf.mxu0
        %v9471 = vadd.f32 0.0, %v9470
        %9472 = vmatmul.f32.gmra.mxu0 %v8962
        %v9473 = vpop.f32.mrf.mxu0
        %v9474 = vadd.f32 0.0, %v9473
        %9475 = vdwg.mxu0
        %v9476 = vadd.f32 %v9410, %v9453
        %v9477 = vadd.f32 %v9411, %v9456
        %v9478 = vadd.f32 %v9412, %v9459
        %v9479 = vadd.f32 %v9413, %v9462
        %v9480 = vadd.f32 %v9414, %v9465
        %v9481 = vadd.f32 %v9415, %v9468
        %v9482 = vadd.f32 %v9416, %v9471
        %v9483 = vadd.f32 %v9417, %v9474
        %s9484 = scalar_lea.vmem %s5, 1024
        %v9485 = vld [vmem:[%s9484] sm:$0xff]
        %v9486 = vld [vmem:[%s9484 + $0x8] sm:$0xff]
        %v9487 = vld [vmem:[%s9484 + $0x10] sm:$0xff]
        %v9488 = vld [vmem:[%s9484 + $0x18] sm:$0xff]
        %v9489 = vld [vmem:[%s9484 + $0x20] sm:$0xff]
        %v9490 = vld [vmem:[%s9484 + $0x28] sm:$0xff]
        %v9491 = vld [vmem:[%s9484 + $0x30] sm:$0xff]
        %v9492 = vld [vmem:[%s9484 + $0x38] sm:$0xff]
        %v9493 = vld [vmem:[%s9484 + $0x40] sm:$0xff]
        %v9494 = vld [vmem:[%s9484 + $0x48] sm:$0xff]
        %v9495 = vld [vmem:[%s9484 + $0x50] sm:$0xff]
        %v9496 = vld [vmem:[%s9484 + $0x58] sm:$0xff]
        %v9497 = vld [vmem:[%s9484 + $0x60] sm:$0xff]
        %v9498 = vld [vmem:[%s9484 + $0x68] sm:$0xff]
        %v9499 = vld [vmem:[%s9484 + $0x70] sm:$0xff]
        %v9500 = vld [vmem:[%s9484 + $0x78] sm:$0xff]
        %9501 = vmatpush.msra.mxu0 %v9500
        %9502 = vmatpush.msra.mxu0 %v9499
        %9503 = vmatpush.msra.mxu0 %v9498
        %9504 = vmatpush.msra.mxu0 %v9497
        %9505 = vmatpush.msra.mxu0 %v9496
        %9506 = vmatpush.msra.mxu0 %v9495
        %9507 = vmatpush.msra.mxu0 %v9494
        %9508 = vmatpush.msra.mxu0 %v9493
        %9509 = vmatpush.msra.mxu0 %v9492
        %9510 = vmatpush.msra.mxu0 %v9491
        %9511 = vmatpush.msra.mxu0 %v9490
        %9512 = vmatpush.msra.mxu0 %v9489
        %9513 = vmatpush.msra.mxu0 %v9488
        %9514 = vmatpush.msra.mxu0 %v9487
        %9515 = vmatpush.msra.mxu0 %v9486
        %9516 = vmatpush.msra.mxu0 %v9485
        %9517 = vmatmul.f32.gmra.mxu0 %v8965
        %v9518 = vpop.f32.mrf.mxu0
        %v9519 = vadd.f32 0.0, %v9518
        %9520 = vmatmul.f32.gmra.mxu0 %v8966
        %v9521 = vpop.f32.mrf.mxu0
        %v9522 = vadd.f32 0.0, %v9521
        %9523 = vmatmul.f32.gmra.mxu0 %v8967
        %v9524 = vpop.f32.mrf.mxu0
        %v9525 = vadd.f32 0.0, %v9524
        %9526 = vmatmul.f32.gmra.mxu0 %v8968
        %v9527 = vpop.f32.mrf.mxu0
        %v9528 = vadd.f32 0.0, %v9527
        %9529 = vmatmul.f32.gmra.mxu0 %v8969
        %v9530 = vpop.f32.mrf.mxu0
        %v9531 = vadd.f32 0.0, %v9530
        %9532 = vmatmul.f32.gmra.mxu0 %v8970
        %v9533 = vpop.f32.mrf.mxu0
        %v9534 = vadd.f32 0.0, %v9533
        %9535 = vmatmul.f32.gmra.mxu0 %v8971
        %v9536 = vpop.f32.mrf.mxu0
        %v9537 = vadd.f32 0.0, %v9536
        %9538 = vmatmul.f32.gmra.mxu0 %v8972
        %v9539 = vpop.f32.mrf.mxu0
        %v9540 = vadd.f32 0.0, %v9539
        %9541 = vdwg.mxu0
        %v9542 = vadd.f32 %v9476, %v9519
        %v9543 = vadd.f32 %v9477, %v9522
        %v9544 = vadd.f32 %v9478, %v9525
        %v9545 = vadd.f32 %v9479, %v9528
        %v9546 = vadd.f32 %v9480, %v9531
        %v9547 = vadd.f32 %v9481, %v9534
        %v9548 = vadd.f32 %v9482, %v9537
        %v9549 = vadd.f32 %v9483, %v9540
        %v9550 = vld [vmem:[%s6] sm:$0x1]
        %v9552 = vperm.slane %v9550, 0
        %v9554 = vadd.f32 %v9542, %v9552
        %v9555 = vadd.f32 %v9543, %v9552
        %v9556 = vadd.f32 %v9544, %v9552
        %v9557 = vadd.f32 %v9545, %v9552
        %v9558 = vadd.f32 %v9546, %v9552
        %v9559 = vadd.f32 %v9547, %v9552
        %v9560 = vadd.f32 %v9548, %v9552
        %v9561 = vadd.f32 %v9549, %v9552
        %v9562 = vmax.f32 %v9554, 0.0
        %v9563 = vmax.f32 %v9555, 0.0
        %v9564 = vmax.f32 %v9556, 0.0
        %v9565 = vmax.f32 %v9557, 0.0
        %v9566 = vmax.f32 %v9558, 0.0
        %v9567 = vmax.f32 %v9559, 0.0
        %v9568 = vmax.f32 %v9560, 0.0
        %v9569 = vmax.f32 %v9561, 0.0
        %v9570 = vmax.f32 %v9562, %v9563
        %v9571 = vmax.f32 %v9564, %v9565
        %v9572 = vmax.f32 %v9566, %v9567
        %v9573 = vmax.f32 %v9568, %v9569
        %9574 = vst [vmem:[#allocation4] sm:$0xff] %v9570
        %9575 = vst [vmem:[#allocation4 + $0x20] sm:$0xff] %v9571
        %9576 = vst [vmem:[#allocation4 + $0x40] sm:$0xff] %v9572
        %9577 = vst [vmem:[#allocation4 + $0x60] sm:$0xff] %v9573
        %v9578 = vld [vmem:[#allocation4] sm:$0x3]
        %v9580 = vrot.slane %v9578, 1
        %v9582 = vmax.f32 %v9578, %v9580
        %v9583 = vld [vmem:[%s7] sm:$0xff]
        %v9584 = vld [vmem:[%s7 + $0x8] sm:$0xff]
        %v9585 = vld [vmem:[%s7 + $0x10] sm:$0xff]
        %v9586 = vld [vmem:[%s7 + $0x18] sm:$0xff]
        %v9587 = vld [vmem:[%s7 + $0x20] sm:$0xff]
        %v9588 = vld [vmem:[%s7 + $0x28] sm:$0xff]
        %v9589 = vld [vmem:[%s7 + $0x30] sm:$0xff]
        %v9590 = vld [vmem:[%s7 + $0x38] sm:$0xff]
        %v9591 = vld [vmem:[%s7 + $0x40] sm:$0xff]
        %v9592 = vld [vmem:[%s7 + $0x48] sm:$0xff]
        %v9593 = vld [vmem:[%s7 + $0x50] sm:$0xff]
        %v9594 = vld [vmem:[%s7 + $0x58] sm:$0xff]
        %v9595 = vld [vmem:[%s7 + $0x60] sm:$0xff]
        %v9596 = vld [vmem:[%s7 + $0x68] sm:$0xff]
        %v9597 = vld [vmem:[%s7 + $0x70] sm:$0xff]
        %v9598 = vld [vmem:[%s7 + $0x78] sm:$0xff]
        %v9599 = vld [vmem:[#allocation4 + $0x2] sm:$0x3]
        %v9601 = vrot.slane %v9599, 1
        %v9603 = vmax.f32 %v9599, %v9601
        %s9604 = scalar_lea.vmem %s7, 128
        %v9605 = vld [vmem:[%s9604] sm:$0xff]
        %v9606 = vld [vmem:[%s9604 + $0x8] sm:$0xff]
        %v9607 = vld [vmem:[%s9604 + $0x10] sm:$0xff]
        %v9608 = vld [vmem:[%s9604 + $0x18] sm:$0xff]
        %v9609 = vld [vmem:[%s9604 + $0x20] sm:$0xff]
        %v9610 = vld [vmem:[%s9604 + $0x28] sm:$0xff]
        %v9611 = vld [vmem:[%s9604 + $0x30] sm:$0xff]
        %v9612 = vld [vmem:[%s9604 + $0x38] sm:$0xff]
        %v9613 = vld [vmem:[%s9604 + $0x40] sm:$0xff]
        %v9614 = vld [vmem:[%s9604 + $0x48] sm:$0xff]
        %v9615 = vld [vmem:[%s9604 + $0x50] sm:$0xff]
        %v9616 = vld [vmem:[%s9604 + $0x58] sm:$0xff]
        %v9617 = vld [vmem:[%s9604 + $0x60] sm:$0xff]
        %v9618 = vld [vmem:[%s9604 + $0x68] sm:$0xff]
        %v9619 = vld [vmem:[%s9604 + $0x70] sm:$0xff]
        %v9620 = vld [vmem:[%s9604 + $0x78] sm:$0xff]
        %9621 = vmatpush.msra.mxu0 %v9620
        %9622 = vmatpush.msra.mxu0 %v9619
        %9623 = vmatpush.msra.mxu0 %v9618
        %9624 = vmatpush.msra.mxu0 %v9617
        %9625 = vmatpush.msra.mxu0 %v9616
        %9626 = vmatpush.msra.mxu0 %v9615
        %9627 = vmatpush.msra.mxu0 %v9614
        %9628 = vmatpush.msra.mxu0 %v9613
        %9629 = vmatpush.msra.mxu0 %v9612
        %9630 = vmatpush.msra.mxu0 %v9611
        %9631 = vmatpush.msra.mxu0 %v9610
        %9632 = vmatpush.msra.mxu0 %v9609
        %9633 = vmatpush.msra.mxu0 %v9608
        %9634 = vmatpush.msra.mxu0 %v9607
        %9635 = vmatpush.msra.mxu0 %v9606
        %9636 = vmatpush.msra.mxu0 %v9605
        %9637 = vmatmul.f32.gmra.mxu0 %v9603
        %v9638 = vpop.f32.mrf.mxu0
        %v9639 = vadd.f32 0.0, %v9638
        %9640 = vdwg.mxu0
        %9641 = vmatpush.msra.mxu0 %v9598
        %9642 = vmatpush.msra.mxu0 %v9597
        %9643 = vmatpush.msra.mxu0 %v9596
        %9644 = vmatpush.msra.mxu0 %v9595
        %9645 = vmatpush.msra.mxu0 %v9594
        %9646 = vmatpush.msra.mxu0 %v9593
        %9647 = vmatpush.msra.mxu0 %v9592
        %9648 = vmatpush.msra.mxu0 %v9591
        %9649 = vmatpush.msra.mxu0 %v9590
        %9650 = vmatpush.msra.mxu0 %v9589
        %9651 = vmatpush.msra.mxu0 %v9588
        %9652 = vmatpush.msra.mxu0 %v9587
        %9653 = vmatpush.msra.mxu0 %v9586
        %9654 = vmatpush.msra.mxu0 %v9585
        %9655 = vmatpush.msra.mxu0 %v9584
        %9656 = vmatpush.msra.mxu0 %v9583
        %9657 = vmatmul.f32.gmra.mxu0 %v9582
        %v9658 = vpop.f32.mrf.mxu0
        %v9659 = vadd.f32 %v9639, %v9658
        %9660 = vdwg.mxu0
        %v9661 = vld [vmem:[#allocation4 + $0x4] sm:$0x3]
        %v9663 = vrot.slane %v9661, 1
        %v9665 = vmax.f32 %v9661, %v9663
        %s9666 = scalar_lea.vmem %s7, 256
        %v9667 = vld [vmem:[%s9666] sm:$0xff]
        %v9668 = vld [vmem:[%s9666 + $0x8] sm:$0xff]
        %v9669 = vld [vmem:[%s9666 + $0x10] sm:$0xff]
        %v9670 = vld [vmem:[%s9666 + $0x18] sm:$0xff]
        %v9671 = vld [vmem:[%s9666 + $0x20] sm:$0xff]
        %v9672 = vld [vmem:[%s9666 + $0x28] sm:$0xff]
        %v9673 = vld [vmem:[%s9666 + $0x30] sm:$0xff]
        %v9674 = vld [vmem:[%s9666 + $0x38] sm:$0xff]
        %v9675 = vld [vmem:[%s9666 + $0x40] sm:$0xff]
        %v9676 = vld [vmem:[%s9666 + $0x48] sm:$0xff]
        %v9677 = vld [vmem:[%s9666 + $0x50] sm:$0xff]
        %v9678 = vld [vmem:[%s9666 + $0x58] sm:$0xff]
        %v9679 = vld [vmem:[%s9666 + $0x60] sm:$0xff]
        %v9680 = vld [vmem:[%s9666 + $0x68] sm:$0xff]
        %v9681 = vld [vmem:[%s9666 + $0x70] sm:$0xff]
        %v9682 = vld [vmem:[%s9666 + $0x78] sm:$0xff]
        %9683 = vmatpush.msra.mxu0 %v9682
        %9684 = vmatpush.msra.mxu0 %v9681
        %9685 = vmatpush.msra.mxu0 %v9680
        %9686 = vmatpush.msra.mxu0 %v9679
        %9687 = vmatpush.msra.mxu0 %v9678
        %9688 = vmatpush.msra.mxu0 %v9677
        %9689 = vmatpush.msra.mxu0 %v9676
        %9690 = vmatpush.msra.mxu0 %v9675
        %9691 = vmatpush.msra.mxu0 %v9674
        %9692 = vmatpush.msra.mxu0 %v9673
        %9693 = vmatpush.msra.mxu0 %v9672
        %9694 = vmatpush.msra.mxu0 %v9671
        %9695 = vmatpush.msra.mxu0 %v9670
        %9696 = vmatpush.msra.mxu0 %v9669
        %9697 = vmatpush.msra.mxu0 %v9668
        %9698 = vmatpush.msra.mxu0 %v9667
        %9699 = vmatmul.f32.gmra.mxu0 %v9665
        %v9700 = vpop.f32.mrf.mxu0
        %v9701 = vadd.f32 0.0, %v9700
        %9702 = vdwg.mxu0
        %v9703 = vadd.f32 %v9659, %v9701
        %v9704 = vld [vmem:[#allocation4 + $0x6] sm:$0x3]
        %v9706 = vrot.slane %v9704, 1
        %v9708 = vmax.f32 %v9704, %v9706
        %s9709 = scalar_lea.vmem %s7, 384
        %v9710 = vld [vmem:[%s9709] sm:$0xff]
        %v9711 = vld [vmem:[%s9709 + $0x8] sm:$0xff]
        %v9712 = vld [vmem:[%s9709 + $0x10] sm:$0xff]
        %v9713 = vld [vmem:[%s9709 + $0x18] sm:$0xff]
        %v9714 = vld [vmem:[%s9709 + $0x20] sm:$0xff]
        %v9715 = vld [vmem:[%s9709 + $0x28] sm:$0xff]
        %v9716 = vld [vmem:[%s9709 + $0x30] sm:$0xff]
        %v9717 = vld [vmem:[%s9709 + $0x38] sm:$0xff]
        %v9718 = vld [vmem:[%s9709 + $0x40] sm:$0xff]
        %v9719 = vld [vmem:[%s9709 + $0x48] sm:$0xff]
        %v9720 = vld [vmem:[%s9709 + $0x50] sm:$0xff]
        %v9721 = vld [vmem:[%s9709 + $0x58] sm:$0xff]
        %v9722 = vld [vmem:[%s9709 + $0x60] sm:$0xff]
        %v9723 = vld [vmem:[%s9709 + $0x68] sm:$0xff]
        %v9724 = vld [vmem:[%s9709 + $0x70] sm:$0xff]
        %v9725 = vld [vmem:[%s9709 + $0x78] sm:$0xff]
        %9726 = vmatpush.msra.mxu0 %v9725
        %9727 = vmatpush.msra.mxu0 %v9724
        %9728 = vmatpush.msra.mxu0 %v9723
        %9729 = vmatpush.msra.mxu0 %v9722
        %9730 = vmatpush.msra.mxu0 %v9721
        %9731 = vmatpush.msra.mxu0 %v9720
        %9732 = vmatpush.msra.mxu0 %v9719
        %9733 = vmatpush.msra.mxu0 %v9718
        %9734 = vmatpush.msra.mxu0 %v9717
        %9735 = vmatpush.msra.mxu0 %v9716
        %9736 = vmatpush.msra.mxu0 %v9715
        %9737 = vmatpush.msra.mxu0 %v9714
        %9738 = vmatpush.msra.mxu0 %v9713
        %9739 = vmatpush.msra.mxu0 %v9712
        %9740 = vmatpush.msra.mxu0 %v9711
        %9741 = vmatpush.msra.mxu0 %v9710
        %9742 = vmatmul.f32.gmra.mxu0 %v9708
        %v9743 = vpop.f32.mrf.mxu0
        %v9744 = vadd.f32 0.0, %v9743
        %9745 = vdwg.mxu0
        %v9746 = vadd.f32 %v9703, %v9744
        %s9747 = scalar_lea.vmem [#allocation4], 32
        %v9748 = vld [vmem:[%s9747] sm:$0x3]
        %v9750 = vrot.slane %v9748, 1
        %v9752 = vmax.f32 %v9748, %v9750
        %s9753 = scalar_lea.vmem %s7, 512
        %v9754 = vld [vmem:[%s9753] sm:$0xff]
        %v9755 = vld [vmem:[%s9753 + $0x8] sm:$0xff]
        %v9756 = vld [vmem:[%s9753 + $0x10] sm:$0xff]
        %v9757 = vld [vmem:[%s9753 + $0x18] sm:$0xff]
        %v9758 = vld [vmem:[%s9753 + $0x20] sm:$0xff]
        %v9759 = vld [vmem:[%s9753 + $0x28] sm:$0xff]
        %v9760 = vld [vmem:[%s9753 + $0x30] sm:$0xff]
        %v9761 = vld [vmem:[%s9753 + $0x38] sm:$0xff]
        %v9762 = vld [vmem:[%s9753 + $0x40] sm:$0xff]
        %v9763 = vld [vmem:[%s9753 + $0x48] sm:$0xff]
        %v9764 = vld [vmem:[%s9753 + $0x50] sm:$0xff]
        %v9765 = vld [vmem:[%s9753 + $0x58] sm:$0xff]
        %v9766 = vld [vmem:[%s9753 + $0x60] sm:$0xff]
        %v9767 = vld [vmem:[%s9753 + $0x68] sm:$0xff]
        %v9768 = vld [vmem:[%s9753 + $0x70] sm:$0xff]
        %v9769 = vld [vmem:[%s9753 + $0x78] sm:$0xff]
        %9770 = vmatpush.msra.mxu0 %v9769
        %9771 = vmatpush.msra.mxu0 %v9768
        %9772 = vmatpush.msra.mxu0 %v9767
        %9773 = vmatpush.msra.mxu0 %v9766
        %9774 = vmatpush.msra.mxu0 %v9765
        %9775 = vmatpush.msra.mxu0 %v9764
        %9776 = vmatpush.msra.mxu0 %v9763
        %9777 = vmatpush.msra.mxu0 %v9762
        %9778 = vmatpush.msra.mxu0 %v9761
        %9779 = vmatpush.msra.mxu0 %v9760
        %9780 = vmatpush.msra.mxu0 %v9759
        %9781 = vmatpush.msra.mxu0 %v9758
        %9782 = vmatpush.msra.mxu0 %v9757
        %9783 = vmatpush.msra.mxu0 %v9756
        %9784 = vmatpush.msra.mxu0 %v9755
        %9785 = vmatpush.msra.mxu0 %v9754
        %9786 = vmatmul.f32.gmra.mxu0 %v9752
        %v9787 = vpop.f32.mrf.mxu0
        %v9788 = vadd.f32 0.0, %v9787
        %9789 = vdwg.mxu0
        %v9790 = vadd.f32 %v9746, %v9788
        %v9791 = vld [vmem:[%s9747 + $0x2] sm:$0x3]
        %v9793 = vrot.slane %v9791, 1
        %v9795 = vmax.f32 %v9791, %v9793
        %s9796 = scalar_lea.vmem %s7, 640
        %v9797 = vld [vmem:[%s9796] sm:$0xff]
        %v9798 = vld [vmem:[%s9796 + $0x8] sm:$0xff]
        %v9799 = vld [vmem:[%s9796 + $0x10] sm:$0xff]
        %v9800 = vld [vmem:[%s9796 + $0x18] sm:$0xff]
        %v9801 = vld [vmem:[%s9796 + $0x20] sm:$0xff]
        %v9802 = vld [vmem:[%s9796 + $0x28] sm:$0xff]
        %v9803 = vld [vmem:[%s9796 + $0x30] sm:$0xff]
        %v9804 = vld [vmem:[%s9796 + $0x38] sm:$0xff]
        %v9805 = vld [vmem:[%s9796 + $0x40] sm:$0xff]
        %v9806 = vld [vmem:[%s9796 + $0x48] sm:$0xff]
        %v9807 = vld [vmem:[%s9796 + $0x50] sm:$0xff]
        %v9808 = vld [vmem:[%s9796 + $0x58] sm:$0xff]
        %v9809 = vld [vmem:[%s9796 + $0x60] sm:$0xff]
        %v9810 = vld [vmem:[%s9796 + $0x68] sm:$0xff]
        %v9811 = vld [vmem:[%s9796 + $0x70] sm:$0xff]
        %v9812 = vld [vmem:[%s9796 + $0x78] sm:$0xff]
        %9813 = vmatpush.msra.mxu0 %v9812
        %9814 = vmatpush.msra.mxu0 %v9811
        %9815 = vmatpush.msra.mxu0 %v9810
        %9816 = vmatpush.msra.mxu0 %v9809
        %9817 = vmatpush.msra.mxu0 %v9808
        %9818 = vmatpush.msra.mxu0 %v9807
        %9819 = vmatpush.msra.mxu0 %v9806
        %9820 = vmatpush.msra.mxu0 %v9805
        %9821 = vmatpush.msra.mxu0 %v9804
        %9822 = vmatpush.msra.mxu0 %v9803
        %9823 = vmatpush.msra.mxu0 %v9802
        %9824 = vmatpush.msra.mxu0 %v9801
        %9825 = vmatpush.msra.mxu0 %v9800
        %9826 = vmatpush.msra.mxu0 %v9799
        %9827 = vmatpush.msra.mxu0 %v9798
        %9828 = vmatpush.msra.mxu0 %v9797
        %9829 = vmatmul.f32.gmra.mxu0 %v9795
        %v9830 = vpop.f32.mrf.mxu0
        %v9831 = vadd.f32 0.0, %v9830
        %9832 = vdwg.mxu0
        %v9833 = vadd.f32 %v9790, %v9831
        %v9834 = vld [vmem:[%s9747 + $0x4] sm:$0x3]
        %v9836 = vrot.slane %v9834, 1
        %v9838 = vmax.f32 %v9834, %v9836
        %s9839 = scalar_lea.vmem %s7, 768
        %v9840 = vld [vmem:[%s9839] sm:$0xff]
        %v9841 = vld [vmem:[%s9839 + $0x8] sm:$0xff]
        %v9842 = vld [vmem:[%s9839 + $0x10] sm:$0xff]
        %v9843 = vld [vmem:[%s9839 + $0x18] sm:$0xff]
        %v9844 = vld [vmem:[%s9839 + $0x20] sm:$0xff]
        %v9845 = vld [vmem:[%s9839 + $0x28] sm:$0xff]
        %v9846 = vld [vmem:[%s9839 + $0x30] sm:$0xff]
        %v9847 = vld [vmem:[%s9839 + $0x38] sm:$0xff]
        %v9848 = vld [vmem:[%s9839 + $0x40] sm:$0xff]
        %v9849 = vld [vmem:[%s9839 + $0x48] sm:$0xff]
        %v9850 = vld [vmem:[%s9839 + $0x50] sm:$0xff]
        %v9851 = vld [vmem:[%s9839 + $0x58] sm:$0xff]
        %v9852 = vld [vmem:[%s9839 + $0x60] sm:$0xff]
        %v9853 = vld [vmem:[%s9839 + $0x68] sm:$0xff]
        %v9854 = vld [vmem:[%s9839 + $0x70] sm:$0xff]
        %v9855 = vld [vmem:[%s9839 + $0x78] sm:$0xff]
        %9856 = vmatpush.msra.mxu0 %v9855
        %9857 = vmatpush.msra.mxu0 %v9854
        %9858 = vmatpush.msra.mxu0 %v9853
        %9859 = vmatpush.msra.mxu0 %v9852
        %9860 = vmatpush.msra.mxu0 %v9851
        %9861 = vmatpush.msra.mxu0 %v9850
        %9862 = vmatpush.msra.mxu0 %v9849
        %9863 = vmatpush.msra.mxu0 %v9848
        %9864 = vmatpush.msra.mxu0 %v9847
        %9865 = vmatpush.msra.mxu0 %v9846
        %9866 = vmatpush.msra.mxu0 %v9845
        %9867 = vmatpush.msra.mxu0 %v9844
        %9868 = vmatpush.msra.mxu0 %v9843
        %9869 = vmatpush.msra.mxu0 %v9842
        %9870 = vmatpush.msra.mxu0 %v9841
        %9871 = vmatpush.msra.mxu0 %v9840
        %9872 = vmatmul.f32.gmra.mxu0 %v9838
        %v9873 = vpop.f32.mrf.mxu0
        %v9874 = vadd.f32 0.0, %v9873
        %9875 = vdwg.mxu0
        %v9876 = vadd.f32 %v9833, %v9874
        %v9877 = vld [vmem:[%s9747 + $0x6] sm:$0x3]
        %v9879 = vrot.slane %v9877, 1
        %v9881 = vmax.f32 %v9877, %v9879
        %s9882 = scalar_lea.vmem %s7, 896
        %v9883 = vld [vmem:[%s9882] sm:$0xff]
        %v9884 = vld [vmem:[%s9882 + $0x8] sm:$0xff]
        %v9885 = vld [vmem:[%s9882 + $0x10] sm:$0xff]
        %v9886 = vld [vmem:[%s9882 + $0x18] sm:$0xff]
        %v9887 = vld [vmem:[%s9882 + $0x20] sm:$0xff]
        %v9888 = vld [vmem:[%s9882 + $0x28] sm:$0xff]
        %v9889 = vld [vmem:[%s9882 + $0x30] sm:$0xff]
        %v9890 = vld [vmem:[%s9882 + $0x38] sm:$0xff]
        %v9891 = vld [vmem:[%s9882 + $0x40] sm:$0xff]
        %v9892 = vld [vmem:[%s9882 + $0x48] sm:$0xff]
        %v9893 = vld [vmem:[%s9882 + $0x50] sm:$0xff]
        %v9894 = vld [vmem:[%s9882 + $0x58] sm:$0xff]
        %v9895 = vld [vmem:[%s9882 + $0x60] sm:$0xff]
        %v9896 = vld [vmem:[%s9882 + $0x68] sm:$0xff]
        %v9897 = vld [vmem:[%s9882 + $0x70] sm:$0xff]
        %v9898 = vld [vmem:[%s9882 + $0x78] sm:$0xff]
        %9899 = vmatpush.msra.mxu0 %v9898
        %9900 = vmatpush.msra.mxu0 %v9897
        %9901 = vmatpush.msra.mxu0 %v9896
        %9902 = vmatpush.msra.mxu0 %v9895
        %9903 = vmatpush.msra.mxu0 %v9894
        %9904 = vmatpush.msra.mxu0 %v9893
        %9905 = vmatpush.msra.mxu0 %v9892
        %9906 = vmatpush.msra.mxu0 %v9891
        %9907 = vmatpush.msra.mxu0 %v9890
        %9908 = vmatpush.msra.mxu0 %v9889
        %9909 = vmatpush.msra.mxu0 %v9888
        %9910 = vmatpush.msra.mxu0 %v9887
        %9911 = vmatpush.msra.mxu0 %v9886
        %9912 = vmatpush.msra.mxu0 %v9885
        %9913 = vmatpush.msra.mxu0 %v9884
        %9914 = vmatpush.msra.mxu0 %v9883
        %9915 = vmatmul.f32.gmra.mxu0 %v9881
        %v9916 = vpop.f32.mrf.mxu0
        %v9917 = vadd.f32 0.0, %v9916
        %9918 = vdwg.mxu0
        %v9919 = vadd.f32 %v9876, %v9917
        %s9920 = scalar_lea.vmem [#allocation4], 64
        %v9921 = vld [vmem:[%s9920] sm:$0x3]
        %v9923 = vrot.slane %v9921, 1
        %v9925 = vmax.f32 %v9921, %v9923
        %s9926 = scalar_lea.vmem %s7, 1024
        %v9927 = vld [vmem:[%s9926] sm:$0xff]
        %v9928 = vld [vmem:[%s9926 + $0x8] sm:$0xff]
        %v9929 = vld [vmem:[%s9926 + $0x10] sm:$0xff]
        %v9930 = vld [vmem:[%s9926 + $0x18] sm:$0xff]
        %v9931 = vld [vmem:[%s9926 + $0x20] sm:$0xff]
        %v9932 = vld [vmem:[%s9926 + $0x28] sm:$0xff]
        %v9933 = vld [vmem:[%s9926 + $0x30] sm:$0xff]
        %v9934 = vld [vmem:[%s9926 + $0x38] sm:$0xff]
        %v9935 = vld [vmem:[%s9926 + $0x40] sm:$0xff]
        %v9936 = vld [vmem:[%s9926 + $0x48] sm:$0xff]
        %v9937 = vld [vmem:[%s9926 + $0x50] sm:$0xff]
        %v9938 = vld [vmem:[%s9926 + $0x58] sm:$0xff]
        %v9939 = vld [vmem:[%s9926 + $0x60] sm:$0xff]
        %v9940 = vld [vmem:[%s9926 + $0x68] sm:$0xff]
        %v9941 = vld [vmem:[%s9926 + $0x70] sm:$0xff]
        %v9942 = vld [vmem:[%s9926 + $0x78] sm:$0xff]
        %9943 = vmatpush.msra.mxu0 %v9942
        %9944 = vmatpush.msra.mxu0 %v9941
        %9945 = vmatpush.msra.mxu0 %v9940
        %9946 = vmatpush.msra.mxu0 %v9939
        %9947 = vmatpush.msra.mxu0 %v9938
        %9948 = vmatpush.msra.mxu0 %v9937
        %9949 = vmatpush.msra.mxu0 %v9936
        %9950 = vmatpush.msra.mxu0 %v9935
        %9951 = vmatpush.msra.mxu0 %v9934
        %9952 = vmatpush.msra.mxu0 %v9933
        %9953 = vmatpush.msra.mxu0 %v9932
        %9954 = vmatpush.msra.mxu0 %v9931
        %9955 = vmatpush.msra.mxu0 %v9930
        %9956 = vmatpush.msra.mxu0 %v9929
        %9957 = vmatpush.msra.mxu0 %v9928
        %9958 = vmatpush.msra.mxu0 %v9927
        %9959 = vmatmul.f32.gmra.mxu0 %v9925
        %v9960 = vpop.f32.mrf.mxu0
        %v9961 = vadd.f32 0.0, %v9960
        %9962 = vdwg.mxu0
        %v9963 = vadd.f32 %v9919, %v9961
        %v9964 = vld [vmem:[%s9920 + $0x2] sm:$0x3]
        %v9966 = vrot.slane %v9964, 1
        %v9968 = vmax.f32 %v9964, %v9966
        %s9969 = scalar_lea.vmem %s7, 1152
        %v9970 = vld [vmem:[%s9969] sm:$0xff]
        %v9971 = vld [vmem:[%s9969 + $0x8] sm:$0xff]
        %v9972 = vld [vmem:[%s9969 + $0x10] sm:$0xff]
        %v9973 = vld [vmem:[%s9969 + $0x18] sm:$0xff]
        %v9974 = vld [vmem:[%s9969 + $0x20] sm:$0xff]
        %v9975 = vld [vmem:[%s9969 + $0x28] sm:$0xff]
        %v9976 = vld [vmem:[%s9969 + $0x30] sm:$0xff]
        %v9977 = vld [vmem:[%s9969 + $0x38] sm:$0xff]
        %v9978 = vld [vmem:[%s9969 + $0x40] sm:$0xff]
        %v9979 = vld [vmem:[%s9969 + $0x48] sm:$0xff]
        %v9980 = vld [vmem:[%s9969 + $0x50] sm:$0xff]
        %v9981 = vld [vmem:[%s9969 + $0x58] sm:$0xff]
        %v9982 = vld [vmem:[%s9969 + $0x60] sm:$0xff]
        %v9983 = vld [vmem:[%s9969 + $0x68] sm:$0xff]
        %v9984 = vld [vmem:[%s9969 + $0x70] sm:$0xff]
        %v9985 = vld [vmem:[%s9969 + $0x78] sm:$0xff]
        %9986 = vmatpush.msra.mxu0 %v9985
        %9987 = vmatpush.msra.mxu0 %v9984
        %9988 = vmatpush.msra.mxu0 %v9983
        %9989 = vmatpush.msra.mxu0 %v9982
        %9990 = vmatpush.msra.mxu0 %v9981
        %9991 = vmatpush.msra.mxu0 %v9980
        %9992 = vmatpush.msra.mxu0 %v9979
        %9993 = vmatpush.msra.mxu0 %v9978
        %9994 = vmatpush.msra.mxu0 %v9977
        %9995 = vmatpush.msra.mxu0 %v9976
        %9996 = vmatpush.msra.mxu0 %v9975
        %9997 = vmatpush.msra.mxu0 %v9974
        %9998 = vmatpush.msra.mxu0 %v9973
        %9999 = vmatpush.msra.mxu0 %v9972
        %10000 = vmatpush.msra.mxu0 %v9971
        %10001 = vmatpush.msra.mxu0 %v9970
        %10002 = vmatmul.f32.gmra.mxu0 %v9968
        %v10003 = vpop.f32.mrf.mxu0
        %v10004 = vadd.f32 0.0, %v10003
        %10005 = vdwg.mxu0
        %v10006 = vadd.f32 %v9963, %v10004
        %v10007 = vld [vmem:[%s9920 + $0x4] sm:$0x3]
        %v10009 = vrot.slane %v10007, 1
        %v10011 = vmax.f32 %v10007, %v10009
        %s10012 = scalar_lea.vmem %s7, 1280
        %v10013 = vld [vmem:[%s10012] sm:$0xff]
        %v10014 = vld [vmem:[%s10012 + $0x8] sm:$0xff]
        %v10015 = vld [vmem:[%s10012 + $0x10] sm:$0xff]
        %v10016 = vld [vmem:[%s10012 + $0x18] sm:$0xff]
        %v10017 = vld [vmem:[%s10012 + $0x20] sm:$0xff]
        %v10018 = vld [vmem:[%s10012 + $0x28] sm:$0xff]
        %v10019 = vld [vmem:[%s10012 + $0x30] sm:$0xff]
        %v10020 = vld [vmem:[%s10012 + $0x38] sm:$0xff]
        %v10021 = vld [vmem:[%s10012 + $0x40] sm:$0xff]
        %v10022 = vld [vmem:[%s10012 + $0x48] sm:$0xff]
        %v10023 = vld [vmem:[%s10012 + $0x50] sm:$0xff]
        %v10024 = vld [vmem:[%s10012 + $0x58] sm:$0xff]
        %v10025 = vld [vmem:[%s10012 + $0x60] sm:$0xff]
        %v10026 = vld [vmem:[%s10012 + $0x68] sm:$0xff]
        %v10027 = vld [vmem:[%s10012 + $0x70] sm:$0xff]
        %v10028 = vld [vmem:[%s10012 + $0x78] sm:$0xff]
        %10029 = vmatpush.msra.mxu0 %v10028
        %10030 = vmatpush.msra.mxu0 %v10027
        %10031 = vmatpush.msra.mxu0 %v10026
        %10032 = vmatpush.msra.mxu0 %v10025
        %10033 = vmatpush.msra.mxu0 %v10024
        %10034 = vmatpush.msra.mxu0 %v10023
        %10035 = vmatpush.msra.mxu0 %v10022
        %10036 = vmatpush.msra.mxu0 %v10021
        %10037 = vmatpush.msra.mxu0 %v10020
        %10038 = vmatpush.msra.mxu0 %v10019
        %10039 = vmatpush.msra.mxu0 %v10018
        %10040 = vmatpush.msra.mxu0 %v10017
        %10041 = vmatpush.msra.mxu0 %v10016
        %10042 = vmatpush.msra.mxu0 %v10015
        %10043 = vmatpush.msra.mxu0 %v10014
        %10044 = vmatpush.msra.mxu0 %v10013
        %10045 = vmatmul.f32.gmra.mxu0 %v10011
        %v10046 = vpop.f32.mrf.mxu0
        %v10047 = vadd.f32 0.0, %v10046
        %10048 = vdwg.mxu0
        %v10049 = vadd.f32 %v10006, %v10047
        %v10050 = vld [vmem:[%s9920 + $0x6] sm:$0x3]
        %v10052 = vrot.slane %v10050, 1
        %v10054 = vmax.f32 %v10050, %v10052
        %s10055 = scalar_lea.vmem %s7, 1408
        %v10056 = vld [vmem:[%s10055] sm:$0xff]
        %v10057 = vld [vmem:[%s10055 + $0x8] sm:$0xff]
        %v10058 = vld [vmem:[%s10055 + $0x10] sm:$0xff]
        %v10059 = vld [vmem:[%s10055 + $0x18] sm:$0xff]
        %v10060 = vld [vmem:[%s10055 + $0x20] sm:$0xff]
        %v10061 = vld [vmem:[%s10055 + $0x28] sm:$0xff]
        %v10062 = vld [vmem:[%s10055 + $0x30] sm:$0xff]
        %v10063 = vld [vmem:[%s10055 + $0x38] sm:$0xff]
        %v10064 = vld [vmem:[%s10055 + $0x40] sm:$0xff]
        %v10065 = vld [vmem:[%s10055 + $0x48] sm:$0xff]
        %v10066 = vld [vmem:[%s10055 + $0x50] sm:$0xff]
        %v10067 = vld [vmem:[%s10055 + $0x58] sm:$0xff]
        %v10068 = vld [vmem:[%s10055 + $0x60] sm:$0xff]
        %v10069 = vld [vmem:[%s10055 + $0x68] sm:$0xff]
        %v10070 = vld [vmem:[%s10055 + $0x70] sm:$0xff]
        %v10071 = vld [vmem:[%s10055 + $0x78] sm:$0xff]
        %10072 = vmatpush.msra.mxu0 %v10071
        %10073 = vmatpush.msra.mxu0 %v10070
        %10074 = vmatpush.msra.mxu0 %v10069
        %10075 = vmatpush.msra.mxu0 %v10068
        %10076 = vmatpush.msra.mxu0 %v10067
        %10077 = vmatpush.msra.mxu0 %v10066
        %10078 = vmatpush.msra.mxu0 %v10065
        %10079 = vmatpush.msra.mxu0 %v10064
        %10080 = vmatpush.msra.mxu0 %v10063
        %10081 = vmatpush.msra.mxu0 %v10062
        %10082 = vmatpush.msra.mxu0 %v10061
        %10083 = vmatpush.msra.mxu0 %v10060
        %10084 = vmatpush.msra.mxu0 %v10059
        %10085 = vmatpush.msra.mxu0 %v10058
        %10086 = vmatpush.msra.mxu0 %v10057
        %10087 = vmatpush.msra.mxu0 %v10056
        %10088 = vmatmul.f32.gmra.mxu0 %v10054
        %v10089 = vpop.f32.mrf.mxu0
        %v10090 = vadd.f32 0.0, %v10089
        %10091 = vdwg.mxu0
        %v10092 = vadd.f32 %v10049, %v10090
        %s10093 = scalar_lea.vmem [#allocation4], 96
        %v10094 = vld [vmem:[%s10093] sm:$0x3]
        %v10096 = vrot.slane %v10094, 1
        %v10098 = vmax.f32 %v10094, %v10096
        %s10099 = scalar_lea.vmem %s7, 1536
        %v10100 = vld [vmem:[%s10099] sm:$0xff]
        %v10101 = vld [vmem:[%s10099 + $0x8] sm:$0xff]
        %v10102 = vld [vmem:[%s10099 + $0x10] sm:$0xff]
        %v10103 = vld [vmem:[%s10099 + $0x18] sm:$0xff]
        %v10104 = vld [vmem:[%s10099 + $0x20] sm:$0xff]
        %v10105 = vld [vmem:[%s10099 + $0x28] sm:$0xff]
        %v10106 = vld [vmem:[%s10099 + $0x30] sm:$0xff]
        %v10107 = vld [vmem:[%s10099 + $0x38] sm:$0xff]
        %v10108 = vld [vmem:[%s10099 + $0x40] sm:$0xff]
        %v10109 = vld [vmem:[%s10099 + $0x48] sm:$0xff]
        %v10110 = vld [vmem:[%s10099 + $0x50] sm:$0xff]
        %v10111 = vld [vmem:[%s10099 + $0x58] sm:$0xff]
        %v10112 = vld [vmem:[%s10099 + $0x60] sm:$0xff]
        %v10113 = vld [vmem:[%s10099 + $0x68] sm:$0xff]
        %v10114 = vld [vmem:[%s10099 + $0x70] sm:$0xff]
        %v10115 = vld [vmem:[%s10099 + $0x78] sm:$0xff]
        %10116 = vmatpush.msra.mxu0 %v10115
        %10117 = vmatpush.msra.mxu0 %v10114
        %10118 = vmatpush.msra.mxu0 %v10113
        %10119 = vmatpush.msra.mxu0 %v10112
        %10120 = vmatpush.msra.mxu0 %v10111
        %10121 = vmatpush.msra.mxu0 %v10110
        %10122 = vmatpush.msra.mxu0 %v10109
        %10123 = vmatpush.msra.mxu0 %v10108
        %10124 = vmatpush.msra.mxu0 %v10107
        %10125 = vmatpush.msra.mxu0 %v10106
        %10126 = vmatpush.msra.mxu0 %v10105
        %10127 = vmatpush.msra.mxu0 %v10104
        %10128 = vmatpush.msra.mxu0 %v10103
        %10129 = vmatpush.msra.mxu0 %v10102
        %10130 = vmatpush.msra.mxu0 %v10101
        %10131 = vmatpush.msra.mxu0 %v10100
        %10132 = vmatmul.f32.gmra.mxu0 %v10098
        %v10133 = vpop.f32.mrf.mxu0
        %v10134 = vadd.f32 0.0, %v10133
        %10135 = vdwg.mxu0
        %v10136 = vadd.f32 %v10092, %v10134
        %v10137 = vld [vmem:[%s10093 + $0x2] sm:$0x3]
        %v10139 = vrot.slane %v10137, 1
        %v10141 = vmax.f32 %v10137, %v10139
        %s10142 = scalar_lea.vmem %s7, 1664
        %v10143 = vld [vmem:[%s10142] sm:$0xff]
        %v10144 = vld [vmem:[%s10142 + $0x8] sm:$0xff]
        %v10145 = vld [vmem:[%s10142 + $0x10] sm:$0xff]
        %v10146 = vld [vmem:[%s10142 + $0x18] sm:$0xff]
        %v10147 = vld [vmem:[%s10142 + $0x20] sm:$0xff]
        %v10148 = vld [vmem:[%s10142 + $0x28] sm:$0xff]
        %v10149 = vld [vmem:[%s10142 + $0x30] sm:$0xff]
        %v10150 = vld [vmem:[%s10142 + $0x38] sm:$0xff]
        %v10151 = vld [vmem:[%s10142 + $0x40] sm:$0xff]
        %v10152 = vld [vmem:[%s10142 + $0x48] sm:$0xff]
        %v10153 = vld [vmem:[%s10142 + $0x50] sm:$0xff]
        %v10154 = vld [vmem:[%s10142 + $0x58] sm:$0xff]
        %v10155 = vld [vmem:[%s10142 + $0x60] sm:$0xff]
        %v10156 = vld [vmem:[%s10142 + $0x68] sm:$0xff]
        %v10157 = vld [vmem:[%s10142 + $0x70] sm:$0xff]
        %v10158 = vld [vmem:[%s10142 + $0x78] sm:$0xff]
        %10159 = vmatpush.msra.mxu0 %v10158
        %10160 = vmatpush.msra.mxu0 %v10157
        %10161 = vmatpush.msra.mxu0 %v10156
        %10162 = vmatpush.msra.mxu0 %v10155
        %10163 = vmatpush.msra.mxu0 %v10154
        %10164 = vmatpush.msra.mxu0 %v10153
        %10165 = vmatpush.msra.mxu0 %v10152
        %10166 = vmatpush.msra.mxu0 %v10151
        %10167 = vmatpush.msra.mxu0 %v10150
        %10168 = vmatpush.msra.mxu0 %v10149
        %10169 = vmatpush.msra.mxu0 %v10148
        %10170 = vmatpush.msra.mxu0 %v10147
        %10171 = vmatpush.msra.mxu0 %v10146
        %10172 = vmatpush.msra.mxu0 %v10145
        %10173 = vmatpush.msra.mxu0 %v10144
        %10174 = vmatpush.msra.mxu0 %v10143
        %10175 = vmatmul.f32.gmra.mxu0 %v10141
        %v10176 = vpop.f32.mrf.mxu0
        %v10177 = vadd.f32 0.0, %v10176
        %10178 = vdwg.mxu0
        %v10179 = vadd.f32 %v10136, %v10177
        %v10180 = vld [vmem:[%s10093 + $0x4] sm:$0x3]
        %v10182 = vrot.slane %v10180, 1
        %v10184 = vmax.f32 %v10180, %v10182
        %s10185 = scalar_lea.vmem %s7, 1792
        %v10186 = vld [vmem:[%s10185] sm:$0xff]
        %v10187 = vld [vmem:[%s10185 + $0x8] sm:$0xff]
        %v10188 = vld [vmem:[%s10185 + $0x10] sm:$0xff]
        %v10189 = vld [vmem:[%s10185 + $0x18] sm:$0xff]
        %v10190 = vld [vmem:[%s10185 + $0x20] sm:$0xff]
        %v10191 = vld [vmem:[%s10185 + $0x28] sm:$0xff]
        %v10192 = vld [vmem:[%s10185 + $0x30] sm:$0xff]
        %v10193 = vld [vmem:[%s10185 + $0x38] sm:$0xff]
        %v10194 = vld [vmem:[%s10185 + $0x40] sm:$0xff]
        %v10195 = vld [vmem:[%s10185 + $0x48] sm:$0xff]
        %v10196 = vld [vmem:[%s10185 + $0x50] sm:$0xff]
        %v10197 = vld [vmem:[%s10185 + $0x58] sm:$0xff]
        %v10198 = vld [vmem:[%s10185 + $0x60] sm:$0xff]
        %v10199 = vld [vmem:[%s10185 + $0x68] sm:$0xff]
        %v10200 = vld [vmem:[%s10185 + $0x70] sm:$0xff]
        %v10201 = vld [vmem:[%s10185 + $0x78] sm:$0xff]
        %10202 = vmatpush.msra.mxu0 %v10201
        %10203 = vmatpush.msra.mxu0 %v10200
        %10204 = vmatpush.msra.mxu0 %v10199
        %10205 = vmatpush.msra.mxu0 %v10198
        %10206 = vmatpush.msra.mxu0 %v10197
        %10207 = vmatpush.msra.mxu0 %v10196
        %10208 = vmatpush.msra.mxu0 %v10195
        %10209 = vmatpush.msra.mxu0 %v10194
        %10210 = vmatpush.msra.mxu0 %v10193
        %10211 = vmatpush.msra.mxu0 %v10192
        %10212 = vmatpush.msra.mxu0 %v10191
        %10213 = vmatpush.msra.mxu0 %v10190
        %10214 = vmatpush.msra.mxu0 %v10189
        %10215 = vmatpush.msra.mxu0 %v10188
        %10216 = vmatpush.msra.mxu0 %v10187
        %10217 = vmatpush.msra.mxu0 %v10186
        %10218 = vmatmul.f32.gmra.mxu0 %v10184
        %v10219 = vpop.f32.mrf.mxu0
        %v10220 = vadd.f32 0.0, %v10219
        %10221 = vdwg.mxu0
        %v10222 = vadd.f32 %v10179, %v10220
        %v10223 = vld [vmem:[%s10093 + $0x6] sm:$0x3]
        %v10225 = vrot.slane %v10223, 1
        %v10227 = vmax.f32 %v10223, %v10225
        %s10228 = scalar_lea.vmem %s7, 1920
        %v10229 = vld [vmem:[%s10228] sm:$0xff]
        %v10230 = vld [vmem:[%s10228 + $0x8] sm:$0xff]
        %v10231 = vld [vmem:[%s10228 + $0x10] sm:$0xff]
        %v10232 = vld [vmem:[%s10228 + $0x18] sm:$0xff]
        %v10233 = vld [vmem:[%s10228 + $0x20] sm:$0xff]
        %v10234 = vld [vmem:[%s10228 + $0x28] sm:$0xff]
        %v10235 = vld [vmem:[%s10228 + $0x30] sm:$0xff]
        %v10236 = vld [vmem:[%s10228 + $0x38] sm:$0xff]
        %v10237 = vld [vmem:[%s10228 + $0x40] sm:$0xff]
        %v10238 = vld [vmem:[%s10228 + $0x48] sm:$0xff]
        %v10239 = vld [vmem:[%s10228 + $0x50] sm:$0xff]
        %v10240 = vld [vmem:[%s10228 + $0x58] sm:$0xff]
        %v10241 = vld [vmem:[%s10228 + $0x60] sm:$0xff]
        %v10242 = vld [vmem:[%s10228 + $0x68] sm:$0xff]
        %v10243 = vld [vmem:[%s10228 + $0x70] sm:$0xff]
        %v10244 = vld [vmem:[%s10228 + $0x78] sm:$0xff]
        %10245 = vmatpush.msra.mxu0 %v10244
        %10246 = vmatpush.msra.mxu0 %v10243
        %10247 = vmatpush.msra.mxu0 %v10242
        %10248 = vmatpush.msra.mxu0 %v10241
        %10249 = vmatpush.msra.mxu0 %v10240
        %10250 = vmatpush.msra.mxu0 %v10239
        %10251 = vmatpush.msra.mxu0 %v10238
        %10252 = vmatpush.msra.mxu0 %v10237
        %10253 = vmatpush.msra.mxu0 %v10236
        %10254 = vmatpush.msra.mxu0 %v10235
        %10255 = vmatpush.msra.mxu0 %v10234
        %10256 = vmatpush.msra.mxu0 %v10233
        %10257 = vmatpush.msra.mxu0 %v10232
        %10258 = vmatpush.msra.mxu0 %v10231
        %10259 = vmatpush.msra.mxu0 %v10230
        %10260 = vmatpush.msra.mxu0 %v10229
        %10261 = vmatmul.f32.gmra.mxu0 %v10227
        %v10262 = vpop.f32.mrf.mxu0
        %v10263 = vadd.f32 0.0, %v10262
        %10264 = vdwg.mxu0
        %v10265 = vadd.f32 %v10222, %v10263
        %v10266 = vld [vmem:[%s8] sm:$0x1]
        %v10267 = vadd.f32 %v10265, %v10266
        %v10268 = vmax.f32 %v10267, 0.0
        %v10269 = vld [vmem:[%s9] sm:$0xff]
        %v10270 = vld [vmem:[%s9 + $0x8] sm:$0xff]
        %v10271 = vld [vmem:[%s9 + $0x10] sm:$0xff]
        %v10272 = vld [vmem:[%s9 + $0x18] sm:$0xff]
        %v10273 = vld [vmem:[%s9 + $0x20] sm:$0xff]
        %v10274 = vld [vmem:[%s9 + $0x28] sm:$0xff]
        %v10275 = vld [vmem:[%s9 + $0x30] sm:$0xff]
        %v10276 = vld [vmem:[%s9 + $0x38] sm:$0xff]
        %v10277 = vld [vmem:[%s9 + $0x40] sm:$0xff]
        %v10278 = vld [vmem:[%s9 + $0x48] sm:$0xff]
        %v10279 = vld [vmem:[%s9 + $0x50] sm:$0xff]
        %v10280 = vld [vmem:[%s9 + $0x58] sm:$0xff]
        %v10281 = vld [vmem:[%s9 + $0x60] sm:$0xff]
        %v10282 = vld [vmem:[%s9 + $0x68] sm:$0xff]
        %v10283 = vld [vmem:[%s9 + $0x70] sm:$0xff]
        %v10284 = vld [vmem:[%s9 + $0x78] sm:$0xff]
        %v10285 = vld [vmem:[%s10] sm:$0x1]
        %10286 = vmatpush.msra.mxu0 %v10284
        %10287 = vmatpush.msra.mxu0 %v10283
        %10288 = vmatpush.msra.mxu0 %v10282
        %10289 = vmatpush.msra.mxu0 %v10281
        %10290 = vmatpush.msra.mxu0 %v10280
        %10291 = vmatpush.msra.mxu0 %v10279
        %10292 = vmatpush.msra.mxu0 %v10278
        %10293 = vmatpush.msra.mxu0 %v10277
        %10294 = vmatpush.msra.mxu0 %v10276
        %10295 = vmatpush.msra.mxu0 %v10275
        %10296 = vmatpush.msra.mxu0 %v10274
        %10297 = vmatpush.msra.mxu0 %v10273
        %10298 = vmatpush.msra.mxu0 %v10272
        %10299 = vmatpush.msra.mxu0 %v10271
        %10300 = vmatpush.msra.mxu0 %v10270
        %10301 = vmatpush.msra.mxu0 %v10269
        %10302 = vmatmul.f32.gmra.mxu0 %v10268
        %v10303 = vpop.f32.mrf.mxu0
        %v10304 = vadd.f32 %v10285, %v10303
        %10305 = vdwg.mxu0
        %v10306 = vmax.f32 %v10304, 0.0
        %v10307 = vld [vmem:[%s11] sm:$0xff]
        %v10308 = vld [vmem:[%s11 + $0x8] sm:$0xff]
        %v10309 = vld [vmem:[%s11 + $0x10] sm:$0xff]
        %v10310 = vld [vmem:[%s11 + $0x18] sm:$0xff]
        %v10311 = vld [vmem:[%s11 + $0x20] sm:$0xff]
        %v10312 = vld [vmem:[%s11 + $0x28] sm:$0xff]
        %v10313 = vld [vmem:[%s11 + $0x30] sm:$0xff]
        %v10314 = vld [vmem:[%s11 + $0x38] sm:$0xff]
        %v10315 = vld [vmem:[%s11 + $0x40] sm:$0xff]
        %v10316 = vld [vmem:[%s11 + $0x48] sm:$0xff]
        %v10317 = vld [vmem:[%s11 + $0x50] sm:$0xff]
        %v10318 = vld [vmem:[%s11 + $0x58] sm:$0xff]
        %v10319 = vld [vmem:[%s11 + $0x60] sm:$0xff]
        %v10320 = vld [vmem:[%s11 + $0x68] sm:$0xff]
        %v10321 = vld [vmem:[%s11 + $0x70] sm:$0xff]
        %v10322 = vld [vmem:[%s11 + $0x78] sm:$0xff]
        %v10323 = vld [vmem:[%s12] sm:$0x1]
        %10324 = vmatpush.msra.mxu0 %v10322
        %10325 = vmatpush.msra.mxu0 %v10321
        %10326 = vmatpush.msra.mxu0 %v10320
        %10327 = vmatpush.msra.mxu0 %v10319
        %10328 = vmatpush.msra.mxu0 %v10318
        %10329 = vmatpush.msra.mxu0 %v10317
        %10330 = vmatpush.msra.mxu0 %v10316
        %10331 = vmatpush.msra.mxu0 %v10315
        %10332 = vmatpush.msra.mxu0 %v10314
        %10333 = vmatpush.msra.mxu0 %v10313
        %10334 = vmatpush.msra.mxu0 %v10312
        %10335 = vmatpush.msra.mxu0 %v10311
        %10336 = vmatpush.msra.mxu0 %v10310
        %10337 = vmatpush.msra.mxu0 %v10309
        %10338 = vmatpush.msra.mxu0 %v10308
        %10339 = vmatpush.msra.mxu0 %v10307
        %10340 = vmatmul.f32.gmra.mxu0 %v10306
        %v10341 = vpop.f32.mrf.mxu0
        %v10342 = vadd.f32 %v10323, %v10341
        %10343 = vdwg.mxu0
        %10344 = vst [vmem:[%s432] sm:$0x1] %v10342
        %s10345 = sand.u32 %s313, 1
        %s10346 = scalar_lea.sflag [#allocation6], %s10345
        %s10347 = sand.u32 %s313, 1
        %s10348 = scalar_lea.vmem [#allocation5], %s10347
        // Predicated region
        $region73: #{cifar_cnn_forward.1} parent=71 // pred_check
          %p10349 = pneg %p323
        $region74: #{cifar_cnn_forward.1} parent=71 // pred_check_branch
          %10351 = sbr.rel (%p10349) target = $region76
        $region75: #{cifar_cnn_forward.1} parent=71 // pred_region
          %10353 = vsyncadd %s10346, 0
          %s10354 = scalar_lea.hbm %s13, %s27
          %s10356 = sshll.u32 %s10348, 4
          %s10357 = int_to_ptr.vmem [resolvable:$true] %s10356
          %s10358 = sshll.u32 %s10354, 4
          %s10359 = int_to_ptr.hbm [resolvable:$true] %s10358
          %10361 = dma.vmem_to_hbm [thread:$0]  %s10357, 16, %s10359, %s10346
        $region76: #{cifar_cnn_forward.1} parent=71 // pred_fallthru
          _
      $region72: #{cifar_cnn_forward.1} parent=5 // pred_fallthru
        _
      %p10362 = scmp.le.s32.totalorder 2, %s22
      // Predicated region
      $region77: #{cifar_cnn_forward.1} parent=5 // pred_check
        %p10363 = pneg %p10362
      $region78: #{cifar_cnn_forward.1} parent=5 // pred_check_branch
        %10365 = sbr.rel (%p10363) target = $region80
      $region79: #{cifar_cnn_forward.1} parent=5 // pred_region
        %s10366 = ssub.s32 %s22, 2
        // Predicated region
        $region81: #{cifar_cnn_forward.1} parent=79 // pred_check
          %p10367 = pneg %p329
        $region82: #{cifar_cnn_forward.1} parent=79 // pred_check_branch
          %10369 = sbr.rel (%p10367) target = $region84
        $region83: #{cifar_cnn_forward.1} parent=79 // pred_region
          %s10370 = sand.u32 %s314, 1
          %s10371 = scalar_lea.sflag [#allocation6], %s10370
          %s10372 = sand.u32 %s314, 1
          %s10373 = scalar_lea.vmem [#allocation5], %s10372
          %10375 = dma.done %s10371, 16
        $region84: #{cifar_cnn_forward.1} parent=79 // pred_fallthru
          _
      $region80: #{cifar_cnn_forward.1} parent=5 // pred_fallthru
        _
    $region6: #{cifar_cnn_forward.1} parent=1 // loop_footer
      %s26 = sadd.s32 1, %s22
    $region7: #{cifar_cnn_forward.1} parent=1 // loop_footer_branch
      %21 = sbr.rel target = $region3
    $region8: #{cifar_cnn_forward.1} parent=1 // loop_exit
      _
    %10376 = vsyncpa [#allocation6], 1
    %s10377 = scalar_lea.sflag [#allocation6], 1
    %10378 = vsyncpa %s10377, 1

</llo_original>
